<compile_context>
chip_gen: v6e
topology: v6e:2x2x1
jax: 0.10.0
libtpu: 0.0.40
codegen_flags: <defaults>
</compile_context>

<pallas_src>
import functools

import jax
import jax.numpy as jnp
from jax.experimental import pallas as pl
from jax.experimental.pallas import tpu as pltpu


def encoder1_kernel(ref_ref, w1_ref, b1_ref, w2_ref, b2_ref, out_ref, *,
                    r_way, r_shot, feat, n_rows, pad_rows):
    # ref_ref : (r_way, r_shot, feat)  f32
    # w1_ref  : (2*feat, H_mid)        bf16
    # b1_ref  : (1, H_mid)             f32
    # w2_ref  : (H_mid, H_out)         bf16
    # b2_ref  : (1, H_out)             f32
    # out_ref : (1, H_out)             f32
    #
    # Fused Task_concate: pair rows [ref[i,j] ++ ref[i,k]] (j < k), class-major,
    # matching torch's r_pair.view(r_way * n_pairs, -1) row order.
    ref = ref_ref[...]                                          # (r_way, r_shot, feat)
    pairs = [(j, k) for j in range(r_shot) for k in range(j + 1, r_shot)]
    left = jnp.concatenate(
        [ref[i, j:j + 1, :] for i in range(r_way) for (j, _) in pairs], axis=0)
    right = jnp.concatenate(
        [ref[i, k:k + 1, :] for i in range(r_way) for (_, k) in pairs], axis=0)
    x = jnp.concatenate([left, right], axis=1)                  # (n_rows, 2*feat)
    if pad_rows > n_rows:                                       # pad to bf16 sublane tile
        x = jnp.concatenate(
            [x, jnp.zeros((pad_rows - n_rows, 2 * feat), x.dtype)], axis=0)
    x = x.astype(w1_ref.dtype)                                  # cast to bf16 once

    # fc1 + LeakyReLU(0.2); dropout1 = identity (inference).
    h = jnp.dot(x, w1_ref[...], preferred_element_type=jnp.float32) + b1_ref[...]
    h = jnp.where(h >= 0, h, 0.2 * h)

    # fc2 + LeakyReLU(0.2); dropout2 = identity (inference).
    y = jnp.dot(h.astype(w2_ref.dtype), w2_ref[...],
                preferred_element_type=jnp.float32) + b2_ref[...]
    y = jnp.where(y >= 0, y, 0.2 * y)

    # Row-mean over the real rows only (pad rows masked to zero, then sum).
    row_ids = jax.lax.broadcasted_iota(jnp.int32, y.shape, 0)
    y = jnp.where(row_ids < n_rows, y, 0.0)
    out_ref[...] = jnp.sum(y, axis=0, keepdims=True) * (1.0 / n_rows)


@jax.jit
def encoder1_forward(reference, w1, b1, w2, b2):
    r_way, r_shot, feat = reference.shape
    n_pairs = r_shot * (r_shot - 1) // 2
    n_rows = r_way * n_pairs
    pad_rows = max(16, ((n_rows + 15) // 16) * 16)   # full bf16 sublane tile
    d_in = 2 * feat
    h_mid = w1.shape[1]
    h_out = w2.shape[1]
    assert w1.shape == (d_in, h_mid) and w2.shape == (h_mid, h_out)
    assert b1.shape == (1, h_mid) and b2.shape == (1, h_out)

    kernel = functools.partial(
        encoder1_kernel, r_way=r_way, r_shot=r_shot, feat=feat,
        n_rows=n_rows, pad_rows=pad_rows)

    # Advisory cost: dominated by streaming the two weight matrices.
    weight_bytes = int(w1.size * w1.dtype.itemsize + w2.size * w2.dtype.itemsize)
    io_bytes = int(reference.size * reference.dtype.itemsize
                   + b1.size * b1.dtype.itemsize + b2.size * b2.dtype.itemsize
                   + h_out * 4)
    flops = int(2 * n_rows * d_in * h_mid + 2 * n_rows * h_mid * h_out)

    vmem = pl.BlockSpec(memory_space=pltpu.MemorySpace.VMEM)
    out = pl.pallas_call(
        kernel,
        out_shape=jax.ShapeDtypeStruct((1, h_out), jnp.float32),
        in_specs=[vmem, vmem, vmem, vmem, vmem],
        out_specs=vmem,
        cost_estimate=pl.CostEstimate(
            flops=flops, transcendentals=0,
            bytes_accessed=weight_bytes + io_bytes),
    )(reference, w1, b1, w2, b2)
    return out[0]                                    # (h_out,)


def task_concate(reference):
    """Plain-JAX Task_concate (used only by the correctness reference)."""
    r_way, r_shot, feat = reference.shape
    pairs = [(j, k) for j in range(r_shot) for k in range(j + 1, r_shot)]
    j_idx = jnp.array([p[0] for p in pairs], dtype=jnp.int32)
    k_idx = jnp.array([p[1] for p in pairs], dtype=jnp.int32)
    left = reference[:, j_idx, :]
    right = reference[:, k_idx, :]
    return jnp.concatenate([left, right], axis=-1)   # (r_way, P, 2*feat)


def reference_forward(reference, w1, b1, w2, b2):
    """Pure-JAX (f32) reference of Encoder1.forward (dropout in eval mode)."""
    r_pair = task_concate(reference)
    r_way, n_pairs, d = r_pair.shape
    x = r_pair.reshape(r_way * n_pairs, d)
    h = x @ w1 + b1
    h = jnp.where(h >= 0, h, 0.2 * h)
    h = h @ w2 + b2
    h = jnp.where(h >= 0, h, 0.2 * h)
    return jnp.mean(h.reshape(r_way, n_pairs, -1), axis=(0, 1))


if __name__ == "__main__":
    key = jax.random.PRNGKey(0)
    k_ref, k_w1, k_b1, k_w2, k_b2 = jax.random.split(key, 5)

    # fc1 has in_features = 1024 = 2*feat  =>  feat = 512
    r_way, r_shot, feat = 2, 4, 512
    hidden = 1024

    reference = jax.random.normal(k_ref, (r_way, r_shot, feat), dtype=jnp.float32)

    # Synthetic parameters.  Kernel expects W of shape (in, out), i.e. the
    # transpose of torch nn.Linear.weight.
    w1 = 0.02 * jax.random.normal(k_w1, (2 * feat, hidden), dtype=jnp.float32)
    b1 = 0.01 * jax.random.normal(k_b1, (1, hidden), dtype=jnp.float32)
    w2 = 0.02 * jax.random.normal(k_w2, (hidden, hidden), dtype=jnp.float32)
    b2 = 0.01 * jax.random.normal(k_b2, (1, hidden), dtype=jnp.float32)

    # Weights stored at rest in bf16: halves HBM weight traffic (the dominant
    # cost); MXU is bf16-native and accumulation stays f32.
    w1_bf = w1.astype(jnp.bfloat16)
    w2_bf = w2.astype(jnp.bfloat16)

    out = encoder1_forward(reference, w1_bf, b1, w2_bf, b2)
    out = jax.block_until_ready(out)

    # f32 reference using the same (bf16-rounded) weights; remaining deltas are
    # the in-kernel bf16 casts of x / h, so tolerance is loosened vs pure f32.
    ref_out = reference_forward(reference,
                                w1_bf.astype(jnp.float32), b1,
                                w2_bf.astype(jnp.float32), b2)

    assert out.shape == (hidden,), out.shape
    assert jnp.allclose(out, ref_out, atol=1e-2, rtol=1e-2), (
        "mismatch vs JAX reference, max abs err = "
        f"{float(jnp.max(jnp.abs(out - ref_out)))}")

    print("KERNEL_OK")
</pallas_src>

<mosaic_0001>
module attributes {stable_mosaic.version = 11 : i64} {
  func.func @encoder1_kernel(%arg0: memref<2x4x512xf32, #tpu.memory_space<vmem>>, %arg1: memref<1024x1024xbf16, #tpu.memory_space<vmem>>, %arg2: memref<1x1024xf32, #tpu.memory_space<vmem>>, %arg3: memref<1024x1024xbf16, #tpu.memory_space<vmem>>, %arg4: memref<1x1024xf32, #tpu.memory_space<vmem>>, %arg5: memref<1x1024xf32, #tpu.memory_space<vmem>>) attributes {dimension_semantics = [], scalar_prefetch = 0 : i64, scratch_operands = 0 : i64, tpu.core_type = #tpu.core_type<tc>} {
    %c0 = arith.constant 0 : index
    %c0_0 = arith.constant 0 : index
    %c0_1 = arith.constant 0 : index
    %0 = vector.load %arg0[%c0, %c0_0, %c0_1] : memref<2x4x512xf32, #tpu.memory_space<vmem>>, vector<2x4x512xf32>
    %1 = vector.extract_strided_slice %0 {offsets = [0, 0, 0], sizes = [1, 1, 512], strides = [1, 1, 1]} : vector<2x4x512xf32> to vector<1x1x512xf32>
    %2 = vector.shape_cast %1 : vector<1x1x512xf32> to vector<1x512xf32>
    %3 = vector.extract_strided_slice %0 {offsets = [0, 0, 0], sizes = [1, 1, 512], strides = [1, 1, 1]} : vector<2x4x512xf32> to vector<1x1x512xf32>
    %4 = vector.shape_cast %3 : vector<1x1x512xf32> to vector<1x512xf32>
    %5 = vector.extract_strided_slice %0 {offsets = [0, 0, 0], sizes = [1, 1, 512], strides = [1, 1, 1]} : vector<2x4x512xf32> to vector<1x1x512xf32>
    %6 = vector.shape_cast %5 : vector<1x1x512xf32> to vector<1x512xf32>
    %7 = vector.extract_strided_slice %0 {offsets = [0, 1, 0], sizes = [1, 1, 512], strides = [1, 1, 1]} : vector<2x4x512xf32> to vector<1x1x512xf32>
    %8 = vector.shape_cast %7 : vector<1x1x512xf32> to vector<1x512xf32>
    %9 = vector.extract_strided_slice %0 {offsets = [0, 1, 0], sizes = [1, 1, 512], strides = [1, 1, 1]} : vector<2x4x512xf32> to vector<1x1x512xf32>
    %10 = vector.shape_cast %9 : vector<1x1x512xf32> to vector<1x512xf32>
    %11 = vector.extract_strided_slice %0 {offsets = [0, 2, 0], sizes = [1, 1, 512], strides = [1, 1, 1]} : vector<2x4x512xf32> to vector<1x1x512xf32>
    %12 = vector.shape_cast %11 : vector<1x1x512xf32> to vector<1x512xf32>
    %13 = vector.extract_strided_slice %0 {offsets = [1, 0, 0], sizes = [1, 1, 512], strides = [1, 1, 1]} : vector<2x4x512xf32> to vector<1x1x512xf32>
    %14 = vector.shape_cast %13 : vector<1x1x512xf32> to vector<1x512xf32>
    %15 = vector.extract_strided_slice %0 {offsets = [1, 0, 0], sizes = [1, 1, 512], strides = [1, 1, 1]} : vector<2x4x512xf32> to vector<1x1x512xf32>
    %16 = vector.shape_cast %15 : vector<1x1x512xf32> to vector<1x512xf32>
    %17 = vector.extract_strided_slice %0 {offsets = [1, 0, 0], sizes = [1, 1, 512], strides = [1, 1, 1]} : vector<2x4x512xf32> to vector<1x1x512xf32>
    %18 = vector.shape_cast %17 : vector<1x1x512xf32> to vector<1x512xf32>
    %19 = vector.extract_strided_slice %0 {offsets = [1, 1, 0], sizes = [1, 1, 512], strides = [1, 1, 1]} : vector<2x4x512xf32> to vector<1x1x512xf32>
    %20 = vector.shape_cast %19 : vector<1x1x512xf32> to vector<1x512xf32>
    %21 = vector.extract_strided_slice %0 {offsets = [1, 1, 0], sizes = [1, 1, 512], strides = [1, 1, 1]} : vector<2x4x512xf32> to vector<1x1x512xf32>
    %22 = vector.shape_cast %21 : vector<1x1x512xf32> to vector<1x512xf32>
    %23 = vector.extract_strided_slice %0 {offsets = [1, 2, 0], sizes = [1, 1, 512], strides = [1, 1, 1]} : vector<2x4x512xf32> to vector<1x1x512xf32>
    %24 = vector.shape_cast %23 : vector<1x1x512xf32> to vector<1x512xf32>
    %25 = tpu.concatenate %2, %4, %6, %8, %10, %12, %14, %16, %18, %20, %22, %24 in 0 : vector<1x512xf32>, vector<1x512xf32>, vector<1x512xf32>, vector<1x512xf32>, vector<1x512xf32>, vector<1x512xf32>, vector<1x512xf32>, vector<1x512xf32>, vector<1x512xf32>, vector<1x512xf32>, vector<1x512xf32>, vector<1x512xf32> -> vector<12x512xf32>
    %26 = vector.extract_strided_slice %0 {offsets = [0, 1, 0], sizes = [1, 1, 512], strides = [1, 1, 1]} : vector<2x4x512xf32> to vector<1x1x512xf32>
    %27 = vector.shape_cast %26 : vector<1x1x512xf32> to vector<1x512xf32>
    %28 = vector.extract_strided_slice %0 {offsets = [0, 2, 0], sizes = [1, 1, 512], strides = [1, 1, 1]} : vector<2x4x512xf32> to vector<1x1x512xf32>
    %29 = vector.shape_cast %28 : vector<1x1x512xf32> to vector<1x512xf32>
    %30 = vector.extract_strided_slice %0 {offsets = [0, 3, 0], sizes = [1, 1, 512], strides = [1, 1, 1]} : vector<2x4x512xf32> to vector<1x1x512xf32>
    %31 = vector.shape_cast %30 : vector<1x1x512xf32> to vector<1x512xf32>
    %32 = vector.extract_strided_slice %0 {offsets = [0, 2, 0], sizes = [1, 1, 512], strides = [1, 1, 1]} : vector<2x4x512xf32> to vector<1x1x512xf32>
    %33 = vector.shape_cast %32 : vector<1x1x512xf32> to vector<1x512xf32>
    %34 = vector.extract_strided_slice %0 {offsets = [0, 3, 0], sizes = [1, 1, 512], strides = [1, 1, 1]} : vector<2x4x512xf32> to vector<1x1x512xf32>
    %35 = vector.shape_cast %34 : vector<1x1x512xf32> to vector<1x512xf32>
    %36 = vector.extract_strided_slice %0 {offsets = [0, 3, 0], sizes = [1, 1, 512], strides = [1, 1, 1]} : vector<2x4x512xf32> to vector<1x1x512xf32>
    %37 = vector.shape_cast %36 : vector<1x1x512xf32> to vector<1x512xf32>
    %38 = vector.extract_strided_slice %0 {offsets = [1, 1, 0], sizes = [1, 1, 512], strides = [1, 1, 1]} : vector<2x4x512xf32> to vector<1x1x512xf32>
    %39 = vector.shape_cast %38 : vector<1x1x512xf32> to vector<1x512xf32>
    %40 = vector.extract_strided_slice %0 {offsets = [1, 2, 0], sizes = [1, 1, 512], strides = [1, 1, 1]} : vector<2x4x512xf32> to vector<1x1x512xf32>
    %41 = vector.shape_cast %40 : vector<1x1x512xf32> to vector<1x512xf32>
    %42 = vector.extract_strided_slice %0 {offsets = [1, 3, 0], sizes = [1, 1, 512], strides = [1, 1, 1]} : vector<2x4x512xf32> to vector<1x1x512xf32>
    %43 = vector.shape_cast %42 : vector<1x1x512xf32> to vector<1x512xf32>
    %44 = vector.extract_strided_slice %0 {offsets = [1, 2, 0], sizes = [1, 1, 512], strides = [1, 1, 1]} : vector<2x4x512xf32> to vector<1x1x512xf32>
    %45 = vector.shape_cast %44 : vector<1x1x512xf32> to vector<1x512xf32>
    %46 = vector.extract_strided_slice %0 {offsets = [1, 3, 0], sizes = [1, 1, 512], strides = [1, 1, 1]} : vector<2x4x512xf32> to vector<1x1x512xf32>
    %47 = vector.shape_cast %46 : vector<1x1x512xf32> to vector<1x512xf32>
    %48 = vector.extract_strided_slice %0 {offsets = [1, 3, 0], sizes = [1, 1, 512], strides = [1, 1, 1]} : vector<2x4x512xf32> to vector<1x1x512xf32>
    %49 = vector.shape_cast %48 : vector<1x1x512xf32> to vector<1x512xf32>
    %50 = tpu.concatenate %27, %29, %31, %33, %35, %37, %39, %41, %43, %45, %47, %49 in 0 : vector<1x512xf32>, vector<1x512xf32>, vector<1x512xf32>, vector<1x512xf32>, vector<1x512xf32>, vector<1x512xf32>, vector<1x512xf32>, vector<1x512xf32>, vector<1x512xf32>, vector<1x512xf32>, vector<1x512xf32>, vector<1x512xf32> -> vector<12x512xf32>
    %51 = tpu.concatenate %25, %50 in 1 : vector<12x512xf32>, vector<12x512xf32> -> vector<12x1024xf32>
    %cst = arith.constant 0.000000e+00 : f32
    %52 = vector.broadcast %cst : f32 to vector<4x1024xf32>
    %53 = tpu.concatenate %51, %52 in 0 : vector<12x1024xf32>, vector<4x1024xf32> -> vector<16x1024xf32>
    %54 = arith.truncf %53 : vector<16x1024xf32> to vector<16x1024xbf16>
    %c0_2 = arith.constant 0 : index
    %c0_3 = arith.constant 0 : index
    %55 = vector.load %arg1[%c0_2, %c0_3] : memref<1024x1024xbf16, #tpu.memory_space<vmem>>, vector<1024x1024xbf16>
    %cst_4 = arith.constant dense<0.000000e+00> : vector<16x1024xf32>
    %56 = tpu.matmul %54, %55, %cst_4 {dimension_numbers = #tpu.dot_dimension_numbers<[1], [0], [0], [1], [0, 0, 1, 1], [], []>} : vector<16x1024xbf16>, vector<1024x1024xbf16>, vector<16x1024xf32> -> vector<16x1024xf32>
    %c0_5 = arith.constant 0 : index
    %c0_6 = arith.constant 0 : index
    %57 = vector.load %arg2[%c0_5, %c0_6] : memref<1x1024xf32, #tpu.memory_space<vmem>>, vector<1x1024xf32>
    %58 = vector.broadcast %57 : vector<1x1024xf32> to vector<16x1024xf32>
    %59 = arith.addf %56, %58 : vector<16x1024xf32>
    %cst_7 = arith.constant 0.000000e+00 : f32
    %60 = vector.broadcast %cst_7 : f32 to vector<16x1024xf32>
    %61 = arith.cmpf oge, %59, %60 : vector<16x1024xf32>
    %cst_8 = arith.constant 2.000000e-01 : f32
    %62 = vector.broadcast %cst_8 : f32 to vector<16x1024xf32>
    %63 = arith.mulf %62, %59 : vector<16x1024xf32>
    %64 = arith.select %61, %59, %63 : vector<16x1024xi1>, vector<16x1024xf32>
    %65 = arith.truncf %64 : vector<16x1024xf32> to vector<16x1024xbf16>
    %c0_9 = arith.constant 0 : index
    %c0_10 = arith.constant 0 : index
    %66 = vector.load %arg3[%c0_9, %c0_10] : memref<1024x1024xbf16, #tpu.memory_space<vmem>>, vector<1024x1024xbf16>
    %cst_11 = arith.constant dense<0.000000e+00> : vector<16x1024xf32>
    %67 = tpu.matmul %65, %66, %cst_11 {dimension_numbers = #tpu.dot_dimension_numbers<[1], [0], [0], [1], [0, 0, 1, 1], [], []>} : vector<16x1024xbf16>, vector<1024x1024xbf16>, vector<16x1024xf32> -> vector<16x1024xf32>
    %c0_12 = arith.constant 0 : index
    %c0_13 = arith.constant 0 : index
    %68 = vector.load %arg4[%c0_12, %c0_13] : memref<1x1024xf32, #tpu.memory_space<vmem>>, vector<1x1024xf32>
    %69 = vector.broadcast %68 : vector<1x1024xf32> to vector<16x1024xf32>
    %70 = arith.addf %67, %69 : vector<16x1024xf32>
    %cst_14 = arith.constant 0.000000e+00 : f32
    %71 = vector.broadcast %cst_14 : f32 to vector<16x1024xf32>
    %72 = arith.cmpf oge, %70, %71 : vector<16x1024xf32>
    %cst_15 = arith.constant 2.000000e-01 : f32
    %73 = vector.broadcast %cst_15 : f32 to vector<16x1024xf32>
    %74 = arith.mulf %73, %70 : vector<16x1024xf32>
    %75 = arith.select %72, %70, %74 : vector<16x1024xi1>, vector<16x1024xf32>
    %76 = tpu.iota {dimensions = array<i32: 0>} : vector<16x1024xi32>
    %c12_i32 = arith.constant 12 : i32
    %77 = vector.broadcast %c12_i32 : i32 to vector<16x1024xi32>
    %78 = arith.cmpi slt, %76, %77 : vector<16x1024xi32>
    %cst_16 = arith.constant 0.000000e+00 : f32
    %79 = vector.broadcast %cst_16 : f32 to vector<16x1024xf32>
    %80 = arith.select %78, %75, %79 : vector<16x1024xi1>, vector<16x1024xf32>
    %cst_17 = arith.constant dense<0.000000e+00> : vector<1024xf32>
    %81 = vector.multi_reduction <add>, %80, %cst_17 [0] : vector<16x1024xf32> to vector<1024xf32>
    %82 = vector.shape_cast %81 : vector<1024xf32> to vector<1x1024xf32>
    %cst_18 = arith.constant 0.0833333358 : f32
    %83 = vector.broadcast %cst_18 : f32 to vector<1x1024xf32>
    %84 = arith.mulf %82, %83 : vector<1x1024xf32>
    %c0_19 = arith.constant 0 : index
    %c0_20 = arith.constant 0 : index
    %85 = vector.load %arg5[%c0_19, %c0_20] : memref<1x1024xf32, #tpu.memory_space<vmem>>, vector<1x1024xf32>
    tpu.vector_store %arg5[%c0_19, %c0_20], %84 {strides = array<i32>} : memref<1x1024xf32, #tpu.memory_space<vmem>>, vector<1x1024xf32>,
    return
  }
}

</mosaic_0001>

<llo_original>
// kernel: encoder1_forward.1
$region0: #{encoder1_forward.1}
  #allocation0 [shape = 'u32[]', space=smem, size = 0x4, offset = 0x4, fixed_abs, tag = 'smem constant byte address 0x4 - core index']
  #allocation1 [shape = 'u32[144,128]{1,0:T(1,128)}', space=vmem, size = 0x12000, scoped, tag = 'internal scratch']
  %s0 = inlined_call_operand.hbm [shape: f32[2,4,512], index: 0, kind: input, shape index: {}]
  %s1 = inlined_call_operand.hbm [shape: bf16[1024,1024], index: 1, kind: input, shape index: {}]
  %s2 = inlined_call_operand.hbm [shape: f32[1,1024], index: 2, kind: input, shape index: {}]
  %s3 = inlined_call_operand.hbm [shape: bf16[1024,1024], index: 3, kind: input, shape index: {}]
  %s4 = inlined_call_operand.hbm [shape: f32[1,1024], index: 4, kind: input, shape index: {}]
  %s5 = inlined_call_operand.hbm [shape: f32[1,1024], index: 5, kind: output, shape index: {}]
  %s6 = sld [smem:[#allocation0]]
  $region50: #{encoder1_forward.1} parent=0
    _
  %s8 = ssub.s32 1, %s6
  %s9 = scalar_select 0, %s8, %s6
  $region1: #{encoder1_forward.1} parent=0
    #allocation2 [shape = 'u8[16384]{0}', space=vmem, size = 0x4000, scoped, tag = 'input window, operand 0, single buffered']
    #allocation3 [shape = 's32[1]{0}', space=sflag, size = 0x4, scoped, tag = 'scoped memory for encoder1_forward.1']
    #allocation4 [shape = 's32[1]{0}', space=sflag, size = 0x4, scoped, tag = 'scoped memory for encoder1_forward.1']
    #allocation5 [shape = 'u8[2097152]{0}', space=vmem, size = 0x200000, scoped, tag = 'input window, operand 1, single buffered']
    #allocation6 [shape = 's32[1]{0}', space=sflag, size = 0x4, scoped, tag = 'scoped memory for encoder1_forward.1']
    #allocation7 [shape = 'u8[4096]{0}', space=vmem, size = 0x1000, scoped, tag = 'input window, operand 2, single buffered']
    #allocation8 [shape = 'u8[2097152]{0}', space=vmem, size = 0x200000, scoped, tag = 'input window, operand 3, single buffered']
    #allocation9 [shape = 's32[1]{0}', space=sflag, size = 0x4, scoped, tag = 'scoped memory for encoder1_forward.1']
    #allocation10 [shape = 'u8[4096]{0}', space=vmem, size = 0x1000, scoped, tag = 'input window, operand 4, single buffered']
    #allocation11 [shape = 'u8[4096]{0}', space=vmem, size = 0x1000, scoped, tag = 'output window, operand 0, single buffered']
    %10 = vsyncpa [#allocation3], 0
    %11 = vsyncpa [#allocation6], 0
    %12 = vsyncpa [#allocation9], 0
    %13 = vsyncpa [#allocation4], 0
    // Predicated region
    $region2: #{encoder1_forward.1} parent=1 // pred_check
      _
    $region3: #{encoder1_forward.1} parent=1 // pred_check_branch
      %15 = sbr.rel (0) target = $region5
    $region4: #{encoder1_forward.1} parent=1 // pred_region
      %s17 = ssub.s32 512, 512
      %18 = vsyncadd [#allocation3], %s17
      %s19 = sshll.u32 [#allocation2], 4
      %s20 = int_to_ptr.vmem [resolvable:$true] %s19
      %25 = dma.hbm_to_vmem [thread:$0]  %s0, 512, %s20, [#allocation3], 256, 256, 16
    $region5: #{encoder1_forward.1} parent=1 // pred_fallthru
      _
    // Predicated region
    $region6: #{encoder1_forward.1} parent=1 // pred_check
      _
    $region7: #{encoder1_forward.1} parent=1 // pred_check_branch
      %27 = sbr.rel (0) target = $region9
    $region8: #{encoder1_forward.1} parent=1 // pred_region
      %s29 = ssub.s32 65536, 65536
      %30 = vsyncadd [#allocation6], %s29
      %s31 = sshll.u32 [#allocation5], 4
      %s32 = int_to_ptr.vmem [resolvable:$true] %s31
      %37 = dma.hbm_to_vmem [thread:$0]  %s1, 65536, %s32, [#allocation6], 512, 512, 32
    $region9: #{encoder1_forward.1} parent=1 // pred_fallthru
      _
    // Predicated region
    $region10: #{encoder1_forward.1} parent=1 // pred_check
      _
    $region11: #{encoder1_forward.1} parent=1 // pred_check_branch
      %39 = sbr.rel (0) target = $region13
    $region12: #{encoder1_forward.1} parent=1 // pred_region
      %s41 = ssub.s32 128, 128
      %42 = vsyncadd [#allocation6], %s41
      %s44 = sshll.u32 [#allocation7], 4
      %s45 = int_to_ptr.vmem [resolvable:$true] %s44
      %47 = dma.hbm_to_vmem [thread:$0]  %s2, 128, %s45, [#allocation6]
    $region13: #{encoder1_forward.1} parent=1 // pred_fallthru
      _
    // Predicated region
    $region14: #{encoder1_forward.1} parent=1 // pred_check
      _
    $region15: #{encoder1_forward.1} parent=1 // pred_check_branch
      %49 = sbr.rel (0) target = $region17
    $region16: #{encoder1_forward.1} parent=1 // pred_region
      %s51 = ssub.s32 65536, 65536
      %52 = vsyncadd [#allocation9], %s51
      %s53 = sshll.u32 [#allocation8], 4
      %s54 = int_to_ptr.vmem [resolvable:$true] %s53
      %59 = dma.hbm_to_vmem [thread:$0]  %s3, 65536, %s54, [#allocation9], 512, 512, 32
    $region17: #{encoder1_forward.1} parent=1 // pred_fallthru
      _
    // Predicated region
    $region18: #{encoder1_forward.1} parent=1 // pred_check
      _
    $region19: #{encoder1_forward.1} parent=1 // pred_check_branch
      %61 = sbr.rel (0) target = $region21
    $region20: #{encoder1_forward.1} parent=1 // pred_region
      %s63 = ssub.s32 128, 128
      %64 = vsyncadd [#allocation9], %s63
      %s66 = sshll.u32 [#allocation10], 4
      %s67 = int_to_ptr.vmem [resolvable:$true] %s66
      %69 = dma.hbm_to_vmem [thread:$0]  %s4, 128, %s67, [#allocation9]
    $region21: #{encoder1_forward.1} parent=1 // pred_fallthru
      _
    // Predicated region
    $region22: #{encoder1_forward.1} parent=1 // pred_check
      _
    $region23: #{encoder1_forward.1} parent=1 // pred_check_branch
      %71 = sbr.rel (0) target = $region25
    $region24: #{encoder1_forward.1} parent=1 // pred_region
      %72 = dma.done [#allocation3], 512
    $region25: #{encoder1_forward.1} parent=1 // pred_fallthru
      _
    // Predicated region
    $region26: #{encoder1_forward.1} parent=1 // pred_check
      _
    $region27: #{encoder1_forward.1} parent=1 // pred_check_branch
      %74 = sbr.rel (0) target = $region29
    $region28: #{encoder1_forward.1} parent=1 // pred_region
      %75 = dma.done [#allocation6], 65536
    $region29: #{encoder1_forward.1} parent=1 // pred_fallthru
      _
    // Predicated region
    $region30: #{encoder1_forward.1} parent=1 // pred_check
      _
    $region31: #{encoder1_forward.1} parent=1 // pred_check_branch
      %77 = sbr.rel (0) target = $region33
    $region32: #{encoder1_forward.1} parent=1 // pred_region
      %78 = dma.done [#allocation6], 128
    $region33: #{encoder1_forward.1} parent=1 // pred_fallthru
      _
    // Predicated region
    $region34: #{encoder1_forward.1} parent=1 // pred_check
      _
    $region35: #{encoder1_forward.1} parent=1 // pred_check_branch
      %80 = sbr.rel (0) target = $region37
    $region36: #{encoder1_forward.1} parent=1 // pred_region
      %81 = dma.done [#allocation9], 65536
    $region37: #{encoder1_forward.1} parent=1 // pred_fallthru
      _
    // Predicated region
    $region38: #{encoder1_forward.1} parent=1 // pred_check
      _
    $region39: #{encoder1_forward.1} parent=1 // pred_check_branch
      %83 = sbr.rel (0) target = $region41
    $region40: #{encoder1_forward.1} parent=1 // pred_region
      %84 = dma.done [#allocation9], 128
    $region41: #{encoder1_forward.1} parent=1 // pred_fallthru
      _
    %v85 = vld [vmem:[#allocation2] sm:$0xff]
    %v86 = vld [vmem:[#allocation2 + $0x8] sm:$0xff]
    %v87 = vld [vmem:[#allocation2 + $0x10] sm:$0xff]
    %v88 = vld [vmem:[#allocation2 + $0x18] sm:$0xff]
    %v91 = vlaneseq
    %v92 = vshrl.u32 %v91, 7
    %v93 = vsub.s32 0, %v92
    %v94 = vrot.slane %v85, %v93
    %v95 = vlaneseq
    %v96 = vshrl.u32 %v95, 7
    %v97 = vsub.s32 4, %v96
    %v98 = vrot.slane %v85, %v97
    %v99 = vlaneseq
    %v100 = vshrl.u32 %v99, 7
    %v101 = vsub.s32 0, %v100
    %v102 = vrot.slane %v86, %v101
    %v103 = vlaneseq
    %v104 = vshrl.u32 %v103, 7
    %v105 = vsub.s32 4, %v104
    %v106 = vrot.slane %v86, %v105
    %v111 = vlaneseq
    %v112 = vshrl.u32 %v111, 7
    %v113 = vsub.s32 1, %v112
    %v114 = vrot.slane %v85, %v113
    %v115 = vlaneseq
    %v116 = vshrl.u32 %v115, 7
    %v117 = vsub.s32 5, %v116
    %v118 = vrot.slane %v85, %v117
    %v119 = vlaneseq
    %v120 = vshrl.u32 %v119, 7
    %v121 = vsub.s32 1, %v120
    %v122 = vrot.slane %v86, %v121
    %v123 = vlaneseq
    %v124 = vshrl.u32 %v123, 7
    %v125 = vsub.s32 5, %v124
    %v126 = vrot.slane %v86, %v125
    %v131 = vlaneseq
    %v132 = vshrl.u32 %v131, 7
    %v133 = vsub.s32 2, %v132
    %v134 = vrot.slane %v85, %v133
    %v135 = vlaneseq
    %v136 = vshrl.u32 %v135, 7
    %v137 = vsub.s32 6, %v136
    %v138 = vrot.slane %v85, %v137
    %v139 = vlaneseq
    %v140 = vshrl.u32 %v139, 7
    %v141 = vsub.s32 2, %v140
    %v142 = vrot.slane %v86, %v141
    %v143 = vlaneseq
    %v144 = vshrl.u32 %v143, 7
    %v145 = vsub.s32 6, %v144
    %v146 = vrot.slane %v86, %v145
    %v153 = vlaneseq
    %v154 = vshrl.u32 %v153, 7
    %v155 = vsub.s32 0, %v154
    %v156 = vrot.slane %v87, %v155
    %v157 = vlaneseq
    %v158 = vshrl.u32 %v157, 7
    %v159 = vsub.s32 4, %v158
    %v160 = vrot.slane %v87, %v159
    %v161 = vlaneseq
    %v162 = vshrl.u32 %v161, 7
    %v163 = vsub.s32 0, %v162
    %v164 = vrot.slane %v88, %v163
    %v165 = vlaneseq
    %v166 = vshrl.u32 %v165, 7
    %v167 = vsub.s32 4, %v166
    %v168 = vrot.slane %v88, %v167
    %v173 = vlaneseq
    %v174 = vshrl.u32 %v173, 7
    %v175 = vsub.s32 1, %v174
    %v176 = vrot.slane %v87, %v175
    %v177 = vlaneseq
    %v178 = vshrl.u32 %v177, 7
    %v179 = vsub.s32 5, %v178
    %v180 = vrot.slane %v87, %v179
    %v181 = vlaneseq
    %v182 = vshrl.u32 %v181, 7
    %v183 = vsub.s32 1, %v182
    %v184 = vrot.slane %v88, %v183
    %v185 = vlaneseq
    %v186 = vshrl.u32 %v185, 7
    %v187 = vsub.s32 5, %v186
    %v188 = vrot.slane %v88, %v187
    %v193 = vlaneseq
    %v194 = vshrl.u32 %v193, 7
    %v195 = vsub.s32 2, %v194
    %v196 = vrot.slane %v87, %v195
    %v197 = vlaneseq
    %v198 = vshrl.u32 %v197, 7
    %v199 = vsub.s32 6, %v198
    %v200 = vrot.slane %v87, %v199
    %v201 = vlaneseq
    %v202 = vshrl.u32 %v201, 7
    %v203 = vsub.s32 2, %v202
    %v204 = vrot.slane %v88, %v203
    %v205 = vlaneseq
    %v206 = vshrl.u32 %v205, 7
    %v207 = vsub.s32 6, %v206
    %v208 = vrot.slane %v88, %v207
    %vm213 = vcmask 1040384
    %vm214 = vcmask 1041408
    %v215 = vsel %vm214, %v94, %v94
    %v216 = vsel %vm214, %v98, %v98
    %v217 = vsel %vm214, %v102, %v102
    %v218 = vsel %vm214, %v106, %v106
    %vm219 = vcmask 1042432
    %v220 = vsel %vm219, %v215, %v114
    %v221 = vsel %vm219, %v216, %v118
    %v222 = vsel %vm219, %v217, %v122
    %v223 = vsel %vm219, %v218, %v126
    %vm224 = vcmask 1043456
    %v225 = vsel %vm224, %v220, %v114
    %v226 = vsel %vm224, %v221, %v118
    %v227 = vsel %vm224, %v222, %v122
    %v228 = vsel %vm224, %v223, %v126
    %vm229 = vcmask 1044480
    %v230 = vsel %vm229, %v225, %v134
    %v231 = vsel %vm229, %v226, %v138
    %v232 = vsel %vm229, %v227, %v142
    %v233 = vsel %vm229, %v228, %v146
    %vm234 = vcmask 1045504
    %v235 = vsel %vm234, %v230, %v156
    %v236 = vsel %vm234, %v231, %v160
    %v237 = vsel %vm234, %v232, %v164
    %v238 = vsel %vm234, %v233, %v168
    %vm239 = vcmask 1046528
    %v240 = vsel %vm239, %v235, %v156
    %v241 = vsel %vm239, %v236, %v160
    %v242 = vsel %vm239, %v237, %v164
    %v243 = vsel %vm239, %v238, %v168
    %v244 = vsel %vm213, %v156, %v176
    %v245 = vsel %vm213, %v160, %v180
    %v246 = vsel %vm213, %v164, %v184
    %v247 = vsel %vm213, %v168, %v188
    %v248 = vsel %vm214, %v244, %v176
    %v249 = vsel %vm214, %v245, %v180
    %v250 = vsel %vm214, %v246, %v184
    %v251 = vsel %vm214, %v247, %v188
    %v252 = vsel %vm219, %v248, %v196
    %v253 = vsel %vm219, %v249, %v200
    %v254 = vsel %vm219, %v250, %v204
    %v255 = vsel %vm219, %v251, %v208
    %v256 = vlaneseq
    %v257 = vshrl.u32 %v256, 7
    %v258 = vsub.s32 3, %v257
    %v259 = vrot.slane %v85, %v258
    %v260 = vlaneseq
    %v261 = vshrl.u32 %v260, 7
    %v262 = vsub.s32 7, %v261
    %v263 = vrot.slane %v85, %v262
    %v264 = vlaneseq
    %v265 = vshrl.u32 %v264, 7
    %v266 = vsub.s32 3, %v265
    %v267 = vrot.slane %v86, %v266
    %v268 = vlaneseq
    %v269 = vshrl.u32 %v268, 7
    %v270 = vsub.s32 7, %v269
    %v271 = vrot.slane %v86, %v270
    %v276 = vlaneseq
    %v277 = vshrl.u32 %v276, 7
    %v278 = vsub.s32 3, %v277
    %v279 = vrot.slane %v87, %v278
    %v280 = vlaneseq
    %v281 = vshrl.u32 %v280, 7
    %v282 = vsub.s32 7, %v281
    %v283 = vrot.slane %v87, %v282
    %v284 = vlaneseq
    %v285 = vshrl.u32 %v284, 7
    %v286 = vsub.s32 3, %v285
    %v287 = vrot.slane %v88, %v286
    %v288 = vlaneseq
    %v289 = vshrl.u32 %v288, 7
    %v290 = vsub.s32 7, %v289
    %v291 = vrot.slane %v88, %v290
    %v296 = vsel %vm213, %v114, %v134
    %v297 = vsel %vm213, %v118, %v138
    %v298 = vsel %vm213, %v122, %v142
    %v299 = vsel %vm213, %v126, %v146
    %v300 = vsel %vm214, %v296, %v259
    %v301 = vsel %vm214, %v297, %v263
    %v302 = vsel %vm214, %v298, %v267
    %v303 = vsel %vm214, %v299, %v271
    %v304 = vsel %vm219, %v300, %v134
    %v305 = vsel %vm219, %v301, %v138
    %v306 = vsel %vm219, %v302, %v142
    %v307 = vsel %vm219, %v303, %v146
    %v308 = vsel %vm224, %v304, %v259
    %v309 = vsel %vm224, %v305, %v263
    %v310 = vsel %vm224, %v306, %v267
    %v311 = vsel %vm224, %v307, %v271
    %v312 = vsel %vm229, %v308, %v259
    %v313 = vsel %vm229, %v309, %v263
    %v314 = vsel %vm229, %v310, %v267
    %v315 = vsel %vm229, %v311, %v271
    %v316 = vsel %vm234, %v312, %v176
    %v317 = vsel %vm234, %v313, %v180
    %v318 = vsel %vm234, %v314, %v184
    %v319 = vsel %vm234, %v315, %v188
    %v320 = vsel %vm239, %v316, %v196
    %v321 = vsel %vm239, %v317, %v200
    %v322 = vsel %vm239, %v318, %v204
    %v323 = vsel %vm239, %v319, %v208
    %v324 = vsel %vm213, %v279, %v196
    %v325 = vsel %vm213, %v283, %v200
    %v326 = vsel %vm213, %v287, %v204
    %v327 = vsel %vm213, %v291, %v208
    %v328 = vsel %vm214, %v324, %v279
    %v329 = vsel %vm214, %v325, %v283
    %v330 = vsel %vm214, %v326, %v287
    %v331 = vsel %vm214, %v327, %v291
    %v332 = vsel %vm219, %v328, %v279
    %v333 = vsel %vm219, %v329, %v283
    %v334 = vsel %vm219, %v330, %v287
    %v335 = vsel %vm219, %v331, %v291
    %v336 = vsel %vm224, %v252, 0.0
    %v337 = vsel %vm224, %v253, 0.0
    %v338 = vsel %vm224, %v254, 0.0
    %v339 = vsel %vm224, %v255, 0.0
    %v340 = vsel %vm224, %v332, 0.0
    %v341 = vsel %vm224, %v333, 0.0
    %v342 = vsel %vm224, %v334, 0.0
    %v343 = vsel %vm224, %v335, 0.0
    %v344 = vpack.c.bf16 %v336, %v240
    %v345 = vpack.c.bf16 %v337, %v241
    %v346 = vpack.c.bf16 %v338, %v242
    %v347 = vpack.c.bf16 %v339, %v243
    %v348 = vpack.c.bf16 %v340, %v320
    %v349 = vpack.c.bf16 %v341, %v321
    %v350 = vpack.c.bf16 %v342, %v322
    %v351 = vpack.c.bf16 %v343, %v323
    %v352 = vld [vmem:[#allocation5] sm:$0xff]
    %v353 = vld [vmem:[#allocation5 + $0x8] sm:$0xff]
    %v354 = vld [vmem:[#allocation5 + $0x10] sm:$0xff]
    %v355 = vld [vmem:[#allocation5 + $0x18] sm:$0xff]
    %v356 = vld [vmem:[#allocation5 + $0x20] sm:$0xff]
    %v357 = vld [vmem:[#allocation5 + $0x28] sm:$0xff]
    %v358 = vld [vmem:[#allocation5 + $0x30] sm:$0xff]
    %v359 = vld [vmem:[#allocation5 + $0x38] sm:$0xff]
    %v360 = vld [vmem:[#allocation5 + $0x40] sm:$0xff]
    %v361 = vld [vmem:[#allocation5 + $0x48] sm:$0xff]
    %v362 = vld [vmem:[#allocation5 + $0x50] sm:$0xff]
    %v363 = vld [vmem:[#allocation5 + $0x58] sm:$0xff]
    %v364 = vld [vmem:[#allocation5 + $0x60] sm:$0xff]
    %v365 = vld [vmem:[#allocation5 + $0x68] sm:$0xff]
    %v366 = vld [vmem:[#allocation5 + $0x70] sm:$0xff]
    %v367 = vld [vmem:[#allocation5 + $0x78] sm:$0xff]
    %v368 = vld [vmem:[#allocation5 + $0x80] sm:$0xff]
    %v369 = vld [vmem:[#allocation5 + $0x88] sm:$0xff]
    %v370 = vld [vmem:[#allocation5 + $0x90] sm:$0xff]
    %v371 = vld [vmem:[#allocation5 + $0x98] sm:$0xff]
    %v372 = vld [vmem:[#allocation5 + $0xa0] sm:$0xff]
    %v373 = vld [vmem:[#allocation5 + $0xa8] sm:$0xff]
    %v374 = vld [vmem:[#allocation5 + $0xb0] sm:$0xff]
    %v375 = vld [vmem:[#allocation5 + $0xb8] sm:$0xff]
    %v376 = vld [vmem:[#allocation5 + $0xc0] sm:$0xff]
    %v377 = vld [vmem:[#allocation5 + $0xc8] sm:$0xff]
    %v378 = vld [vmem:[#allocation5 + $0xd0] sm:$0xff]
    %v379 = vld [vmem:[#allocation5 + $0xd8] sm:$0xff]
    %v380 = vld [vmem:[#allocation5 + $0xe0] sm:$0xff]
    %v381 = vld [vmem:[#allocation5 + $0xe8] sm:$0xff]
    %v382 = vld [vmem:[#allocation5 + $0xf0] sm:$0xff]
    %v383 = vld [vmem:[#allocation5 + $0xf8] sm:$0xff]
    %v384 = vld [vmem:[#allocation5 + $0x100] sm:$0xff]
    %v385 = vld [vmem:[#allocation5 + $0x108] sm:$0xff]
    %v386 = vld [vmem:[#allocation5 + $0x110] sm:$0xff]
    %v387 = vld [vmem:[#allocation5 + $0x118] sm:$0xff]
    %v388 = vld [vmem:[#allocation5 + $0x120] sm:$0xff]
    %v389 = vld [vmem:[#allocation5 + $0x128] sm:$0xff]
    %v390 = vld [vmem:[#allocation5 + $0x130] sm:$0xff]
    %v391 = vld [vmem:[#allocation5 + $0x138] sm:$0xff]
    %v392 = vld [vmem:[#allocation5 + $0x140] sm:$0xff]
    %v393 = vld [vmem:[#allocation5 + $0x148] sm:$0xff]
    %v394 = vld [vmem:[#allocation5 + $0x150] sm:$0xff]
    %v395 = vld [vmem:[#allocation5 + $0x158] sm:$0xff]
    %v396 = vld [vmem:[#allocation5 + $0x160] sm:$0xff]
    %v397 = vld [vmem:[#allocation5 + $0x168] sm:$0xff]
    %v398 = vld [vmem:[#allocation5 + $0x170] sm:$0xff]
    %v399 = vld [vmem:[#allocation5 + $0x178] sm:$0xff]
    %v400 = vld [vmem:[#allocation5 + $0x180] sm:$0xff]
    %v401 = vld [vmem:[#allocation5 + $0x188] sm:$0xff]
    %v402 = vld [vmem:[#allocation5 + $0x190] sm:$0xff]
    %v403 = vld [vmem:[#allocation5 + $0x198] sm:$0xff]
    %v404 = vld [vmem:[#allocation5 + $0x1a0] sm:$0xff]
    %v405 = vld [vmem:[#allocation5 + $0x1a8] sm:$0xff]
    %v406 = vld [vmem:[#allocation5 + $0x1b0] sm:$0xff]
    %v407 = vld [vmem:[#allocation5 + $0x1b8] sm:$0xff]
    %v408 = vld [vmem:[#allocation5 + $0x1c0] sm:$0xff]
    %v409 = vld [vmem:[#allocation5 + $0x1c8] sm:$0xff]
    %v410 = vld [vmem:[#allocation5 + $0x1d0] sm:$0xff]
    %v411 = vld [vmem:[#allocation5 + $0x1d8] sm:$0xff]
    %v412 = vld [vmem:[#allocation5 + $0x1e0] sm:$0xff]
    %v413 = vld [vmem:[#allocation5 + $0x1e8] sm:$0xff]
    %v414 = vld [vmem:[#allocation5 + $0x1f0] sm:$0xff]
    %v415 = vld [vmem:[#allocation5 + $0x1f8] sm:$0xff]
    %v416 = vld [vmem:[#allocation5 + $0x200] sm:$0xff]
    %v417 = vld [vmem:[#allocation5 + $0x208] sm:$0xff]
    %v418 = vld [vmem:[#allocation5 + $0x210] sm:$0xff]
    %v419 = vld [vmem:[#allocation5 + $0x218] sm:$0xff]
    %v420 = vld [vmem:[#allocation5 + $0x220] sm:$0xff]
    %v421 = vld [vmem:[#allocation5 + $0x228] sm:$0xff]
    %v422 = vld [vmem:[#allocation5 + $0x230] sm:$0xff]
    %v423 = vld [vmem:[#allocation5 + $0x238] sm:$0xff]
    %v424 = vld [vmem:[#allocation5 + $0x240] sm:$0xff]
    %v425 = vld [vmem:[#allocation5 + $0x248] sm:$0xff]
    %v426 = vld [vmem:[#allocation5 + $0x250] sm:$0xff]
    %v427 = vld [vmem:[#allocation5 + $0x258] sm:$0xff]
    %v428 = vld [vmem:[#allocation5 + $0x260] sm:$0xff]
    %v429 = vld [vmem:[#allocation5 + $0x268] sm:$0xff]
    %v430 = vld [vmem:[#allocation5 + $0x270] sm:$0xff]
    %v431 = vld [vmem:[#allocation5 + $0x278] sm:$0xff]
    %v432 = vld [vmem:[#allocation5 + $0x280] sm:$0xff]
    %v433 = vld [vmem:[#allocation5 + $0x288] sm:$0xff]
    %v434 = vld [vmem:[#allocation5 + $0x290] sm:$0xff]
    %v435 = vld [vmem:[#allocation5 + $0x298] sm:$0xff]
    %v436 = vld [vmem:[#allocation5 + $0x2a0] sm:$0xff]
    %v437 = vld [vmem:[#allocation5 + $0x2a8] sm:$0xff]
    %v438 = vld [vmem:[#allocation5 + $0x2b0] sm:$0xff]
    %v439 = vld [vmem:[#allocation5 + $0x2b8] sm:$0xff]
    %v440 = vld [vmem:[#allocation5 + $0x2c0] sm:$0xff]
    %v441 = vld [vmem:[#allocation5 + $0x2c8] sm:$0xff]
    %v442 = vld [vmem:[#allocation5 + $0x2d0] sm:$0xff]
    %v443 = vld [vmem:[#allocation5 + $0x2d8] sm:$0xff]
    %v444 = vld [vmem:[#allocation5 + $0x2e0] sm:$0xff]
    %v445 = vld [vmem:[#allocation5 + $0x2e8] sm:$0xff]
    %v446 = vld [vmem:[#allocation5 + $0x2f0] sm:$0xff]
    %v447 = vld [vmem:[#allocation5 + $0x2f8] sm:$0xff]
    %v448 = vld [vmem:[#allocation5 + $0x300] sm:$0xff]
    %v449 = vld [vmem:[#allocation5 + $0x308] sm:$0xff]
    %v450 = vld [vmem:[#allocation5 + $0x310] sm:$0xff]
    %v451 = vld [vmem:[#allocation5 + $0x318] sm:$0xff]
    %v452 = vld [vmem:[#allocation5 + $0x320] sm:$0xff]
    %v453 = vld [vmem:[#allocation5 + $0x328] sm:$0xff]
    %v454 = vld [vmem:[#allocation5 + $0x330] sm:$0xff]
    %v455 = vld [vmem:[#allocation5 + $0x338] sm:$0xff]
    %v456 = vld [vmem:[#allocation5 + $0x340] sm:$0xff]
    %v457 = vld [vmem:[#allocation5 + $0x348] sm:$0xff]
    %v458 = vld [vmem:[#allocation5 + $0x350] sm:$0xff]
    %v459 = vld [vmem:[#allocation5 + $0x358] sm:$0xff]
    %v460 = vld [vmem:[#allocation5 + $0x360] sm:$0xff]
    %v461 = vld [vmem:[#allocation5 + $0x368] sm:$0xff]
    %v462 = vld [vmem:[#allocation5 + $0x370] sm:$0xff]
    %v463 = vld [vmem:[#allocation5 + $0x378] sm:$0xff]
    %v464 = vld [vmem:[#allocation5 + $0x380] sm:$0xff]
    %v465 = vld [vmem:[#allocation5 + $0x388] sm:$0xff]
    %v466 = vld [vmem:[#allocation5 + $0x390] sm:$0xff]
    %v467 = vld [vmem:[#allocation5 + $0x398] sm:$0xff]
    %v468 = vld [vmem:[#allocation5 + $0x3a0] sm:$0xff]
    %v469 = vld [vmem:[#allocation5 + $0x3a8] sm:$0xff]
    %v470 = vld [vmem:[#allocation5 + $0x3b0] sm:$0xff]
    %v471 = vld [vmem:[#allocation5 + $0x3b8] sm:$0xff]
    %v472 = vld [vmem:[#allocation5 + $0x3c0] sm:$0xff]
    %v473 = vld [vmem:[#allocation5 + $0x3c8] sm:$0xff]
    %v474 = vld [vmem:[#allocation5 + $0x3d0] sm:$0xff]
    %v475 = vld [vmem:[#allocation5 + $0x3d8] sm:$0xff]
    %v476 = vld [vmem:[#allocation5 + $0x3e0] sm:$0xff]
    %v477 = vld [vmem:[#allocation5 + $0x3e8] sm:$0xff]
    %v478 = vld [vmem:[#allocation5 + $0x3f0] sm:$0xff]
    %v479 = vld [vmem:[#allocation5 + $0x3f8] sm:$0xff]
    %v480 = vld [vmem:[#allocation5 + $0x400] sm:$0xff]
    %v481 = vld [vmem:[#allocation5 + $0x408] sm:$0xff]
    %v482 = vld [vmem:[#allocation5 + $0x410] sm:$0xff]
    %v483 = vld [vmem:[#allocation5 + $0x418] sm:$0xff]
    %v484 = vld [vmem:[#allocation5 + $0x420] sm:$0xff]
    %v485 = vld [vmem:[#allocation5 + $0x428] sm:$0xff]
    %v486 = vld [vmem:[#allocation5 + $0x430] sm:$0xff]
    %v487 = vld [vmem:[#allocation5 + $0x438] sm:$0xff]
    %v488 = vld [vmem:[#allocation5 + $0x440] sm:$0xff]
    %v489 = vld [vmem:[#allocation5 + $0x448] sm:$0xff]
    %v490 = vld [vmem:[#allocation5 + $0x450] sm:$0xff]
    %v491 = vld [vmem:[#allocation5 + $0x458] sm:$0xff]
    %v492 = vld [vmem:[#allocation5 + $0x460] sm:$0xff]
    %v493 = vld [vmem:[#allocation5 + $0x468] sm:$0xff]
    %v494 = vld [vmem:[#allocation5 + $0x470] sm:$0xff]
    %v495 = vld [vmem:[#allocation5 + $0x478] sm:$0xff]
    %v496 = vld [vmem:[#allocation5 + $0x480] sm:$0xff]
    %v497 = vld [vmem:[#allocation5 + $0x488] sm:$0xff]
    %v498 = vld [vmem:[#allocation5 + $0x490] sm:$0xff]
    %v499 = vld [vmem:[#allocation5 + $0x498] sm:$0xff]
    %v500 = vld [vmem:[#allocation5 + $0x4a0] sm:$0xff]
    %v501 = vld [vmem:[#allocation5 + $0x4a8] sm:$0xff]
    %v502 = vld [vmem:[#allocation5 + $0x4b0] sm:$0xff]
    %v503 = vld [vmem:[#allocation5 + $0x4b8] sm:$0xff]
    %v504 = vld [vmem:[#allocation5 + $0x4c0] sm:$0xff]
    %v505 = vld [vmem:[#allocation5 + $0x4c8] sm:$0xff]
    %v506 = vld [vmem:[#allocation5 + $0x4d0] sm:$0xff]
    %v507 = vld [vmem:[#allocation5 + $0x4d8] sm:$0xff]
    %v508 = vld [vmem:[#allocation5 + $0x4e0] sm:$0xff]
    %v509 = vld [vmem:[#allocation5 + $0x4e8] sm:$0xff]
    %v510 = vld [vmem:[#allocation5 + $0x4f0] sm:$0xff]
    %v511 = vld [vmem:[#allocation5 + $0x4f8] sm:$0xff]
    %v512 = vld [vmem:[#allocation5 + $0x500] sm:$0xff]
    %v513 = vld [vmem:[#allocation5 + $0x508] sm:$0xff]
    %v514 = vld [vmem:[#allocation5 + $0x510] sm:$0xff]
    %v515 = vld [vmem:[#allocation5 + $0x518] sm:$0xff]
    %v516 = vld [vmem:[#allocation5 + $0x520] sm:$0xff]
    %v517 = vld [vmem:[#allocation5 + $0x528] sm:$0xff]
    %v518 = vld [vmem:[#allocation5 + $0x530] sm:$0xff]
    %v519 = vld [vmem:[#allocation5 + $0x538] sm:$0xff]
    %v520 = vld [vmem:[#allocation5 + $0x540] sm:$0xff]
    %v521 = vld [vmem:[#allocation5 + $0x548] sm:$0xff]
    %v522 = vld [vmem:[#allocation5 + $0x550] sm:$0xff]
    %v523 = vld [vmem:[#allocation5 + $0x558] sm:$0xff]
    %v524 = vld [vmem:[#allocation5 + $0x560] sm:$0xff]
    %v525 = vld [vmem:[#allocation5 + $0x568] sm:$0xff]
    %v526 = vld [vmem:[#allocation5 + $0x570] sm:$0xff]
    %v527 = vld [vmem:[#allocation5 + $0x578] sm:$0xff]
    %v528 = vld [vmem:[#allocation5 + $0x580] sm:$0xff]
    %v529 = vld [vmem:[#allocation5 + $0x588] sm:$0xff]
    %v530 = vld [vmem:[#allocation5 + $0x590] sm:$0xff]
    %v531 = vld [vmem:[#allocation5 + $0x598] sm:$0xff]
    %v532 = vld [vmem:[#allocation5 + $0x5a0] sm:$0xff]
    %v533 = vld [vmem:[#allocation5 + $0x5a8] sm:$0xff]
    %v534 = vld [vmem:[#allocation5 + $0x5b0] sm:$0xff]
    %v535 = vld [vmem:[#allocation5 + $0x5b8] sm:$0xff]
    %v536 = vld [vmem:[#allocation5 + $0x5c0] sm:$0xff]
    %v537 = vld [vmem:[#allocation5 + $0x5c8] sm:$0xff]
    %v538 = vld [vmem:[#allocation5 + $0x5d0] sm:$0xff]
    %v539 = vld [vmem:[#allocation5 + $0x5d8] sm:$0xff]
    %v540 = vld [vmem:[#allocation5 + $0x5e0] sm:$0xff]
    %v541 = vld [vmem:[#allocation5 + $0x5e8] sm:$0xff]
    %v542 = vld [vmem:[#allocation5 + $0x5f0] sm:$0xff]
    %v543 = vld [vmem:[#allocation5 + $0x5f8] sm:$0xff]
    %v544 = vld [vmem:[#allocation5 + $0x600] sm:$0xff]
    %v545 = vld [vmem:[#allocation5 + $0x608] sm:$0xff]
    %v546 = vld [vmem:[#allocation5 + $0x610] sm:$0xff]
    %v547 = vld [vmem:[#allocation5 + $0x618] sm:$0xff]
    %v548 = vld [vmem:[#allocation5 + $0x620] sm:$0xff]
    %v549 = vld [vmem:[#allocation5 + $0x628] sm:$0xff]
    %v550 = vld [vmem:[#allocation5 + $0x630] sm:$0xff]
    %v551 = vld [vmem:[#allocation5 + $0x638] sm:$0xff]
    %v552 = vld [vmem:[#allocation5 + $0x640] sm:$0xff]
    %v553 = vld [vmem:[#allocation5 + $0x648] sm:$0xff]
    %v554 = vld [vmem:[#allocation5 + $0x650] sm:$0xff]
    %v555 = vld [vmem:[#allocation5 + $0x658] sm:$0xff]
    %v556 = vld [vmem:[#allocation5 + $0x660] sm:$0xff]
    %v557 = vld [vmem:[#allocation5 + $0x668] sm:$0xff]
    %v558 = vld [vmem:[#allocation5 + $0x670] sm:$0xff]
    %v559 = vld [vmem:[#allocation5 + $0x678] sm:$0xff]
    %v560 = vld [vmem:[#allocation5 + $0x680] sm:$0xff]
    %v561 = vld [vmem:[#allocation5 + $0x688] sm:$0xff]
    %v562 = vld [vmem:[#allocation5 + $0x690] sm:$0xff]
    %v563 = vld [vmem:[#allocation5 + $0x698] sm:$0xff]
    %v564 = vld [vmem:[#allocation5 + $0x6a0] sm:$0xff]
    %v565 = vld [vmem:[#allocation5 + $0x6a8] sm:$0xff]
    %v566 = vld [vmem:[#allocation5 + $0x6b0] sm:$0xff]
    %v567 = vld [vmem:[#allocation5 + $0x6b8] sm:$0xff]
    %v568 = vld [vmem:[#allocation5 + $0x6c0] sm:$0xff]
    %v569 = vld [vmem:[#allocation5 + $0x6c8] sm:$0xff]
    %v570 = vld [vmem:[#allocation5 + $0x6d0] sm:$0xff]
    %v571 = vld [vmem:[#allocation5 + $0x6d8] sm:$0xff]
    %v572 = vld [vmem:[#allocation5 + $0x6e0] sm:$0xff]
    %v573 = vld [vmem:[#allocation5 + $0x6e8] sm:$0xff]
    %v574 = vld [vmem:[#allocation5 + $0x6f0] sm:$0xff]
    %v575 = vld [vmem:[#allocation5 + $0x6f8] sm:$0xff]
    %v576 = vld [vmem:[#allocation5 + $0x700] sm:$0xff]
    %v577 = vld [vmem:[#allocation5 + $0x708] sm:$0xff]
    %v578 = vld [vmem:[#allocation5 + $0x710] sm:$0xff]
    %v579 = vld [vmem:[#allocation5 + $0x718] sm:$0xff]
    %v580 = vld [vmem:[#allocation5 + $0x720] sm:$0xff]
    %v581 = vld [vmem:[#allocation5 + $0x728] sm:$0xff]
    %v582 = vld [vmem:[#allocation5 + $0x730] sm:$0xff]
    %v583 = vld [vmem:[#allocation5 + $0x738] sm:$0xff]
    %v584 = vld [vmem:[#allocation5 + $0x740] sm:$0xff]
    %v585 = vld [vmem:[#allocation5 + $0x748] sm:$0xff]
    %v586 = vld [vmem:[#allocation5 + $0x750] sm:$0xff]
    %v587 = vld [vmem:[#allocation5 + $0x758] sm:$0xff]
    %v588 = vld [vmem:[#allocation5 + $0x760] sm:$0xff]
    %v589 = vld [vmem:[#allocation5 + $0x768] sm:$0xff]
    %v590 = vld [vmem:[#allocation5 + $0x770] sm:$0xff]
    %v591 = vld [vmem:[#allocation5 + $0x778] sm:$0xff]
    %v592 = vld [vmem:[#allocation5 + $0x780] sm:$0xff]
    %v593 = vld [vmem:[#allocation5 + $0x788] sm:$0xff]
    %v594 = vld [vmem:[#allocation5 + $0x790] sm:$0xff]
    %v595 = vld [vmem:[#allocation5 + $0x798] sm:$0xff]
    %v596 = vld [vmem:[#allocation5 + $0x7a0] sm:$0xff]
    %v597 = vld [vmem:[#allocation5 + $0x7a8] sm:$0xff]
    %v598 = vld [vmem:[#allocation5 + $0x7b0] sm:$0xff]
    %v599 = vld [vmem:[#allocation5 + $0x7b8] sm:$0xff]
    %v600 = vld [vmem:[#allocation5 + $0x7c0] sm:$0xff]
    %v601 = vld [vmem:[#allocation5 + $0x7c8] sm:$0xff]
    %v602 = vld [vmem:[#allocation5 + $0x7d0] sm:$0xff]
    %v603 = vld [vmem:[#allocation5 + $0x7d8] sm:$0xff]
    %v604 = vld [vmem:[#allocation5 + $0x7e0] sm:$0xff]
    %v605 = vld [vmem:[#allocation5 + $0x7e8] sm:$0xff]
    %v606 = vld [vmem:[#allocation5 + $0x7f0] sm:$0xff]
    %v607 = vld [vmem:[#allocation5 + $0x7f8] sm:$0xff]
    %v608 = vld [vmem:[#allocation5 + $0x800] sm:$0xff]
    %v609 = vld [vmem:[#allocation5 + $0x808] sm:$0xff]
    %v610 = vld [vmem:[#allocation5 + $0x810] sm:$0xff]
    %v611 = vld [vmem:[#allocation5 + $0x818] sm:$0xff]
    %v612 = vld [vmem:[#allocation5 + $0x820] sm:$0xff]
    %v613 = vld [vmem:[#allocation5 + $0x828] sm:$0xff]
    %v614 = vld [vmem:[#allocation5 + $0x830] sm:$0xff]
    %v615 = vld [vmem:[#allocation5 + $0x838] sm:$0xff]
    %v616 = vld [vmem:[#allocation5 + $0x840] sm:$0xff]
    %v617 = vld [vmem:[#allocation5 + $0x848] sm:$0xff]
    %v618 = vld [vmem:[#allocation5 + $0x850] sm:$0xff]
    %v619 = vld [vmem:[#allocation5 + $0x858] sm:$0xff]
    %v620 = vld [vmem:[#allocation5 + $0x860] sm:$0xff]
    %v621 = vld [vmem:[#allocation5 + $0x868] sm:$0xff]
    %v622 = vld [vmem:[#allocation5 + $0x870] sm:$0xff]
    %v623 = vld [vmem:[#allocation5 + $0x878] sm:$0xff]
    %v624 = vld [vmem:[#allocation5 + $0x880] sm:$0xff]
    %v625 = vld [vmem:[#allocation5 + $0x888] sm:$0xff]
    %v626 = vld [vmem:[#allocation5 + $0x890] sm:$0xff]
    %v627 = vld [vmem:[#allocation5 + $0x898] sm:$0xff]
    %v628 = vld [vmem:[#allocation5 + $0x8a0] sm:$0xff]
    %v629 = vld [vmem:[#allocation5 + $0x8a8] sm:$0xff]
    %v630 = vld [vmem:[#allocation5 + $0x8b0] sm:$0xff]
    %v631 = vld [vmem:[#allocation5 + $0x8b8] sm:$0xff]
    %v632 = vld [vmem:[#allocation5 + $0x8c0] sm:$0xff]
    %v633 = vld [vmem:[#allocation5 + $0x8c8] sm:$0xff]
    %v634 = vld [vmem:[#allocation5 + $0x8d0] sm:$0xff]
    %v635 = vld [vmem:[#allocation5 + $0x8d8] sm:$0xff]
    %v636 = vld [vmem:[#allocation5 + $0x8e0] sm:$0xff]
    %v637 = vld [vmem:[#allocation5 + $0x8e8] sm:$0xff]
    %v638 = vld [vmem:[#allocation5 + $0x8f0] sm:$0xff]
    %v639 = vld [vmem:[#allocation5 + $0x8f8] sm:$0xff]
    %v640 = vld [vmem:[#allocation5 + $0x900] sm:$0xff]
    %v641 = vld [vmem:[#allocation5 + $0x908] sm:$0xff]
    %v642 = vld [vmem:[#allocation5 + $0x910] sm:$0xff]
    %v643 = vld [vmem:[#allocation5 + $0x918] sm:$0xff]
    %v644 = vld [vmem:[#allocation5 + $0x920] sm:$0xff]
    %v645 = vld [vmem:[#allocation5 + $0x928] sm:$0xff]
    %v646 = vld [vmem:[#allocation5 + $0x930] sm:$0xff]
    %v647 = vld [vmem:[#allocation5 + $0x938] sm:$0xff]
    %v648 = vld [vmem:[#allocation5 + $0x940] sm:$0xff]
    %v649 = vld [vmem:[#allocation5 + $0x948] sm:$0xff]
    %v650 = vld [vmem:[#allocation5 + $0x950] sm:$0xff]
    %v651 = vld [vmem:[#allocation5 + $0x958] sm:$0xff]
    %v652 = vld [vmem:[#allocation5 + $0x960] sm:$0xff]
    %v653 = vld [vmem:[#allocation5 + $0x968] sm:$0xff]
    %v654 = vld [vmem:[#allocation5 + $0x970] sm:$0xff]
    %v655 = vld [vmem:[#allocation5 + $0x978] sm:$0xff]
    %v656 = vld [vmem:[#allocation5 + $0x980] sm:$0xff]
    %v657 = vld [vmem:[#allocation5 + $0x988] sm:$0xff]
    %v658 = vld [vmem:[#allocation5 + $0x990] sm:$0xff]
    %v659 = vld [vmem:[#allocation5 + $0x998] sm:$0xff]
    %v660 = vld [vmem:[#allocation5 + $0x9a0] sm:$0xff]
    %v661 = vld [vmem:[#allocation5 + $0x9a8] sm:$0xff]
    %v662 = vld [vmem:[#allocation5 + $0x9b0] sm:$0xff]
    %v663 = vld [vmem:[#allocation5 + $0x9b8] sm:$0xff]
    %v664 = vld [vmem:[#allocation5 + $0x9c0] sm:$0xff]
    %v665 = vld [vmem:[#allocation5 + $0x9c8] sm:$0xff]
    %v666 = vld [vmem:[#allocation5 + $0x9d0] sm:$0xff]
    %v667 = vld [vmem:[#allocation5 + $0x9d8] sm:$0xff]
    %v668 = vld [vmem:[#allocation5 + $0x9e0] sm:$0xff]
    %v669 = vld [vmem:[#allocation5 + $0x9e8] sm:$0xff]
    %v670 = vld [vmem:[#allocation5 + $0x9f0] sm:$0xff]
    %v671 = vld [vmem:[#allocation5 + $0x9f8] sm:$0xff]
    %v672 = vld [vmem:[#allocation5 + $0xa00] sm:$0xff]
    %v673 = vld [vmem:[#allocation5 + $0xa08] sm:$0xff]
    %v674 = vld [vmem:[#allocation5 + $0xa10] sm:$0xff]
    %v675 = vld [vmem:[#allocation5 + $0xa18] sm:$0xff]
    %v676 = vld [vmem:[#allocation5 + $0xa20] sm:$0xff]
    %v677 = vld [vmem:[#allocation5 + $0xa28] sm:$0xff]
    %v678 = vld [vmem:[#allocation5 + $0xa30] sm:$0xff]
    %v679 = vld [vmem:[#allocation5 + $0xa38] sm:$0xff]
    %v680 = vld [vmem:[#allocation5 + $0xa40] sm:$0xff]
    %v681 = vld [vmem:[#allocation5 + $0xa48] sm:$0xff]
    %v682 = vld [vmem:[#allocation5 + $0xa50] sm:$0xff]
    %v683 = vld [vmem:[#allocation5 + $0xa58] sm:$0xff]
    %v684 = vld [vmem:[#allocation5 + $0xa60] sm:$0xff]
    %v685 = vld [vmem:[#allocation5 + $0xa68] sm:$0xff]
    %v686 = vld [vmem:[#allocation5 + $0xa70] sm:$0xff]
    %v687 = vld [vmem:[#allocation5 + $0xa78] sm:$0xff]
    %v688 = vld [vmem:[#allocation5 + $0xa80] sm:$0xff]
    %v689 = vld [vmem:[#allocation5 + $0xa88] sm:$0xff]
    %v690 = vld [vmem:[#allocation5 + $0xa90] sm:$0xff]
    %v691 = vld [vmem:[#allocation5 + $0xa98] sm:$0xff]
    %v692 = vld [vmem:[#allocation5 + $0xaa0] sm:$0xff]
    %v693 = vld [vmem:[#allocation5 + $0xaa8] sm:$0xff]
    %v694 = vld [vmem:[#allocation5 + $0xab0] sm:$0xff]
    %v695 = vld [vmem:[#allocation5 + $0xab8] sm:$0xff]
    %v696 = vld [vmem:[#allocation5 + $0xac0] sm:$0xff]
    %v697 = vld [vmem:[#allocation5 + $0xac8] sm:$0xff]
    %v698 = vld [vmem:[#allocation5 + $0xad0] sm:$0xff]
    %v699 = vld [vmem:[#allocation5 + $0xad8] sm:$0xff]
    %v700 = vld [vmem:[#allocation5 + $0xae0] sm:$0xff]
    %v701 = vld [vmem:[#allocation5 + $0xae8] sm:$0xff]
    %v702 = vld [vmem:[#allocation5 + $0xaf0] sm:$0xff]
    %v703 = vld [vmem:[#allocation5 + $0xaf8] sm:$0xff]
    %v704 = vld [vmem:[#allocation5 + $0xb00] sm:$0xff]
    %v705 = vld [vmem:[#allocation5 + $0xb08] sm:$0xff]
    %v706 = vld [vmem:[#allocation5 + $0xb10] sm:$0xff]
    %v707 = vld [vmem:[#allocation5 + $0xb18] sm:$0xff]
    %v708 = vld [vmem:[#allocation5 + $0xb20] sm:$0xff]
    %v709 = vld [vmem:[#allocation5 + $0xb28] sm:$0xff]
    %v710 = vld [vmem:[#allocation5 + $0xb30] sm:$0xff]
    %v711 = vld [vmem:[#allocation5 + $0xb38] sm:$0xff]
    %v712 = vld [vmem:[#allocation5 + $0xb40] sm:$0xff]
    %v713 = vld [vmem:[#allocation5 + $0xb48] sm:$0xff]
    %v714 = vld [vmem:[#allocation5 + $0xb50] sm:$0xff]
    %v715 = vld [vmem:[#allocation5 + $0xb58] sm:$0xff]
    %v716 = vld [vmem:[#allocation5 + $0xb60] sm:$0xff]
    %v717 = vld [vmem:[#allocation5 + $0xb68] sm:$0xff]
    %v718 = vld [vmem:[#allocation5 + $0xb70] sm:$0xff]
    %v719 = vld [vmem:[#allocation5 + $0xb78] sm:$0xff]
    %v720 = vld [vmem:[#allocation5 + $0xb80] sm:$0xff]
    %v721 = vld [vmem:[#allocation5 + $0xb88] sm:$0xff]
    %v722 = vld [vmem:[#allocation5 + $0xb90] sm:$0xff]
    %v723 = vld [vmem:[#allocation5 + $0xb98] sm:$0xff]
    %v724 = vld [vmem:[#allocation5 + $0xba0] sm:$0xff]
    %v725 = vld [vmem:[#allocation5 + $0xba8] sm:$0xff]
    %v726 = vld [vmem:[#allocation5 + $0xbb0] sm:$0xff]
    %v727 = vld [vmem:[#allocation5 + $0xbb8] sm:$0xff]
    %v728 = vld [vmem:[#allocation5 + $0xbc0] sm:$0xff]
    %v729 = vld [vmem:[#allocation5 + $0xbc8] sm:$0xff]
    %v730 = vld [vmem:[#allocation5 + $0xbd0] sm:$0xff]
    %v731 = vld [vmem:[#allocation5 + $0xbd8] sm:$0xff]
    %v732 = vld [vmem:[#allocation5 + $0xbe0] sm:$0xff]
    %v733 = vld [vmem:[#allocation5 + $0xbe8] sm:$0xff]
    %v734 = vld [vmem:[#allocation5 + $0xbf0] sm:$0xff]
    %v735 = vld [vmem:[#allocation5 + $0xbf8] sm:$0xff]
    %v736 = vld [vmem:[#allocation5 + $0xc00] sm:$0xff]
    %v737 = vld [vmem:[#allocation5 + $0xc08] sm:$0xff]
    %v738 = vld [vmem:[#allocation5 + $0xc10] sm:$0xff]
    %v739 = vld [vmem:[#allocation5 + $0xc18] sm:$0xff]
    %v740 = vld [vmem:[#allocation5 + $0xc20] sm:$0xff]
    %v741 = vld [vmem:[#allocation5 + $0xc28] sm:$0xff]
    %v742 = vld [vmem:[#allocation5 + $0xc30] sm:$0xff]
    %v743 = vld [vmem:[#allocation5 + $0xc38] sm:$0xff]
    %v744 = vld [vmem:[#allocation5 + $0xc40] sm:$0xff]
    %v745 = vld [vmem:[#allocation5 + $0xc48] sm:$0xff]
    %v746 = vld [vmem:[#allocation5 + $0xc50] sm:$0xff]
    %v747 = vld [vmem:[#allocation5 + $0xc58] sm:$0xff]
    %v748 = vld [vmem:[#allocation5 + $0xc60] sm:$0xff]
    %v749 = vld [vmem:[#allocation5 + $0xc68] sm:$0xff]
    %v750 = vld [vmem:[#allocation5 + $0xc70] sm:$0xff]
    %v751 = vld [vmem:[#allocation5 + $0xc78] sm:$0xff]
    %v752 = vld [vmem:[#allocation5 + $0xc80] sm:$0xff]
    %v753 = vld [vmem:[#allocation5 + $0xc88] sm:$0xff]
    %v754 = vld [vmem:[#allocation5 + $0xc90] sm:$0xff]
    %v755 = vld [vmem:[#allocation5 + $0xc98] sm:$0xff]
    %v756 = vld [vmem:[#allocation5 + $0xca0] sm:$0xff]
    %v757 = vld [vmem:[#allocation5 + $0xca8] sm:$0xff]
    %v758 = vld [vmem:[#allocation5 + $0xcb0] sm:$0xff]
    %v759 = vld [vmem:[#allocation5 + $0xcb8] sm:$0xff]
    %v760 = vld [vmem:[#allocation5 + $0xcc0] sm:$0xff]
    %v761 = vld [vmem:[#allocation5 + $0xcc8] sm:$0xff]
    %v762 = vld [vmem:[#allocation5 + $0xcd0] sm:$0xff]
    %v763 = vld [vmem:[#allocation5 + $0xcd8] sm:$0xff]
    %v764 = vld [vmem:[#allocation5 + $0xce0] sm:$0xff]
    %v765 = vld [vmem:[#allocation5 + $0xce8] sm:$0xff]
    %v766 = vld [vmem:[#allocation5 + $0xcf0] sm:$0xff]
    %v767 = vld [vmem:[#allocation5 + $0xcf8] sm:$0xff]
    %v768 = vld [vmem:[#allocation5 + $0xd00] sm:$0xff]
    %v769 = vld [vmem:[#allocation5 + $0xd08] sm:$0xff]
    %v770 = vld [vmem:[#allocation5 + $0xd10] sm:$0xff]
    %v771 = vld [vmem:[#allocation5 + $0xd18] sm:$0xff]
    %v772 = vld [vmem:[#allocation5 + $0xd20] sm:$0xff]
    %v773 = vld [vmem:[#allocation5 + $0xd28] sm:$0xff]
    %v774 = vld [vmem:[#allocation5 + $0xd30] sm:$0xff]
    %v775 = vld [vmem:[#allocation5 + $0xd38] sm:$0xff]
    %v776 = vld [vmem:[#allocation5 + $0xd40] sm:$0xff]
    %v777 = vld [vmem:[#allocation5 + $0xd48] sm:$0xff]
    %v778 = vld [vmem:[#allocation5 + $0xd50] sm:$0xff]
    %v779 = vld [vmem:[#allocation5 + $0xd58] sm:$0xff]
    %v780 = vld [vmem:[#allocation5 + $0xd60] sm:$0xff]
    %v781 = vld [vmem:[#allocation5 + $0xd68] sm:$0xff]
    %v782 = vld [vmem:[#allocation5 + $0xd70] sm:$0xff]
    %v783 = vld [vmem:[#allocation5 + $0xd78] sm:$0xff]
    %v784 = vld [vmem:[#allocation5 + $0xd80] sm:$0xff]
    %v785 = vld [vmem:[#allocation5 + $0xd88] sm:$0xff]
    %v786 = vld [vmem:[#allocation5 + $0xd90] sm:$0xff]
    %v787 = vld [vmem:[#allocation5 + $0xd98] sm:$0xff]
    %v788 = vld [vmem:[#allocation5 + $0xda0] sm:$0xff]
    %v789 = vld [vmem:[#allocation5 + $0xda8] sm:$0xff]
    %v790 = vld [vmem:[#allocation5 + $0xdb0] sm:$0xff]
    %v791 = vld [vmem:[#allocation5 + $0xdb8] sm:$0xff]
    %v792 = vld [vmem:[#allocation5 + $0xdc0] sm:$0xff]
    %v793 = vld [vmem:[#allocation5 + $0xdc8] sm:$0xff]
    %v794 = vld [vmem:[#allocation5 + $0xdd0] sm:$0xff]
    %v795 = vld [vmem:[#allocation5 + $0xdd8] sm:$0xff]
    %v796 = vld [vmem:[#allocation5 + $0xde0] sm:$0xff]
    %v797 = vld [vmem:[#allocation5 + $0xde8] sm:$0xff]
    %v798 = vld [vmem:[#allocation5 + $0xdf0] sm:$0xff]
    %v799 = vld [vmem:[#allocation5 + $0xdf8] sm:$0xff]
    %v800 = vld [vmem:[#allocation5 + $0xe00] sm:$0xff]
    %v801 = vld [vmem:[#allocation5 + $0xe08] sm:$0xff]
    %v802 = vld [vmem:[#allocation5 + $0xe10] sm:$0xff]
    %v803 = vld [vmem:[#allocation5 + $0xe18] sm:$0xff]
    %v804 = vld [vmem:[#allocation5 + $0xe20] sm:$0xff]
    %v805 = vld [vmem:[#allocation5 + $0xe28] sm:$0xff]
    %v806 = vld [vmem:[#allocation5 + $0xe30] sm:$0xff]
    %v807 = vld [vmem:[#allocation5 + $0xe38] sm:$0xff]
    %v808 = vld [vmem:[#allocation5 + $0xe40] sm:$0xff]
    %v809 = vld [vmem:[#allocation5 + $0xe48] sm:$0xff]
    %v810 = vld [vmem:[#allocation5 + $0xe50] sm:$0xff]
    %v811 = vld [vmem:[#allocation5 + $0xe58] sm:$0xff]
    %v812 = vld [vmem:[#allocation5 + $0xe60] sm:$0xff]
    %v813 = vld [vmem:[#allocation5 + $0xe68] sm:$0xff]
    %v814 = vld [vmem:[#allocation5 + $0xe70] sm:$0xff]
    %v815 = vld [vmem:[#allocation5 + $0xe78] sm:$0xff]
    %v816 = vld [vmem:[#allocation5 + $0xe80] sm:$0xff]
    %v817 = vld [vmem:[#allocation5 + $0xe88] sm:$0xff]
    %v818 = vld [vmem:[#allocation5 + $0xe90] sm:$0xff]
    %v819 = vld [vmem:[#allocation5 + $0xe98] sm:$0xff]
    %v820 = vld [vmem:[#allocation5 + $0xea0] sm:$0xff]
    %v821 = vld [vmem:[#allocation5 + $0xea8] sm:$0xff]
    %v822 = vld [vmem:[#allocation5 + $0xeb0] sm:$0xff]
    %v823 = vld [vmem:[#allocation5 + $0xeb8] sm:$0xff]
    %v824 = vld [vmem:[#allocation5 + $0xec0] sm:$0xff]
    %v825 = vld [vmem:[#allocation5 + $0xec8] sm:$0xff]
    %v826 = vld [vmem:[#allocation5 + $0xed0] sm:$0xff]
    %v827 = vld [vmem:[#allocation5 + $0xed8] sm:$0xff]
    %v828 = vld [vmem:[#allocation5 + $0xee0] sm:$0xff]
    %v829 = vld [vmem:[#allocation5 + $0xee8] sm:$0xff]
    %v830 = vld [vmem:[#allocation5 + $0xef0] sm:$0xff]
    %v831 = vld [vmem:[#allocation5 + $0xef8] sm:$0xff]
    %v832 = vld [vmem:[#allocation5 + $0xf00] sm:$0xff]
    %v833 = vld [vmem:[#allocation5 + $0xf08] sm:$0xff]
    %v834 = vld [vmem:[#allocation5 + $0xf10] sm:$0xff]
    %v835 = vld [vmem:[#allocation5 + $0xf18] sm:$0xff]
    %v836 = vld [vmem:[#allocation5 + $0xf20] sm:$0xff]
    %v837 = vld [vmem:[#allocation5 + $0xf28] sm:$0xff]
    %v838 = vld [vmem:[#allocation5 + $0xf30] sm:$0xff]
    %v839 = vld [vmem:[#allocation5 + $0xf38] sm:$0xff]
    %v840 = vld [vmem:[#allocation5 + $0xf40] sm:$0xff]
    %v841 = vld [vmem:[#allocation5 + $0xf48] sm:$0xff]
    %v842 = vld [vmem:[#allocation5 + $0xf50] sm:$0xff]
    %v843 = vld [vmem:[#allocation5 + $0xf58] sm:$0xff]
    %v844 = vld [vmem:[#allocation5 + $0xf60] sm:$0xff]
    %v845 = vld [vmem:[#allocation5 + $0xf68] sm:$0xff]
    %v846 = vld [vmem:[#allocation5 + $0xf70] sm:$0xff]
    %v847 = vld [vmem:[#allocation5 + $0xf78] sm:$0xff]
    %v848 = vld [vmem:[#allocation5 + $0xf80] sm:$0xff]
    %v849 = vld [vmem:[#allocation5 + $0xf88] sm:$0xff]
    %v850 = vld [vmem:[#allocation5 + $0xf90] sm:$0xff]
    %v851 = vld [vmem:[#allocation5 + $0xf98] sm:$0xff]
    %v852 = vld [vmem:[#allocation5 + $0xfa0] sm:$0xff]
    %v853 = vld [vmem:[#allocation5 + $0xfa8] sm:$0xff]
    %v854 = vld [vmem:[#allocation5 + $0xfb0] sm:$0xff]
    %v855 = vld [vmem:[#allocation5 + $0xfb8] sm:$0xff]
    %v856 = vld [vmem:[#allocation5 + $0xfc0] sm:$0xff]
    %v857 = vld [vmem:[#allocation5 + $0xfc8] sm:$0xff]
    %v858 = vld [vmem:[#allocation5 + $0xfd0] sm:$0xff]
    %v859 = vld [vmem:[#allocation5 + $0xfd8] sm:$0xff]
    %v860 = vld [vmem:[#allocation5 + $0xfe0] sm:$0xff]
    %v861 = vld [vmem:[#allocation5 + $0xfe8] sm:$0xff]
    %v862 = vld [vmem:[#allocation5 + $0xff0] sm:$0xff]
    %v863 = vld [vmem:[#allocation5 + $0xff8] sm:$0xff]
    %v864 = vld [vmem:[#allocation7] sm:$0xff]
    %v866 = vlaneseq
    %v867 = vshrl.u32 %v866, 7
    %v868 = vsub.s32 0, %v867
    %v869 = vrot.slane %v864, %v868
    %v870 = vlaneseq
    %v871 = vshrl.u32 %v870, 7
    %v872 = vsub.s32 1, %v871
    %v873 = vrot.slane %v864, %v872
    %v874 = vlaneseq
    %v875 = vshrl.u32 %v874, 7
    %v876 = vsub.s32 2, %v875
    %v877 = vrot.slane %v864, %v876
    %v878 = vlaneseq
    %v879 = vshrl.u32 %v878, 7
    %v880 = vsub.s32 3, %v879
    %v881 = vrot.slane %v864, %v880
    %v882 = vlaneseq
    %v883 = vshrl.u32 %v882, 7
    %v884 = vsub.s32 4, %v883
    %v885 = vrot.slane %v864, %v884
    %v886 = vlaneseq
    %v887 = vshrl.u32 %v886, 7
    %v888 = vsub.s32 5, %v887
    %v889 = vrot.slane %v864, %v888
    %v890 = vlaneseq
    %v891 = vshrl.u32 %v890, 7
    %v892 = vsub.s32 6, %v891
    %v893 = vrot.slane %v864, %v892
    %v894 = vlaneseq
    %v895 = vshrl.u32 %v894, 7
    %v896 = vsub.s32 7, %v895
    %v897 = vrot.slane %v864, %v896
    %v1418 = vunpack.c.l.b16 %v352
    %v1419 = vunpack.c.h.b16 %v352
    %v1420 = vunpack.c.l.b16 %v353
    %v1421 = vunpack.c.h.b16 %v353
    %v1422 = vunpack.c.l.b16 %v354
    %v1423 = vunpack.c.h.b16 %v354
    %v1424 = vunpack.c.l.b16 %v355
    %v1425 = vunpack.c.h.b16 %v355
    %v1426 = vunpack.c.l.b16 %v356
    %v1427 = vunpack.c.h.b16 %v356
    %v1428 = vunpack.c.l.b16 %v357
    %v1429 = vunpack.c.h.b16 %v357
    %v1430 = vunpack.c.l.b16 %v358
    %v1431 = vunpack.c.h.b16 %v358
    %v1432 = vunpack.c.l.b16 %v359
    %v1433 = vunpack.c.h.b16 %v359
    %v1434 = vunpack.c.l.b16 %v360
    %v1435 = vunpack.c.h.b16 %v360
    %v1436 = vunpack.c.l.b16 %v361
    %v1437 = vunpack.c.h.b16 %v361
    %v1438 = vunpack.c.l.b16 %v362
    %v1439 = vunpack.c.h.b16 %v362
    %v1440 = vunpack.c.l.b16 %v363
    %v1441 = vunpack.c.h.b16 %v363
    %v1442 = vunpack.c.l.b16 %v364
    %v1443 = vunpack.c.h.b16 %v364
    %v1444 = vunpack.c.l.b16 %v365
    %v1445 = vunpack.c.h.b16 %v365
    %v1446 = vunpack.c.l.b16 %v366
    %v1447 = vunpack.c.h.b16 %v366
    %v1448 = vunpack.c.l.b16 %v367
    %v1449 = vunpack.c.h.b16 %v367
    %v1450 = vunpack.c.l.b16 %v368
    %v1451 = vunpack.c.h.b16 %v368
    %v1452 = vunpack.c.l.b16 %v369
    %v1453 = vunpack.c.h.b16 %v369
    %v1454 = vunpack.c.l.b16 %v370
    %v1455 = vunpack.c.h.b16 %v370
    %v1456 = vunpack.c.l.b16 %v371
    %v1457 = vunpack.c.h.b16 %v371
    %v1458 = vunpack.c.l.b16 %v372
    %v1459 = vunpack.c.h.b16 %v372
    %v1460 = vunpack.c.l.b16 %v373
    %v1461 = vunpack.c.h.b16 %v373
    %v1462 = vunpack.c.l.b16 %v374
    %v1463 = vunpack.c.h.b16 %v374
    %v1464 = vunpack.c.l.b16 %v375
    %v1465 = vunpack.c.h.b16 %v375
    %v1466 = vunpack.c.l.b16 %v376
    %v1467 = vunpack.c.h.b16 %v376
    %v1468 = vunpack.c.l.b16 %v377
    %v1469 = vunpack.c.h.b16 %v377
    %v1470 = vunpack.c.l.b16 %v378
    %v1471 = vunpack.c.h.b16 %v378
    %v1472 = vunpack.c.l.b16 %v379
    %v1473 = vunpack.c.h.b16 %v379
    %v1474 = vunpack.c.l.b16 %v380
    %v1475 = vunpack.c.h.b16 %v380
    %v1476 = vunpack.c.l.b16 %v381
    %v1477 = vunpack.c.h.b16 %v381
    %v1478 = vunpack.c.l.b16 %v382
    %v1479 = vunpack.c.h.b16 %v382
    %v1480 = vunpack.c.l.b16 %v383
    %v1481 = vunpack.c.h.b16 %v383
    %v1482 = vunpack.c.l.b16 %v384
    %v1483 = vunpack.c.h.b16 %v384
    %v1484 = vunpack.c.l.b16 %v385
    %v1485 = vunpack.c.h.b16 %v385
    %v1486 = vunpack.c.l.b16 %v386
    %v1487 = vunpack.c.h.b16 %v386
    %v1488 = vunpack.c.l.b16 %v387
    %v1489 = vunpack.c.h.b16 %v387
    %v1490 = vunpack.c.l.b16 %v388
    %v1491 = vunpack.c.h.b16 %v388
    %v1492 = vunpack.c.l.b16 %v389
    %v1493 = vunpack.c.h.b16 %v389
    %v1494 = vunpack.c.l.b16 %v390
    %v1495 = vunpack.c.h.b16 %v390
    %v1496 = vunpack.c.l.b16 %v391
    %v1497 = vunpack.c.h.b16 %v391
    %v1498 = vunpack.c.l.b16 %v392
    %v1499 = vunpack.c.h.b16 %v392
    %v1500 = vunpack.c.l.b16 %v393
    %v1501 = vunpack.c.h.b16 %v393
    %v1502 = vunpack.c.l.b16 %v394
    %v1503 = vunpack.c.h.b16 %v394
    %v1504 = vunpack.c.l.b16 %v395
    %v1505 = vunpack.c.h.b16 %v395
    %v1506 = vunpack.c.l.b16 %v396
    %v1507 = vunpack.c.h.b16 %v396
    %v1508 = vunpack.c.l.b16 %v397
    %v1509 = vunpack.c.h.b16 %v397
    %v1510 = vunpack.c.l.b16 %v398
    %v1511 = vunpack.c.h.b16 %v398
    %v1512 = vunpack.c.l.b16 %v399
    %v1513 = vunpack.c.h.b16 %v399
    %v1514 = vunpack.c.l.b16 %v400
    %v1515 = vunpack.c.h.b16 %v400
    %v1516 = vunpack.c.l.b16 %v401
    %v1517 = vunpack.c.h.b16 %v401
    %v1518 = vunpack.c.l.b16 %v402
    %v1519 = vunpack.c.h.b16 %v402
    %v1520 = vunpack.c.l.b16 %v403
    %v1521 = vunpack.c.h.b16 %v403
    %v1522 = vunpack.c.l.b16 %v404
    %v1523 = vunpack.c.h.b16 %v404
    %v1524 = vunpack.c.l.b16 %v405
    %v1525 = vunpack.c.h.b16 %v405
    %v1526 = vunpack.c.l.b16 %v406
    %v1527 = vunpack.c.h.b16 %v406
    %v1528 = vunpack.c.l.b16 %v407
    %v1529 = vunpack.c.h.b16 %v407
    %v1530 = vunpack.c.l.b16 %v408
    %v1531 = vunpack.c.h.b16 %v408
    %v1532 = vunpack.c.l.b16 %v409
    %v1533 = vunpack.c.h.b16 %v409
    %v1534 = vunpack.c.l.b16 %v410
    %v1535 = vunpack.c.h.b16 %v410
    %v1536 = vunpack.c.l.b16 %v411
    %v1537 = vunpack.c.h.b16 %v411
    %v1538 = vunpack.c.l.b16 %v412
    %v1539 = vunpack.c.h.b16 %v412
    %v1540 = vunpack.c.l.b16 %v413
    %v1541 = vunpack.c.h.b16 %v413
    %v1542 = vunpack.c.l.b16 %v414
    %v1543 = vunpack.c.h.b16 %v414
    %v1544 = vunpack.c.l.b16 %v415
    %v1545 = vunpack.c.h.b16 %v415
    %v1546 = vunpack.c.l.b16 %v416
    %v1547 = vunpack.c.h.b16 %v416
    %v1548 = vunpack.c.l.b16 %v417
    %v1549 = vunpack.c.h.b16 %v417
    %v1550 = vunpack.c.l.b16 %v418
    %v1551 = vunpack.c.h.b16 %v418
    %v1552 = vunpack.c.l.b16 %v419
    %v1553 = vunpack.c.h.b16 %v419
    %v1554 = vunpack.c.l.b16 %v420
    %v1555 = vunpack.c.h.b16 %v420
    %v1556 = vunpack.c.l.b16 %v421
    %v1557 = vunpack.c.h.b16 %v421
    %v1558 = vunpack.c.l.b16 %v422
    %v1559 = vunpack.c.h.b16 %v422
    %v1560 = vunpack.c.l.b16 %v423
    %v1561 = vunpack.c.h.b16 %v423
    %v1562 = vunpack.c.l.b16 %v424
    %v1563 = vunpack.c.h.b16 %v424
    %v1564 = vunpack.c.l.b16 %v425
    %v1565 = vunpack.c.h.b16 %v425
    %v1566 = vunpack.c.l.b16 %v426
    %v1567 = vunpack.c.h.b16 %v426
    %v1568 = vunpack.c.l.b16 %v427
    %v1569 = vunpack.c.h.b16 %v427
    %v1570 = vunpack.c.l.b16 %v428
    %v1571 = vunpack.c.h.b16 %v428
    %v1572 = vunpack.c.l.b16 %v429
    %v1573 = vunpack.c.h.b16 %v429
    %v1574 = vunpack.c.l.b16 %v430
    %v1575 = vunpack.c.h.b16 %v430
    %v1576 = vunpack.c.l.b16 %v431
    %v1577 = vunpack.c.h.b16 %v431
    %v1578 = vunpack.c.l.b16 %v432
    %v1579 = vunpack.c.h.b16 %v432
    %v1580 = vunpack.c.l.b16 %v433
    %v1581 = vunpack.c.h.b16 %v433
    %v1582 = vunpack.c.l.b16 %v434
    %v1583 = vunpack.c.h.b16 %v434
    %v1584 = vunpack.c.l.b16 %v435
    %v1585 = vunpack.c.h.b16 %v435
    %v1586 = vunpack.c.l.b16 %v436
    %v1587 = vunpack.c.h.b16 %v436
    %v1588 = vunpack.c.l.b16 %v437
    %v1589 = vunpack.c.h.b16 %v437
    %v1590 = vunpack.c.l.b16 %v438
    %v1591 = vunpack.c.h.b16 %v438
    %v1592 = vunpack.c.l.b16 %v439
    %v1593 = vunpack.c.h.b16 %v439
    %v1594 = vunpack.c.l.b16 %v440
    %v1595 = vunpack.c.h.b16 %v440
    %v1596 = vunpack.c.l.b16 %v441
    %v1597 = vunpack.c.h.b16 %v441
    %v1598 = vunpack.c.l.b16 %v442
    %v1599 = vunpack.c.h.b16 %v442
    %v1600 = vunpack.c.l.b16 %v443
    %v1601 = vunpack.c.h.b16 %v443
    %v1602 = vunpack.c.l.b16 %v444
    %v1603 = vunpack.c.h.b16 %v444
    %v1604 = vunpack.c.l.b16 %v445
    %v1605 = vunpack.c.h.b16 %v445
    %v1606 = vunpack.c.l.b16 %v446
    %v1607 = vunpack.c.h.b16 %v446
    %v1608 = vunpack.c.l.b16 %v447
    %v1609 = vunpack.c.h.b16 %v447
    %v1610 = vunpack.c.l.b16 %v448
    %v1611 = vunpack.c.h.b16 %v448
    %v1612 = vunpack.c.l.b16 %v449
    %v1613 = vunpack.c.h.b16 %v449
    %v1614 = vunpack.c.l.b16 %v450
    %v1615 = vunpack.c.h.b16 %v450
    %v1616 = vunpack.c.l.b16 %v451
    %v1617 = vunpack.c.h.b16 %v451
    %v1618 = vunpack.c.l.b16 %v452
    %v1619 = vunpack.c.h.b16 %v452
    %v1620 = vunpack.c.l.b16 %v453
    %v1621 = vunpack.c.h.b16 %v453
    %v1622 = vunpack.c.l.b16 %v454
    %v1623 = vunpack.c.h.b16 %v454
    %v1624 = vunpack.c.l.b16 %v455
    %v1625 = vunpack.c.h.b16 %v455
    %v1626 = vunpack.c.l.b16 %v456
    %v1627 = vunpack.c.h.b16 %v456
    %v1628 = vunpack.c.l.b16 %v457
    %v1629 = vunpack.c.h.b16 %v457
    %v1630 = vunpack.c.l.b16 %v458
    %v1631 = vunpack.c.h.b16 %v458
    %v1632 = vunpack.c.l.b16 %v459
    %v1633 = vunpack.c.h.b16 %v459
    %v1634 = vunpack.c.l.b16 %v460
    %v1635 = vunpack.c.h.b16 %v460
    %v1636 = vunpack.c.l.b16 %v461
    %v1637 = vunpack.c.h.b16 %v461
    %v1638 = vunpack.c.l.b16 %v462
    %v1639 = vunpack.c.h.b16 %v462
    %v1640 = vunpack.c.l.b16 %v463
    %v1641 = vunpack.c.h.b16 %v463
    %v1642 = vunpack.c.l.b16 %v464
    %v1643 = vunpack.c.h.b16 %v464
    %v1644 = vunpack.c.l.b16 %v465
    %v1645 = vunpack.c.h.b16 %v465
    %v1646 = vunpack.c.l.b16 %v466
    %v1647 = vunpack.c.h.b16 %v466
    %v1648 = vunpack.c.l.b16 %v467
    %v1649 = vunpack.c.h.b16 %v467
    %v1650 = vunpack.c.l.b16 %v468
    %v1651 = vunpack.c.h.b16 %v468
    %v1652 = vunpack.c.l.b16 %v469
    %v1653 = vunpack.c.h.b16 %v469
    %v1654 = vunpack.c.l.b16 %v470
    %v1655 = vunpack.c.h.b16 %v470
    %v1656 = vunpack.c.l.b16 %v471
    %v1657 = vunpack.c.h.b16 %v471
    %v1658 = vunpack.c.l.b16 %v472
    %v1659 = vunpack.c.h.b16 %v472
    %v1660 = vunpack.c.l.b16 %v473
    %v1661 = vunpack.c.h.b16 %v473
    %v1662 = vunpack.c.l.b16 %v474
    %v1663 = vunpack.c.h.b16 %v474
    %v1664 = vunpack.c.l.b16 %v475
    %v1665 = vunpack.c.h.b16 %v475
    %v1666 = vunpack.c.l.b16 %v476
    %v1667 = vunpack.c.h.b16 %v476
    %v1668 = vunpack.c.l.b16 %v477
    %v1669 = vunpack.c.h.b16 %v477
    %v1670 = vunpack.c.l.b16 %v478
    %v1671 = vunpack.c.h.b16 %v478
    %v1672 = vunpack.c.l.b16 %v479
    %v1673 = vunpack.c.h.b16 %v479
    %v1674 = vunpack.c.l.b16 %v480
    %v1675 = vunpack.c.h.b16 %v480
    %v1676 = vunpack.c.l.b16 %v481
    %v1677 = vunpack.c.h.b16 %v481
    %v1678 = vunpack.c.l.b16 %v482
    %v1679 = vunpack.c.h.b16 %v482
    %v1680 = vunpack.c.l.b16 %v483
    %v1681 = vunpack.c.h.b16 %v483
    %v1682 = vunpack.c.l.b16 %v484
    %v1683 = vunpack.c.h.b16 %v484
    %v1684 = vunpack.c.l.b16 %v485
    %v1685 = vunpack.c.h.b16 %v485
    %v1686 = vunpack.c.l.b16 %v486
    %v1687 = vunpack.c.h.b16 %v486
    %v1688 = vunpack.c.l.b16 %v487
    %v1689 = vunpack.c.h.b16 %v487
    %v1690 = vunpack.c.l.b16 %v488
    %v1691 = vunpack.c.h.b16 %v488
    %v1692 = vunpack.c.l.b16 %v489
    %v1693 = vunpack.c.h.b16 %v489
    %v1694 = vunpack.c.l.b16 %v490
    %v1695 = vunpack.c.h.b16 %v490
    %v1696 = vunpack.c.l.b16 %v491
    %v1697 = vunpack.c.h.b16 %v491
    %v1698 = vunpack.c.l.b16 %v492
    %v1699 = vunpack.c.h.b16 %v492
    %v1700 = vunpack.c.l.b16 %v493
    %v1701 = vunpack.c.h.b16 %v493
    %v1702 = vunpack.c.l.b16 %v494
    %v1703 = vunpack.c.h.b16 %v494
    %v1704 = vunpack.c.l.b16 %v495
    %v1705 = vunpack.c.h.b16 %v495
    %v1706 = vunpack.c.l.b16 %v496
    %v1707 = vunpack.c.h.b16 %v496
    %v1708 = vunpack.c.l.b16 %v497
    %v1709 = vunpack.c.h.b16 %v497
    %v1710 = vunpack.c.l.b16 %v498
    %v1711 = vunpack.c.h.b16 %v498
    %v1712 = vunpack.c.l.b16 %v499
    %v1713 = vunpack.c.h.b16 %v499
    %v1714 = vunpack.c.l.b16 %v500
    %v1715 = vunpack.c.h.b16 %v500
    %v1716 = vunpack.c.l.b16 %v501
    %v1717 = vunpack.c.h.b16 %v501
    %v1718 = vunpack.c.l.b16 %v502
    %v1719 = vunpack.c.h.b16 %v502
    %v1720 = vunpack.c.l.b16 %v503
    %v1721 = vunpack.c.h.b16 %v503
    %v1722 = vunpack.c.l.b16 %v504
    %v1723 = vunpack.c.h.b16 %v504
    %v1724 = vunpack.c.l.b16 %v505
    %v1725 = vunpack.c.h.b16 %v505
    %v1726 = vunpack.c.l.b16 %v506
    %v1727 = vunpack.c.h.b16 %v506
    %v1728 = vunpack.c.l.b16 %v507
    %v1729 = vunpack.c.h.b16 %v507
    %v1730 = vunpack.c.l.b16 %v508
    %v1731 = vunpack.c.h.b16 %v508
    %v1732 = vunpack.c.l.b16 %v509
    %v1733 = vunpack.c.h.b16 %v509
    %v1734 = vunpack.c.l.b16 %v510
    %v1735 = vunpack.c.h.b16 %v510
    %v1736 = vunpack.c.l.b16 %v511
    %v1737 = vunpack.c.h.b16 %v511
    %v1738 = vunpack.c.l.b16 %v512
    %v1739 = vunpack.c.h.b16 %v512
    %v1740 = vunpack.c.l.b16 %v513
    %v1741 = vunpack.c.h.b16 %v513
    %v1742 = vunpack.c.l.b16 %v514
    %v1743 = vunpack.c.h.b16 %v514
    %v1744 = vunpack.c.l.b16 %v515
    %v1745 = vunpack.c.h.b16 %v515
    %v1746 = vunpack.c.l.b16 %v516
    %v1747 = vunpack.c.h.b16 %v516
    %v1748 = vunpack.c.l.b16 %v517
    %v1749 = vunpack.c.h.b16 %v517
    %v1750 = vunpack.c.l.b16 %v518
    %v1751 = vunpack.c.h.b16 %v518
    %v1752 = vunpack.c.l.b16 %v519
    %v1753 = vunpack.c.h.b16 %v519
    %v1754 = vunpack.c.l.b16 %v520
    %v1755 = vunpack.c.h.b16 %v520
    %v1756 = vunpack.c.l.b16 %v521
    %v1757 = vunpack.c.h.b16 %v521
    %v1758 = vunpack.c.l.b16 %v522
    %v1759 = vunpack.c.h.b16 %v522
    %v1760 = vunpack.c.l.b16 %v523
    %v1761 = vunpack.c.h.b16 %v523
    %v1762 = vunpack.c.l.b16 %v524
    %v1763 = vunpack.c.h.b16 %v524
    %v1764 = vunpack.c.l.b16 %v525
    %v1765 = vunpack.c.h.b16 %v525
    %v1766 = vunpack.c.l.b16 %v526
    %v1767 = vunpack.c.h.b16 %v526
    %v1768 = vunpack.c.l.b16 %v527
    %v1769 = vunpack.c.h.b16 %v527
    %v1770 = vunpack.c.l.b16 %v528
    %v1771 = vunpack.c.h.b16 %v528
    %v1772 = vunpack.c.l.b16 %v529
    %v1773 = vunpack.c.h.b16 %v529
    %v1774 = vunpack.c.l.b16 %v530
    %v1775 = vunpack.c.h.b16 %v530
    %v1776 = vunpack.c.l.b16 %v531
    %v1777 = vunpack.c.h.b16 %v531
    %v1778 = vunpack.c.l.b16 %v532
    %v1779 = vunpack.c.h.b16 %v532
    %v1780 = vunpack.c.l.b16 %v533
    %v1781 = vunpack.c.h.b16 %v533
    %v1782 = vunpack.c.l.b16 %v534
    %v1783 = vunpack.c.h.b16 %v534
    %v1784 = vunpack.c.l.b16 %v535
    %v1785 = vunpack.c.h.b16 %v535
    %v1786 = vunpack.c.l.b16 %v536
    %v1787 = vunpack.c.h.b16 %v536
    %v1788 = vunpack.c.l.b16 %v537
    %v1789 = vunpack.c.h.b16 %v537
    %v1790 = vunpack.c.l.b16 %v538
    %v1791 = vunpack.c.h.b16 %v538
    %v1792 = vunpack.c.l.b16 %v539
    %v1793 = vunpack.c.h.b16 %v539
    %v1794 = vunpack.c.l.b16 %v540
    %v1795 = vunpack.c.h.b16 %v540
    %v1796 = vunpack.c.l.b16 %v541
    %v1797 = vunpack.c.h.b16 %v541
    %v1798 = vunpack.c.l.b16 %v542
    %v1799 = vunpack.c.h.b16 %v542
    %v1800 = vunpack.c.l.b16 %v543
    %v1801 = vunpack.c.h.b16 %v543
    %v1802 = vunpack.c.l.b16 %v544
    %v1803 = vunpack.c.h.b16 %v544
    %v1804 = vunpack.c.l.b16 %v545
    %v1805 = vunpack.c.h.b16 %v545
    %v1806 = vunpack.c.l.b16 %v546
    %v1807 = vunpack.c.h.b16 %v546
    %v1808 = vunpack.c.l.b16 %v547
    %v1809 = vunpack.c.h.b16 %v547
    %v1810 = vunpack.c.l.b16 %v548
    %v1811 = vunpack.c.h.b16 %v548
    %v1812 = vunpack.c.l.b16 %v549
    %v1813 = vunpack.c.h.b16 %v549
    %v1814 = vunpack.c.l.b16 %v550
    %v1815 = vunpack.c.h.b16 %v550
    %v1816 = vunpack.c.l.b16 %v551
    %v1817 = vunpack.c.h.b16 %v551
    %v1818 = vunpack.c.l.b16 %v552
    %v1819 = vunpack.c.h.b16 %v552
    %v1820 = vunpack.c.l.b16 %v553
    %v1821 = vunpack.c.h.b16 %v553
    %v1822 = vunpack.c.l.b16 %v554
    %v1823 = vunpack.c.h.b16 %v554
    %v1824 = vunpack.c.l.b16 %v555
    %v1825 = vunpack.c.h.b16 %v555
    %v1826 = vunpack.c.l.b16 %v556
    %v1827 = vunpack.c.h.b16 %v556
    %v1828 = vunpack.c.l.b16 %v557
    %v1829 = vunpack.c.h.b16 %v557
    %v1830 = vunpack.c.l.b16 %v558
    %v1831 = vunpack.c.h.b16 %v558
    %v1832 = vunpack.c.l.b16 %v559
    %v1833 = vunpack.c.h.b16 %v559
    %v1834 = vunpack.c.l.b16 %v560
    %v1835 = vunpack.c.h.b16 %v560
    %v1836 = vunpack.c.l.b16 %v561
    %v1837 = vunpack.c.h.b16 %v561
    %v1838 = vunpack.c.l.b16 %v562
    %v1839 = vunpack.c.h.b16 %v562
    %v1840 = vunpack.c.l.b16 %v563
    %v1841 = vunpack.c.h.b16 %v563
    %v1842 = vunpack.c.l.b16 %v564
    %v1843 = vunpack.c.h.b16 %v564
    %v1844 = vunpack.c.l.b16 %v565
    %v1845 = vunpack.c.h.b16 %v565
    %v1846 = vunpack.c.l.b16 %v566
    %v1847 = vunpack.c.h.b16 %v566
    %v1848 = vunpack.c.l.b16 %v567
    %v1849 = vunpack.c.h.b16 %v567
    %v1850 = vunpack.c.l.b16 %v568
    %v1851 = vunpack.c.h.b16 %v568
    %v1852 = vunpack.c.l.b16 %v569
    %v1853 = vunpack.c.h.b16 %v569
    %v1854 = vunpack.c.l.b16 %v570
    %v1855 = vunpack.c.h.b16 %v570
    %v1856 = vunpack.c.l.b16 %v571
    %v1857 = vunpack.c.h.b16 %v571
    %v1858 = vunpack.c.l.b16 %v572
    %v1859 = vunpack.c.h.b16 %v572
    %v1860 = vunpack.c.l.b16 %v573
    %v1861 = vunpack.c.h.b16 %v573
    %v1862 = vunpack.c.l.b16 %v574
    %v1863 = vunpack.c.h.b16 %v574
    %v1864 = vunpack.c.l.b16 %v575
    %v1865 = vunpack.c.h.b16 %v575
    %v1866 = vunpack.c.l.b16 %v576
    %v1867 = vunpack.c.h.b16 %v576
    %v1868 = vunpack.c.l.b16 %v577
    %v1869 = vunpack.c.h.b16 %v577
    %v1870 = vunpack.c.l.b16 %v578
    %v1871 = vunpack.c.h.b16 %v578
    %v1872 = vunpack.c.l.b16 %v579
    %v1873 = vunpack.c.h.b16 %v579
    %v1874 = vunpack.c.l.b16 %v580
    %v1875 = vunpack.c.h.b16 %v580
    %v1876 = vunpack.c.l.b16 %v581
    %v1877 = vunpack.c.h.b16 %v581
    %v1878 = vunpack.c.l.b16 %v582
    %v1879 = vunpack.c.h.b16 %v582
    %v1880 = vunpack.c.l.b16 %v583
    %v1881 = vunpack.c.h.b16 %v583
    %v1882 = vunpack.c.l.b16 %v584
    %v1883 = vunpack.c.h.b16 %v584
    %v1884 = vunpack.c.l.b16 %v585
    %v1885 = vunpack.c.h.b16 %v585
    %v1886 = vunpack.c.l.b16 %v586
    %v1887 = vunpack.c.h.b16 %v586
    %v1888 = vunpack.c.l.b16 %v587
    %v1889 = vunpack.c.h.b16 %v587
    %v1890 = vunpack.c.l.b16 %v588
    %v1891 = vunpack.c.h.b16 %v588
    %v1892 = vunpack.c.l.b16 %v589
    %v1893 = vunpack.c.h.b16 %v589
    %v1894 = vunpack.c.l.b16 %v590
    %v1895 = vunpack.c.h.b16 %v590
    %v1896 = vunpack.c.l.b16 %v591
    %v1897 = vunpack.c.h.b16 %v591
    %v1898 = vunpack.c.l.b16 %v592
    %v1899 = vunpack.c.h.b16 %v592
    %v1900 = vunpack.c.l.b16 %v593
    %v1901 = vunpack.c.h.b16 %v593
    %v1902 = vunpack.c.l.b16 %v594
    %v1903 = vunpack.c.h.b16 %v594
    %v1904 = vunpack.c.l.b16 %v595
    %v1905 = vunpack.c.h.b16 %v595
    %v1906 = vunpack.c.l.b16 %v596
    %v1907 = vunpack.c.h.b16 %v596
    %v1908 = vunpack.c.l.b16 %v597
    %v1909 = vunpack.c.h.b16 %v597
    %v1910 = vunpack.c.l.b16 %v598
    %v1911 = vunpack.c.h.b16 %v598
    %v1912 = vunpack.c.l.b16 %v599
    %v1913 = vunpack.c.h.b16 %v599
    %v1914 = vunpack.c.l.b16 %v600
    %v1915 = vunpack.c.h.b16 %v600
    %v1916 = vunpack.c.l.b16 %v601
    %v1917 = vunpack.c.h.b16 %v601
    %v1918 = vunpack.c.l.b16 %v602
    %v1919 = vunpack.c.h.b16 %v602
    %v1920 = vunpack.c.l.b16 %v603
    %v1921 = vunpack.c.h.b16 %v603
    %v1922 = vunpack.c.l.b16 %v604
    %v1923 = vunpack.c.h.b16 %v604
    %v1924 = vunpack.c.l.b16 %v605
    %v1925 = vunpack.c.h.b16 %v605
    %v1926 = vunpack.c.l.b16 %v606
    %v1927 = vunpack.c.h.b16 %v606
    %v1928 = vunpack.c.l.b16 %v607
    %v1929 = vunpack.c.h.b16 %v607
    %v1930 = vunpack.c.l.b16 %v608
    %v1931 = vunpack.c.h.b16 %v608
    %v1932 = vunpack.c.l.b16 %v609
    %v1933 = vunpack.c.h.b16 %v609
    %v1934 = vunpack.c.l.b16 %v610
    %v1935 = vunpack.c.h.b16 %v610
    %v1936 = vunpack.c.l.b16 %v611
    %v1937 = vunpack.c.h.b16 %v611
    %v1938 = vunpack.c.l.b16 %v612
    %v1939 = vunpack.c.h.b16 %v612
    %v1940 = vunpack.c.l.b16 %v613
    %v1941 = vunpack.c.h.b16 %v613
    %v1942 = vunpack.c.l.b16 %v614
    %v1943 = vunpack.c.h.b16 %v614
    %v1944 = vunpack.c.l.b16 %v615
    %v1945 = vunpack.c.h.b16 %v615
    %v1946 = vunpack.c.l.b16 %v616
    %v1947 = vunpack.c.h.b16 %v616
    %v1948 = vunpack.c.l.b16 %v617
    %v1949 = vunpack.c.h.b16 %v617
    %v1950 = vunpack.c.l.b16 %v618
    %v1951 = vunpack.c.h.b16 %v618
    %v1952 = vunpack.c.l.b16 %v619
    %v1953 = vunpack.c.h.b16 %v619
    %v1954 = vunpack.c.l.b16 %v620
    %v1955 = vunpack.c.h.b16 %v620
    %v1956 = vunpack.c.l.b16 %v621
    %v1957 = vunpack.c.h.b16 %v621
    %v1958 = vunpack.c.l.b16 %v622
    %v1959 = vunpack.c.h.b16 %v622
    %v1960 = vunpack.c.l.b16 %v623
    %v1961 = vunpack.c.h.b16 %v623
    %v1962 = vunpack.c.l.b16 %v624
    %v1963 = vunpack.c.h.b16 %v624
    %v1964 = vunpack.c.l.b16 %v625
    %v1965 = vunpack.c.h.b16 %v625
    %v1966 = vunpack.c.l.b16 %v626
    %v1967 = vunpack.c.h.b16 %v626
    %v1968 = vunpack.c.l.b16 %v627
    %v1969 = vunpack.c.h.b16 %v627
    %v1970 = vunpack.c.l.b16 %v628
    %v1971 = vunpack.c.h.b16 %v628
    %v1972 = vunpack.c.l.b16 %v629
    %v1973 = vunpack.c.h.b16 %v629
    %v1974 = vunpack.c.l.b16 %v630
    %v1975 = vunpack.c.h.b16 %v630
    %v1976 = vunpack.c.l.b16 %v631
    %v1977 = vunpack.c.h.b16 %v631
    %v1978 = vunpack.c.l.b16 %v632
    %v1979 = vunpack.c.h.b16 %v632
    %v1980 = vunpack.c.l.b16 %v633
    %v1981 = vunpack.c.h.b16 %v633
    %v1982 = vunpack.c.l.b16 %v634
    %v1983 = vunpack.c.h.b16 %v634
    %v1984 = vunpack.c.l.b16 %v635
    %v1985 = vunpack.c.h.b16 %v635
    %v1986 = vunpack.c.l.b16 %v636
    %v1987 = vunpack.c.h.b16 %v636
    %v1988 = vunpack.c.l.b16 %v637
    %v1989 = vunpack.c.h.b16 %v637
    %v1990 = vunpack.c.l.b16 %v638
    %v1991 = vunpack.c.h.b16 %v638
    %v1992 = vunpack.c.l.b16 %v639
    %v1993 = vunpack.c.h.b16 %v639
    %v1994 = vunpack.c.l.b16 %v640
    %v1995 = vunpack.c.h.b16 %v640
    %v1996 = vunpack.c.l.b16 %v641
    %v1997 = vunpack.c.h.b16 %v641
    %v1998 = vunpack.c.l.b16 %v642
    %v1999 = vunpack.c.h.b16 %v642
    %v2000 = vunpack.c.l.b16 %v643
    %v2001 = vunpack.c.h.b16 %v643
    %v2002 = vunpack.c.l.b16 %v644
    %v2003 = vunpack.c.h.b16 %v644
    %v2004 = vunpack.c.l.b16 %v645
    %v2005 = vunpack.c.h.b16 %v645
    %v2006 = vunpack.c.l.b16 %v646
    %v2007 = vunpack.c.h.b16 %v646
    %v2008 = vunpack.c.l.b16 %v647
    %v2009 = vunpack.c.h.b16 %v647
    %v2010 = vunpack.c.l.b16 %v648
    %v2011 = vunpack.c.h.b16 %v648
    %v2012 = vunpack.c.l.b16 %v649
    %v2013 = vunpack.c.h.b16 %v649
    %v2014 = vunpack.c.l.b16 %v650
    %v2015 = vunpack.c.h.b16 %v650
    %v2016 = vunpack.c.l.b16 %v651
    %v2017 = vunpack.c.h.b16 %v651
    %v2018 = vunpack.c.l.b16 %v652
    %v2019 = vunpack.c.h.b16 %v652
    %v2020 = vunpack.c.l.b16 %v653
    %v2021 = vunpack.c.h.b16 %v653
    %v2022 = vunpack.c.l.b16 %v654
    %v2023 = vunpack.c.h.b16 %v654
    %v2024 = vunpack.c.l.b16 %v655
    %v2025 = vunpack.c.h.b16 %v655
    %v2026 = vunpack.c.l.b16 %v656
    %v2027 = vunpack.c.h.b16 %v656
    %v2028 = vunpack.c.l.b16 %v657
    %v2029 = vunpack.c.h.b16 %v657
    %v2030 = vunpack.c.l.b16 %v658
    %v2031 = vunpack.c.h.b16 %v658
    %v2032 = vunpack.c.l.b16 %v659
    %v2033 = vunpack.c.h.b16 %v659
    %v2034 = vunpack.c.l.b16 %v660
    %v2035 = vunpack.c.h.b16 %v660
    %v2036 = vunpack.c.l.b16 %v661
    %v2037 = vunpack.c.h.b16 %v661
    %v2038 = vunpack.c.l.b16 %v662
    %v2039 = vunpack.c.h.b16 %v662
    %v2040 = vunpack.c.l.b16 %v663
    %v2041 = vunpack.c.h.b16 %v663
    %v2042 = vunpack.c.l.b16 %v664
    %v2043 = vunpack.c.h.b16 %v664
    %v2044 = vunpack.c.l.b16 %v665
    %v2045 = vunpack.c.h.b16 %v665
    %v2046 = vunpack.c.l.b16 %v666
    %v2047 = vunpack.c.h.b16 %v666
    %v2048 = vunpack.c.l.b16 %v667
    %v2049 = vunpack.c.h.b16 %v667
    %v2050 = vunpack.c.l.b16 %v668
    %v2051 = vunpack.c.h.b16 %v668
    %v2052 = vunpack.c.l.b16 %v669
    %v2053 = vunpack.c.h.b16 %v669
    %v2054 = vunpack.c.l.b16 %v670
    %v2055 = vunpack.c.h.b16 %v670
    %v2056 = vunpack.c.l.b16 %v671
    %v2057 = vunpack.c.h.b16 %v671
    %v2058 = vunpack.c.l.b16 %v672
    %v2059 = vunpack.c.h.b16 %v672
    %v2060 = vunpack.c.l.b16 %v673
    %v2061 = vunpack.c.h.b16 %v673
    %v2062 = vunpack.c.l.b16 %v674
    %v2063 = vunpack.c.h.b16 %v674
    %v2064 = vunpack.c.l.b16 %v675
    %v2065 = vunpack.c.h.b16 %v675
    %v2066 = vunpack.c.l.b16 %v676
    %v2067 = vunpack.c.h.b16 %v676
    %v2068 = vunpack.c.l.b16 %v677
    %v2069 = vunpack.c.h.b16 %v677
    %v2070 = vunpack.c.l.b16 %v678
    %v2071 = vunpack.c.h.b16 %v678
    %v2072 = vunpack.c.l.b16 %v679
    %v2073 = vunpack.c.h.b16 %v679
    %v2074 = vunpack.c.l.b16 %v680
    %v2075 = vunpack.c.h.b16 %v680
    %v2076 = vunpack.c.l.b16 %v681
    %v2077 = vunpack.c.h.b16 %v681
    %v2078 = vunpack.c.l.b16 %v682
    %v2079 = vunpack.c.h.b16 %v682
    %v2080 = vunpack.c.l.b16 %v683
    %v2081 = vunpack.c.h.b16 %v683
    %v2082 = vunpack.c.l.b16 %v684
    %v2083 = vunpack.c.h.b16 %v684
    %v2084 = vunpack.c.l.b16 %v685
    %v2085 = vunpack.c.h.b16 %v685
    %v2086 = vunpack.c.l.b16 %v686
    %v2087 = vunpack.c.h.b16 %v686
    %v2088 = vunpack.c.l.b16 %v687
    %v2089 = vunpack.c.h.b16 %v687
    %v2090 = vunpack.c.l.b16 %v688
    %v2091 = vunpack.c.h.b16 %v688
    %v2092 = vunpack.c.l.b16 %v689
    %v2093 = vunpack.c.h.b16 %v689
    %v2094 = vunpack.c.l.b16 %v690
    %v2095 = vunpack.c.h.b16 %v690
    %v2096 = vunpack.c.l.b16 %v691
    %v2097 = vunpack.c.h.b16 %v691
    %v2098 = vunpack.c.l.b16 %v692
    %v2099 = vunpack.c.h.b16 %v692
    %v2100 = vunpack.c.l.b16 %v693
    %v2101 = vunpack.c.h.b16 %v693
    %v2102 = vunpack.c.l.b16 %v694
    %v2103 = vunpack.c.h.b16 %v694
    %v2104 = vunpack.c.l.b16 %v695
    %v2105 = vunpack.c.h.b16 %v695
    %v2106 = vunpack.c.l.b16 %v696
    %v2107 = vunpack.c.h.b16 %v696
    %v2108 = vunpack.c.l.b16 %v697
    %v2109 = vunpack.c.h.b16 %v697
    %v2110 = vunpack.c.l.b16 %v698
    %v2111 = vunpack.c.h.b16 %v698
    %v2112 = vunpack.c.l.b16 %v699
    %v2113 = vunpack.c.h.b16 %v699
    %v2114 = vunpack.c.l.b16 %v700
    %v2115 = vunpack.c.h.b16 %v700
    %v2116 = vunpack.c.l.b16 %v701
    %v2117 = vunpack.c.h.b16 %v701
    %v2118 = vunpack.c.l.b16 %v702
    %v2119 = vunpack.c.h.b16 %v702
    %v2120 = vunpack.c.l.b16 %v703
    %v2121 = vunpack.c.h.b16 %v703
    %v2122 = vunpack.c.l.b16 %v704
    %v2123 = vunpack.c.h.b16 %v704
    %v2124 = vunpack.c.l.b16 %v705
    %v2125 = vunpack.c.h.b16 %v705
    %v2126 = vunpack.c.l.b16 %v706
    %v2127 = vunpack.c.h.b16 %v706
    %v2128 = vunpack.c.l.b16 %v707
    %v2129 = vunpack.c.h.b16 %v707
    %v2130 = vunpack.c.l.b16 %v708
    %v2131 = vunpack.c.h.b16 %v708
    %v2132 = vunpack.c.l.b16 %v709
    %v2133 = vunpack.c.h.b16 %v709
    %v2134 = vunpack.c.l.b16 %v710
    %v2135 = vunpack.c.h.b16 %v710
    %v2136 = vunpack.c.l.b16 %v711
    %v2137 = vunpack.c.h.b16 %v711
    %v2138 = vunpack.c.l.b16 %v712
    %v2139 = vunpack.c.h.b16 %v712
    %v2140 = vunpack.c.l.b16 %v713
    %v2141 = vunpack.c.h.b16 %v713
    %v2142 = vunpack.c.l.b16 %v714
    %v2143 = vunpack.c.h.b16 %v714
    %v2144 = vunpack.c.l.b16 %v715
    %v2145 = vunpack.c.h.b16 %v715
    %v2146 = vunpack.c.l.b16 %v716
    %v2147 = vunpack.c.h.b16 %v716
    %v2148 = vunpack.c.l.b16 %v717
    %v2149 = vunpack.c.h.b16 %v717
    %v2150 = vunpack.c.l.b16 %v718
    %v2151 = vunpack.c.h.b16 %v718
    %v2152 = vunpack.c.l.b16 %v719
    %v2153 = vunpack.c.h.b16 %v719
    %v2154 = vunpack.c.l.b16 %v720
    %v2155 = vunpack.c.h.b16 %v720
    %v2156 = vunpack.c.l.b16 %v721
    %v2157 = vunpack.c.h.b16 %v721
    %v2158 = vunpack.c.l.b16 %v722
    %v2159 = vunpack.c.h.b16 %v722
    %v2160 = vunpack.c.l.b16 %v723
    %v2161 = vunpack.c.h.b16 %v723
    %v2162 = vunpack.c.l.b16 %v724
    %v2163 = vunpack.c.h.b16 %v724
    %v2164 = vunpack.c.l.b16 %v725
    %v2165 = vunpack.c.h.b16 %v725
    %v2166 = vunpack.c.l.b16 %v726
    %v2167 = vunpack.c.h.b16 %v726
    %v2168 = vunpack.c.l.b16 %v727
    %v2169 = vunpack.c.h.b16 %v727
    %v2170 = vunpack.c.l.b16 %v728
    %v2171 = vunpack.c.h.b16 %v728
    %v2172 = vunpack.c.l.b16 %v729
    %v2173 = vunpack.c.h.b16 %v729
    %v2174 = vunpack.c.l.b16 %v730
    %v2175 = vunpack.c.h.b16 %v730
    %v2176 = vunpack.c.l.b16 %v731
    %v2177 = vunpack.c.h.b16 %v731
    %v2178 = vunpack.c.l.b16 %v732
    %v2179 = vunpack.c.h.b16 %v732
    %v2180 = vunpack.c.l.b16 %v733
    %v2181 = vunpack.c.h.b16 %v733
    %v2182 = vunpack.c.l.b16 %v734
    %v2183 = vunpack.c.h.b16 %v734
    %v2184 = vunpack.c.l.b16 %v735
    %v2185 = vunpack.c.h.b16 %v735
    %v2186 = vunpack.c.l.b16 %v736
    %v2187 = vunpack.c.h.b16 %v736
    %v2188 = vunpack.c.l.b16 %v737
    %v2189 = vunpack.c.h.b16 %v737
    %v2190 = vunpack.c.l.b16 %v738
    %v2191 = vunpack.c.h.b16 %v738
    %v2192 = vunpack.c.l.b16 %v739
    %v2193 = vunpack.c.h.b16 %v739
    %v2194 = vunpack.c.l.b16 %v740
    %v2195 = vunpack.c.h.b16 %v740
    %v2196 = vunpack.c.l.b16 %v741
    %v2197 = vunpack.c.h.b16 %v741
    %v2198 = vunpack.c.l.b16 %v742
    %v2199 = vunpack.c.h.b16 %v742
    %v2200 = vunpack.c.l.b16 %v743
    %v2201 = vunpack.c.h.b16 %v743
    %v2202 = vunpack.c.l.b16 %v744
    %v2203 = vunpack.c.h.b16 %v744
    %v2204 = vunpack.c.l.b16 %v745
    %v2205 = vunpack.c.h.b16 %v745
    %v2206 = vunpack.c.l.b16 %v746
    %v2207 = vunpack.c.h.b16 %v746
    %v2208 = vunpack.c.l.b16 %v747
    %v2209 = vunpack.c.h.b16 %v747
    %v2210 = vunpack.c.l.b16 %v748
    %v2211 = vunpack.c.h.b16 %v748
    %v2212 = vunpack.c.l.b16 %v749
    %v2213 = vunpack.c.h.b16 %v749
    %v2214 = vunpack.c.l.b16 %v750
    %v2215 = vunpack.c.h.b16 %v750
    %v2216 = vunpack.c.l.b16 %v751
    %v2217 = vunpack.c.h.b16 %v751
    %v2218 = vunpack.c.l.b16 %v752
    %v2219 = vunpack.c.h.b16 %v752
    %v2220 = vunpack.c.l.b16 %v753
    %v2221 = vunpack.c.h.b16 %v753
    %v2222 = vunpack.c.l.b16 %v754
    %v2223 = vunpack.c.h.b16 %v754
    %v2224 = vunpack.c.l.b16 %v755
    %v2225 = vunpack.c.h.b16 %v755
    %v2226 = vunpack.c.l.b16 %v756
    %v2227 = vunpack.c.h.b16 %v756
    %v2228 = vunpack.c.l.b16 %v757
    %v2229 = vunpack.c.h.b16 %v757
    %v2230 = vunpack.c.l.b16 %v758
    %v2231 = vunpack.c.h.b16 %v758
    %v2232 = vunpack.c.l.b16 %v759
    %v2233 = vunpack.c.h.b16 %v759
    %v2234 = vunpack.c.l.b16 %v760
    %v2235 = vunpack.c.h.b16 %v760
    %v2236 = vunpack.c.l.b16 %v761
    %v2237 = vunpack.c.h.b16 %v761
    %v2238 = vunpack.c.l.b16 %v762
    %v2239 = vunpack.c.h.b16 %v762
    %v2240 = vunpack.c.l.b16 %v763
    %v2241 = vunpack.c.h.b16 %v763
    %v2242 = vunpack.c.l.b16 %v764
    %v2243 = vunpack.c.h.b16 %v764
    %v2244 = vunpack.c.l.b16 %v765
    %v2245 = vunpack.c.h.b16 %v765
    %v2246 = vunpack.c.l.b16 %v766
    %v2247 = vunpack.c.h.b16 %v766
    %v2248 = vunpack.c.l.b16 %v767
    %v2249 = vunpack.c.h.b16 %v767
    %v2250 = vunpack.c.l.b16 %v768
    %v2251 = vunpack.c.h.b16 %v768
    %v2252 = vunpack.c.l.b16 %v769
    %v2253 = vunpack.c.h.b16 %v769
    %v2254 = vunpack.c.l.b16 %v770
    %v2255 = vunpack.c.h.b16 %v770
    %v2256 = vunpack.c.l.b16 %v771
    %v2257 = vunpack.c.h.b16 %v771
    %v2258 = vunpack.c.l.b16 %v772
    %v2259 = vunpack.c.h.b16 %v772
    %v2260 = vunpack.c.l.b16 %v773
    %v2261 = vunpack.c.h.b16 %v773
    %v2262 = vunpack.c.l.b16 %v774
    %v2263 = vunpack.c.h.b16 %v774
    %v2264 = vunpack.c.l.b16 %v775
    %v2265 = vunpack.c.h.b16 %v775
    %v2266 = vunpack.c.l.b16 %v776
    %v2267 = vunpack.c.h.b16 %v776
    %v2268 = vunpack.c.l.b16 %v777
    %v2269 = vunpack.c.h.b16 %v777
    %v2270 = vunpack.c.l.b16 %v778
    %v2271 = vunpack.c.h.b16 %v778
    %v2272 = vunpack.c.l.b16 %v779
    %v2273 = vunpack.c.h.b16 %v779
    %v2274 = vunpack.c.l.b16 %v780
    %v2275 = vunpack.c.h.b16 %v780
    %v2276 = vunpack.c.l.b16 %v781
    %v2277 = vunpack.c.h.b16 %v781
    %v2278 = vunpack.c.l.b16 %v782
    %v2279 = vunpack.c.h.b16 %v782
    %v2280 = vunpack.c.l.b16 %v783
    %v2281 = vunpack.c.h.b16 %v783
    %v2282 = vunpack.c.l.b16 %v784
    %v2283 = vunpack.c.h.b16 %v784
    %v2284 = vunpack.c.l.b16 %v785
    %v2285 = vunpack.c.h.b16 %v785
    %v2286 = vunpack.c.l.b16 %v786
    %v2287 = vunpack.c.h.b16 %v786
    %v2288 = vunpack.c.l.b16 %v787
    %v2289 = vunpack.c.h.b16 %v787
    %v2290 = vunpack.c.l.b16 %v788
    %v2291 = vunpack.c.h.b16 %v788
    %v2292 = vunpack.c.l.b16 %v789
    %v2293 = vunpack.c.h.b16 %v789
    %v2294 = vunpack.c.l.b16 %v790
    %v2295 = vunpack.c.h.b16 %v790
    %v2296 = vunpack.c.l.b16 %v791
    %v2297 = vunpack.c.h.b16 %v791
    %v2298 = vunpack.c.l.b16 %v792
    %v2299 = vunpack.c.h.b16 %v792
    %v2300 = vunpack.c.l.b16 %v793
    %v2301 = vunpack.c.h.b16 %v793
    %v2302 = vunpack.c.l.b16 %v794
    %v2303 = vunpack.c.h.b16 %v794
    %v2304 = vunpack.c.l.b16 %v795
    %v2305 = vunpack.c.h.b16 %v795
    %v2306 = vunpack.c.l.b16 %v796
    %v2307 = vunpack.c.h.b16 %v796
    %v2308 = vunpack.c.l.b16 %v797
    %v2309 = vunpack.c.h.b16 %v797
    %v2310 = vunpack.c.l.b16 %v798
    %v2311 = vunpack.c.h.b16 %v798
    %v2312 = vunpack.c.l.b16 %v799
    %v2313 = vunpack.c.h.b16 %v799
    %v2314 = vunpack.c.l.b16 %v800
    %v2315 = vunpack.c.h.b16 %v800
    %v2316 = vunpack.c.l.b16 %v801
    %v2317 = vunpack.c.h.b16 %v801
    %v2318 = vunpack.c.l.b16 %v802
    %v2319 = vunpack.c.h.b16 %v802
    %v2320 = vunpack.c.l.b16 %v803
    %v2321 = vunpack.c.h.b16 %v803
    %v2322 = vunpack.c.l.b16 %v804
    %v2323 = vunpack.c.h.b16 %v804
    %v2324 = vunpack.c.l.b16 %v805
    %v2325 = vunpack.c.h.b16 %v805
    %v2326 = vunpack.c.l.b16 %v806
    %v2327 = vunpack.c.h.b16 %v806
    %v2328 = vunpack.c.l.b16 %v807
    %v2329 = vunpack.c.h.b16 %v807
    %v2330 = vunpack.c.l.b16 %v808
    %v2331 = vunpack.c.h.b16 %v808
    %v2332 = vunpack.c.l.b16 %v809
    %v2333 = vunpack.c.h.b16 %v809
    %v2334 = vunpack.c.l.b16 %v810
    %v2335 = vunpack.c.h.b16 %v810
    %v2336 = vunpack.c.l.b16 %v811
    %v2337 = vunpack.c.h.b16 %v811
    %v2338 = vunpack.c.l.b16 %v812
    %v2339 = vunpack.c.h.b16 %v812
    %v2340 = vunpack.c.l.b16 %v813
    %v2341 = vunpack.c.h.b16 %v813
    %v2342 = vunpack.c.l.b16 %v814
    %v2343 = vunpack.c.h.b16 %v814
    %v2344 = vunpack.c.l.b16 %v815
    %v2345 = vunpack.c.h.b16 %v815
    %v2346 = vunpack.c.l.b16 %v816
    %v2347 = vunpack.c.h.b16 %v816
    %v2348 = vunpack.c.l.b16 %v817
    %v2349 = vunpack.c.h.b16 %v817
    %v2350 = vunpack.c.l.b16 %v818
    %v2351 = vunpack.c.h.b16 %v818
    %v2352 = vunpack.c.l.b16 %v819
    %v2353 = vunpack.c.h.b16 %v819
    %v2354 = vunpack.c.l.b16 %v820
    %v2355 = vunpack.c.h.b16 %v820
    %v2356 = vunpack.c.l.b16 %v821
    %v2357 = vunpack.c.h.b16 %v821
    %v2358 = vunpack.c.l.b16 %v822
    %v2359 = vunpack.c.h.b16 %v822
    %v2360 = vunpack.c.l.b16 %v823
    %v2361 = vunpack.c.h.b16 %v823
    %v2362 = vunpack.c.l.b16 %v824
    %v2363 = vunpack.c.h.b16 %v824
    %v2364 = vunpack.c.l.b16 %v825
    %v2365 = vunpack.c.h.b16 %v825
    %v2366 = vunpack.c.l.b16 %v826
    %v2367 = vunpack.c.h.b16 %v826
    %v2368 = vunpack.c.l.b16 %v827
    %v2369 = vunpack.c.h.b16 %v827
    %v2370 = vunpack.c.l.b16 %v828
    %v2371 = vunpack.c.h.b16 %v828
    %v2372 = vunpack.c.l.b16 %v829
    %v2373 = vunpack.c.h.b16 %v829
    %v2374 = vunpack.c.l.b16 %v830
    %v2375 = vunpack.c.h.b16 %v830
    %v2376 = vunpack.c.l.b16 %v831
    %v2377 = vunpack.c.h.b16 %v831
    %v2378 = vunpack.c.l.b16 %v832
    %v2379 = vunpack.c.h.b16 %v832
    %v2380 = vunpack.c.l.b16 %v833
    %v2381 = vunpack.c.h.b16 %v833
    %v2382 = vunpack.c.l.b16 %v834
    %v2383 = vunpack.c.h.b16 %v834
    %v2384 = vunpack.c.l.b16 %v835
    %v2385 = vunpack.c.h.b16 %v835
    %v2386 = vunpack.c.l.b16 %v836
    %v2387 = vunpack.c.h.b16 %v836
    %v2388 = vunpack.c.l.b16 %v837
    %v2389 = vunpack.c.h.b16 %v837
    %v2390 = vunpack.c.l.b16 %v838
    %v2391 = vunpack.c.h.b16 %v838
    %v2392 = vunpack.c.l.b16 %v839
    %v2393 = vunpack.c.h.b16 %v839
    %v2394 = vunpack.c.l.b16 %v840
    %v2395 = vunpack.c.h.b16 %v840
    %v2396 = vunpack.c.l.b16 %v841
    %v2397 = vunpack.c.h.b16 %v841
    %v2398 = vunpack.c.l.b16 %v842
    %v2399 = vunpack.c.h.b16 %v842
    %v2400 = vunpack.c.l.b16 %v843
    %v2401 = vunpack.c.h.b16 %v843
    %v2402 = vunpack.c.l.b16 %v844
    %v2403 = vunpack.c.h.b16 %v844
    %v2404 = vunpack.c.l.b16 %v845
    %v2405 = vunpack.c.h.b16 %v845
    %v2406 = vunpack.c.l.b16 %v846
    %v2407 = vunpack.c.h.b16 %v846
    %v2408 = vunpack.c.l.b16 %v847
    %v2409 = vunpack.c.h.b16 %v847
    %v2410 = vunpack.c.l.b16 %v848
    %v2411 = vunpack.c.h.b16 %v848
    %v2412 = vunpack.c.l.b16 %v849
    %v2413 = vunpack.c.h.b16 %v849
    %v2414 = vunpack.c.l.b16 %v850
    %v2415 = vunpack.c.h.b16 %v850
    %v2416 = vunpack.c.l.b16 %v851
    %v2417 = vunpack.c.h.b16 %v851
    %v2418 = vunpack.c.l.b16 %v852
    %v2419 = vunpack.c.h.b16 %v852
    %v2420 = vunpack.c.l.b16 %v853
    %v2421 = vunpack.c.h.b16 %v853
    %v2422 = vunpack.c.l.b16 %v854
    %v2423 = vunpack.c.h.b16 %v854
    %v2424 = vunpack.c.l.b16 %v855
    %v2425 = vunpack.c.h.b16 %v855
    %v2426 = vunpack.c.l.b16 %v856
    %v2427 = vunpack.c.h.b16 %v856
    %v2428 = vunpack.c.l.b16 %v857
    %v2429 = vunpack.c.h.b16 %v857
    %v2430 = vunpack.c.l.b16 %v858
    %v2431 = vunpack.c.h.b16 %v858
    %v2432 = vunpack.c.l.b16 %v859
    %v2433 = vunpack.c.h.b16 %v859
    %v2434 = vunpack.c.l.b16 %v860
    %v2435 = vunpack.c.h.b16 %v860
    %v2436 = vunpack.c.l.b16 %v861
    %v2437 = vunpack.c.h.b16 %v861
    %v2438 = vunpack.c.l.b16 %v862
    %v2439 = vunpack.c.h.b16 %v862
    %v2440 = vunpack.c.l.b16 %v863
    %v2441 = vunpack.c.h.b16 %v863
    %v2442 = vpack.c.b16 %v1426, %v1418
    %v2443 = vpack.c.b16 %v1427, %v1419
    %v2444 = vpack.c.b16 %v1428, %v1420
    %v2445 = vpack.c.b16 %v1429, %v1421
    %v2446 = vpack.c.b16 %v1430, %v1422
    %v2447 = vpack.c.b16 %v1431, %v1423
    %v2448 = vpack.c.b16 %v1432, %v1424
    %v2449 = vpack.c.b16 %v1433, %v1425
    %v2450 = vpack.c.b16 %v1442, %v1434
    %v2451 = vpack.c.b16 %v1443, %v1435
    %v2452 = vpack.c.b16 %v1444, %v1436
    %v2453 = vpack.c.b16 %v1445, %v1437
    %v2454 = vpack.c.b16 %v1446, %v1438
    %v2455 = vpack.c.b16 %v1447, %v1439
    %v2456 = vpack.c.b16 %v1448, %v1440
    %v2457 = vpack.c.b16 %v1449, %v1441
    %v2458 = vpack.c.b16 %v1458, %v1450
    %v2459 = vpack.c.b16 %v1459, %v1451
    %v2460 = vpack.c.b16 %v1460, %v1452
    %v2461 = vpack.c.b16 %v1461, %v1453
    %v2462 = vpack.c.b16 %v1462, %v1454
    %v2463 = vpack.c.b16 %v1463, %v1455
    %v2464 = vpack.c.b16 %v1464, %v1456
    %v2465 = vpack.c.b16 %v1465, %v1457
    %v2466 = vpack.c.b16 %v1474, %v1466
    %v2467 = vpack.c.b16 %v1475, %v1467
    %v2468 = vpack.c.b16 %v1476, %v1468
    %v2469 = vpack.c.b16 %v1477, %v1469
    %v2470 = vpack.c.b16 %v1478, %v1470
    %v2471 = vpack.c.b16 %v1479, %v1471
    %v2472 = vpack.c.b16 %v1480, %v1472
    %v2473 = vpack.c.b16 %v1481, %v1473
    %v2474 = vpack.c.b16 %v1490, %v1482
    %v2475 = vpack.c.b16 %v1491, %v1483
    %v2476 = vpack.c.b16 %v1492, %v1484
    %v2477 = vpack.c.b16 %v1493, %v1485
    %v2478 = vpack.c.b16 %v1494, %v1486
    %v2479 = vpack.c.b16 %v1495, %v1487
    %v2480 = vpack.c.b16 %v1496, %v1488
    %v2481 = vpack.c.b16 %v1497, %v1489
    %v2482 = vpack.c.b16 %v1506, %v1498
    %v2483 = vpack.c.b16 %v1507, %v1499
    %v2484 = vpack.c.b16 %v1508, %v1500
    %v2485 = vpack.c.b16 %v1509, %v1501
    %v2486 = vpack.c.b16 %v1510, %v1502
    %v2487 = vpack.c.b16 %v1511, %v1503
    %v2488 = vpack.c.b16 %v1512, %v1504
    %v2489 = vpack.c.b16 %v1513, %v1505
    %v2490 = vpack.c.b16 %v1522, %v1514
    %v2491 = vpack.c.b16 %v1523, %v1515
    %v2492 = vpack.c.b16 %v1524, %v1516
    %v2493 = vpack.c.b16 %v1525, %v1517
    %v2494 = vpack.c.b16 %v1526, %v1518
    %v2495 = vpack.c.b16 %v1527, %v1519
    %v2496 = vpack.c.b16 %v1528, %v1520
    %v2497 = vpack.c.b16 %v1529, %v1521
    %v2498 = vpack.c.b16 %v1538, %v1530
    %v2499 = vpack.c.b16 %v1539, %v1531
    %v2500 = vpack.c.b16 %v1540, %v1532
    %v2501 = vpack.c.b16 %v1541, %v1533
    %v2502 = vpack.c.b16 %v1542, %v1534
    %v2503 = vpack.c.b16 %v1543, %v1535
    %v2504 = vpack.c.b16 %v1544, %v1536
    %v2505 = vpack.c.b16 %v1545, %v1537
    %v2506 = vpack.c.b16 %v1554, %v1546
    %v2507 = vpack.c.b16 %v1555, %v1547
    %v2508 = vpack.c.b16 %v1556, %v1548
    %v2509 = vpack.c.b16 %v1557, %v1549
    %v2510 = vpack.c.b16 %v1558, %v1550
    %v2511 = vpack.c.b16 %v1559, %v1551
    %v2512 = vpack.c.b16 %v1560, %v1552
    %v2513 = vpack.c.b16 %v1561, %v1553
    %v2514 = vpack.c.b16 %v1570, %v1562
    %v2515 = vpack.c.b16 %v1571, %v1563
    %v2516 = vpack.c.b16 %v1572, %v1564
    %v2517 = vpack.c.b16 %v1573, %v1565
    %v2518 = vpack.c.b16 %v1574, %v1566
    %v2519 = vpack.c.b16 %v1575, %v1567
    %v2520 = vpack.c.b16 %v1576, %v1568
    %v2521 = vpack.c.b16 %v1577, %v1569
    %v2522 = vpack.c.b16 %v1586, %v1578
    %v2523 = vpack.c.b16 %v1587, %v1579
    %v2524 = vpack.c.b16 %v1588, %v1580
    %v2525 = vpack.c.b16 %v1589, %v1581
    %v2526 = vpack.c.b16 %v1590, %v1582
    %v2527 = vpack.c.b16 %v1591, %v1583
    %v2528 = vpack.c.b16 %v1592, %v1584
    %v2529 = vpack.c.b16 %v1593, %v1585
    %v2530 = vpack.c.b16 %v1602, %v1594
    %v2531 = vpack.c.b16 %v1603, %v1595
    %v2532 = vpack.c.b16 %v1604, %v1596
    %v2533 = vpack.c.b16 %v1605, %v1597
    %v2534 = vpack.c.b16 %v1606, %v1598
    %v2535 = vpack.c.b16 %v1607, %v1599
    %v2536 = vpack.c.b16 %v1608, %v1600
    %v2537 = vpack.c.b16 %v1609, %v1601
    %v2538 = vpack.c.b16 %v1618, %v1610
    %v2539 = vpack.c.b16 %v1619, %v1611
    %v2540 = vpack.c.b16 %v1620, %v1612
    %v2541 = vpack.c.b16 %v1621, %v1613
    %v2542 = vpack.c.b16 %v1622, %v1614
    %v2543 = vpack.c.b16 %v1623, %v1615
    %v2544 = vpack.c.b16 %v1624, %v1616
    %v2545 = vpack.c.b16 %v1625, %v1617
    %v2546 = vpack.c.b16 %v1634, %v1626
    %v2547 = vpack.c.b16 %v1635, %v1627
    %v2548 = vpack.c.b16 %v1636, %v1628
    %v2549 = vpack.c.b16 %v1637, %v1629
    %v2550 = vpack.c.b16 %v1638, %v1630
    %v2551 = vpack.c.b16 %v1639, %v1631
    %v2552 = vpack.c.b16 %v1640, %v1632
    %v2553 = vpack.c.b16 %v1641, %v1633
    %v2554 = vpack.c.b16 %v1650, %v1642
    %v2555 = vpack.c.b16 %v1651, %v1643
    %v2556 = vpack.c.b16 %v1652, %v1644
    %v2557 = vpack.c.b16 %v1653, %v1645
    %v2558 = vpack.c.b16 %v1654, %v1646
    %v2559 = vpack.c.b16 %v1655, %v1647
    %v2560 = vpack.c.b16 %v1656, %v1648
    %v2561 = vpack.c.b16 %v1657, %v1649
    %v2562 = vpack.c.b16 %v1666, %v1658
    %v2563 = vpack.c.b16 %v1667, %v1659
    %v2564 = vpack.c.b16 %v1668, %v1660
    %v2565 = vpack.c.b16 %v1669, %v1661
    %v2566 = vpack.c.b16 %v1670, %v1662
    %v2567 = vpack.c.b16 %v1671, %v1663
    %v2568 = vpack.c.b16 %v1672, %v1664
    %v2569 = vpack.c.b16 %v1673, %v1665
    %v2570 = vpack.c.b16 %v1682, %v1674
    %v2571 = vpack.c.b16 %v1683, %v1675
    %v2572 = vpack.c.b16 %v1684, %v1676
    %v2573 = vpack.c.b16 %v1685, %v1677
    %v2574 = vpack.c.b16 %v1686, %v1678
    %v2575 = vpack.c.b16 %v1687, %v1679
    %v2576 = vpack.c.b16 %v1688, %v1680
    %v2577 = vpack.c.b16 %v1689, %v1681
    %v2578 = vpack.c.b16 %v1698, %v1690
    %v2579 = vpack.c.b16 %v1699, %v1691
    %v2580 = vpack.c.b16 %v1700, %v1692
    %v2581 = vpack.c.b16 %v1701, %v1693
    %v2582 = vpack.c.b16 %v1702, %v1694
    %v2583 = vpack.c.b16 %v1703, %v1695
    %v2584 = vpack.c.b16 %v1704, %v1696
    %v2585 = vpack.c.b16 %v1705, %v1697
    %v2586 = vpack.c.b16 %v1714, %v1706
    %v2587 = vpack.c.b16 %v1715, %v1707
    %v2588 = vpack.c.b16 %v1716, %v1708
    %v2589 = vpack.c.b16 %v1717, %v1709
    %v2590 = vpack.c.b16 %v1718, %v1710
    %v2591 = vpack.c.b16 %v1719, %v1711
    %v2592 = vpack.c.b16 %v1720, %v1712
    %v2593 = vpack.c.b16 %v1721, %v1713
    %v2594 = vpack.c.b16 %v1730, %v1722
    %v2595 = vpack.c.b16 %v1731, %v1723
    %v2596 = vpack.c.b16 %v1732, %v1724
    %v2597 = vpack.c.b16 %v1733, %v1725
    %v2598 = vpack.c.b16 %v1734, %v1726
    %v2599 = vpack.c.b16 %v1735, %v1727
    %v2600 = vpack.c.b16 %v1736, %v1728
    %v2601 = vpack.c.b16 %v1737, %v1729
    %v2602 = vpack.c.b16 %v1746, %v1738
    %v2603 = vpack.c.b16 %v1747, %v1739
    %v2604 = vpack.c.b16 %v1748, %v1740
    %v2605 = vpack.c.b16 %v1749, %v1741
    %v2606 = vpack.c.b16 %v1750, %v1742
    %v2607 = vpack.c.b16 %v1751, %v1743
    %v2608 = vpack.c.b16 %v1752, %v1744
    %v2609 = vpack.c.b16 %v1753, %v1745
    %v2610 = vpack.c.b16 %v1762, %v1754
    %v2611 = vpack.c.b16 %v1763, %v1755
    %v2612 = vpack.c.b16 %v1764, %v1756
    %v2613 = vpack.c.b16 %v1765, %v1757
    %v2614 = vpack.c.b16 %v1766, %v1758
    %v2615 = vpack.c.b16 %v1767, %v1759
    %v2616 = vpack.c.b16 %v1768, %v1760
    %v2617 = vpack.c.b16 %v1769, %v1761
    %v2618 = vpack.c.b16 %v1778, %v1770
    %v2619 = vpack.c.b16 %v1779, %v1771
    %v2620 = vpack.c.b16 %v1780, %v1772
    %v2621 = vpack.c.b16 %v1781, %v1773
    %v2622 = vpack.c.b16 %v1782, %v1774
    %v2623 = vpack.c.b16 %v1783, %v1775
    %v2624 = vpack.c.b16 %v1784, %v1776
    %v2625 = vpack.c.b16 %v1785, %v1777
    %v2626 = vpack.c.b16 %v1794, %v1786
    %v2627 = vpack.c.b16 %v1795, %v1787
    %v2628 = vpack.c.b16 %v1796, %v1788
    %v2629 = vpack.c.b16 %v1797, %v1789
    %v2630 = vpack.c.b16 %v1798, %v1790
    %v2631 = vpack.c.b16 %v1799, %v1791
    %v2632 = vpack.c.b16 %v1800, %v1792
    %v2633 = vpack.c.b16 %v1801, %v1793
    %v2634 = vpack.c.b16 %v1810, %v1802
    %v2635 = vpack.c.b16 %v1811, %v1803
    %v2636 = vpack.c.b16 %v1812, %v1804
    %v2637 = vpack.c.b16 %v1813, %v1805
    %v2638 = vpack.c.b16 %v1814, %v1806
    %v2639 = vpack.c.b16 %v1815, %v1807
    %v2640 = vpack.c.b16 %v1816, %v1808
    %v2641 = vpack.c.b16 %v1817, %v1809
    %v2642 = vpack.c.b16 %v1826, %v1818
    %v2643 = vpack.c.b16 %v1827, %v1819
    %v2644 = vpack.c.b16 %v1828, %v1820
    %v2645 = vpack.c.b16 %v1829, %v1821
    %v2646 = vpack.c.b16 %v1830, %v1822
    %v2647 = vpack.c.b16 %v1831, %v1823
    %v2648 = vpack.c.b16 %v1832, %v1824
    %v2649 = vpack.c.b16 %v1833, %v1825
    %v2650 = vpack.c.b16 %v1842, %v1834
    %v2651 = vpack.c.b16 %v1843, %v1835
    %v2652 = vpack.c.b16 %v1844, %v1836
    %v2653 = vpack.c.b16 %v1845, %v1837
    %v2654 = vpack.c.b16 %v1846, %v1838
    %v2655 = vpack.c.b16 %v1847, %v1839
    %v2656 = vpack.c.b16 %v1848, %v1840
    %v2657 = vpack.c.b16 %v1849, %v1841
    %v2658 = vpack.c.b16 %v1858, %v1850
    %v2659 = vpack.c.b16 %v1859, %v1851
    %v2660 = vpack.c.b16 %v1860, %v1852
    %v2661 = vpack.c.b16 %v1861, %v1853
    %v2662 = vpack.c.b16 %v1862, %v1854
    %v2663 = vpack.c.b16 %v1863, %v1855
    %v2664 = vpack.c.b16 %v1864, %v1856
    %v2665 = vpack.c.b16 %v1865, %v1857
    %v2666 = vpack.c.b16 %v1874, %v1866
    %v2667 = vpack.c.b16 %v1875, %v1867
    %v2668 = vpack.c.b16 %v1876, %v1868
    %v2669 = vpack.c.b16 %v1877, %v1869
    %v2670 = vpack.c.b16 %v1878, %v1870
    %v2671 = vpack.c.b16 %v1879, %v1871
    %v2672 = vpack.c.b16 %v1880, %v1872
    %v2673 = vpack.c.b16 %v1881, %v1873
    %v2674 = vpack.c.b16 %v1890, %v1882
    %v2675 = vpack.c.b16 %v1891, %v1883
    %v2676 = vpack.c.b16 %v1892, %v1884
    %v2677 = vpack.c.b16 %v1893, %v1885
    %v2678 = vpack.c.b16 %v1894, %v1886
    %v2679 = vpack.c.b16 %v1895, %v1887
    %v2680 = vpack.c.b16 %v1896, %v1888
    %v2681 = vpack.c.b16 %v1897, %v1889
    %v2682 = vpack.c.b16 %v1906, %v1898
    %v2683 = vpack.c.b16 %v1907, %v1899
    %v2684 = vpack.c.b16 %v1908, %v1900
    %v2685 = vpack.c.b16 %v1909, %v1901
    %v2686 = vpack.c.b16 %v1910, %v1902
    %v2687 = vpack.c.b16 %v1911, %v1903
    %v2688 = vpack.c.b16 %v1912, %v1904
    %v2689 = vpack.c.b16 %v1913, %v1905
    %v2690 = vpack.c.b16 %v1922, %v1914
    %v2691 = vpack.c.b16 %v1923, %v1915
    %v2692 = vpack.c.b16 %v1924, %v1916
    %v2693 = vpack.c.b16 %v1925, %v1917
    %v2694 = vpack.c.b16 %v1926, %v1918
    %v2695 = vpack.c.b16 %v1927, %v1919
    %v2696 = vpack.c.b16 %v1928, %v1920
    %v2697 = vpack.c.b16 %v1929, %v1921
    %v2698 = vpack.c.b16 %v1938, %v1930
    %v2699 = vpack.c.b16 %v1939, %v1931
    %v2700 = vpack.c.b16 %v1940, %v1932
    %v2701 = vpack.c.b16 %v1941, %v1933
    %v2702 = vpack.c.b16 %v1942, %v1934
    %v2703 = vpack.c.b16 %v1943, %v1935
    %v2704 = vpack.c.b16 %v1944, %v1936
    %v2705 = vpack.c.b16 %v1945, %v1937
    %v2706 = vpack.c.b16 %v1954, %v1946
    %v2707 = vpack.c.b16 %v1955, %v1947
    %v2708 = vpack.c.b16 %v1956, %v1948
    %v2709 = vpack.c.b16 %v1957, %v1949
    %v2710 = vpack.c.b16 %v1958, %v1950
    %v2711 = vpack.c.b16 %v1959, %v1951
    %v2712 = vpack.c.b16 %v1960, %v1952
    %v2713 = vpack.c.b16 %v1961, %v1953
    %v2714 = vpack.c.b16 %v1970, %v1962
    %v2715 = vpack.c.b16 %v1971, %v1963
    %v2716 = vpack.c.b16 %v1972, %v1964
    %v2717 = vpack.c.b16 %v1973, %v1965
    %v2718 = vpack.c.b16 %v1974, %v1966
    %v2719 = vpack.c.b16 %v1975, %v1967
    %v2720 = vpack.c.b16 %v1976, %v1968
    %v2721 = vpack.c.b16 %v1977, %v1969
    %v2722 = vpack.c.b16 %v1986, %v1978
    %v2723 = vpack.c.b16 %v1987, %v1979
    %v2724 = vpack.c.b16 %v1988, %v1980
    %v2725 = vpack.c.b16 %v1989, %v1981
    %v2726 = vpack.c.b16 %v1990, %v1982
    %v2727 = vpack.c.b16 %v1991, %v1983
    %v2728 = vpack.c.b16 %v1992, %v1984
    %v2729 = vpack.c.b16 %v1993, %v1985
    %v2730 = vpack.c.b16 %v2002, %v1994
    %v2731 = vpack.c.b16 %v2003, %v1995
    %v2732 = vpack.c.b16 %v2004, %v1996
    %v2733 = vpack.c.b16 %v2005, %v1997
    %v2734 = vpack.c.b16 %v2006, %v1998
    %v2735 = vpack.c.b16 %v2007, %v1999
    %v2736 = vpack.c.b16 %v2008, %v2000
    %v2737 = vpack.c.b16 %v2009, %v2001
    %v2738 = vpack.c.b16 %v2018, %v2010
    %v2739 = vpack.c.b16 %v2019, %v2011
    %v2740 = vpack.c.b16 %v2020, %v2012
    %v2741 = vpack.c.b16 %v2021, %v2013
    %v2742 = vpack.c.b16 %v2022, %v2014
    %v2743 = vpack.c.b16 %v2023, %v2015
    %v2744 = vpack.c.b16 %v2024, %v2016
    %v2745 = vpack.c.b16 %v2025, %v2017
    %v2746 = vpack.c.b16 %v2034, %v2026
    %v2747 = vpack.c.b16 %v2035, %v2027
    %v2748 = vpack.c.b16 %v2036, %v2028
    %v2749 = vpack.c.b16 %v2037, %v2029
    %v2750 = vpack.c.b16 %v2038, %v2030
    %v2751 = vpack.c.b16 %v2039, %v2031
    %v2752 = vpack.c.b16 %v2040, %v2032
    %v2753 = vpack.c.b16 %v2041, %v2033
    %v2754 = vpack.c.b16 %v2050, %v2042
    %v2755 = vpack.c.b16 %v2051, %v2043
    %v2756 = vpack.c.b16 %v2052, %v2044
    %v2757 = vpack.c.b16 %v2053, %v2045
    %v2758 = vpack.c.b16 %v2054, %v2046
    %v2759 = vpack.c.b16 %v2055, %v2047
    %v2760 = vpack.c.b16 %v2056, %v2048
    %v2761 = vpack.c.b16 %v2057, %v2049
    %v2762 = vpack.c.b16 %v2066, %v2058
    %v2763 = vpack.c.b16 %v2067, %v2059
    %v2764 = vpack.c.b16 %v2068, %v2060
    %v2765 = vpack.c.b16 %v2069, %v2061
    %v2766 = vpack.c.b16 %v2070, %v2062
    %v2767 = vpack.c.b16 %v2071, %v2063
    %v2768 = vpack.c.b16 %v2072, %v2064
    %v2769 = vpack.c.b16 %v2073, %v2065
    %v2770 = vpack.c.b16 %v2082, %v2074
    %v2771 = vpack.c.b16 %v2083, %v2075
    %v2772 = vpack.c.b16 %v2084, %v2076
    %v2773 = vpack.c.b16 %v2085, %v2077
    %v2774 = vpack.c.b16 %v2086, %v2078
    %v2775 = vpack.c.b16 %v2087, %v2079
    %v2776 = vpack.c.b16 %v2088, %v2080
    %v2777 = vpack.c.b16 %v2089, %v2081
    %v2778 = vpack.c.b16 %v2098, %v2090
    %v2779 = vpack.c.b16 %v2099, %v2091
    %v2780 = vpack.c.b16 %v2100, %v2092
    %v2781 = vpack.c.b16 %v2101, %v2093
    %v2782 = vpack.c.b16 %v2102, %v2094
    %v2783 = vpack.c.b16 %v2103, %v2095
    %v2784 = vpack.c.b16 %v2104, %v2096
    %v2785 = vpack.c.b16 %v2105, %v2097
    %v2786 = vpack.c.b16 %v2114, %v2106
    %v2787 = vpack.c.b16 %v2115, %v2107
    %v2788 = vpack.c.b16 %v2116, %v2108
    %v2789 = vpack.c.b16 %v2117, %v2109
    %v2790 = vpack.c.b16 %v2118, %v2110
    %v2791 = vpack.c.b16 %v2119, %v2111
    %v2792 = vpack.c.b16 %v2120, %v2112
    %v2793 = vpack.c.b16 %v2121, %v2113
    %v2794 = vpack.c.b16 %v2130, %v2122
    %v2795 = vpack.c.b16 %v2131, %v2123
    %v2796 = vpack.c.b16 %v2132, %v2124
    %v2797 = vpack.c.b16 %v2133, %v2125
    %v2798 = vpack.c.b16 %v2134, %v2126
    %v2799 = vpack.c.b16 %v2135, %v2127
    %v2800 = vpack.c.b16 %v2136, %v2128
    %v2801 = vpack.c.b16 %v2137, %v2129
    %v2802 = vpack.c.b16 %v2146, %v2138
    %v2803 = vpack.c.b16 %v2147, %v2139
    %v2804 = vpack.c.b16 %v2148, %v2140
    %v2805 = vpack.c.b16 %v2149, %v2141
    %v2806 = vpack.c.b16 %v2150, %v2142
    %v2807 = vpack.c.b16 %v2151, %v2143
    %v2808 = vpack.c.b16 %v2152, %v2144
    %v2809 = vpack.c.b16 %v2153, %v2145
    %v2810 = vpack.c.b16 %v2162, %v2154
    %v2811 = vpack.c.b16 %v2163, %v2155
    %v2812 = vpack.c.b16 %v2164, %v2156
    %v2813 = vpack.c.b16 %v2165, %v2157
    %v2814 = vpack.c.b16 %v2166, %v2158
    %v2815 = vpack.c.b16 %v2167, %v2159
    %v2816 = vpack.c.b16 %v2168, %v2160
    %v2817 = vpack.c.b16 %v2169, %v2161
    %v2818 = vpack.c.b16 %v2178, %v2170
    %v2819 = vpack.c.b16 %v2179, %v2171
    %v2820 = vpack.c.b16 %v2180, %v2172
    %v2821 = vpack.c.b16 %v2181, %v2173
    %v2822 = vpack.c.b16 %v2182, %v2174
    %v2823 = vpack.c.b16 %v2183, %v2175
    %v2824 = vpack.c.b16 %v2184, %v2176
    %v2825 = vpack.c.b16 %v2185, %v2177
    %v2826 = vpack.c.b16 %v2194, %v2186
    %v2827 = vpack.c.b16 %v2195, %v2187
    %v2828 = vpack.c.b16 %v2196, %v2188
    %v2829 = vpack.c.b16 %v2197, %v2189
    %v2830 = vpack.c.b16 %v2198, %v2190
    %v2831 = vpack.c.b16 %v2199, %v2191
    %v2832 = vpack.c.b16 %v2200, %v2192
    %v2833 = vpack.c.b16 %v2201, %v2193
    %v2834 = vpack.c.b16 %v2210, %v2202
    %v2835 = vpack.c.b16 %v2211, %v2203
    %v2836 = vpack.c.b16 %v2212, %v2204
    %v2837 = vpack.c.b16 %v2213, %v2205
    %v2838 = vpack.c.b16 %v2214, %v2206
    %v2839 = vpack.c.b16 %v2215, %v2207
    %v2840 = vpack.c.b16 %v2216, %v2208
    %v2841 = vpack.c.b16 %v2217, %v2209
    %v2842 = vpack.c.b16 %v2226, %v2218
    %v2843 = vpack.c.b16 %v2227, %v2219
    %v2844 = vpack.c.b16 %v2228, %v2220
    %v2845 = vpack.c.b16 %v2229, %v2221
    %v2846 = vpack.c.b16 %v2230, %v2222
    %v2847 = vpack.c.b16 %v2231, %v2223
    %v2848 = vpack.c.b16 %v2232, %v2224
    %v2849 = vpack.c.b16 %v2233, %v2225
    %v2850 = vpack.c.b16 %v2242, %v2234
    %v2851 = vpack.c.b16 %v2243, %v2235
    %v2852 = vpack.c.b16 %v2244, %v2236
    %v2853 = vpack.c.b16 %v2245, %v2237
    %v2854 = vpack.c.b16 %v2246, %v2238
    %v2855 = vpack.c.b16 %v2247, %v2239
    %v2856 = vpack.c.b16 %v2248, %v2240
    %v2857 = vpack.c.b16 %v2249, %v2241
    %v2858 = vpack.c.b16 %v2258, %v2250
    %v2859 = vpack.c.b16 %v2259, %v2251
    %v2860 = vpack.c.b16 %v2260, %v2252
    %v2861 = vpack.c.b16 %v2261, %v2253
    %v2862 = vpack.c.b16 %v2262, %v2254
    %v2863 = vpack.c.b16 %v2263, %v2255
    %v2864 = vpack.c.b16 %v2264, %v2256
    %v2865 = vpack.c.b16 %v2265, %v2257
    %v2866 = vpack.c.b16 %v2274, %v2266
    %v2867 = vpack.c.b16 %v2275, %v2267
    %v2868 = vpack.c.b16 %v2276, %v2268
    %v2869 = vpack.c.b16 %v2277, %v2269
    %v2870 = vpack.c.b16 %v2278, %v2270
    %v2871 = vpack.c.b16 %v2279, %v2271
    %v2872 = vpack.c.b16 %v2280, %v2272
    %v2873 = vpack.c.b16 %v2281, %v2273
    %v2874 = vpack.c.b16 %v2290, %v2282
    %v2875 = vpack.c.b16 %v2291, %v2283
    %v2876 = vpack.c.b16 %v2292, %v2284
    %v2877 = vpack.c.b16 %v2293, %v2285
    %v2878 = vpack.c.b16 %v2294, %v2286
    %v2879 = vpack.c.b16 %v2295, %v2287
    %v2880 = vpack.c.b16 %v2296, %v2288
    %v2881 = vpack.c.b16 %v2297, %v2289
    %v2882 = vpack.c.b16 %v2306, %v2298
    %v2883 = vpack.c.b16 %v2307, %v2299
    %v2884 = vpack.c.b16 %v2308, %v2300
    %v2885 = vpack.c.b16 %v2309, %v2301
    %v2886 = vpack.c.b16 %v2310, %v2302
    %v2887 = vpack.c.b16 %v2311, %v2303
    %v2888 = vpack.c.b16 %v2312, %v2304
    %v2889 = vpack.c.b16 %v2313, %v2305
    %v2890 = vpack.c.b16 %v2322, %v2314
    %v2891 = vpack.c.b16 %v2323, %v2315
    %v2892 = vpack.c.b16 %v2324, %v2316
    %v2893 = vpack.c.b16 %v2325, %v2317
    %v2894 = vpack.c.b16 %v2326, %v2318
    %v2895 = vpack.c.b16 %v2327, %v2319
    %v2896 = vpack.c.b16 %v2328, %v2320
    %v2897 = vpack.c.b16 %v2329, %v2321
    %v2898 = vpack.c.b16 %v2338, %v2330
    %v2899 = vpack.c.b16 %v2339, %v2331
    %v2900 = vpack.c.b16 %v2340, %v2332
    %v2901 = vpack.c.b16 %v2341, %v2333
    %v2902 = vpack.c.b16 %v2342, %v2334
    %v2903 = vpack.c.b16 %v2343, %v2335
    %v2904 = vpack.c.b16 %v2344, %v2336
    %v2905 = vpack.c.b16 %v2345, %v2337
    %v2906 = vpack.c.b16 %v2354, %v2346
    %v2907 = vpack.c.b16 %v2355, %v2347
    %v2908 = vpack.c.b16 %v2356, %v2348
    %v2909 = vpack.c.b16 %v2357, %v2349
    %v2910 = vpack.c.b16 %v2358, %v2350
    %v2911 = vpack.c.b16 %v2359, %v2351
    %v2912 = vpack.c.b16 %v2360, %v2352
    %v2913 = vpack.c.b16 %v2361, %v2353
    %v2914 = vpack.c.b16 %v2370, %v2362
    %v2915 = vpack.c.b16 %v2371, %v2363
    %v2916 = vpack.c.b16 %v2372, %v2364
    %v2917 = vpack.c.b16 %v2373, %v2365
    %v2918 = vpack.c.b16 %v2374, %v2366
    %v2919 = vpack.c.b16 %v2375, %v2367
    %v2920 = vpack.c.b16 %v2376, %v2368
    %v2921 = vpack.c.b16 %v2377, %v2369
    %v2922 = vpack.c.b16 %v2386, %v2378
    %v2923 = vpack.c.b16 %v2387, %v2379
    %v2924 = vpack.c.b16 %v2388, %v2380
    %v2925 = vpack.c.b16 %v2389, %v2381
    %v2926 = vpack.c.b16 %v2390, %v2382
    %v2927 = vpack.c.b16 %v2391, %v2383
    %v2928 = vpack.c.b16 %v2392, %v2384
    %v2929 = vpack.c.b16 %v2393, %v2385
    %v2930 = vpack.c.b16 %v2402, %v2394
    %v2931 = vpack.c.b16 %v2403, %v2395
    %v2932 = vpack.c.b16 %v2404, %v2396
    %v2933 = vpack.c.b16 %v2405, %v2397
    %v2934 = vpack.c.b16 %v2406, %v2398
    %v2935 = vpack.c.b16 %v2407, %v2399
    %v2936 = vpack.c.b16 %v2408, %v2400
    %v2937 = vpack.c.b16 %v2409, %v2401
    %v2938 = vpack.c.b16 %v2418, %v2410
    %v2939 = vpack.c.b16 %v2419, %v2411
    %v2940 = vpack.c.b16 %v2420, %v2412
    %v2941 = vpack.c.b16 %v2421, %v2413
    %v2942 = vpack.c.b16 %v2422, %v2414
    %v2943 = vpack.c.b16 %v2423, %v2415
    %v2944 = vpack.c.b16 %v2424, %v2416
    %v2945 = vpack.c.b16 %v2425, %v2417
    %v2946 = vpack.c.b16 %v2434, %v2426
    %v2947 = vpack.c.b16 %v2435, %v2427
    %v2948 = vpack.c.b16 %v2436, %v2428
    %v2949 = vpack.c.b16 %v2437, %v2429
    %v2950 = vpack.c.b16 %v2438, %v2430
    %v2951 = vpack.c.b16 %v2439, %v2431
    %v2952 = vpack.c.b16 %v2440, %v2432
    %v2953 = vpack.c.b16 %v2441, %v2433
    %3466 = vmatprep.subr.bf16.mxu0 %v2499
    %3467 = vmatpush1.bf16.msra.mxu0 %v2498
    %3468 = vmatprep.subr.bf16.mxu0 %v2491
    %3469 = vmatpush1.bf16.msra.mxu0 %v2490
    %3470 = vmatprep.subr.bf16.mxu0 %v2483
    %3471 = vmatpush1.bf16.msra.mxu0 %v2482
    %3472 = vmatprep.subr.bf16.mxu0 %v2475
    %3473 = vmatpush1.bf16.msra.mxu0 %v2474
    %3474 = vmatprep.subr.bf16.mxu0 %v2467
    %3475 = vmatpush1.bf16.msra.mxu0 %v2466
    %3476 = vmatprep.subr.bf16.mxu0 %v2459
    %3477 = vmatpush1.bf16.msra.mxu0 %v2458
    %3478 = vmatprep.subr.bf16.mxu0 %v2451
    %3479 = vmatpush1.bf16.msra.mxu0 %v2450
    %3480 = vmatprep.subr.bf16.mxu0 %v2443
    %3481 = vmatpush1.bf16.msra.mxu0 %v2442
    %3482 = vmatprep.subr.bf16.mxu0 %v2563
    %3483 = vmatpush2.bf16.msra.mxu0 %v2562
    %3484 = vmatprep.subr.bf16.mxu0 %v2555
    %3485 = vmatpush2.bf16.msra.mxu0 %v2554
    %3486 = vmatprep.subr.bf16.mxu0 %v2547
    %3487 = vmatpush2.bf16.msra.mxu0 %v2546
    %3488 = vmatprep.subr.bf16.mxu0 %v2539
    %3489 = vmatpush2.bf16.msra.mxu0 %v2538
    %3490 = vmatprep.subr.bf16.mxu0 %v2531
    %3491 = vmatpush2.bf16.msra.mxu0 %v2530
    %3492 = vmatprep.subr.bf16.mxu0 %v2523
    %3493 = vmatpush2.bf16.msra.mxu0 %v2522
    %3494 = vmatprep.subr.bf16.mxu0 %v2515
    %3495 = vmatpush2.bf16.msra.mxu0 %v2514
    %3496 = vmatprep.subr.bf16.mxu0 %v2507
    %3497 = vmatpush2.bf16.msra.mxu0 %v2506
    %3498 = vmatprep.mubr.bf16.mxu0 %v345
    %3499 = vmatmul.mubr.bf16.gmra.mxu0 %v344
    %v3500 = vpop.f32.mrf.mxu0
    %v3501 = vadd.f32 %v869, %v3500
    %v3502 = vpop.f32.mrf.mxu0
    %v3503 = vadd.f32 %v873, %v3502
    %v3504 = vpop.f32.mrf.mxu0
    %v3505 = vadd.f32 %v869, %v3504
    %v3506 = vpop.f32.mrf.mxu0
    %v3507 = vadd.f32 %v873, %v3506
    %3508 = vdwg.mxu0
    %3509 = vmatprep.subr.bf16.mxu0 %v2627
    %3510 = vmatpush1.bf16.msra.mxu0 %v2626
    %3511 = vmatprep.subr.bf16.mxu0 %v2619
    %3512 = vmatpush1.bf16.msra.mxu0 %v2618
    %3513 = vmatprep.subr.bf16.mxu0 %v2611
    %3514 = vmatpush1.bf16.msra.mxu0 %v2610
    %3515 = vmatprep.subr.bf16.mxu0 %v2603
    %3516 = vmatpush1.bf16.msra.mxu0 %v2602
    %3517 = vmatprep.subr.bf16.mxu0 %v2595
    %3518 = vmatpush1.bf16.msra.mxu0 %v2594
    %3519 = vmatprep.subr.bf16.mxu0 %v2587
    %3520 = vmatpush1.bf16.msra.mxu0 %v2586
    %3521 = vmatprep.subr.bf16.mxu0 %v2579
    %3522 = vmatpush1.bf16.msra.mxu0 %v2578
    %3523 = vmatprep.subr.bf16.mxu0 %v2571
    %3524 = vmatpush1.bf16.msra.mxu0 %v2570
    %3525 = vmatprep.subr.bf16.mxu0 %v2691
    %3526 = vmatpush2.bf16.msra.mxu0 %v2690
    %3527 = vmatprep.subr.bf16.mxu0 %v2683
    %3528 = vmatpush2.bf16.msra.mxu0 %v2682
    %3529 = vmatprep.subr.bf16.mxu0 %v2675
    %3530 = vmatpush2.bf16.msra.mxu0 %v2674
    %3531 = vmatprep.subr.bf16.mxu0 %v2667
    %3532 = vmatpush2.bf16.msra.mxu0 %v2666
    %3533 = vmatprep.subr.bf16.mxu0 %v2659
    %3534 = vmatpush2.bf16.msra.mxu0 %v2658
    %3535 = vmatprep.subr.bf16.mxu0 %v2651
    %3536 = vmatpush2.bf16.msra.mxu0 %v2650
    %3537 = vmatprep.subr.bf16.mxu0 %v2643
    %3538 = vmatpush2.bf16.msra.mxu0 %v2642
    %3539 = vmatprep.subr.bf16.mxu0 %v2635
    %3540 = vmatpush2.bf16.msra.mxu0 %v2634
    %3541 = vmatprep.mubr.bf16.mxu0 %v347
    %3542 = vmatmul.mubr.bf16.gmra.mxu0 %v346
    %v3543 = vpop.f32.mrf.mxu0
    %v3544 = vadd.f32 %v3501, %v3543
    %v3545 = vpop.f32.mrf.mxu0
    %v3546 = vadd.f32 %v3503, %v3545
    %v3547 = vpop.f32.mrf.mxu0
    %v3548 = vadd.f32 %v3505, %v3547
    %v3549 = vpop.f32.mrf.mxu0
    %v3550 = vadd.f32 %v3507, %v3549
    %3551 = vdwg.mxu0
    %3552 = vmatprep.subr.bf16.mxu0 %v2755
    %3553 = vmatpush1.bf16.msra.mxu0 %v2754
    %3554 = vmatprep.subr.bf16.mxu0 %v2747
    %3555 = vmatpush1.bf16.msra.mxu0 %v2746
    %3556 = vmatprep.subr.bf16.mxu0 %v2739
    %3557 = vmatpush1.bf16.msra.mxu0 %v2738
    %3558 = vmatprep.subr.bf16.mxu0 %v2731
    %3559 = vmatpush1.bf16.msra.mxu0 %v2730
    %3560 = vmatprep.subr.bf16.mxu0 %v2723
    %3561 = vmatpush1.bf16.msra.mxu0 %v2722
    %3562 = vmatprep.subr.bf16.mxu0 %v2715
    %3563 = vmatpush1.bf16.msra.mxu0 %v2714
    %3564 = vmatprep.subr.bf16.mxu0 %v2707
    %3565 = vmatpush1.bf16.msra.mxu0 %v2706
    %3566 = vmatprep.subr.bf16.mxu0 %v2699
    %3567 = vmatpush1.bf16.msra.mxu0 %v2698
    %3568 = vmatprep.subr.bf16.mxu0 %v2819
    %3569 = vmatpush2.bf16.msra.mxu0 %v2818
    %3570 = vmatprep.subr.bf16.mxu0 %v2811
    %3571 = vmatpush2.bf16.msra.mxu0 %v2810
    %3572 = vmatprep.subr.bf16.mxu0 %v2803
    %3573 = vmatpush2.bf16.msra.mxu0 %v2802
    %3574 = vmatprep.subr.bf16.mxu0 %v2795
    %3575 = vmatpush2.bf16.msra.mxu0 %v2794
    %3576 = vmatprep.subr.bf16.mxu0 %v2787
    %3577 = vmatpush2.bf16.msra.mxu0 %v2786
    %3578 = vmatprep.subr.bf16.mxu0 %v2779
    %3579 = vmatpush2.bf16.msra.mxu0 %v2778
    %3580 = vmatprep.subr.bf16.mxu0 %v2771
    %3581 = vmatpush2.bf16.msra.mxu0 %v2770
    %3582 = vmatprep.subr.bf16.mxu0 %v2763
    %3583 = vmatpush2.bf16.msra.mxu0 %v2762
    %3584 = vmatprep.mubr.bf16.mxu0 %v349
    %3585 = vmatmul.mubr.bf16.gmra.mxu0 %v348
    %v3586 = vpop.f32.mrf.mxu0
    %v3587 = vadd.f32 %v3544, %v3586
    %v3588 = vpop.f32.mrf.mxu0
    %v3589 = vadd.f32 %v3546, %v3588
    %v3590 = vpop.f32.mrf.mxu0
    %v3591 = vadd.f32 %v3548, %v3590
    %v3592 = vpop.f32.mrf.mxu0
    %v3593 = vadd.f32 %v3550, %v3592
    %3594 = vdwg.mxu0
    %3595 = vmatprep.subr.bf16.mxu0 %v2883
    %3596 = vmatpush1.bf16.msra.mxu0 %v2882
    %3597 = vmatprep.subr.bf16.mxu0 %v2875
    %3598 = vmatpush1.bf16.msra.mxu0 %v2874
    %3599 = vmatprep.subr.bf16.mxu0 %v2867
    %3600 = vmatpush1.bf16.msra.mxu0 %v2866
    %3601 = vmatprep.subr.bf16.mxu0 %v2859
    %3602 = vmatpush1.bf16.msra.mxu0 %v2858
    %3603 = vmatprep.subr.bf16.mxu0 %v2851
    %3604 = vmatpush1.bf16.msra.mxu0 %v2850
    %3605 = vmatprep.subr.bf16.mxu0 %v2843
    %3606 = vmatpush1.bf16.msra.mxu0 %v2842
    %3607 = vmatprep.subr.bf16.mxu0 %v2835
    %3608 = vmatpush1.bf16.msra.mxu0 %v2834
    %3609 = vmatprep.subr.bf16.mxu0 %v2827
    %3610 = vmatpush1.bf16.msra.mxu0 %v2826
    %3611 = vmatprep.subr.bf16.mxu0 %v2947
    %3612 = vmatpush2.bf16.msra.mxu0 %v2946
    %3613 = vmatprep.subr.bf16.mxu0 %v2939
    %3614 = vmatpush2.bf16.msra.mxu0 %v2938
    %3615 = vmatprep.subr.bf16.mxu0 %v2931
    %3616 = vmatpush2.bf16.msra.mxu0 %v2930
    %3617 = vmatprep.subr.bf16.mxu0 %v2923
    %3618 = vmatpush2.bf16.msra.mxu0 %v2922
    %3619 = vmatprep.subr.bf16.mxu0 %v2915
    %3620 = vmatpush2.bf16.msra.mxu0 %v2914
    %3621 = vmatprep.subr.bf16.mxu0 %v2907
    %3622 = vmatpush2.bf16.msra.mxu0 %v2906
    %3623 = vmatprep.subr.bf16.mxu0 %v2899
    %3624 = vmatpush2.bf16.msra.mxu0 %v2898
    %3625 = vmatprep.subr.bf16.mxu0 %v2891
    %3626 = vmatpush2.bf16.msra.mxu0 %v2890
    %3627 = vmatprep.mubr.bf16.mxu0 %v351
    %3628 = vmatmul.mubr.bf16.gmra.mxu0 %v350
    %v3629 = vpop.f32.mrf.mxu0
    %v3630 = vadd.f32 %v3587, %v3629
    %v3631 = vpop.f32.mrf.mxu0
    %v3632 = vadd.f32 %v3589, %v3631
    %v3633 = vpop.f32.mrf.mxu0
    %v3634 = vadd.f32 %v3591, %v3633
    %v3635 = vpop.f32.mrf.mxu0
    %v3636 = vadd.f32 %v3593, %v3635
    %3637 = vdwg.mxu0
    %3638 = vmatprep.subr.bf16.mxu0 %v2501
    %3639 = vmatpush1.bf16.msra.mxu0 %v2500
    %3640 = vmatprep.subr.bf16.mxu0 %v2493
    %3641 = vmatpush1.bf16.msra.mxu0 %v2492
    %3642 = vmatprep.subr.bf16.mxu0 %v2485
    %3643 = vmatpush1.bf16.msra.mxu0 %v2484
    %3644 = vmatprep.subr.bf16.mxu0 %v2477
    %3645 = vmatpush1.bf16.msra.mxu0 %v2476
    %3646 = vmatprep.subr.bf16.mxu0 %v2469
    %3647 = vmatpush1.bf16.msra.mxu0 %v2468
    %3648 = vmatprep.subr.bf16.mxu0 %v2461
    %3649 = vmatpush1.bf16.msra.mxu0 %v2460
    %3650 = vmatprep.subr.bf16.mxu0 %v2453
    %3651 = vmatpush1.bf16.msra.mxu0 %v2452
    %3652 = vmatprep.subr.bf16.mxu0 %v2445
    %3653 = vmatpush1.bf16.msra.mxu0 %v2444
    %3654 = vmatprep.subr.bf16.mxu0 %v2565
    %3655 = vmatpush2.bf16.msra.mxu0 %v2564
    %3656 = vmatprep.subr.bf16.mxu0 %v2557
    %3657 = vmatpush2.bf16.msra.mxu0 %v2556
    %3658 = vmatprep.subr.bf16.mxu0 %v2549
    %3659 = vmatpush2.bf16.msra.mxu0 %v2548
    %3660 = vmatprep.subr.bf16.mxu0 %v2541
    %3661 = vmatpush2.bf16.msra.mxu0 %v2540
    %3662 = vmatprep.subr.bf16.mxu0 %v2533
    %3663 = vmatpush2.bf16.msra.mxu0 %v2532
    %3664 = vmatprep.subr.bf16.mxu0 %v2525
    %3665 = vmatpush2.bf16.msra.mxu0 %v2524
    %3666 = vmatprep.subr.bf16.mxu0 %v2517
    %3667 = vmatpush2.bf16.msra.mxu0 %v2516
    %3668 = vmatprep.subr.bf16.mxu0 %v2509
    %3669 = vmatpush2.bf16.msra.mxu0 %v2508
    %3670 = vmatprep.mubr.bf16.mxu0 %v345
    %3671 = vmatmul.mubr.bf16.gmra.mxu0 %v344
    %v3672 = vpop.f32.mrf.mxu0
    %v3673 = vadd.f32 %v877, %v3672
    %v3674 = vpop.f32.mrf.mxu0
    %v3675 = vadd.f32 %v881, %v3674
    %v3676 = vpop.f32.mrf.mxu0
    %v3677 = vadd.f32 %v877, %v3676
    %v3678 = vpop.f32.mrf.mxu0
    %v3679 = vadd.f32 %v881, %v3678
    %3680 = vdwg.mxu0
    %3681 = vmatprep.subr.bf16.mxu0 %v2629
    %3682 = vmatpush1.bf16.msra.mxu0 %v2628
    %3683 = vmatprep.subr.bf16.mxu0 %v2621
    %3684 = vmatpush1.bf16.msra.mxu0 %v2620
    %3685 = vmatprep.subr.bf16.mxu0 %v2613
    %3686 = vmatpush1.bf16.msra.mxu0 %v2612
    %3687 = vmatprep.subr.bf16.mxu0 %v2605
    %3688 = vmatpush1.bf16.msra.mxu0 %v2604
    %3689 = vmatprep.subr.bf16.mxu0 %v2597
    %3690 = vmatpush1.bf16.msra.mxu0 %v2596
    %3691 = vmatprep.subr.bf16.mxu0 %v2589
    %3692 = vmatpush1.bf16.msra.mxu0 %v2588
    %3693 = vmatprep.subr.bf16.mxu0 %v2581
    %3694 = vmatpush1.bf16.msra.mxu0 %v2580
    %3695 = vmatprep.subr.bf16.mxu0 %v2573
    %3696 = vmatpush1.bf16.msra.mxu0 %v2572
    %3697 = vmatprep.subr.bf16.mxu0 %v2693
    %3698 = vmatpush2.bf16.msra.mxu0 %v2692
    %3699 = vmatprep.subr.bf16.mxu0 %v2685
    %3700 = vmatpush2.bf16.msra.mxu0 %v2684
    %3701 = vmatprep.subr.bf16.mxu0 %v2677
    %3702 = vmatpush2.bf16.msra.mxu0 %v2676
    %3703 = vmatprep.subr.bf16.mxu0 %v2669
    %3704 = vmatpush2.bf16.msra.mxu0 %v2668
    %3705 = vmatprep.subr.bf16.mxu0 %v2661
    %3706 = vmatpush2.bf16.msra.mxu0 %v2660
    %3707 = vmatprep.subr.bf16.mxu0 %v2653
    %3708 = vmatpush2.bf16.msra.mxu0 %v2652
    %3709 = vmatprep.subr.bf16.mxu0 %v2645
    %3710 = vmatpush2.bf16.msra.mxu0 %v2644
    %3711 = vmatprep.subr.bf16.mxu0 %v2637
    %3712 = vmatpush2.bf16.msra.mxu0 %v2636
    %3713 = vmatprep.mubr.bf16.mxu0 %v347
    %3714 = vmatmul.mubr.bf16.gmra.mxu0 %v346
    %v3715 = vpop.f32.mrf.mxu0
    %v3716 = vadd.f32 %v3673, %v3715
    %v3717 = vpop.f32.mrf.mxu0
    %v3718 = vadd.f32 %v3675, %v3717
    %v3719 = vpop.f32.mrf.mxu0
    %v3720 = vadd.f32 %v3677, %v3719
    %v3721 = vpop.f32.mrf.mxu0
    %v3722 = vadd.f32 %v3679, %v3721
    %3723 = vdwg.mxu0
    %3724 = vmatprep.subr.bf16.mxu0 %v2757
    %3725 = vmatpush1.bf16.msra.mxu0 %v2756
    %3726 = vmatprep.subr.bf16.mxu0 %v2749
    %3727 = vmatpush1.bf16.msra.mxu0 %v2748
    %3728 = vmatprep.subr.bf16.mxu0 %v2741
    %3729 = vmatpush1.bf16.msra.mxu0 %v2740
    %3730 = vmatprep.subr.bf16.mxu0 %v2733
    %3731 = vmatpush1.bf16.msra.mxu0 %v2732
    %3732 = vmatprep.subr.bf16.mxu0 %v2725
    %3733 = vmatpush1.bf16.msra.mxu0 %v2724
    %3734 = vmatprep.subr.bf16.mxu0 %v2717
    %3735 = vmatpush1.bf16.msra.mxu0 %v2716
    %3736 = vmatprep.subr.bf16.mxu0 %v2709
    %3737 = vmatpush1.bf16.msra.mxu0 %v2708
    %3738 = vmatprep.subr.bf16.mxu0 %v2701
    %3739 = vmatpush1.bf16.msra.mxu0 %v2700
    %3740 = vmatprep.subr.bf16.mxu0 %v2821
    %3741 = vmatpush2.bf16.msra.mxu0 %v2820
    %3742 = vmatprep.subr.bf16.mxu0 %v2813
    %3743 = vmatpush2.bf16.msra.mxu0 %v2812
    %3744 = vmatprep.subr.bf16.mxu0 %v2805
    %3745 = vmatpush2.bf16.msra.mxu0 %v2804
    %3746 = vmatprep.subr.bf16.mxu0 %v2797
    %3747 = vmatpush2.bf16.msra.mxu0 %v2796
    %3748 = vmatprep.subr.bf16.mxu0 %v2789
    %3749 = vmatpush2.bf16.msra.mxu0 %v2788
    %3750 = vmatprep.subr.bf16.mxu0 %v2781
    %3751 = vmatpush2.bf16.msra.mxu0 %v2780
    %3752 = vmatprep.subr.bf16.mxu0 %v2773
    %3753 = vmatpush2.bf16.msra.mxu0 %v2772
    %3754 = vmatprep.subr.bf16.mxu0 %v2765
    %3755 = vmatpush2.bf16.msra.mxu0 %v2764
    %3756 = vmatprep.mubr.bf16.mxu0 %v349
    %3757 = vmatmul.mubr.bf16.gmra.mxu0 %v348
    %v3758 = vpop.f32.mrf.mxu0
    %v3759 = vadd.f32 %v3716, %v3758
    %v3760 = vpop.f32.mrf.mxu0
    %v3761 = vadd.f32 %v3718, %v3760
    %v3762 = vpop.f32.mrf.mxu0
    %v3763 = vadd.f32 %v3720, %v3762
    %v3764 = vpop.f32.mrf.mxu0
    %v3765 = vadd.f32 %v3722, %v3764
    %3766 = vdwg.mxu0
    %3767 = vmatprep.subr.bf16.mxu0 %v2885
    %3768 = vmatpush1.bf16.msra.mxu0 %v2884
    %3769 = vmatprep.subr.bf16.mxu0 %v2877
    %3770 = vmatpush1.bf16.msra.mxu0 %v2876
    %3771 = vmatprep.subr.bf16.mxu0 %v2869
    %3772 = vmatpush1.bf16.msra.mxu0 %v2868
    %3773 = vmatprep.subr.bf16.mxu0 %v2861
    %3774 = vmatpush1.bf16.msra.mxu0 %v2860
    %3775 = vmatprep.subr.bf16.mxu0 %v2853
    %3776 = vmatpush1.bf16.msra.mxu0 %v2852
    %3777 = vmatprep.subr.bf16.mxu0 %v2845
    %3778 = vmatpush1.bf16.msra.mxu0 %v2844
    %3779 = vmatprep.subr.bf16.mxu0 %v2837
    %3780 = vmatpush1.bf16.msra.mxu0 %v2836
    %3781 = vmatprep.subr.bf16.mxu0 %v2829
    %3782 = vmatpush1.bf16.msra.mxu0 %v2828
    %3783 = vmatprep.subr.bf16.mxu0 %v2949
    %3784 = vmatpush2.bf16.msra.mxu0 %v2948
    %3785 = vmatprep.subr.bf16.mxu0 %v2941
    %3786 = vmatpush2.bf16.msra.mxu0 %v2940
    %3787 = vmatprep.subr.bf16.mxu0 %v2933
    %3788 = vmatpush2.bf16.msra.mxu0 %v2932
    %3789 = vmatprep.subr.bf16.mxu0 %v2925
    %3790 = vmatpush2.bf16.msra.mxu0 %v2924
    %3791 = vmatprep.subr.bf16.mxu0 %v2917
    %3792 = vmatpush2.bf16.msra.mxu0 %v2916
    %3793 = vmatprep.subr.bf16.mxu0 %v2909
    %3794 = vmatpush2.bf16.msra.mxu0 %v2908
    %3795 = vmatprep.subr.bf16.mxu0 %v2901
    %3796 = vmatpush2.bf16.msra.mxu0 %v2900
    %3797 = vmatprep.subr.bf16.mxu0 %v2893
    %3798 = vmatpush2.bf16.msra.mxu0 %v2892
    %3799 = vmatprep.mubr.bf16.mxu0 %v351
    %3800 = vmatmul.mubr.bf16.gmra.mxu0 %v350
    %v3801 = vpop.f32.mrf.mxu0
    %v3802 = vadd.f32 %v3759, %v3801
    %v3803 = vpop.f32.mrf.mxu0
    %v3804 = vadd.f32 %v3761, %v3803
    %v3805 = vpop.f32.mrf.mxu0
    %v3806 = vadd.f32 %v3763, %v3805
    %v3807 = vpop.f32.mrf.mxu0
    %v3808 = vadd.f32 %v3765, %v3807
    %3809 = vdwg.mxu0
    %3810 = vmatprep.subr.bf16.mxu0 %v2503
    %3811 = vmatpush1.bf16.msra.mxu0 %v2502
    %3812 = vmatprep.subr.bf16.mxu0 %v2495
    %3813 = vmatpush1.bf16.msra.mxu0 %v2494
    %3814 = vmatprep.subr.bf16.mxu0 %v2487
    %3815 = vmatpush1.bf16.msra.mxu0 %v2486
    %3816 = vmatprep.subr.bf16.mxu0 %v2479
    %3817 = vmatpush1.bf16.msra.mxu0 %v2478
    %3818 = vmatprep.subr.bf16.mxu0 %v2471
    %3819 = vmatpush1.bf16.msra.mxu0 %v2470
    %3820 = vmatprep.subr.bf16.mxu0 %v2463
    %3821 = vmatpush1.bf16.msra.mxu0 %v2462
    %3822 = vmatprep.subr.bf16.mxu0 %v2455
    %3823 = vmatpush1.bf16.msra.mxu0 %v2454
    %3824 = vmatprep.subr.bf16.mxu0 %v2447
    %3825 = vmatpush1.bf16.msra.mxu0 %v2446
    %3826 = vmatprep.subr.bf16.mxu0 %v2567
    %3827 = vmatpush2.bf16.msra.mxu0 %v2566
    %3828 = vmatprep.subr.bf16.mxu0 %v2559
    %3829 = vmatpush2.bf16.msra.mxu0 %v2558
    %3830 = vmatprep.subr.bf16.mxu0 %v2551
    %3831 = vmatpush2.bf16.msra.mxu0 %v2550
    %3832 = vmatprep.subr.bf16.mxu0 %v2543
    %3833 = vmatpush2.bf16.msra.mxu0 %v2542
    %3834 = vmatprep.subr.bf16.mxu0 %v2535
    %3835 = vmatpush2.bf16.msra.mxu0 %v2534
    %3836 = vmatprep.subr.bf16.mxu0 %v2527
    %3837 = vmatpush2.bf16.msra.mxu0 %v2526
    %3838 = vmatprep.subr.bf16.mxu0 %v2519
    %3839 = vmatpush2.bf16.msra.mxu0 %v2518
    %3840 = vmatprep.subr.bf16.mxu0 %v2511
    %3841 = vmatpush2.bf16.msra.mxu0 %v2510
    %3842 = vmatprep.mubr.bf16.mxu0 %v345
    %3843 = vmatmul.mubr.bf16.gmra.mxu0 %v344
    %v3844 = vpop.f32.mrf.mxu0
    %v3845 = vadd.f32 %v885, %v3844
    %v3846 = vpop.f32.mrf.mxu0
    %v3847 = vadd.f32 %v889, %v3846
    %v3848 = vpop.f32.mrf.mxu0
    %v3849 = vadd.f32 %v885, %v3848
    %v3850 = vpop.f32.mrf.mxu0
    %v3851 = vadd.f32 %v889, %v3850
    %3852 = vdwg.mxu0
    %3853 = vmatprep.subr.bf16.mxu0 %v2631
    %3854 = vmatpush1.bf16.msra.mxu0 %v2630
    %3855 = vmatprep.subr.bf16.mxu0 %v2623
    %3856 = vmatpush1.bf16.msra.mxu0 %v2622
    %3857 = vmatprep.subr.bf16.mxu0 %v2615
    %3858 = vmatpush1.bf16.msra.mxu0 %v2614
    %3859 = vmatprep.subr.bf16.mxu0 %v2607
    %3860 = vmatpush1.bf16.msra.mxu0 %v2606
    %3861 = vmatprep.subr.bf16.mxu0 %v2599
    %3862 = vmatpush1.bf16.msra.mxu0 %v2598
    %3863 = vmatprep.subr.bf16.mxu0 %v2591
    %3864 = vmatpush1.bf16.msra.mxu0 %v2590
    %3865 = vmatprep.subr.bf16.mxu0 %v2583
    %3866 = vmatpush1.bf16.msra.mxu0 %v2582
    %3867 = vmatprep.subr.bf16.mxu0 %v2575
    %3868 = vmatpush1.bf16.msra.mxu0 %v2574
    %3869 = vmatprep.subr.bf16.mxu0 %v2695
    %3870 = vmatpush2.bf16.msra.mxu0 %v2694
    %3871 = vmatprep.subr.bf16.mxu0 %v2687
    %3872 = vmatpush2.bf16.msra.mxu0 %v2686
    %3873 = vmatprep.subr.bf16.mxu0 %v2679
    %3874 = vmatpush2.bf16.msra.mxu0 %v2678
    %3875 = vmatprep.subr.bf16.mxu0 %v2671
    %3876 = vmatpush2.bf16.msra.mxu0 %v2670
    %3877 = vmatprep.subr.bf16.mxu0 %v2663
    %3878 = vmatpush2.bf16.msra.mxu0 %v2662
    %3879 = vmatprep.subr.bf16.mxu0 %v2655
    %3880 = vmatpush2.bf16.msra.mxu0 %v2654
    %3881 = vmatprep.subr.bf16.mxu0 %v2647
    %3882 = vmatpush2.bf16.msra.mxu0 %v2646
    %3883 = vmatprep.subr.bf16.mxu0 %v2639
    %3884 = vmatpush2.bf16.msra.mxu0 %v2638
    %3885 = vmatprep.mubr.bf16.mxu0 %v347
    %3886 = vmatmul.mubr.bf16.gmra.mxu0 %v346
    %v3887 = vpop.f32.mrf.mxu0
    %v3888 = vadd.f32 %v3845, %v3887
    %v3889 = vpop.f32.mrf.mxu0
    %v3890 = vadd.f32 %v3847, %v3889
    %v3891 = vpop.f32.mrf.mxu0
    %v3892 = vadd.f32 %v3849, %v3891
    %v3893 = vpop.f32.mrf.mxu0
    %v3894 = vadd.f32 %v3851, %v3893
    %3895 = vdwg.mxu0
    %3896 = vmatprep.subr.bf16.mxu0 %v2759
    %3897 = vmatpush1.bf16.msra.mxu0 %v2758
    %3898 = vmatprep.subr.bf16.mxu0 %v2751
    %3899 = vmatpush1.bf16.msra.mxu0 %v2750
    %3900 = vmatprep.subr.bf16.mxu0 %v2743
    %3901 = vmatpush1.bf16.msra.mxu0 %v2742
    %3902 = vmatprep.subr.bf16.mxu0 %v2735
    %3903 = vmatpush1.bf16.msra.mxu0 %v2734
    %3904 = vmatprep.subr.bf16.mxu0 %v2727
    %3905 = vmatpush1.bf16.msra.mxu0 %v2726
    %3906 = vmatprep.subr.bf16.mxu0 %v2719
    %3907 = vmatpush1.bf16.msra.mxu0 %v2718
    %3908 = vmatprep.subr.bf16.mxu0 %v2711
    %3909 = vmatpush1.bf16.msra.mxu0 %v2710
    %3910 = vmatprep.subr.bf16.mxu0 %v2703
    %3911 = vmatpush1.bf16.msra.mxu0 %v2702
    %3912 = vmatprep.subr.bf16.mxu0 %v2823
    %3913 = vmatpush2.bf16.msra.mxu0 %v2822
    %3914 = vmatprep.subr.bf16.mxu0 %v2815
    %3915 = vmatpush2.bf16.msra.mxu0 %v2814
    %3916 = vmatprep.subr.bf16.mxu0 %v2807
    %3917 = vmatpush2.bf16.msra.mxu0 %v2806
    %3918 = vmatprep.subr.bf16.mxu0 %v2799
    %3919 = vmatpush2.bf16.msra.mxu0 %v2798
    %3920 = vmatprep.subr.bf16.mxu0 %v2791
    %3921 = vmatpush2.bf16.msra.mxu0 %v2790
    %3922 = vmatprep.subr.bf16.mxu0 %v2783
    %3923 = vmatpush2.bf16.msra.mxu0 %v2782
    %3924 = vmatprep.subr.bf16.mxu0 %v2775
    %3925 = vmatpush2.bf16.msra.mxu0 %v2774
    %3926 = vmatprep.subr.bf16.mxu0 %v2767
    %3927 = vmatpush2.bf16.msra.mxu0 %v2766
    %3928 = vmatprep.mubr.bf16.mxu0 %v349
    %3929 = vmatmul.mubr.bf16.gmra.mxu0 %v348
    %v3930 = vpop.f32.mrf.mxu0
    %v3931 = vadd.f32 %v3888, %v3930
    %v3932 = vpop.f32.mrf.mxu0
    %v3933 = vadd.f32 %v3890, %v3932
    %v3934 = vpop.f32.mrf.mxu0
    %v3935 = vadd.f32 %v3892, %v3934
    %v3936 = vpop.f32.mrf.mxu0
    %v3937 = vadd.f32 %v3894, %v3936
    %3938 = vdwg.mxu0
    %3939 = vmatprep.subr.bf16.mxu0 %v2887
    %3940 = vmatpush1.bf16.msra.mxu0 %v2886
    %3941 = vmatprep.subr.bf16.mxu0 %v2879
    %3942 = vmatpush1.bf16.msra.mxu0 %v2878
    %3943 = vmatprep.subr.bf16.mxu0 %v2871
    %3944 = vmatpush1.bf16.msra.mxu0 %v2870
    %3945 = vmatprep.subr.bf16.mxu0 %v2863
    %3946 = vmatpush1.bf16.msra.mxu0 %v2862
    %3947 = vmatprep.subr.bf16.mxu0 %v2855
    %3948 = vmatpush1.bf16.msra.mxu0 %v2854
    %3949 = vmatprep.subr.bf16.mxu0 %v2847
    %3950 = vmatpush1.bf16.msra.mxu0 %v2846
    %3951 = vmatprep.subr.bf16.mxu0 %v2839
    %3952 = vmatpush1.bf16.msra.mxu0 %v2838
    %3953 = vmatprep.subr.bf16.mxu0 %v2831
    %3954 = vmatpush1.bf16.msra.mxu0 %v2830
    %3955 = vmatprep.subr.bf16.mxu0 %v2951
    %3956 = vmatpush2.bf16.msra.mxu0 %v2950
    %3957 = vmatprep.subr.bf16.mxu0 %v2943
    %3958 = vmatpush2.bf16.msra.mxu0 %v2942
    %3959 = vmatprep.subr.bf16.mxu0 %v2935
    %3960 = vmatpush2.bf16.msra.mxu0 %v2934
    %3961 = vmatprep.subr.bf16.mxu0 %v2927
    %3962 = vmatpush2.bf16.msra.mxu0 %v2926
    %3963 = vmatprep.subr.bf16.mxu0 %v2919
    %3964 = vmatpush2.bf16.msra.mxu0 %v2918
    %3965 = vmatprep.subr.bf16.mxu0 %v2911
    %3966 = vmatpush2.bf16.msra.mxu0 %v2910
    %3967 = vmatprep.subr.bf16.mxu0 %v2903
    %3968 = vmatpush2.bf16.msra.mxu0 %v2902
    %3969 = vmatprep.subr.bf16.mxu0 %v2895
    %3970 = vmatpush2.bf16.msra.mxu0 %v2894
    %3971 = vmatprep.mubr.bf16.mxu0 %v351
    %3972 = vmatmul.mubr.bf16.gmra.mxu0 %v350
    %v3973 = vpop.f32.mrf.mxu0
    %v3974 = vadd.f32 %v3931, %v3973
    %v3975 = vpop.f32.mrf.mxu0
    %v3976 = vadd.f32 %v3933, %v3975
    %v3977 = vpop.f32.mrf.mxu0
    %v3978 = vadd.f32 %v3935, %v3977
    %v3979 = vpop.f32.mrf.mxu0
    %v3980 = vadd.f32 %v3937, %v3979
    %3981 = vdwg.mxu0
    %3982 = vmatprep.subr.bf16.mxu0 %v2505
    %3983 = vmatpush1.bf16.msra.mxu0 %v2504
    %3984 = vmatprep.subr.bf16.mxu0 %v2497
    %3985 = vmatpush1.bf16.msra.mxu0 %v2496
    %3986 = vmatprep.subr.bf16.mxu0 %v2489
    %3987 = vmatpush1.bf16.msra.mxu0 %v2488
    %3988 = vmatprep.subr.bf16.mxu0 %v2481
    %3989 = vmatpush1.bf16.msra.mxu0 %v2480
    %3990 = vmatprep.subr.bf16.mxu0 %v2473
    %3991 = vmatpush1.bf16.msra.mxu0 %v2472
    %3992 = vmatprep.subr.bf16.mxu0 %v2465
    %3993 = vmatpush1.bf16.msra.mxu0 %v2464
    %3994 = vmatprep.subr.bf16.mxu0 %v2457
    %3995 = vmatpush1.bf16.msra.mxu0 %v2456
    %3996 = vmatprep.subr.bf16.mxu0 %v2449
    %3997 = vmatpush1.bf16.msra.mxu0 %v2448
    %3998 = vmatprep.subr.bf16.mxu0 %v2569
    %3999 = vmatpush2.bf16.msra.mxu0 %v2568
    %4000 = vmatprep.subr.bf16.mxu0 %v2561
    %4001 = vmatpush2.bf16.msra.mxu0 %v2560
    %4002 = vmatprep.subr.bf16.mxu0 %v2553
    %4003 = vmatpush2.bf16.msra.mxu0 %v2552
    %4004 = vmatprep.subr.bf16.mxu0 %v2545
    %4005 = vmatpush2.bf16.msra.mxu0 %v2544
    %4006 = vmatprep.subr.bf16.mxu0 %v2537
    %4007 = vmatpush2.bf16.msra.mxu0 %v2536
    %4008 = vmatprep.subr.bf16.mxu0 %v2529
    %4009 = vmatpush2.bf16.msra.mxu0 %v2528
    %4010 = vmatprep.subr.bf16.mxu0 %v2521
    %4011 = vmatpush2.bf16.msra.mxu0 %v2520
    %4012 = vmatprep.subr.bf16.mxu0 %v2513
    %4013 = vmatpush2.bf16.msra.mxu0 %v2512
    %4014 = vmatprep.mubr.bf16.mxu0 %v345
    %4015 = vmatmul.mubr.bf16.gmra.mxu0 %v344
    %v4016 = vpop.f32.mrf.mxu0
    %v4017 = vadd.f32 %v893, %v4016
    %v4018 = vpop.f32.mrf.mxu0
    %v4019 = vadd.f32 %v897, %v4018
    %v4020 = vpop.f32.mrf.mxu0
    %v4021 = vadd.f32 %v893, %v4020
    %v4022 = vpop.f32.mrf.mxu0
    %v4023 = vadd.f32 %v897, %v4022
    %4024 = vdwg.mxu0
    %4025 = vmatprep.subr.bf16.mxu0 %v2633
    %4026 = vmatpush1.bf16.msra.mxu0 %v2632
    %4027 = vmatprep.subr.bf16.mxu0 %v2625
    %4028 = vmatpush1.bf16.msra.mxu0 %v2624
    %4029 = vmatprep.subr.bf16.mxu0 %v2617
    %4030 = vmatpush1.bf16.msra.mxu0 %v2616
    %4031 = vmatprep.subr.bf16.mxu0 %v2609
    %4032 = vmatpush1.bf16.msra.mxu0 %v2608
    %4033 = vmatprep.subr.bf16.mxu0 %v2601
    %4034 = vmatpush1.bf16.msra.mxu0 %v2600
    %4035 = vmatprep.subr.bf16.mxu0 %v2593
    %4036 = vmatpush1.bf16.msra.mxu0 %v2592
    %4037 = vmatprep.subr.bf16.mxu0 %v2585
    %4038 = vmatpush1.bf16.msra.mxu0 %v2584
    %4039 = vmatprep.subr.bf16.mxu0 %v2577
    %4040 = vmatpush1.bf16.msra.mxu0 %v2576
    %4041 = vmatprep.subr.bf16.mxu0 %v2697
    %4042 = vmatpush2.bf16.msra.mxu0 %v2696
    %4043 = vmatprep.subr.bf16.mxu0 %v2689
    %4044 = vmatpush2.bf16.msra.mxu0 %v2688
    %4045 = vmatprep.subr.bf16.mxu0 %v2681
    %4046 = vmatpush2.bf16.msra.mxu0 %v2680
    %4047 = vmatprep.subr.bf16.mxu0 %v2673
    %4048 = vmatpush2.bf16.msra.mxu0 %v2672
    %4049 = vmatprep.subr.bf16.mxu0 %v2665
    %4050 = vmatpush2.bf16.msra.mxu0 %v2664
    %4051 = vmatprep.subr.bf16.mxu0 %v2657
    %4052 = vmatpush2.bf16.msra.mxu0 %v2656
    %4053 = vmatprep.subr.bf16.mxu0 %v2649
    %4054 = vmatpush2.bf16.msra.mxu0 %v2648
    %4055 = vmatprep.subr.bf16.mxu0 %v2641
    %4056 = vmatpush2.bf16.msra.mxu0 %v2640
    %4057 = vmatprep.mubr.bf16.mxu0 %v347
    %4058 = vmatmul.mubr.bf16.gmra.mxu0 %v346
    %v4059 = vpop.f32.mrf.mxu0
    %v4060 = vadd.f32 %v4017, %v4059
    %v4061 = vpop.f32.mrf.mxu0
    %v4062 = vadd.f32 %v4019, %v4061
    %v4063 = vpop.f32.mrf.mxu0
    %v4064 = vadd.f32 %v4021, %v4063
    %v4065 = vpop.f32.mrf.mxu0
    %v4066 = vadd.f32 %v4023, %v4065
    %4067 = vdwg.mxu0
    %4068 = vmatprep.subr.bf16.mxu0 %v2761
    %4069 = vmatpush1.bf16.msra.mxu0 %v2760
    %4070 = vmatprep.subr.bf16.mxu0 %v2753
    %4071 = vmatpush1.bf16.msra.mxu0 %v2752
    %4072 = vmatprep.subr.bf16.mxu0 %v2745
    %4073 = vmatpush1.bf16.msra.mxu0 %v2744
    %4074 = vmatprep.subr.bf16.mxu0 %v2737
    %4075 = vmatpush1.bf16.msra.mxu0 %v2736
    %4076 = vmatprep.subr.bf16.mxu0 %v2729
    %4077 = vmatpush1.bf16.msra.mxu0 %v2728
    %4078 = vmatprep.subr.bf16.mxu0 %v2721
    %4079 = vmatpush1.bf16.msra.mxu0 %v2720
    %4080 = vmatprep.subr.bf16.mxu0 %v2713
    %4081 = vmatpush1.bf16.msra.mxu0 %v2712
    %4082 = vmatprep.subr.bf16.mxu0 %v2705
    %4083 = vmatpush1.bf16.msra.mxu0 %v2704
    %4084 = vmatprep.subr.bf16.mxu0 %v2825
    %4085 = vmatpush2.bf16.msra.mxu0 %v2824
    %4086 = vmatprep.subr.bf16.mxu0 %v2817
    %4087 = vmatpush2.bf16.msra.mxu0 %v2816
    %4088 = vmatprep.subr.bf16.mxu0 %v2809
    %4089 = vmatpush2.bf16.msra.mxu0 %v2808
    %4090 = vmatprep.subr.bf16.mxu0 %v2801
    %4091 = vmatpush2.bf16.msra.mxu0 %v2800
    %4092 = vmatprep.subr.bf16.mxu0 %v2793
    %4093 = vmatpush2.bf16.msra.mxu0 %v2792
    %4094 = vmatprep.subr.bf16.mxu0 %v2785
    %4095 = vmatpush2.bf16.msra.mxu0 %v2784
    %4096 = vmatprep.subr.bf16.mxu0 %v2777
    %4097 = vmatpush2.bf16.msra.mxu0 %v2776
    %4098 = vmatprep.subr.bf16.mxu0 %v2769
    %4099 = vmatpush2.bf16.msra.mxu0 %v2768
    %4100 = vmatprep.mubr.bf16.mxu0 %v349
    %4101 = vmatmul.mubr.bf16.gmra.mxu0 %v348
    %v4102 = vpop.f32.mrf.mxu0
    %v4103 = vadd.f32 %v4060, %v4102
    %v4104 = vpop.f32.mrf.mxu0
    %v4105 = vadd.f32 %v4062, %v4104
    %v4106 = vpop.f32.mrf.mxu0
    %v4107 = vadd.f32 %v4064, %v4106
    %v4108 = vpop.f32.mrf.mxu0
    %v4109 = vadd.f32 %v4066, %v4108
    %4110 = vdwg.mxu0
    %4111 = vmatprep.subr.bf16.mxu0 %v2889
    %4112 = vmatpush1.bf16.msra.mxu0 %v2888
    %4113 = vmatprep.subr.bf16.mxu0 %v2881
    %4114 = vmatpush1.bf16.msra.mxu0 %v2880
    %4115 = vmatprep.subr.bf16.mxu0 %v2873
    %4116 = vmatpush1.bf16.msra.mxu0 %v2872
    %4117 = vmatprep.subr.bf16.mxu0 %v2865
    %4118 = vmatpush1.bf16.msra.mxu0 %v2864
    %4119 = vmatprep.subr.bf16.mxu0 %v2857
    %4120 = vmatpush1.bf16.msra.mxu0 %v2856
    %4121 = vmatprep.subr.bf16.mxu0 %v2849
    %4122 = vmatpush1.bf16.msra.mxu0 %v2848
    %4123 = vmatprep.subr.bf16.mxu0 %v2841
    %4124 = vmatpush1.bf16.msra.mxu0 %v2840
    %4125 = vmatprep.subr.bf16.mxu0 %v2833
    %4126 = vmatpush1.bf16.msra.mxu0 %v2832
    %4127 = vmatprep.subr.bf16.mxu0 %v2953
    %4128 = vmatpush2.bf16.msra.mxu0 %v2952
    %4129 = vmatprep.subr.bf16.mxu0 %v2945
    %4130 = vmatpush2.bf16.msra.mxu0 %v2944
    %4131 = vmatprep.subr.bf16.mxu0 %v2937
    %4132 = vmatpush2.bf16.msra.mxu0 %v2936
    %4133 = vmatprep.subr.bf16.mxu0 %v2929
    %4134 = vmatpush2.bf16.msra.mxu0 %v2928
    %4135 = vmatprep.subr.bf16.mxu0 %v2921
    %4136 = vmatpush2.bf16.msra.mxu0 %v2920
    %4137 = vmatprep.subr.bf16.mxu0 %v2913
    %4138 = vmatpush2.bf16.msra.mxu0 %v2912
    %4139 = vmatprep.subr.bf16.mxu0 %v2905
    %4140 = vmatpush2.bf16.msra.mxu0 %v2904
    %4141 = vmatprep.subr.bf16.mxu0 %v2897
    %4142 = vmatpush2.bf16.msra.mxu0 %v2896
    %4143 = vmatprep.mubr.bf16.mxu0 %v351
    %4144 = vmatmul.mubr.bf16.gmra.mxu0 %v350
    %v4145 = vpop.f32.mrf.mxu0
    %v4146 = vadd.f32 %v4103, %v4145
    %v4147 = vpop.f32.mrf.mxu0
    %v4148 = vadd.f32 %v4105, %v4147
    %v4149 = vpop.f32.mrf.mxu0
    %v4150 = vadd.f32 %v4107, %v4149
    %v4151 = vpop.f32.mrf.mxu0
    %v4152 = vadd.f32 %v4109, %v4151
    %4153 = vdwg.mxu0
    %vm4154 = vcmp.ge.f32.partialorder %v3630, 0.0
    %vm4155 = vcmp.ge.f32.partialorder %v3632, 0.0
    %vm4156 = vcmp.ge.f32.partialorder %v3802, 0.0
    %vm4157 = vcmp.ge.f32.partialorder %v3804, 0.0
    %vm4158 = vcmp.ge.f32.partialorder %v3974, 0.0
    %vm4159 = vcmp.ge.f32.partialorder %v3976, 0.0
    %vm4160 = vcmp.ge.f32.partialorder %v4146, 0.0
    %vm4161 = vcmp.ge.f32.partialorder %v4148, 0.0
    %vm4162 = vcmp.ge.f32.partialorder %v3634, 0.0
    %vm4163 = vcmp.ge.f32.partialorder %v3636, 0.0
    %vm4164 = vcmp.ge.f32.partialorder %v3806, 0.0
    %vm4165 = vcmp.ge.f32.partialorder %v3808, 0.0
    %vm4166 = vcmp.ge.f32.partialorder %v3978, 0.0
    %vm4167 = vcmp.ge.f32.partialorder %v3980, 0.0
    %vm4168 = vcmp.ge.f32.partialorder %v4150, 0.0
    %vm4169 = vcmp.ge.f32.partialorder %v4152, 0.0
    %v4170 = vmul.f32 %v3630, 0.2
    %v4171 = vmul.f32 %v3632, 0.2
    %v4172 = vmul.f32 %v3802, 0.2
    %v4173 = vmul.f32 %v3804, 0.2
    %v4174 = vmul.f32 %v3974, 0.2
    %v4175 = vmul.f32 %v3976, 0.2
    %v4176 = vmul.f32 %v4146, 0.2
    %v4177 = vmul.f32 %v4148, 0.2
    %v4178 = vmul.f32 %v3634, 0.2
    %v4179 = vmul.f32 %v3636, 0.2
    %v4180 = vmul.f32 %v3806, 0.2
    %v4181 = vmul.f32 %v3808, 0.2
    %v4182 = vmul.f32 %v3978, 0.2
    %v4183 = vmul.f32 %v3980, 0.2
    %v4184 = vmul.f32 %v4150, 0.2
    %v4185 = vmul.f32 %v4152, 0.2
    %v4186 = vsel %vm4154, %v3630, %v4170
    %v4187 = vsel %vm4155, %v3632, %v4171
    %v4188 = vsel %vm4156, %v3802, %v4172
    %v4189 = vsel %vm4157, %v3804, %v4173
    %v4190 = vsel %vm4158, %v3974, %v4174
    %v4191 = vsel %vm4159, %v3976, %v4175
    %v4192 = vsel %vm4160, %v4146, %v4176
    %v4193 = vsel %vm4161, %v4148, %v4177
    %v4194 = vsel %vm4162, %v3634, %v4178
    %v4195 = vsel %vm4163, %v3636, %v4179
    %v4196 = vsel %vm4164, %v3806, %v4180
    %v4197 = vsel %vm4165, %v3808, %v4181
    %v4198 = vsel %vm4166, %v3978, %v4182
    %v4199 = vsel %vm4167, %v3980, %v4183
    %v4200 = vsel %vm4168, %v4150, %v4184
    %v4201 = vsel %vm4169, %v4152, %v4185
    %v4202 = vpack.c.bf16 %v4194, %v4186
    %v4203 = vpack.c.bf16 %v4195, %v4187
    %v4204 = vpack.c.bf16 %v4196, %v4188
    %v4205 = vpack.c.bf16 %v4197, %v4189
    %v4206 = vpack.c.bf16 %v4198, %v4190
    %v4207 = vpack.c.bf16 %v4199, %v4191
    %v4208 = vpack.c.bf16 %v4200, %v4192
    %v4209 = vpack.c.bf16 %v4201, %v4193
    %v4210 = vld [vmem:[#allocation8] sm:$0xff]
    %v4211 = vld [vmem:[#allocation8 + $0x8] sm:$0xff]
    %v4212 = vld [vmem:[#allocation8 + $0x10] sm:$0xff]
    %v4213 = vld [vmem:[#allocation8 + $0x18] sm:$0xff]
    %v4214 = vld [vmem:[#allocation8 + $0x20] sm:$0xff]
    %v4215 = vld [vmem:[#allocation8 + $0x28] sm:$0xff]
    %v4216 = vld [vmem:[#allocation8 + $0x30] sm:$0xff]
    %v4217 = vld [vmem:[#allocation8 + $0x38] sm:$0xff]
    %v4218 = vld [vmem:[#allocation8 + $0x40] sm:$0xff]
    %v4219 = vld [vmem:[#allocation8 + $0x48] sm:$0xff]
    %v4220 = vld [vmem:[#allocation8 + $0x50] sm:$0xff]
    %v4221 = vld [vmem:[#allocation8 + $0x58] sm:$0xff]
    %v4222 = vld [vmem:[#allocation8 + $0x60] sm:$0xff]
    %v4223 = vld [vmem:[#allocation8 + $0x68] sm:$0xff]
    %v4224 = vld [vmem:[#allocation8 + $0x70] sm:$0xff]
    %v4225 = vld [vmem:[#allocation8 + $0x78] sm:$0xff]
    %v4226 = vld [vmem:[#allocation8 + $0x80] sm:$0xff]
    %v4227 = vld [vmem:[#allocation8 + $0x88] sm:$0xff]
    %v4228 = vld [vmem:[#allocation8 + $0x90] sm:$0xff]
    %v4229 = vld [vmem:[#allocation8 + $0x98] sm:$0xff]
    %v4230 = vld [vmem:[#allocation8 + $0xa0] sm:$0xff]
    %v4231 = vld [vmem:[#allocation8 + $0xa8] sm:$0xff]
    %v4232 = vld [vmem:[#allocation8 + $0xb0] sm:$0xff]
    %v4233 = vld [vmem:[#allocation8 + $0xb8] sm:$0xff]
    %v4234 = vld [vmem:[#allocation8 + $0xc0] sm:$0xff]
    %v4235 = vld [vmem:[#allocation8 + $0xc8] sm:$0xff]
    %v4236 = vld [vmem:[#allocation8 + $0xd0] sm:$0xff]
    %v4237 = vld [vmem:[#allocation8 + $0xd8] sm:$0xff]
    %v4238 = vld [vmem:[#allocation8 + $0xe0] sm:$0xff]
    %v4239 = vld [vmem:[#allocation8 + $0xe8] sm:$0xff]
    %v4240 = vld [vmem:[#allocation8 + $0xf0] sm:$0xff]
    %v4241 = vld [vmem:[#allocation8 + $0xf8] sm:$0xff]
    %v4242 = vld [vmem:[#allocation8 + $0x100] sm:$0xff]
    %v4243 = vld [vmem:[#allocation8 + $0x108] sm:$0xff]
    %v4244 = vld [vmem:[#allocation8 + $0x110] sm:$0xff]
    %v4245 = vld [vmem:[#allocation8 + $0x118] sm:$0xff]
    %v4246 = vld [vmem:[#allocation8 + $0x120] sm:$0xff]
    %v4247 = vld [vmem:[#allocation8 + $0x128] sm:$0xff]
    %v4248 = vld [vmem:[#allocation8 + $0x130] sm:$0xff]
    %v4249 = vld [vmem:[#allocation8 + $0x138] sm:$0xff]
    %v4250 = vld [vmem:[#allocation8 + $0x140] sm:$0xff]
    %v4251 = vld [vmem:[#allocation8 + $0x148] sm:$0xff]
    %v4252 = vld [vmem:[#allocation8 + $0x150] sm:$0xff]
    %v4253 = vld [vmem:[#allocation8 + $0x158] sm:$0xff]
    %v4254 = vld [vmem:[#allocation8 + $0x160] sm:$0xff]
    %v4255 = vld [vmem:[#allocation8 + $0x168] sm:$0xff]
    %v4256 = vld [vmem:[#allocation8 + $0x170] sm:$0xff]
    %v4257 = vld [vmem:[#allocation8 + $0x178] sm:$0xff]
    %v4258 = vld [vmem:[#allocation8 + $0x180] sm:$0xff]
    %v4259 = vld [vmem:[#allocation8 + $0x188] sm:$0xff]
    %v4260 = vld [vmem:[#allocation8 + $0x190] sm:$0xff]
    %v4261 = vld [vmem:[#allocation8 + $0x198] sm:$0xff]
    %v4262 = vld [vmem:[#allocation8 + $0x1a0] sm:$0xff]
    %v4263 = vld [vmem:[#allocation8 + $0x1a8] sm:$0xff]
    %v4264 = vld [vmem:[#allocation8 + $0x1b0] sm:$0xff]
    %v4265 = vld [vmem:[#allocation8 + $0x1b8] sm:$0xff]
    %v4266 = vld [vmem:[#allocation8 + $0x1c0] sm:$0xff]
    %v4267 = vld [vmem:[#allocation8 + $0x1c8] sm:$0xff]
    %v4268 = vld [vmem:[#allocation8 + $0x1d0] sm:$0xff]
    %v4269 = vld [vmem:[#allocation8 + $0x1d8] sm:$0xff]
    %v4270 = vld [vmem:[#allocation8 + $0x1e0] sm:$0xff]
    %v4271 = vld [vmem:[#allocation8 + $0x1e8] sm:$0xff]
    %v4272 = vld [vmem:[#allocation8 + $0x1f0] sm:$0xff]
    %v4273 = vld [vmem:[#allocation8 + $0x1f8] sm:$0xff]
    %v4274 = vld [vmem:[#allocation8 + $0x200] sm:$0xff]
    %v4275 = vld [vmem:[#allocation8 + $0x208] sm:$0xff]
    %v4276 = vld [vmem:[#allocation8 + $0x210] sm:$0xff]
    %v4277 = vld [vmem:[#allocation8 + $0x218] sm:$0xff]
    %v4278 = vld [vmem:[#allocation8 + $0x220] sm:$0xff]
    %v4279 = vld [vmem:[#allocation8 + $0x228] sm:$0xff]
    %v4280 = vld [vmem:[#allocation8 + $0x230] sm:$0xff]
    %v4281 = vld [vmem:[#allocation8 + $0x238] sm:$0xff]
    %v4282 = vld [vmem:[#allocation8 + $0x240] sm:$0xff]
    %v4283 = vld [vmem:[#allocation8 + $0x248] sm:$0xff]
    %v4284 = vld [vmem:[#allocation8 + $0x250] sm:$0xff]
    %v4285 = vld [vmem:[#allocation8 + $0x258] sm:$0xff]
    %v4286 = vld [vmem:[#allocation8 + $0x260] sm:$0xff]
    %v4287 = vld [vmem:[#allocation8 + $0x268] sm:$0xff]
    %v4288 = vld [vmem:[#allocation8 + $0x270] sm:$0xff]
    %v4289 = vld [vmem:[#allocation8 + $0x278] sm:$0xff]
    %v4290 = vld [vmem:[#allocation8 + $0x280] sm:$0xff]
    %v4291 = vld [vmem:[#allocation8 + $0x288] sm:$0xff]
    %v4292 = vld [vmem:[#allocation8 + $0x290] sm:$0xff]
    %v4293 = vld [vmem:[#allocation8 + $0x298] sm:$0xff]
    %v4294 = vld [vmem:[#allocation8 + $0x2a0] sm:$0xff]
    %v4295 = vld [vmem:[#allocation8 + $0x2a8] sm:$0xff]
    %v4296 = vld [vmem:[#allocation8 + $0x2b0] sm:$0xff]
    %v4297 = vld [vmem:[#allocation8 + $0x2b8] sm:$0xff]
    %v4298 = vld [vmem:[#allocation8 + $0x2c0] sm:$0xff]
    %v4299 = vld [vmem:[#allocation8 + $0x2c8] sm:$0xff]
    %v4300 = vld [vmem:[#allocation8 + $0x2d0] sm:$0xff]
    %v4301 = vld [vmem:[#allocation8 + $0x2d8] sm:$0xff]
    %v4302 = vld [vmem:[#allocation8 + $0x2e0] sm:$0xff]
    %v4303 = vld [vmem:[#allocation8 + $0x2e8] sm:$0xff]
    %v4304 = vld [vmem:[#allocation8 + $0x2f0] sm:$0xff]
    %v4305 = vld [vmem:[#allocation8 + $0x2f8] sm:$0xff]
    %v4306 = vld [vmem:[#allocation8 + $0x300] sm:$0xff]
    %v4307 = vld [vmem:[#allocation8 + $0x308] sm:$0xff]
    %v4308 = vld [vmem:[#allocation8 + $0x310] sm:$0xff]
    %v4309 = vld [vmem:[#allocation8 + $0x318] sm:$0xff]
    %v4310 = vld [vmem:[#allocation8 + $0x320] sm:$0xff]
    %v4311 = vld [vmem:[#allocation8 + $0x328] sm:$0xff]
    %v4312 = vld [vmem:[#allocation8 + $0x330] sm:$0xff]
    %v4313 = vld [vmem:[#allocation8 + $0x338] sm:$0xff]
    %v4314 = vld [vmem:[#allocation8 + $0x340] sm:$0xff]
    %v4315 = vld [vmem:[#allocation8 + $0x348] sm:$0xff]
    %v4316 = vld [vmem:[#allocation8 + $0x350] sm:$0xff]
    %v4317 = vld [vmem:[#allocation8 + $0x358] sm:$0xff]
    %v4318 = vld [vmem:[#allocation8 + $0x360] sm:$0xff]
    %v4319 = vld [vmem:[#allocation8 + $0x368] sm:$0xff]
    %v4320 = vld [vmem:[#allocation8 + $0x370] sm:$0xff]
    %v4321 = vld [vmem:[#allocation8 + $0x378] sm:$0xff]
    %v4322 = vld [vmem:[#allocation8 + $0x380] sm:$0xff]
    %v4323 = vld [vmem:[#allocation8 + $0x388] sm:$0xff]
    %v4324 = vld [vmem:[#allocation8 + $0x390] sm:$0xff]
    %v4325 = vld [vmem:[#allocation8 + $0x398] sm:$0xff]
    %v4326 = vld [vmem:[#allocation8 + $0x3a0] sm:$0xff]
    %v4327 = vld [vmem:[#allocation8 + $0x3a8] sm:$0xff]
    %v4328 = vld [vmem:[#allocation8 + $0x3b0] sm:$0xff]
    %v4329 = vld [vmem:[#allocation8 + $0x3b8] sm:$0xff]
    %v4330 = vld [vmem:[#allocation8 + $0x3c0] sm:$0xff]
    %v4331 = vld [vmem:[#allocation8 + $0x3c8] sm:$0xff]
    %v4332 = vld [vmem:[#allocation8 + $0x3d0] sm:$0xff]
    %v4333 = vld [vmem:[#allocation8 + $0x3d8] sm:$0xff]
    %v4334 = vld [vmem:[#allocation8 + $0x3e0] sm:$0xff]
    %v4335 = vld [vmem:[#allocation8 + $0x3e8] sm:$0xff]
    %v4336 = vld [vmem:[#allocation8 + $0x3f0] sm:$0xff]
    %v4337 = vld [vmem:[#allocation8 + $0x3f8] sm:$0xff]
    %v4338 = vld [vmem:[#allocation8 + $0x400] sm:$0xff]
    %v4339 = vld [vmem:[#allocation8 + $0x408] sm:$0xff]
    %v4340 = vld [vmem:[#allocation8 + $0x410] sm:$0xff]
    %v4341 = vld [vmem:[#allocation8 + $0x418] sm:$0xff]
    %v4342 = vld [vmem:[#allocation8 + $0x420] sm:$0xff]
    %v4343 = vld [vmem:[#allocation8 + $0x428] sm:$0xff]
    %v4344 = vld [vmem:[#allocation8 + $0x430] sm:$0xff]
    %v4345 = vld [vmem:[#allocation8 + $0x438] sm:$0xff]
    %v4346 = vld [vmem:[#allocation8 + $0x440] sm:$0xff]
    %v4347 = vld [vmem:[#allocation8 + $0x448] sm:$0xff]
    %v4348 = vld [vmem:[#allocation8 + $0x450] sm:$0xff]
    %v4349 = vld [vmem:[#allocation8 + $0x458] sm:$0xff]
    %v4350 = vld [vmem:[#allocation8 + $0x460] sm:$0xff]
    %v4351 = vld [vmem:[#allocation8 + $0x468] sm:$0xff]
    %v4352 = vld [vmem:[#allocation8 + $0x470] sm:$0xff]
    %v4353 = vld [vmem:[#allocation8 + $0x478] sm:$0xff]
    %v4354 = vld [vmem:[#allocation8 + $0x480] sm:$0xff]
    %v4355 = vld [vmem:[#allocation8 + $0x488] sm:$0xff]
    %v4356 = vld [vmem:[#allocation8 + $0x490] sm:$0xff]
    %v4357 = vld [vmem:[#allocation8 + $0x498] sm:$0xff]
    %v4358 = vld [vmem:[#allocation8 + $0x4a0] sm:$0xff]
    %v4359 = vld [vmem:[#allocation8 + $0x4a8] sm:$0xff]
    %v4360 = vld [vmem:[#allocation8 + $0x4b0] sm:$0xff]
    %v4361 = vld [vmem:[#allocation8 + $0x4b8] sm:$0xff]
    %v4362 = vld [vmem:[#allocation8 + $0x4c0] sm:$0xff]
    %v4363 = vld [vmem:[#allocation8 + $0x4c8] sm:$0xff]
    %v4364 = vld [vmem:[#allocation8 + $0x4d0] sm:$0xff]
    %v4365 = vld [vmem:[#allocation8 + $0x4d8] sm:$0xff]
    %v4366 = vld [vmem:[#allocation8 + $0x4e0] sm:$0xff]
    %v4367 = vld [vmem:[#allocation8 + $0x4e8] sm:$0xff]
    %v4368 = vld [vmem:[#allocation8 + $0x4f0] sm:$0xff]
    %v4369 = vld [vmem:[#allocation8 + $0x4f8] sm:$0xff]
    %v4370 = vld [vmem:[#allocation8 + $0x500] sm:$0xff]
    %v4371 = vld [vmem:[#allocation8 + $0x508] sm:$0xff]
    %v4372 = vld [vmem:[#allocation8 + $0x510] sm:$0xff]
    %v4373 = vld [vmem:[#allocation8 + $0x518] sm:$0xff]
    %v4374 = vld [vmem:[#allocation8 + $0x520] sm:$0xff]
    %v4375 = vld [vmem:[#allocation8 + $0x528] sm:$0xff]
    %v4376 = vld [vmem:[#allocation8 + $0x530] sm:$0xff]
    %v4377 = vld [vmem:[#allocation8 + $0x538] sm:$0xff]
    %v4378 = vld [vmem:[#allocation8 + $0x540] sm:$0xff]
    %v4379 = vld [vmem:[#allocation8 + $0x548] sm:$0xff]
    %v4380 = vld [vmem:[#allocation8 + $0x550] sm:$0xff]
    %v4381 = vld [vmem:[#allocation8 + $0x558] sm:$0xff]
    %v4382 = vld [vmem:[#allocation8 + $0x560] sm:$0xff]
    %v4383 = vld [vmem:[#allocation8 + $0x568] sm:$0xff]
    %v4384 = vld [vmem:[#allocation8 + $0x570] sm:$0xff]
    %v4385 = vld [vmem:[#allocation8 + $0x578] sm:$0xff]
    %v4386 = vld [vmem:[#allocation8 + $0x580] sm:$0xff]
    %v4387 = vld [vmem:[#allocation8 + $0x588] sm:$0xff]
    %v4388 = vld [vmem:[#allocation8 + $0x590] sm:$0xff]
    %v4389 = vld [vmem:[#allocation8 + $0x598] sm:$0xff]
    %v4390 = vld [vmem:[#allocation8 + $0x5a0] sm:$0xff]
    %v4391 = vld [vmem:[#allocation8 + $0x5a8] sm:$0xff]
    %v4392 = vld [vmem:[#allocation8 + $0x5b0] sm:$0xff]
    %v4393 = vld [vmem:[#allocation8 + $0x5b8] sm:$0xff]
    %v4394 = vld [vmem:[#allocation8 + $0x5c0] sm:$0xff]
    %v4395 = vld [vmem:[#allocation8 + $0x5c8] sm:$0xff]
    %v4396 = vld [vmem:[#allocation8 + $0x5d0] sm:$0xff]
    %v4397 = vld [vmem:[#allocation8 + $0x5d8] sm:$0xff]
    %v4398 = vld [vmem:[#allocation8 + $0x5e0] sm:$0xff]
    %v4399 = vld [vmem:[#allocation8 + $0x5e8] sm:$0xff]
    %v4400 = vld [vmem:[#allocation8 + $0x5f0] sm:$0xff]
    %v4401 = vld [vmem:[#allocation8 + $0x5f8] sm:$0xff]
    %v4402 = vld [vmem:[#allocation8 + $0x600] sm:$0xff]
    %v4403 = vld [vmem:[#allocation8 + $0x608] sm:$0xff]
    %v4404 = vld [vmem:[#allocation8 + $0x610] sm:$0xff]
    %v4405 = vld [vmem:[#allocation8 + $0x618] sm:$0xff]
    %v4406 = vld [vmem:[#allocation8 + $0x620] sm:$0xff]
    %v4407 = vld [vmem:[#allocation8 + $0x628] sm:$0xff]
    %v4408 = vld [vmem:[#allocation8 + $0x630] sm:$0xff]
    %v4409 = vld [vmem:[#allocation8 + $0x638] sm:$0xff]
    %v4410 = vld [vmem:[#allocation8 + $0x640] sm:$0xff]
    %v4411 = vld [vmem:[#allocation8 + $0x648] sm:$0xff]
    %v4412 = vld [vmem:[#allocation8 + $0x650] sm:$0xff]
    %v4413 = vld [vmem:[#allocation8 + $0x658] sm:$0xff]
    %v4414 = vld [vmem:[#allocation8 + $0x660] sm:$0xff]
    %v4415 = vld [vmem:[#allocation8 + $0x668] sm:$0xff]
    %v4416 = vld [vmem:[#allocation8 + $0x670] sm:$0xff]
    %v4417 = vld [vmem:[#allocation8 + $0x678] sm:$0xff]
    %v4418 = vld [vmem:[#allocation8 + $0x680] sm:$0xff]
    %v4419 = vld [vmem:[#allocation8 + $0x688] sm:$0xff]
    %v4420 = vld [vmem:[#allocation8 + $0x690] sm:$0xff]
    %v4421 = vld [vmem:[#allocation8 + $0x698] sm:$0xff]
    %v4422 = vld [vmem:[#allocation8 + $0x6a0] sm:$0xff]
    %v4423 = vld [vmem:[#allocation8 + $0x6a8] sm:$0xff]
    %v4424 = vld [vmem:[#allocation8 + $0x6b0] sm:$0xff]
    %v4425 = vld [vmem:[#allocation8 + $0x6b8] sm:$0xff]
    %v4426 = vld [vmem:[#allocation8 + $0x6c0] sm:$0xff]
    %v4427 = vld [vmem:[#allocation8 + $0x6c8] sm:$0xff]
    %v4428 = vld [vmem:[#allocation8 + $0x6d0] sm:$0xff]
    %v4429 = vld [vmem:[#allocation8 + $0x6d8] sm:$0xff]
    %v4430 = vld [vmem:[#allocation8 + $0x6e0] sm:$0xff]
    %v4431 = vld [vmem:[#allocation8 + $0x6e8] sm:$0xff]
    %v4432 = vld [vmem:[#allocation8 + $0x6f0] sm:$0xff]
    %v4433 = vld [vmem:[#allocation8 + $0x6f8] sm:$0xff]
    %v4434 = vld [vmem:[#allocation8 + $0x700] sm:$0xff]
    %v4435 = vld [vmem:[#allocation8 + $0x708] sm:$0xff]
    %v4436 = vld [vmem:[#allocation8 + $0x710] sm:$0xff]
    %v4437 = vld [vmem:[#allocation8 + $0x718] sm:$0xff]
    %v4438 = vld [vmem:[#allocation8 + $0x720] sm:$0xff]
    %v4439 = vld [vmem:[#allocation8 + $0x728] sm:$0xff]
    %v4440 = vld [vmem:[#allocation8 + $0x730] sm:$0xff]
    %v4441 = vld [vmem:[#allocation8 + $0x738] sm:$0xff]
    %v4442 = vld [vmem:[#allocation8 + $0x740] sm:$0xff]
    %v4443 = vld [vmem:[#allocation8 + $0x748] sm:$0xff]
    %v4444 = vld [vmem:[#allocation8 + $0x750] sm:$0xff]
    %v4445 = vld [vmem:[#allocation8 + $0x758] sm:$0xff]
    %v4446 = vld [vmem:[#allocation8 + $0x760] sm:$0xff]
    %v4447 = vld [vmem:[#allocation8 + $0x768] sm:$0xff]
    %v4448 = vld [vmem:[#allocation8 + $0x770] sm:$0xff]
    %v4449 = vld [vmem:[#allocation8 + $0x778] sm:$0xff]
    %v4450 = vld [vmem:[#allocation8 + $0x780] sm:$0xff]
    %v4451 = vld [vmem:[#allocation8 + $0x788] sm:$0xff]
    %v4452 = vld [vmem:[#allocation8 + $0x790] sm:$0xff]
    %v4453 = vld [vmem:[#allocation8 + $0x798] sm:$0xff]
    %v4454 = vld [vmem:[#allocation8 + $0x7a0] sm:$0xff]
    %v4455 = vld [vmem:[#allocation8 + $0x7a8] sm:$0xff]
    %v4456 = vld [vmem:[#allocation8 + $0x7b0] sm:$0xff]
    %v4457 = vld [vmem:[#allocation8 + $0x7b8] sm:$0xff]
    %v4458 = vld [vmem:[#allocation8 + $0x7c0] sm:$0xff]
    %v4459 = vld [vmem:[#allocation8 + $0x7c8] sm:$0xff]
    %v4460 = vld [vmem:[#allocation8 + $0x7d0] sm:$0xff]
    %v4461 = vld [vmem:[#allocation8 + $0x7d8] sm:$0xff]
    %v4462 = vld [vmem:[#allocation8 + $0x7e0] sm:$0xff]
    %v4463 = vld [vmem:[#allocation8 + $0x7e8] sm:$0xff]
    %v4464 = vld [vmem:[#allocation8 + $0x7f0] sm:$0xff]
    %v4465 = vld [vmem:[#allocation8 + $0x7f8] sm:$0xff]
    %v4466 = vld [vmem:[#allocation8 + $0x800] sm:$0xff]
    %v4467 = vld [vmem:[#allocation8 + $0x808] sm:$0xff]
    %v4468 = vld [vmem:[#allocation8 + $0x810] sm:$0xff]
    %v4469 = vld [vmem:[#allocation8 + $0x818] sm:$0xff]
    %v4470 = vld [vmem:[#allocation8 + $0x820] sm:$0xff]
    %v4471 = vld [vmem:[#allocation8 + $0x828] sm:$0xff]
    %v4472 = vld [vmem:[#allocation8 + $0x830] sm:$0xff]
    %v4473 = vld [vmem:[#allocation8 + $0x838] sm:$0xff]
    %v4474 = vld [vmem:[#allocation8 + $0x840] sm:$0xff]
    %v4475 = vld [vmem:[#allocation8 + $0x848] sm:$0xff]
    %v4476 = vld [vmem:[#allocation8 + $0x850] sm:$0xff]
    %v4477 = vld [vmem:[#allocation8 + $0x858] sm:$0xff]
    %v4478 = vld [vmem:[#allocation8 + $0x860] sm:$0xff]
    %v4479 = vld [vmem:[#allocation8 + $0x868] sm:$0xff]
    %v4480 = vld [vmem:[#allocation8 + $0x870] sm:$0xff]
    %v4481 = vld [vmem:[#allocation8 + $0x878] sm:$0xff]
    %v4482 = vld [vmem:[#allocation8 + $0x880] sm:$0xff]
    %v4483 = vld [vmem:[#allocation8 + $0x888] sm:$0xff]
    %v4484 = vld [vmem:[#allocation8 + $0x890] sm:$0xff]
    %v4485 = vld [vmem:[#allocation8 + $0x898] sm:$0xff]
    %v4486 = vld [vmem:[#allocation8 + $0x8a0] sm:$0xff]
    %v4487 = vld [vmem:[#allocation8 + $0x8a8] sm:$0xff]
    %v4488 = vld [vmem:[#allocation8 + $0x8b0] sm:$0xff]
    %v4489 = vld [vmem:[#allocation8 + $0x8b8] sm:$0xff]
    %v4490 = vld [vmem:[#allocation8 + $0x8c0] sm:$0xff]
    %v4491 = vld [vmem:[#allocation8 + $0x8c8] sm:$0xff]
    %v4492 = vld [vmem:[#allocation8 + $0x8d0] sm:$0xff]
    %v4493 = vld [vmem:[#allocation8 + $0x8d8] sm:$0xff]
    %v4494 = vld [vmem:[#allocation8 + $0x8e0] sm:$0xff]
    %v4495 = vld [vmem:[#allocation8 + $0x8e8] sm:$0xff]
    %v4496 = vld [vmem:[#allocation8 + $0x8f0] sm:$0xff]
    %v4497 = vld [vmem:[#allocation8 + $0x8f8] sm:$0xff]
    %v4498 = vld [vmem:[#allocation8 + $0x900] sm:$0xff]
    %v4499 = vld [vmem:[#allocation8 + $0x908] sm:$0xff]
    %v4500 = vld [vmem:[#allocation8 + $0x910] sm:$0xff]
    %v4501 = vld [vmem:[#allocation8 + $0x918] sm:$0xff]
    %v4502 = vld [vmem:[#allocation8 + $0x920] sm:$0xff]
    %v4503 = vld [vmem:[#allocation8 + $0x928] sm:$0xff]
    %v4504 = vld [vmem:[#allocation8 + $0x930] sm:$0xff]
    %v4505 = vld [vmem:[#allocation8 + $0x938] sm:$0xff]
    %v4506 = vld [vmem:[#allocation8 + $0x940] sm:$0xff]
    %v4507 = vld [vmem:[#allocation8 + $0x948] sm:$0xff]
    %v4508 = vld [vmem:[#allocation8 + $0x950] sm:$0xff]
    %v4509 = vld [vmem:[#allocation8 + $0x958] sm:$0xff]
    %v4510 = vld [vmem:[#allocation8 + $0x960] sm:$0xff]
    %v4511 = vld [vmem:[#allocation8 + $0x968] sm:$0xff]
    %v4512 = vld [vmem:[#allocation8 + $0x970] sm:$0xff]
    %v4513 = vld [vmem:[#allocation8 + $0x978] sm:$0xff]
    %v4514 = vld [vmem:[#allocation8 + $0x980] sm:$0xff]
    %v4515 = vld [vmem:[#allocation8 + $0x988] sm:$0xff]
    %v4516 = vld [vmem:[#allocation8 + $0x990] sm:$0xff]
    %v4517 = vld [vmem:[#allocation8 + $0x998] sm:$0xff]
    %v4518 = vld [vmem:[#allocation8 + $0x9a0] sm:$0xff]
    %v4519 = vld [vmem:[#allocation8 + $0x9a8] sm:$0xff]
    %v4520 = vld [vmem:[#allocation8 + $0x9b0] sm:$0xff]
    %v4521 = vld [vmem:[#allocation8 + $0x9b8] sm:$0xff]
    %v4522 = vld [vmem:[#allocation8 + $0x9c0] sm:$0xff]
    %v4523 = vld [vmem:[#allocation8 + $0x9c8] sm:$0xff]
    %v4524 = vld [vmem:[#allocation8 + $0x9d0] sm:$0xff]
    %v4525 = vld [vmem:[#allocation8 + $0x9d8] sm:$0xff]
    %v4526 = vld [vmem:[#allocation8 + $0x9e0] sm:$0xff]
    %v4527 = vld [vmem:[#allocation8 + $0x9e8] sm:$0xff]
    %v4528 = vld [vmem:[#allocation8 + $0x9f0] sm:$0xff]
    %v4529 = vld [vmem:[#allocation8 + $0x9f8] sm:$0xff]
    %v4530 = vld [vmem:[#allocation8 + $0xa00] sm:$0xff]
    %v4531 = vld [vmem:[#allocation8 + $0xa08] sm:$0xff]
    %v4532 = vld [vmem:[#allocation8 + $0xa10] sm:$0xff]
    %v4533 = vld [vmem:[#allocation8 + $0xa18] sm:$0xff]
    %v4534 = vld [vmem:[#allocation8 + $0xa20] sm:$0xff]
    %v4535 = vld [vmem:[#allocation8 + $0xa28] sm:$0xff]
    %v4536 = vld [vmem:[#allocation8 + $0xa30] sm:$0xff]
    %v4537 = vld [vmem:[#allocation8 + $0xa38] sm:$0xff]
    %v4538 = vld [vmem:[#allocation8 + $0xa40] sm:$0xff]
    %v4539 = vld [vmem:[#allocation8 + $0xa48] sm:$0xff]
    %v4540 = vld [vmem:[#allocation8 + $0xa50] sm:$0xff]
    %v4541 = vld [vmem:[#allocation8 + $0xa58] sm:$0xff]
    %v4542 = vld [vmem:[#allocation8 + $0xa60] sm:$0xff]
    %v4543 = vld [vmem:[#allocation8 + $0xa68] sm:$0xff]
    %v4544 = vld [vmem:[#allocation8 + $0xa70] sm:$0xff]
    %v4545 = vld [vmem:[#allocation8 + $0xa78] sm:$0xff]
    %v4546 = vld [vmem:[#allocation8 + $0xa80] sm:$0xff]
    %v4547 = vld [vmem:[#allocation8 + $0xa88] sm:$0xff]
    %v4548 = vld [vmem:[#allocation8 + $0xa90] sm:$0xff]
    %v4549 = vld [vmem:[#allocation8 + $0xa98] sm:$0xff]
    %v4550 = vld [vmem:[#allocation8 + $0xaa0] sm:$0xff]
    %v4551 = vld [vmem:[#allocation8 + $0xaa8] sm:$0xff]
    %v4552 = vld [vmem:[#allocation8 + $0xab0] sm:$0xff]
    %v4553 = vld [vmem:[#allocation8 + $0xab8] sm:$0xff]
    %v4554 = vld [vmem:[#allocation8 + $0xac0] sm:$0xff]
    %v4555 = vld [vmem:[#allocation8 + $0xac8] sm:$0xff]
    %v4556 = vld [vmem:[#allocation8 + $0xad0] sm:$0xff]
    %v4557 = vld [vmem:[#allocation8 + $0xad8] sm:$0xff]
    %v4558 = vld [vmem:[#allocation8 + $0xae0] sm:$0xff]
    %v4559 = vld [vmem:[#allocation8 + $0xae8] sm:$0xff]
    %v4560 = vld [vmem:[#allocation8 + $0xaf0] sm:$0xff]
    %v4561 = vld [vmem:[#allocation8 + $0xaf8] sm:$0xff]
    %v4562 = vld [vmem:[#allocation8 + $0xb00] sm:$0xff]
    %v4563 = vld [vmem:[#allocation8 + $0xb08] sm:$0xff]
    %v4564 = vld [vmem:[#allocation8 + $0xb10] sm:$0xff]
    %v4565 = vld [vmem:[#allocation8 + $0xb18] sm:$0xff]
    %v4566 = vld [vmem:[#allocation8 + $0xb20] sm:$0xff]
    %v4567 = vld [vmem:[#allocation8 + $0xb28] sm:$0xff]
    %v4568 = vld [vmem:[#allocation8 + $0xb30] sm:$0xff]
    %v4569 = vld [vmem:[#allocation8 + $0xb38] sm:$0xff]
    %v4570 = vld [vmem:[#allocation8 + $0xb40] sm:$0xff]
    %v4571 = vld [vmem:[#allocation8 + $0xb48] sm:$0xff]
    %v4572 = vld [vmem:[#allocation8 + $0xb50] sm:$0xff]
    %v4573 = vld [vmem:[#allocation8 + $0xb58] sm:$0xff]
    %v4574 = vld [vmem:[#allocation8 + $0xb60] sm:$0xff]
    %v4575 = vld [vmem:[#allocation8 + $0xb68] sm:$0xff]
    %v4576 = vld [vmem:[#allocation8 + $0xb70] sm:$0xff]
    %v4577 = vld [vmem:[#allocation8 + $0xb78] sm:$0xff]
    %v4578 = vld [vmem:[#allocation8 + $0xb80] sm:$0xff]
    %v4579 = vld [vmem:[#allocation8 + $0xb88] sm:$0xff]
    %v4580 = vld [vmem:[#allocation8 + $0xb90] sm:$0xff]
    %v4581 = vld [vmem:[#allocation8 + $0xb98] sm:$0xff]
    %v4582 = vld [vmem:[#allocation8 + $0xba0] sm:$0xff]
    %v4583 = vld [vmem:[#allocation8 + $0xba8] sm:$0xff]
    %v4584 = vld [vmem:[#allocation8 + $0xbb0] sm:$0xff]
    %v4585 = vld [vmem:[#allocation8 + $0xbb8] sm:$0xff]
    %v4586 = vld [vmem:[#allocation8 + $0xbc0] sm:$0xff]
    %v4587 = vld [vmem:[#allocation8 + $0xbc8] sm:$0xff]
    %v4588 = vld [vmem:[#allocation8 + $0xbd0] sm:$0xff]
    %v4589 = vld [vmem:[#allocation8 + $0xbd8] sm:$0xff]
    %v4590 = vld [vmem:[#allocation8 + $0xbe0] sm:$0xff]
    %v4591 = vld [vmem:[#allocation8 + $0xbe8] sm:$0xff]
    %v4592 = vld [vmem:[#allocation8 + $0xbf0] sm:$0xff]
    %v4593 = vld [vmem:[#allocation8 + $0xbf8] sm:$0xff]
    %v4594 = vld [vmem:[#allocation8 + $0xc00] sm:$0xff]
    %v4595 = vld [vmem:[#allocation8 + $0xc08] sm:$0xff]
    %v4596 = vld [vmem:[#allocation8 + $0xc10] sm:$0xff]
    %v4597 = vld [vmem:[#allocation8 + $0xc18] sm:$0xff]
    %v4598 = vld [vmem:[#allocation8 + $0xc20] sm:$0xff]
    %v4599 = vld [vmem:[#allocation8 + $0xc28] sm:$0xff]
    %v4600 = vld [vmem:[#allocation8 + $0xc30] sm:$0xff]
    %v4601 = vld [vmem:[#allocation8 + $0xc38] sm:$0xff]
    %v4602 = vld [vmem:[#allocation8 + $0xc40] sm:$0xff]
    %v4603 = vld [vmem:[#allocation8 + $0xc48] sm:$0xff]
    %v4604 = vld [vmem:[#allocation8 + $0xc50] sm:$0xff]
    %v4605 = vld [vmem:[#allocation8 + $0xc58] sm:$0xff]
    %v4606 = vld [vmem:[#allocation8 + $0xc60] sm:$0xff]
    %v4607 = vld [vmem:[#allocation8 + $0xc68] sm:$0xff]
    %v4608 = vld [vmem:[#allocation8 + $0xc70] sm:$0xff]
    %v4609 = vld [vmem:[#allocation8 + $0xc78] sm:$0xff]
    %v4610 = vld [vmem:[#allocation8 + $0xc80] sm:$0xff]
    %v4611 = vld [vmem:[#allocation8 + $0xc88] sm:$0xff]
    %v4612 = vld [vmem:[#allocation8 + $0xc90] sm:$0xff]
    %v4613 = vld [vmem:[#allocation8 + $0xc98] sm:$0xff]
    %v4614 = vld [vmem:[#allocation8 + $0xca0] sm:$0xff]
    %v4615 = vld [vmem:[#allocation8 + $0xca8] sm:$0xff]
    %v4616 = vld [vmem:[#allocation8 + $0xcb0] sm:$0xff]
    %v4617 = vld [vmem:[#allocation8 + $0xcb8] sm:$0xff]
    %v4618 = vld [vmem:[#allocation8 + $0xcc0] sm:$0xff]
    %v4619 = vld [vmem:[#allocation8 + $0xcc8] sm:$0xff]
    %v4620 = vld [vmem:[#allocation8 + $0xcd0] sm:$0xff]
    %v4621 = vld [vmem:[#allocation8 + $0xcd8] sm:$0xff]
    %v4622 = vld [vmem:[#allocation8 + $0xce0] sm:$0xff]
    %v4623 = vld [vmem:[#allocation8 + $0xce8] sm:$0xff]
    %v4624 = vld [vmem:[#allocation8 + $0xcf0] sm:$0xff]
    %v4625 = vld [vmem:[#allocation8 + $0xcf8] sm:$0xff]
    %v4626 = vld [vmem:[#allocation8 + $0xd00] sm:$0xff]
    %v4627 = vld [vmem:[#allocation8 + $0xd08] sm:$0xff]
    %v4628 = vld [vmem:[#allocation8 + $0xd10] sm:$0xff]
    %v4629 = vld [vmem:[#allocation8 + $0xd18] sm:$0xff]
    %v4630 = vld [vmem:[#allocation8 + $0xd20] sm:$0xff]
    %v4631 = vld [vmem:[#allocation8 + $0xd28] sm:$0xff]
    %v4632 = vld [vmem:[#allocation8 + $0xd30] sm:$0xff]
    %v4633 = vld [vmem:[#allocation8 + $0xd38] sm:$0xff]
    %v4634 = vld [vmem:[#allocation8 + $0xd40] sm:$0xff]
    %v4635 = vld [vmem:[#allocation8 + $0xd48] sm:$0xff]
    %v4636 = vld [vmem:[#allocation8 + $0xd50] sm:$0xff]
    %v4637 = vld [vmem:[#allocation8 + $0xd58] sm:$0xff]
    %v4638 = vld [vmem:[#allocation8 + $0xd60] sm:$0xff]
    %v4639 = vld [vmem:[#allocation8 + $0xd68] sm:$0xff]
    %v4640 = vld [vmem:[#allocation8 + $0xd70] sm:$0xff]
    %v4641 = vld [vmem:[#allocation8 + $0xd78] sm:$0xff]
    %v4642 = vld [vmem:[#allocation8 + $0xd80] sm:$0xff]
    %v4643 = vld [vmem:[#allocation8 + $0xd88] sm:$0xff]
    %v4644 = vld [vmem:[#allocation8 + $0xd90] sm:$0xff]
    %v4645 = vld [vmem:[#allocation8 + $0xd98] sm:$0xff]
    %v4646 = vld [vmem:[#allocation8 + $0xda0] sm:$0xff]
    %v4647 = vld [vmem:[#allocation8 + $0xda8] sm:$0xff]
    %v4648 = vld [vmem:[#allocation8 + $0xdb0] sm:$0xff]
    %v4649 = vld [vmem:[#allocation8 + $0xdb8] sm:$0xff]
    %v4650 = vld [vmem:[#allocation8 + $0xdc0] sm:$0xff]
    %v4651 = vld [vmem:[#allocation8 + $0xdc8] sm:$0xff]
    %v4652 = vld [vmem:[#allocation8 + $0xdd0] sm:$0xff]
    %v4653 = vld [vmem:[#allocation8 + $0xdd8] sm:$0xff]
    %v4654 = vld [vmem:[#allocation8 + $0xde0] sm:$0xff]
    %v4655 = vld [vmem:[#allocation8 + $0xde8] sm:$0xff]
    %v4656 = vld [vmem:[#allocation8 + $0xdf0] sm:$0xff]
    %v4657 = vld [vmem:[#allocation8 + $0xdf8] sm:$0xff]
    %v4658 = vld [vmem:[#allocation8 + $0xe00] sm:$0xff]
    %v4659 = vld [vmem:[#allocation8 + $0xe08] sm:$0xff]
    %v4660 = vld [vmem:[#allocation8 + $0xe10] sm:$0xff]
    %v4661 = vld [vmem:[#allocation8 + $0xe18] sm:$0xff]
    %v4662 = vld [vmem:[#allocation8 + $0xe20] sm:$0xff]
    %v4663 = vld [vmem:[#allocation8 + $0xe28] sm:$0xff]
    %v4664 = vld [vmem:[#allocation8 + $0xe30] sm:$0xff]
    %v4665 = vld [vmem:[#allocation8 + $0xe38] sm:$0xff]
    %v4666 = vld [vmem:[#allocation8 + $0xe40] sm:$0xff]
    %v4667 = vld [vmem:[#allocation8 + $0xe48] sm:$0xff]
    %v4668 = vld [vmem:[#allocation8 + $0xe50] sm:$0xff]
    %v4669 = vld [vmem:[#allocation8 + $0xe58] sm:$0xff]
    %v4670 = vld [vmem:[#allocation8 + $0xe60] sm:$0xff]
    %v4671 = vld [vmem:[#allocation8 + $0xe68] sm:$0xff]
    %v4672 = vld [vmem:[#allocation8 + $0xe70] sm:$0xff]
    %v4673 = vld [vmem:[#allocation8 + $0xe78] sm:$0xff]
    %v4674 = vld [vmem:[#allocation8 + $0xe80] sm:$0xff]
    %v4675 = vld [vmem:[#allocation8 + $0xe88] sm:$0xff]
    %v4676 = vld [vmem:[#allocation8 + $0xe90] sm:$0xff]
    %v4677 = vld [vmem:[#allocation8 + $0xe98] sm:$0xff]
    %v4678 = vld [vmem:[#allocation8 + $0xea0] sm:$0xff]
    %v4679 = vld [vmem:[#allocation8 + $0xea8] sm:$0xff]
    %v4680 = vld [vmem:[#allocation8 + $0xeb0] sm:$0xff]
    %v4681 = vld [vmem:[#allocation8 + $0xeb8] sm:$0xff]
    %v4682 = vld [vmem:[#allocation8 + $0xec0] sm:$0xff]
    %v4683 = vld [vmem:[#allocation8 + $0xec8] sm:$0xff]
    %v4684 = vld [vmem:[#allocation8 + $0xed0] sm:$0xff]
    %v4685 = vld [vmem:[#allocation8 + $0xed8] sm:$0xff]
    %v4686 = vld [vmem:[#allocation8 + $0xee0] sm:$0xff]
    %v4687 = vld [vmem:[#allocation8 + $0xee8] sm:$0xff]
    %v4688 = vld [vmem:[#allocation8 + $0xef0] sm:$0xff]
    %v4689 = vld [vmem:[#allocation8 + $0xef8] sm:$0xff]
    %v4690 = vld [vmem:[#allocation8 + $0xf00] sm:$0xff]
    %v4691 = vld [vmem:[#allocation8 + $0xf08] sm:$0xff]
    %v4692 = vld [vmem:[#allocation8 + $0xf10] sm:$0xff]
    %v4693 = vld [vmem:[#allocation8 + $0xf18] sm:$0xff]
    %v4694 = vld [vmem:[#allocation8 + $0xf20] sm:$0xff]
    %v4695 = vld [vmem:[#allocation8 + $0xf28] sm:$0xff]
    %v4696 = vld [vmem:[#allocation8 + $0xf30] sm:$0xff]
    %v4697 = vld [vmem:[#allocation8 + $0xf38] sm:$0xff]
    %v4698 = vld [vmem:[#allocation8 + $0xf40] sm:$0xff]
    %v4699 = vld [vmem:[#allocation8 + $0xf48] sm:$0xff]
    %v4700 = vld [vmem:[#allocation8 + $0xf50] sm:$0xff]
    %v4701 = vld [vmem:[#allocation8 + $0xf58] sm:$0xff]
    %v4702 = vld [vmem:[#allocation8 + $0xf60] sm:$0xff]
    %v4703 = vld [vmem:[#allocation8 + $0xf68] sm:$0xff]
    %v4704 = vld [vmem:[#allocation8 + $0xf70] sm:$0xff]
    %v4705 = vld [vmem:[#allocation8 + $0xf78] sm:$0xff]
    %v4706 = vld [vmem:[#allocation8 + $0xf80] sm:$0xff]
    %v4707 = vld [vmem:[#allocation8 + $0xf88] sm:$0xff]
    %v4708 = vld [vmem:[#allocation8 + $0xf90] sm:$0xff]
    %v4709 = vld [vmem:[#allocation8 + $0xf98] sm:$0xff]
    %v4710 = vld [vmem:[#allocation8 + $0xfa0] sm:$0xff]
    %v4711 = vld [vmem:[#allocation8 + $0xfa8] sm:$0xff]
    %v4712 = vld [vmem:[#allocation8 + $0xfb0] sm:$0xff]
    %v4713 = vld [vmem:[#allocation8 + $0xfb8] sm:$0xff]
    %v4714 = vld [vmem:[#allocation8 + $0xfc0] sm:$0xff]
    %v4715 = vld [vmem:[#allocation8 + $0xfc8] sm:$0xff]
    %v4716 = vld [vmem:[#allocation8 + $0xfd0] sm:$0xff]
    %v4717 = vld [vmem:[#allocation8 + $0xfd8] sm:$0xff]
    %v4718 = vld [vmem:[#allocation8 + $0xfe0] sm:$0xff]
    %v4719 = vld [vmem:[#allocation8 + $0xfe8] sm:$0xff]
    %v4720 = vld [vmem:[#allocation8 + $0xff0] sm:$0xff]
    %v4721 = vld [vmem:[#allocation8 + $0xff8] sm:$0xff]
    %v4722 = vld [vmem:[#allocation10] sm:$0xff]
    %v4724 = vlaneseq
    %v4725 = vshrl.u32 %v4724, 7
    %v4726 = vsub.s32 0, %v4725
    %v4727 = vrot.slane %v4722, %v4726
    %v4728 = vlaneseq
    %v4729 = vshrl.u32 %v4728, 7
    %v4730 = vsub.s32 1, %v4729
    %v4731 = vrot.slane %v4722, %v4730
    %v4732 = vlaneseq
    %v4733 = vshrl.u32 %v4732, 7
    %v4734 = vsub.s32 2, %v4733
    %v4735 = vrot.slane %v4722, %v4734
    %v4736 = vlaneseq
    %v4737 = vshrl.u32 %v4736, 7
    %v4738 = vsub.s32 3, %v4737
    %v4739 = vrot.slane %v4722, %v4738
    %v4740 = vlaneseq
    %v4741 = vshrl.u32 %v4740, 7
    %v4742 = vsub.s32 4, %v4741
    %v4743 = vrot.slane %v4722, %v4742
    %v4744 = vlaneseq
    %v4745 = vshrl.u32 %v4744, 7
    %v4746 = vsub.s32 5, %v4745
    %v4747 = vrot.slane %v4722, %v4746
    %v4748 = vlaneseq
    %v4749 = vshrl.u32 %v4748, 7
    %v4750 = vsub.s32 6, %v4749
    %v4751 = vrot.slane %v4722, %v4750
    %v4752 = vlaneseq
    %v4753 = vshrl.u32 %v4752, 7
    %v4754 = vsub.s32 7, %v4753
    %v4755 = vrot.slane %v4722, %v4754
    %v5276 = vunpack.c.l.b16 %v4210
    %v5277 = vunpack.c.h.b16 %v4210
    %v5278 = vunpack.c.l.b16 %v4211
    %v5279 = vunpack.c.h.b16 %v4211
    %v5280 = vunpack.c.l.b16 %v4212
    %v5281 = vunpack.c.h.b16 %v4212
    %v5282 = vunpack.c.l.b16 %v4213
    %v5283 = vunpack.c.h.b16 %v4213
    %v5284 = vunpack.c.l.b16 %v4214
    %v5285 = vunpack.c.h.b16 %v4214
    %v5286 = vunpack.c.l.b16 %v4215
    %v5287 = vunpack.c.h.b16 %v4215
    %v5288 = vunpack.c.l.b16 %v4216
    %v5289 = vunpack.c.h.b16 %v4216
    %v5290 = vunpack.c.l.b16 %v4217
    %v5291 = vunpack.c.h.b16 %v4217
    %v5292 = vunpack.c.l.b16 %v4218
    %v5293 = vunpack.c.h.b16 %v4218
    %v5294 = vunpack.c.l.b16 %v4219
    %v5295 = vunpack.c.h.b16 %v4219
    %v5296 = vunpack.c.l.b16 %v4220
    %v5297 = vunpack.c.h.b16 %v4220
    %v5298 = vunpack.c.l.b16 %v4221
    %v5299 = vunpack.c.h.b16 %v4221
    %v5300 = vunpack.c.l.b16 %v4222
    %v5301 = vunpack.c.h.b16 %v4222
    %v5302 = vunpack.c.l.b16 %v4223
    %v5303 = vunpack.c.h.b16 %v4223
    %v5304 = vunpack.c.l.b16 %v4224
    %v5305 = vunpack.c.h.b16 %v4224
    %v5306 = vunpack.c.l.b16 %v4225
    %v5307 = vunpack.c.h.b16 %v4225
    %v5308 = vunpack.c.l.b16 %v4226
    %v5309 = vunpack.c.h.b16 %v4226
    %v5310 = vunpack.c.l.b16 %v4227
    %v5311 = vunpack.c.h.b16 %v4227
    %v5312 = vunpack.c.l.b16 %v4228
    %v5313 = vunpack.c.h.b16 %v4228
    %v5314 = vunpack.c.l.b16 %v4229
    %v5315 = vunpack.c.h.b16 %v4229
    %v5316 = vunpack.c.l.b16 %v4230
    %v5317 = vunpack.c.h.b16 %v4230
    %v5318 = vunpack.c.l.b16 %v4231
    %v5319 = vunpack.c.h.b16 %v4231
    %v5320 = vunpack.c.l.b16 %v4232
    %v5321 = vunpack.c.h.b16 %v4232
    %v5322 = vunpack.c.l.b16 %v4233
    %v5323 = vunpack.c.h.b16 %v4233
    %v5324 = vunpack.c.l.b16 %v4234
    %v5325 = vunpack.c.h.b16 %v4234
    %v5326 = vunpack.c.l.b16 %v4235
    %v5327 = vunpack.c.h.b16 %v4235
    %v5328 = vunpack.c.l.b16 %v4236
    %v5329 = vunpack.c.h.b16 %v4236
    %v5330 = vunpack.c.l.b16 %v4237
    %v5331 = vunpack.c.h.b16 %v4237
    %v5332 = vunpack.c.l.b16 %v4238
    %v5333 = vunpack.c.h.b16 %v4238
    %v5334 = vunpack.c.l.b16 %v4239
    %v5335 = vunpack.c.h.b16 %v4239
    %v5336 = vunpack.c.l.b16 %v4240
    %v5337 = vunpack.c.h.b16 %v4240
    %v5338 = vunpack.c.l.b16 %v4241
    %v5339 = vunpack.c.h.b16 %v4241
    %v5340 = vunpack.c.l.b16 %v4242
    %v5341 = vunpack.c.h.b16 %v4242
    %v5342 = vunpack.c.l.b16 %v4243
    %v5343 = vunpack.c.h.b16 %v4243
    %v5344 = vunpack.c.l.b16 %v4244
    %v5345 = vunpack.c.h.b16 %v4244
    %v5346 = vunpack.c.l.b16 %v4245
    %v5347 = vunpack.c.h.b16 %v4245
    %v5348 = vunpack.c.l.b16 %v4246
    %v5349 = vunpack.c.h.b16 %v4246
    %v5350 = vunpack.c.l.b16 %v4247
    %v5351 = vunpack.c.h.b16 %v4247
    %v5352 = vunpack.c.l.b16 %v4248
    %v5353 = vunpack.c.h.b16 %v4248
    %v5354 = vunpack.c.l.b16 %v4249
    %v5355 = vunpack.c.h.b16 %v4249
    %v5356 = vunpack.c.l.b16 %v4250
    %v5357 = vunpack.c.h.b16 %v4250
    %v5358 = vunpack.c.l.b16 %v4251
    %v5359 = vunpack.c.h.b16 %v4251
    %v5360 = vunpack.c.l.b16 %v4252
    %v5361 = vunpack.c.h.b16 %v4252
    %v5362 = vunpack.c.l.b16 %v4253
    %v5363 = vunpack.c.h.b16 %v4253
    %v5364 = vunpack.c.l.b16 %v4254
    %v5365 = vunpack.c.h.b16 %v4254
    %v5366 = vunpack.c.l.b16 %v4255
    %v5367 = vunpack.c.h.b16 %v4255
    %v5368 = vunpack.c.l.b16 %v4256
    %v5369 = vunpack.c.h.b16 %v4256
    %v5370 = vunpack.c.l.b16 %v4257
    %v5371 = vunpack.c.h.b16 %v4257
    %v5372 = vunpack.c.l.b16 %v4258
    %v5373 = vunpack.c.h.b16 %v4258
    %v5374 = vunpack.c.l.b16 %v4259
    %v5375 = vunpack.c.h.b16 %v4259
    %v5376 = vunpack.c.l.b16 %v4260
    %v5377 = vunpack.c.h.b16 %v4260
    %v5378 = vunpack.c.l.b16 %v4261
    %v5379 = vunpack.c.h.b16 %v4261
    %v5380 = vunpack.c.l.b16 %v4262
    %v5381 = vunpack.c.h.b16 %v4262
    %v5382 = vunpack.c.l.b16 %v4263
    %v5383 = vunpack.c.h.b16 %v4263
    %v5384 = vunpack.c.l.b16 %v4264
    %v5385 = vunpack.c.h.b16 %v4264
    %v5386 = vunpack.c.l.b16 %v4265
    %v5387 = vunpack.c.h.b16 %v4265
    %v5388 = vunpack.c.l.b16 %v4266
    %v5389 = vunpack.c.h.b16 %v4266
    %v5390 = vunpack.c.l.b16 %v4267
    %v5391 = vunpack.c.h.b16 %v4267
    %v5392 = vunpack.c.l.b16 %v4268
    %v5393 = vunpack.c.h.b16 %v4268
    %v5394 = vunpack.c.l.b16 %v4269
    %v5395 = vunpack.c.h.b16 %v4269
    %v5396 = vunpack.c.l.b16 %v4270
    %v5397 = vunpack.c.h.b16 %v4270
    %v5398 = vunpack.c.l.b16 %v4271
    %v5399 = vunpack.c.h.b16 %v4271
    %v5400 = vunpack.c.l.b16 %v4272
    %v5401 = vunpack.c.h.b16 %v4272
    %v5402 = vunpack.c.l.b16 %v4273
    %v5403 = vunpack.c.h.b16 %v4273
    %v5404 = vunpack.c.l.b16 %v4274
    %v5405 = vunpack.c.h.b16 %v4274
    %v5406 = vunpack.c.l.b16 %v4275
    %v5407 = vunpack.c.h.b16 %v4275
    %v5408 = vunpack.c.l.b16 %v4276
    %v5409 = vunpack.c.h.b16 %v4276
    %v5410 = vunpack.c.l.b16 %v4277
    %v5411 = vunpack.c.h.b16 %v4277
    %v5412 = vunpack.c.l.b16 %v4278
    %v5413 = vunpack.c.h.b16 %v4278
    %v5414 = vunpack.c.l.b16 %v4279
    %v5415 = vunpack.c.h.b16 %v4279
    %v5416 = vunpack.c.l.b16 %v4280
    %v5417 = vunpack.c.h.b16 %v4280
    %v5418 = vunpack.c.l.b16 %v4281
    %v5419 = vunpack.c.h.b16 %v4281
    %v5420 = vunpack.c.l.b16 %v4282
    %v5421 = vunpack.c.h.b16 %v4282
    %v5422 = vunpack.c.l.b16 %v4283
    %v5423 = vunpack.c.h.b16 %v4283
    %v5424 = vunpack.c.l.b16 %v4284
    %v5425 = vunpack.c.h.b16 %v4284
    %v5426 = vunpack.c.l.b16 %v4285
    %v5427 = vunpack.c.h.b16 %v4285
    %v5428 = vunpack.c.l.b16 %v4286
    %v5429 = vunpack.c.h.b16 %v4286
    %v5430 = vunpack.c.l.b16 %v4287
    %v5431 = vunpack.c.h.b16 %v4287
    %v5432 = vunpack.c.l.b16 %v4288
    %v5433 = vunpack.c.h.b16 %v4288
    %v5434 = vunpack.c.l.b16 %v4289
    %v5435 = vunpack.c.h.b16 %v4289
    %v5436 = vunpack.c.l.b16 %v4290
    %v5437 = vunpack.c.h.b16 %v4290
    %v5438 = vunpack.c.l.b16 %v4291
    %v5439 = vunpack.c.h.b16 %v4291
    %v5440 = vunpack.c.l.b16 %v4292
    %v5441 = vunpack.c.h.b16 %v4292
    %v5442 = vunpack.c.l.b16 %v4293
    %v5443 = vunpack.c.h.b16 %v4293
    %v5444 = vunpack.c.l.b16 %v4294
    %v5445 = vunpack.c.h.b16 %v4294
    %v5446 = vunpack.c.l.b16 %v4295
    %v5447 = vunpack.c.h.b16 %v4295
    %v5448 = vunpack.c.l.b16 %v4296
    %v5449 = vunpack.c.h.b16 %v4296
    %v5450 = vunpack.c.l.b16 %v4297
    %v5451 = vunpack.c.h.b16 %v4297
    %v5452 = vunpack.c.l.b16 %v4298
    %v5453 = vunpack.c.h.b16 %v4298
    %v5454 = vunpack.c.l.b16 %v4299
    %v5455 = vunpack.c.h.b16 %v4299
    %v5456 = vunpack.c.l.b16 %v4300
    %v5457 = vunpack.c.h.b16 %v4300
    %v5458 = vunpack.c.l.b16 %v4301
    %v5459 = vunpack.c.h.b16 %v4301
    %v5460 = vunpack.c.l.b16 %v4302
    %v5461 = vunpack.c.h.b16 %v4302
    %v5462 = vunpack.c.l.b16 %v4303
    %v5463 = vunpack.c.h.b16 %v4303
    %v5464 = vunpack.c.l.b16 %v4304
    %v5465 = vunpack.c.h.b16 %v4304
    %v5466 = vunpack.c.l.b16 %v4305
    %v5467 = vunpack.c.h.b16 %v4305
    %v5468 = vunpack.c.l.b16 %v4306
    %v5469 = vunpack.c.h.b16 %v4306
    %v5470 = vunpack.c.l.b16 %v4307
    %v5471 = vunpack.c.h.b16 %v4307
    %v5472 = vunpack.c.l.b16 %v4308
    %v5473 = vunpack.c.h.b16 %v4308
    %v5474 = vunpack.c.l.b16 %v4309
    %v5475 = vunpack.c.h.b16 %v4309
    %v5476 = vunpack.c.l.b16 %v4310
    %v5477 = vunpack.c.h.b16 %v4310
    %v5478 = vunpack.c.l.b16 %v4311
    %v5479 = vunpack.c.h.b16 %v4311
    %v5480 = vunpack.c.l.b16 %v4312
    %v5481 = vunpack.c.h.b16 %v4312
    %v5482 = vunpack.c.l.b16 %v4313
    %v5483 = vunpack.c.h.b16 %v4313
    %v5484 = vunpack.c.l.b16 %v4314
    %v5485 = vunpack.c.h.b16 %v4314
    %v5486 = vunpack.c.l.b16 %v4315
    %v5487 = vunpack.c.h.b16 %v4315
    %v5488 = vunpack.c.l.b16 %v4316
    %v5489 = vunpack.c.h.b16 %v4316
    %v5490 = vunpack.c.l.b16 %v4317
    %v5491 = vunpack.c.h.b16 %v4317
    %v5492 = vunpack.c.l.b16 %v4318
    %v5493 = vunpack.c.h.b16 %v4318
    %v5494 = vunpack.c.l.b16 %v4319
    %v5495 = vunpack.c.h.b16 %v4319
    %v5496 = vunpack.c.l.b16 %v4320
    %v5497 = vunpack.c.h.b16 %v4320
    %v5498 = vunpack.c.l.b16 %v4321
    %v5499 = vunpack.c.h.b16 %v4321
    %v5500 = vunpack.c.l.b16 %v4322
    %v5501 = vunpack.c.h.b16 %v4322
    %v5502 = vunpack.c.l.b16 %v4323
    %v5503 = vunpack.c.h.b16 %v4323
    %v5504 = vunpack.c.l.b16 %v4324
    %v5505 = vunpack.c.h.b16 %v4324
    %v5506 = vunpack.c.l.b16 %v4325
    %v5507 = vunpack.c.h.b16 %v4325
    %v5508 = vunpack.c.l.b16 %v4326
    %v5509 = vunpack.c.h.b16 %v4326
    %v5510 = vunpack.c.l.b16 %v4327
    %v5511 = vunpack.c.h.b16 %v4327
    %v5512 = vunpack.c.l.b16 %v4328
    %v5513 = vunpack.c.h.b16 %v4328
    %v5514 = vunpack.c.l.b16 %v4329
    %v5515 = vunpack.c.h.b16 %v4329
    %v5516 = vunpack.c.l.b16 %v4330
    %v5517 = vunpack.c.h.b16 %v4330
    %v5518 = vunpack.c.l.b16 %v4331
    %v5519 = vunpack.c.h.b16 %v4331
    %v5520 = vunpack.c.l.b16 %v4332
    %v5521 = vunpack.c.h.b16 %v4332
    %v5522 = vunpack.c.l.b16 %v4333
    %v5523 = vunpack.c.h.b16 %v4333
    %v5524 = vunpack.c.l.b16 %v4334
    %v5525 = vunpack.c.h.b16 %v4334
    %v5526 = vunpack.c.l.b16 %v4335
    %v5527 = vunpack.c.h.b16 %v4335
    %v5528 = vunpack.c.l.b16 %v4336
    %v5529 = vunpack.c.h.b16 %v4336
    %v5530 = vunpack.c.l.b16 %v4337
    %v5531 = vunpack.c.h.b16 %v4337
    %v5532 = vunpack.c.l.b16 %v4338
    %v5533 = vunpack.c.h.b16 %v4338
    %v5534 = vunpack.c.l.b16 %v4339
    %v5535 = vunpack.c.h.b16 %v4339
    %v5536 = vunpack.c.l.b16 %v4340
    %v5537 = vunpack.c.h.b16 %v4340
    %v5538 = vunpack.c.l.b16 %v4341
    %v5539 = vunpack.c.h.b16 %v4341
    %v5540 = vunpack.c.l.b16 %v4342
    %v5541 = vunpack.c.h.b16 %v4342
    %v5542 = vunpack.c.l.b16 %v4343
    %v5543 = vunpack.c.h.b16 %v4343
    %v5544 = vunpack.c.l.b16 %v4344
    %v5545 = vunpack.c.h.b16 %v4344
    %v5546 = vunpack.c.l.b16 %v4345
    %v5547 = vunpack.c.h.b16 %v4345
    %v5548 = vunpack.c.l.b16 %v4346
    %v5549 = vunpack.c.h.b16 %v4346
    %v5550 = vunpack.c.l.b16 %v4347
    %v5551 = vunpack.c.h.b16 %v4347
    %v5552 = vunpack.c.l.b16 %v4348
    %v5553 = vunpack.c.h.b16 %v4348
    %v5554 = vunpack.c.l.b16 %v4349
    %v5555 = vunpack.c.h.b16 %v4349
    %v5556 = vunpack.c.l.b16 %v4350
    %v5557 = vunpack.c.h.b16 %v4350
    %v5558 = vunpack.c.l.b16 %v4351
    %v5559 = vunpack.c.h.b16 %v4351
    %v5560 = vunpack.c.l.b16 %v4352
    %v5561 = vunpack.c.h.b16 %v4352
    %v5562 = vunpack.c.l.b16 %v4353
    %v5563 = vunpack.c.h.b16 %v4353
    %v5564 = vunpack.c.l.b16 %v4354
    %v5565 = vunpack.c.h.b16 %v4354
    %v5566 = vunpack.c.l.b16 %v4355
    %v5567 = vunpack.c.h.b16 %v4355
    %v5568 = vunpack.c.l.b16 %v4356
    %v5569 = vunpack.c.h.b16 %v4356
    %v5570 = vunpack.c.l.b16 %v4357
    %v5571 = vunpack.c.h.b16 %v4357
    %v5572 = vunpack.c.l.b16 %v4358
    %v5573 = vunpack.c.h.b16 %v4358
    %v5574 = vunpack.c.l.b16 %v4359
    %v5575 = vunpack.c.h.b16 %v4359
    %v5576 = vunpack.c.l.b16 %v4360
    %v5577 = vunpack.c.h.b16 %v4360
    %v5578 = vunpack.c.l.b16 %v4361
    %v5579 = vunpack.c.h.b16 %v4361
    %v5580 = vunpack.c.l.b16 %v4362
    %v5581 = vunpack.c.h.b16 %v4362
    %v5582 = vunpack.c.l.b16 %v4363
    %v5583 = vunpack.c.h.b16 %v4363
    %v5584 = vunpack.c.l.b16 %v4364
    %v5585 = vunpack.c.h.b16 %v4364
    %v5586 = vunpack.c.l.b16 %v4365
    %v5587 = vunpack.c.h.b16 %v4365
    %v5588 = vunpack.c.l.b16 %v4366
    %v5589 = vunpack.c.h.b16 %v4366
    %v5590 = vunpack.c.l.b16 %v4367
    %v5591 = vunpack.c.h.b16 %v4367
    %v5592 = vunpack.c.l.b16 %v4368
    %v5593 = vunpack.c.h.b16 %v4368
    %v5594 = vunpack.c.l.b16 %v4369
    %v5595 = vunpack.c.h.b16 %v4369
    %v5596 = vunpack.c.l.b16 %v4370
    %v5597 = vunpack.c.h.b16 %v4370
    %v5598 = vunpack.c.l.b16 %v4371
    %v5599 = vunpack.c.h.b16 %v4371
    %v5600 = vunpack.c.l.b16 %v4372
    %v5601 = vunpack.c.h.b16 %v4372
    %v5602 = vunpack.c.l.b16 %v4373
    %v5603 = vunpack.c.h.b16 %v4373
    %v5604 = vunpack.c.l.b16 %v4374
    %v5605 = vunpack.c.h.b16 %v4374
    %v5606 = vunpack.c.l.b16 %v4375
    %v5607 = vunpack.c.h.b16 %v4375
    %v5608 = vunpack.c.l.b16 %v4376
    %v5609 = vunpack.c.h.b16 %v4376
    %v5610 = vunpack.c.l.b16 %v4377
    %v5611 = vunpack.c.h.b16 %v4377
    %v5612 = vunpack.c.l.b16 %v4378
    %v5613 = vunpack.c.h.b16 %v4378
    %v5614 = vunpack.c.l.b16 %v4379
    %v5615 = vunpack.c.h.b16 %v4379
    %v5616 = vunpack.c.l.b16 %v4380
    %v5617 = vunpack.c.h.b16 %v4380
    %v5618 = vunpack.c.l.b16 %v4381
    %v5619 = vunpack.c.h.b16 %v4381
    %v5620 = vunpack.c.l.b16 %v4382
    %v5621 = vunpack.c.h.b16 %v4382
    %v5622 = vunpack.c.l.b16 %v4383
    %v5623 = vunpack.c.h.b16 %v4383
    %v5624 = vunpack.c.l.b16 %v4384
    %v5625 = vunpack.c.h.b16 %v4384
    %v5626 = vunpack.c.l.b16 %v4385
    %v5627 = vunpack.c.h.b16 %v4385
    %v5628 = vunpack.c.l.b16 %v4386
    %v5629 = vunpack.c.h.b16 %v4386
    %v5630 = vunpack.c.l.b16 %v4387
    %v5631 = vunpack.c.h.b16 %v4387
    %v5632 = vunpack.c.l.b16 %v4388
    %v5633 = vunpack.c.h.b16 %v4388
    %v5634 = vunpack.c.l.b16 %v4389
    %v5635 = vunpack.c.h.b16 %v4389
    %v5636 = vunpack.c.l.b16 %v4390
    %v5637 = vunpack.c.h.b16 %v4390
    %v5638 = vunpack.c.l.b16 %v4391
    %v5639 = vunpack.c.h.b16 %v4391
    %v5640 = vunpack.c.l.b16 %v4392
    %v5641 = vunpack.c.h.b16 %v4392
    %v5642 = vunpack.c.l.b16 %v4393
    %v5643 = vunpack.c.h.b16 %v4393
    %v5644 = vunpack.c.l.b16 %v4394
    %v5645 = vunpack.c.h.b16 %v4394
    %v5646 = vunpack.c.l.b16 %v4395
    %v5647 = vunpack.c.h.b16 %v4395
    %v5648 = vunpack.c.l.b16 %v4396
    %v5649 = vunpack.c.h.b16 %v4396
    %v5650 = vunpack.c.l.b16 %v4397
    %v5651 = vunpack.c.h.b16 %v4397
    %v5652 = vunpack.c.l.b16 %v4398
    %v5653 = vunpack.c.h.b16 %v4398
    %v5654 = vunpack.c.l.b16 %v4399
    %v5655 = vunpack.c.h.b16 %v4399
    %v5656 = vunpack.c.l.b16 %v4400
    %v5657 = vunpack.c.h.b16 %v4400
    %v5658 = vunpack.c.l.b16 %v4401
    %v5659 = vunpack.c.h.b16 %v4401
    %v5660 = vunpack.c.l.b16 %v4402
    %v5661 = vunpack.c.h.b16 %v4402
    %v5662 = vunpack.c.l.b16 %v4403
    %v5663 = vunpack.c.h.b16 %v4403
    %v5664 = vunpack.c.l.b16 %v4404
    %v5665 = vunpack.c.h.b16 %v4404
    %v5666 = vunpack.c.l.b16 %v4405
    %v5667 = vunpack.c.h.b16 %v4405
    %v5668 = vunpack.c.l.b16 %v4406
    %v5669 = vunpack.c.h.b16 %v4406
    %v5670 = vunpack.c.l.b16 %v4407
    %v5671 = vunpack.c.h.b16 %v4407
    %v5672 = vunpack.c.l.b16 %v4408
    %v5673 = vunpack.c.h.b16 %v4408
    %v5674 = vunpack.c.l.b16 %v4409
    %v5675 = vunpack.c.h.b16 %v4409
    %v5676 = vunpack.c.l.b16 %v4410
    %v5677 = vunpack.c.h.b16 %v4410
    %v5678 = vunpack.c.l.b16 %v4411
    %v5679 = vunpack.c.h.b16 %v4411
    %v5680 = vunpack.c.l.b16 %v4412
    %v5681 = vunpack.c.h.b16 %v4412
    %v5682 = vunpack.c.l.b16 %v4413
    %v5683 = vunpack.c.h.b16 %v4413
    %v5684 = vunpack.c.l.b16 %v4414
    %v5685 = vunpack.c.h.b16 %v4414
    %v5686 = vunpack.c.l.b16 %v4415
    %v5687 = vunpack.c.h.b16 %v4415
    %v5688 = vunpack.c.l.b16 %v4416
    %v5689 = vunpack.c.h.b16 %v4416
    %v5690 = vunpack.c.l.b16 %v4417
    %v5691 = vunpack.c.h.b16 %v4417
    %v5692 = vunpack.c.l.b16 %v4418
    %v5693 = vunpack.c.h.b16 %v4418
    %v5694 = vunpack.c.l.b16 %v4419
    %v5695 = vunpack.c.h.b16 %v4419
    %v5696 = vunpack.c.l.b16 %v4420
    %v5697 = vunpack.c.h.b16 %v4420
    %v5698 = vunpack.c.l.b16 %v4421
    %v5699 = vunpack.c.h.b16 %v4421
    %v5700 = vunpack.c.l.b16 %v4422
    %v5701 = vunpack.c.h.b16 %v4422
    %v5702 = vunpack.c.l.b16 %v4423
    %v5703 = vunpack.c.h.b16 %v4423
    %v5704 = vunpack.c.l.b16 %v4424
    %v5705 = vunpack.c.h.b16 %v4424
    %v5706 = vunpack.c.l.b16 %v4425
    %v5707 = vunpack.c.h.b16 %v4425
    %v5708 = vunpack.c.l.b16 %v4426
    %v5709 = vunpack.c.h.b16 %v4426
    %v5710 = vunpack.c.l.b16 %v4427
    %v5711 = vunpack.c.h.b16 %v4427
    %v5712 = vunpack.c.l.b16 %v4428
    %v5713 = vunpack.c.h.b16 %v4428
    %v5714 = vunpack.c.l.b16 %v4429
    %v5715 = vunpack.c.h.b16 %v4429
    %v5716 = vunpack.c.l.b16 %v4430
    %v5717 = vunpack.c.h.b16 %v4430
    %v5718 = vunpack.c.l.b16 %v4431
    %v5719 = vunpack.c.h.b16 %v4431
    %v5720 = vunpack.c.l.b16 %v4432
    %v5721 = vunpack.c.h.b16 %v4432
    %v5722 = vunpack.c.l.b16 %v4433
    %v5723 = vunpack.c.h.b16 %v4433
    %v5724 = vunpack.c.l.b16 %v4434
    %v5725 = vunpack.c.h.b16 %v4434
    %v5726 = vunpack.c.l.b16 %v4435
    %v5727 = vunpack.c.h.b16 %v4435
    %v5728 = vunpack.c.l.b16 %v4436
    %v5729 = vunpack.c.h.b16 %v4436
    %v5730 = vunpack.c.l.b16 %v4437
    %v5731 = vunpack.c.h.b16 %v4437
    %v5732 = vunpack.c.l.b16 %v4438
    %v5733 = vunpack.c.h.b16 %v4438
    %v5734 = vunpack.c.l.b16 %v4439
    %v5735 = vunpack.c.h.b16 %v4439
    %v5736 = vunpack.c.l.b16 %v4440
    %v5737 = vunpack.c.h.b16 %v4440
    %v5738 = vunpack.c.l.b16 %v4441
    %v5739 = vunpack.c.h.b16 %v4441
    %v5740 = vunpack.c.l.b16 %v4442
    %v5741 = vunpack.c.h.b16 %v4442
    %v5742 = vunpack.c.l.b16 %v4443
    %v5743 = vunpack.c.h.b16 %v4443
    %v5744 = vunpack.c.l.b16 %v4444
    %v5745 = vunpack.c.h.b16 %v4444
    %v5746 = vunpack.c.l.b16 %v4445
    %v5747 = vunpack.c.h.b16 %v4445
    %v5748 = vunpack.c.l.b16 %v4446
    %v5749 = vunpack.c.h.b16 %v4446
    %v5750 = vunpack.c.l.b16 %v4447
    %v5751 = vunpack.c.h.b16 %v4447
    %v5752 = vunpack.c.l.b16 %v4448
    %v5753 = vunpack.c.h.b16 %v4448
    %v5754 = vunpack.c.l.b16 %v4449
    %v5755 = vunpack.c.h.b16 %v4449
    %v5756 = vunpack.c.l.b16 %v4450
    %v5757 = vunpack.c.h.b16 %v4450
    %v5758 = vunpack.c.l.b16 %v4451
    %v5759 = vunpack.c.h.b16 %v4451
    %v5760 = vunpack.c.l.b16 %v4452
    %v5761 = vunpack.c.h.b16 %v4452
    %v5762 = vunpack.c.l.b16 %v4453
    %v5763 = vunpack.c.h.b16 %v4453
    %v5764 = vunpack.c.l.b16 %v4454
    %v5765 = vunpack.c.h.b16 %v4454
    %v5766 = vunpack.c.l.b16 %v4455
    %v5767 = vunpack.c.h.b16 %v4455
    %v5768 = vunpack.c.l.b16 %v4456
    %v5769 = vunpack.c.h.b16 %v4456
    %v5770 = vunpack.c.l.b16 %v4457
    %v5771 = vunpack.c.h.b16 %v4457
    %v5772 = vunpack.c.l.b16 %v4458
    %v5773 = vunpack.c.h.b16 %v4458
    %v5774 = vunpack.c.l.b16 %v4459
    %v5775 = vunpack.c.h.b16 %v4459
    %v5776 = vunpack.c.l.b16 %v4460
    %v5777 = vunpack.c.h.b16 %v4460
    %v5778 = vunpack.c.l.b16 %v4461
    %v5779 = vunpack.c.h.b16 %v4461
    %v5780 = vunpack.c.l.b16 %v4462
    %v5781 = vunpack.c.h.b16 %v4462
    %v5782 = vunpack.c.l.b16 %v4463
    %v5783 = vunpack.c.h.b16 %v4463
    %v5784 = vunpack.c.l.b16 %v4464
    %v5785 = vunpack.c.h.b16 %v4464
    %v5786 = vunpack.c.l.b16 %v4465
    %v5787 = vunpack.c.h.b16 %v4465
    %v5788 = vunpack.c.l.b16 %v4466
    %v5789 = vunpack.c.h.b16 %v4466
    %v5790 = vunpack.c.l.b16 %v4467
    %v5791 = vunpack.c.h.b16 %v4467
    %v5792 = vunpack.c.l.b16 %v4468
    %v5793 = vunpack.c.h.b16 %v4468
    %v5794 = vunpack.c.l.b16 %v4469
    %v5795 = vunpack.c.h.b16 %v4469
    %v5796 = vunpack.c.l.b16 %v4470
    %v5797 = vunpack.c.h.b16 %v4470
    %v5798 = vunpack.c.l.b16 %v4471
    %v5799 = vunpack.c.h.b16 %v4471
    %v5800 = vunpack.c.l.b16 %v4472
    %v5801 = vunpack.c.h.b16 %v4472
    %v5802 = vunpack.c.l.b16 %v4473
    %v5803 = vunpack.c.h.b16 %v4473
    %v5804 = vunpack.c.l.b16 %v4474
    %v5805 = vunpack.c.h.b16 %v4474
    %v5806 = vunpack.c.l.b16 %v4475
    %v5807 = vunpack.c.h.b16 %v4475
    %v5808 = vunpack.c.l.b16 %v4476
    %v5809 = vunpack.c.h.b16 %v4476
    %v5810 = vunpack.c.l.b16 %v4477
    %v5811 = vunpack.c.h.b16 %v4477
    %v5812 = vunpack.c.l.b16 %v4478
    %v5813 = vunpack.c.h.b16 %v4478
    %v5814 = vunpack.c.l.b16 %v4479
    %v5815 = vunpack.c.h.b16 %v4479
    %v5816 = vunpack.c.l.b16 %v4480
    %v5817 = vunpack.c.h.b16 %v4480
    %v5818 = vunpack.c.l.b16 %v4481
    %v5819 = vunpack.c.h.b16 %v4481
    %v5820 = vunpack.c.l.b16 %v4482
    %v5821 = vunpack.c.h.b16 %v4482
    %v5822 = vunpack.c.l.b16 %v4483
    %v5823 = vunpack.c.h.b16 %v4483
    %v5824 = vunpack.c.l.b16 %v4484
    %v5825 = vunpack.c.h.b16 %v4484
    %v5826 = vunpack.c.l.b16 %v4485
    %v5827 = vunpack.c.h.b16 %v4485
    %v5828 = vunpack.c.l.b16 %v4486
    %v5829 = vunpack.c.h.b16 %v4486
    %v5830 = vunpack.c.l.b16 %v4487
    %v5831 = vunpack.c.h.b16 %v4487
    %v5832 = vunpack.c.l.b16 %v4488
    %v5833 = vunpack.c.h.b16 %v4488
    %v5834 = vunpack.c.l.b16 %v4489
    %v5835 = vunpack.c.h.b16 %v4489
    %v5836 = vunpack.c.l.b16 %v4490
    %v5837 = vunpack.c.h.b16 %v4490
    %v5838 = vunpack.c.l.b16 %v4491
    %v5839 = vunpack.c.h.b16 %v4491
    %v5840 = vunpack.c.l.b16 %v4492
    %v5841 = vunpack.c.h.b16 %v4492
    %v5842 = vunpack.c.l.b16 %v4493
    %v5843 = vunpack.c.h.b16 %v4493
    %v5844 = vunpack.c.l.b16 %v4494
    %v5845 = vunpack.c.h.b16 %v4494
    %v5846 = vunpack.c.l.b16 %v4495
    %v5847 = vunpack.c.h.b16 %v4495
    %v5848 = vunpack.c.l.b16 %v4496
    %v5849 = vunpack.c.h.b16 %v4496
    %v5850 = vunpack.c.l.b16 %v4497
    %v5851 = vunpack.c.h.b16 %v4497
    %v5852 = vunpack.c.l.b16 %v4498
    %v5853 = vunpack.c.h.b16 %v4498
    %v5854 = vunpack.c.l.b16 %v4499
    %v5855 = vunpack.c.h.b16 %v4499
    %v5856 = vunpack.c.l.b16 %v4500
    %v5857 = vunpack.c.h.b16 %v4500
    %v5858 = vunpack.c.l.b16 %v4501
    %v5859 = vunpack.c.h.b16 %v4501
    %v5860 = vunpack.c.l.b16 %v4502
    %v5861 = vunpack.c.h.b16 %v4502
    %v5862 = vunpack.c.l.b16 %v4503
    %v5863 = vunpack.c.h.b16 %v4503
    %v5864 = vunpack.c.l.b16 %v4504
    %v5865 = vunpack.c.h.b16 %v4504
    %v5866 = vunpack.c.l.b16 %v4505
    %v5867 = vunpack.c.h.b16 %v4505
    %v5868 = vunpack.c.l.b16 %v4506
    %v5869 = vunpack.c.h.b16 %v4506
    %v5870 = vunpack.c.l.b16 %v4507
    %v5871 = vunpack.c.h.b16 %v4507
    %v5872 = vunpack.c.l.b16 %v4508
    %v5873 = vunpack.c.h.b16 %v4508
    %v5874 = vunpack.c.l.b16 %v4509
    %v5875 = vunpack.c.h.b16 %v4509
    %v5876 = vunpack.c.l.b16 %v4510
    %v5877 = vunpack.c.h.b16 %v4510
    %v5878 = vunpack.c.l.b16 %v4511
    %v5879 = vunpack.c.h.b16 %v4511
    %v5880 = vunpack.c.l.b16 %v4512
    %v5881 = vunpack.c.h.b16 %v4512
    %v5882 = vunpack.c.l.b16 %v4513
    %v5883 = vunpack.c.h.b16 %v4513
    %v5884 = vunpack.c.l.b16 %v4514
    %v5885 = vunpack.c.h.b16 %v4514
    %v5886 = vunpack.c.l.b16 %v4515
    %v5887 = vunpack.c.h.b16 %v4515
    %v5888 = vunpack.c.l.b16 %v4516
    %v5889 = vunpack.c.h.b16 %v4516
    %v5890 = vunpack.c.l.b16 %v4517
    %v5891 = vunpack.c.h.b16 %v4517
    %v5892 = vunpack.c.l.b16 %v4518
    %v5893 = vunpack.c.h.b16 %v4518
    %v5894 = vunpack.c.l.b16 %v4519
    %v5895 = vunpack.c.h.b16 %v4519
    %v5896 = vunpack.c.l.b16 %v4520
    %v5897 = vunpack.c.h.b16 %v4520
    %v5898 = vunpack.c.l.b16 %v4521
    %v5899 = vunpack.c.h.b16 %v4521
    %v5900 = vunpack.c.l.b16 %v4522
    %v5901 = vunpack.c.h.b16 %v4522
    %v5902 = vunpack.c.l.b16 %v4523
    %v5903 = vunpack.c.h.b16 %v4523
    %v5904 = vunpack.c.l.b16 %v4524
    %v5905 = vunpack.c.h.b16 %v4524
    %v5906 = vunpack.c.l.b16 %v4525
    %v5907 = vunpack.c.h.b16 %v4525
    %v5908 = vunpack.c.l.b16 %v4526
    %v5909 = vunpack.c.h.b16 %v4526
    %v5910 = vunpack.c.l.b16 %v4527
    %v5911 = vunpack.c.h.b16 %v4527
    %v5912 = vunpack.c.l.b16 %v4528
    %v5913 = vunpack.c.h.b16 %v4528
    %v5914 = vunpack.c.l.b16 %v4529
    %v5915 = vunpack.c.h.b16 %v4529
    %v5916 = vunpack.c.l.b16 %v4530
    %v5917 = vunpack.c.h.b16 %v4530
    %v5918 = vunpack.c.l.b16 %v4531
    %v5919 = vunpack.c.h.b16 %v4531
    %v5920 = vunpack.c.l.b16 %v4532
    %v5921 = vunpack.c.h.b16 %v4532
    %v5922 = vunpack.c.l.b16 %v4533
    %v5923 = vunpack.c.h.b16 %v4533
    %v5924 = vunpack.c.l.b16 %v4534
    %v5925 = vunpack.c.h.b16 %v4534
    %v5926 = vunpack.c.l.b16 %v4535
    %v5927 = vunpack.c.h.b16 %v4535
    %v5928 = vunpack.c.l.b16 %v4536
    %v5929 = vunpack.c.h.b16 %v4536
    %v5930 = vunpack.c.l.b16 %v4537
    %v5931 = vunpack.c.h.b16 %v4537
    %v5932 = vunpack.c.l.b16 %v4538
    %v5933 = vunpack.c.h.b16 %v4538
    %v5934 = vunpack.c.l.b16 %v4539
    %v5935 = vunpack.c.h.b16 %v4539
    %v5936 = vunpack.c.l.b16 %v4540
    %v5937 = vunpack.c.h.b16 %v4540
    %v5938 = vunpack.c.l.b16 %v4541
    %v5939 = vunpack.c.h.b16 %v4541
    %v5940 = vunpack.c.l.b16 %v4542
    %v5941 = vunpack.c.h.b16 %v4542
    %v5942 = vunpack.c.l.b16 %v4543
    %v5943 = vunpack.c.h.b16 %v4543
    %v5944 = vunpack.c.l.b16 %v4544
    %v5945 = vunpack.c.h.b16 %v4544
    %v5946 = vunpack.c.l.b16 %v4545
    %v5947 = vunpack.c.h.b16 %v4545
    %v5948 = vunpack.c.l.b16 %v4546
    %v5949 = vunpack.c.h.b16 %v4546
    %v5950 = vunpack.c.l.b16 %v4547
    %v5951 = vunpack.c.h.b16 %v4547
    %v5952 = vunpack.c.l.b16 %v4548
    %v5953 = vunpack.c.h.b16 %v4548
    %v5954 = vunpack.c.l.b16 %v4549
    %v5955 = vunpack.c.h.b16 %v4549
    %v5956 = vunpack.c.l.b16 %v4550
    %v5957 = vunpack.c.h.b16 %v4550
    %v5958 = vunpack.c.l.b16 %v4551
    %v5959 = vunpack.c.h.b16 %v4551
    %v5960 = vunpack.c.l.b16 %v4552
    %v5961 = vunpack.c.h.b16 %v4552
    %v5962 = vunpack.c.l.b16 %v4553
    %v5963 = vunpack.c.h.b16 %v4553
    %v5964 = vunpack.c.l.b16 %v4554
    %v5965 = vunpack.c.h.b16 %v4554
    %v5966 = vunpack.c.l.b16 %v4555
    %v5967 = vunpack.c.h.b16 %v4555
    %v5968 = vunpack.c.l.b16 %v4556
    %v5969 = vunpack.c.h.b16 %v4556
    %v5970 = vunpack.c.l.b16 %v4557
    %v5971 = vunpack.c.h.b16 %v4557
    %v5972 = vunpack.c.l.b16 %v4558
    %v5973 = vunpack.c.h.b16 %v4558
    %v5974 = vunpack.c.l.b16 %v4559
    %v5975 = vunpack.c.h.b16 %v4559
    %v5976 = vunpack.c.l.b16 %v4560
    %v5977 = vunpack.c.h.b16 %v4560
    %v5978 = vunpack.c.l.b16 %v4561
    %v5979 = vunpack.c.h.b16 %v4561
    %v5980 = vunpack.c.l.b16 %v4562
    %v5981 = vunpack.c.h.b16 %v4562
    %v5982 = vunpack.c.l.b16 %v4563
    %v5983 = vunpack.c.h.b16 %v4563
    %v5984 = vunpack.c.l.b16 %v4564
    %v5985 = vunpack.c.h.b16 %v4564
    %v5986 = vunpack.c.l.b16 %v4565
    %v5987 = vunpack.c.h.b16 %v4565
    %v5988 = vunpack.c.l.b16 %v4566
    %v5989 = vunpack.c.h.b16 %v4566
    %v5990 = vunpack.c.l.b16 %v4567
    %v5991 = vunpack.c.h.b16 %v4567
    %v5992 = vunpack.c.l.b16 %v4568
    %v5993 = vunpack.c.h.b16 %v4568
    %v5994 = vunpack.c.l.b16 %v4569
    %v5995 = vunpack.c.h.b16 %v4569
    %v5996 = vunpack.c.l.b16 %v4570
    %v5997 = vunpack.c.h.b16 %v4570
    %v5998 = vunpack.c.l.b16 %v4571
    %v5999 = vunpack.c.h.b16 %v4571
    %v6000 = vunpack.c.l.b16 %v4572
    %v6001 = vunpack.c.h.b16 %v4572
    %v6002 = vunpack.c.l.b16 %v4573
    %v6003 = vunpack.c.h.b16 %v4573
    %v6004 = vunpack.c.l.b16 %v4574
    %v6005 = vunpack.c.h.b16 %v4574
    %v6006 = vunpack.c.l.b16 %v4575
    %v6007 = vunpack.c.h.b16 %v4575
    %v6008 = vunpack.c.l.b16 %v4576
    %v6009 = vunpack.c.h.b16 %v4576
    %v6010 = vunpack.c.l.b16 %v4577
    %v6011 = vunpack.c.h.b16 %v4577
    %v6012 = vunpack.c.l.b16 %v4578
    %v6013 = vunpack.c.h.b16 %v4578
    %v6014 = vunpack.c.l.b16 %v4579
    %v6015 = vunpack.c.h.b16 %v4579
    %v6016 = vunpack.c.l.b16 %v4580
    %v6017 = vunpack.c.h.b16 %v4580
    %v6018 = vunpack.c.l.b16 %v4581
    %v6019 = vunpack.c.h.b16 %v4581
    %v6020 = vunpack.c.l.b16 %v4582
    %v6021 = vunpack.c.h.b16 %v4582
    %v6022 = vunpack.c.l.b16 %v4583
    %v6023 = vunpack.c.h.b16 %v4583
    %v6024 = vunpack.c.l.b16 %v4584
    %v6025 = vunpack.c.h.b16 %v4584
    %v6026 = vunpack.c.l.b16 %v4585
    %v6027 = vunpack.c.h.b16 %v4585
    %v6028 = vunpack.c.l.b16 %v4586
    %v6029 = vunpack.c.h.b16 %v4586
    %v6030 = vunpack.c.l.b16 %v4587
    %v6031 = vunpack.c.h.b16 %v4587
    %v6032 = vunpack.c.l.b16 %v4588
    %v6033 = vunpack.c.h.b16 %v4588
    %v6034 = vunpack.c.l.b16 %v4589
    %v6035 = vunpack.c.h.b16 %v4589
    %v6036 = vunpack.c.l.b16 %v4590
    %v6037 = vunpack.c.h.b16 %v4590
    %v6038 = vunpack.c.l.b16 %v4591
    %v6039 = vunpack.c.h.b16 %v4591
    %v6040 = vunpack.c.l.b16 %v4592
    %v6041 = vunpack.c.h.b16 %v4592
    %v6042 = vunpack.c.l.b16 %v4593
    %v6043 = vunpack.c.h.b16 %v4593
    %v6044 = vunpack.c.l.b16 %v4594
    %v6045 = vunpack.c.h.b16 %v4594
    %v6046 = vunpack.c.l.b16 %v4595
    %v6047 = vunpack.c.h.b16 %v4595
    %v6048 = vunpack.c.l.b16 %v4596
    %v6049 = vunpack.c.h.b16 %v4596
    %v6050 = vunpack.c.l.b16 %v4597
    %v6051 = vunpack.c.h.b16 %v4597
    %v6052 = vunpack.c.l.b16 %v4598
    %v6053 = vunpack.c.h.b16 %v4598
    %v6054 = vunpack.c.l.b16 %v4599
    %v6055 = vunpack.c.h.b16 %v4599
    %v6056 = vunpack.c.l.b16 %v4600
    %v6057 = vunpack.c.h.b16 %v4600
    %v6058 = vunpack.c.l.b16 %v4601
    %v6059 = vunpack.c.h.b16 %v4601
    %v6060 = vunpack.c.l.b16 %v4602
    %v6061 = vunpack.c.h.b16 %v4602
    %v6062 = vunpack.c.l.b16 %v4603
    %v6063 = vunpack.c.h.b16 %v4603
    %v6064 = vunpack.c.l.b16 %v4604
    %v6065 = vunpack.c.h.b16 %v4604
    %v6066 = vunpack.c.l.b16 %v4605
    %v6067 = vunpack.c.h.b16 %v4605
    %v6068 = vunpack.c.l.b16 %v4606
    %v6069 = vunpack.c.h.b16 %v4606
    %v6070 = vunpack.c.l.b16 %v4607
    %v6071 = vunpack.c.h.b16 %v4607
    %v6072 = vunpack.c.l.b16 %v4608
    %v6073 = vunpack.c.h.b16 %v4608
    %v6074 = vunpack.c.l.b16 %v4609
    %v6075 = vunpack.c.h.b16 %v4609
    %v6076 = vunpack.c.l.b16 %v4610
    %v6077 = vunpack.c.h.b16 %v4610
    %v6078 = vunpack.c.l.b16 %v4611
    %v6079 = vunpack.c.h.b16 %v4611
    %v6080 = vunpack.c.l.b16 %v4612
    %v6081 = vunpack.c.h.b16 %v4612
    %v6082 = vunpack.c.l.b16 %v4613
    %v6083 = vunpack.c.h.b16 %v4613
    %v6084 = vunpack.c.l.b16 %v4614
    %v6085 = vunpack.c.h.b16 %v4614
    %v6086 = vunpack.c.l.b16 %v4615
    %v6087 = vunpack.c.h.b16 %v4615
    %v6088 = vunpack.c.l.b16 %v4616
    %v6089 = vunpack.c.h.b16 %v4616
    %v6090 = vunpack.c.l.b16 %v4617
    %v6091 = vunpack.c.h.b16 %v4617
    %v6092 = vunpack.c.l.b16 %v4618
    %v6093 = vunpack.c.h.b16 %v4618
    %v6094 = vunpack.c.l.b16 %v4619
    %v6095 = vunpack.c.h.b16 %v4619
    %v6096 = vunpack.c.l.b16 %v4620
    %v6097 = vunpack.c.h.b16 %v4620
    %v6098 = vunpack.c.l.b16 %v4621
    %v6099 = vunpack.c.h.b16 %v4621
    %v6100 = vunpack.c.l.b16 %v4622
    %v6101 = vunpack.c.h.b16 %v4622
    %v6102 = vunpack.c.l.b16 %v4623
    %v6103 = vunpack.c.h.b16 %v4623
    %v6104 = vunpack.c.l.b16 %v4624
    %v6105 = vunpack.c.h.b16 %v4624
    %v6106 = vunpack.c.l.b16 %v4625
    %v6107 = vunpack.c.h.b16 %v4625
    %v6108 = vunpack.c.l.b16 %v4626
    %v6109 = vunpack.c.h.b16 %v4626
    %v6110 = vunpack.c.l.b16 %v4627
    %v6111 = vunpack.c.h.b16 %v4627
    %v6112 = vunpack.c.l.b16 %v4628
    %v6113 = vunpack.c.h.b16 %v4628
    %v6114 = vunpack.c.l.b16 %v4629
    %v6115 = vunpack.c.h.b16 %v4629
    %v6116 = vunpack.c.l.b16 %v4630
    %v6117 = vunpack.c.h.b16 %v4630
    %v6118 = vunpack.c.l.b16 %v4631
    %v6119 = vunpack.c.h.b16 %v4631
    %v6120 = vunpack.c.l.b16 %v4632
    %v6121 = vunpack.c.h.b16 %v4632
    %v6122 = vunpack.c.l.b16 %v4633
    %v6123 = vunpack.c.h.b16 %v4633
    %v6124 = vunpack.c.l.b16 %v4634
    %v6125 = vunpack.c.h.b16 %v4634
    %v6126 = vunpack.c.l.b16 %v4635
    %v6127 = vunpack.c.h.b16 %v4635
    %v6128 = vunpack.c.l.b16 %v4636
    %v6129 = vunpack.c.h.b16 %v4636
    %v6130 = vunpack.c.l.b16 %v4637
    %v6131 = vunpack.c.h.b16 %v4637
    %v6132 = vunpack.c.l.b16 %v4638
    %v6133 = vunpack.c.h.b16 %v4638
    %v6134 = vunpack.c.l.b16 %v4639
    %v6135 = vunpack.c.h.b16 %v4639
    %v6136 = vunpack.c.l.b16 %v4640
    %v6137 = vunpack.c.h.b16 %v4640
    %v6138 = vunpack.c.l.b16 %v4641
    %v6139 = vunpack.c.h.b16 %v4641
    %v6140 = vunpack.c.l.b16 %v4642
    %v6141 = vunpack.c.h.b16 %v4642
    %v6142 = vunpack.c.l.b16 %v4643
    %v6143 = vunpack.c.h.b16 %v4643
    %v6144 = vunpack.c.l.b16 %v4644
    %v6145 = vunpack.c.h.b16 %v4644
    %v6146 = vunpack.c.l.b16 %v4645
    %v6147 = vunpack.c.h.b16 %v4645
    %v6148 = vunpack.c.l.b16 %v4646
    %v6149 = vunpack.c.h.b16 %v4646
    %v6150 = vunpack.c.l.b16 %v4647
    %v6151 = vunpack.c.h.b16 %v4647
    %v6152 = vunpack.c.l.b16 %v4648
    %v6153 = vunpack.c.h.b16 %v4648
    %v6154 = vunpack.c.l.b16 %v4649
    %v6155 = vunpack.c.h.b16 %v4649
    %v6156 = vunpack.c.l.b16 %v4650
    %v6157 = vunpack.c.h.b16 %v4650
    %v6158 = vunpack.c.l.b16 %v4651
    %v6159 = vunpack.c.h.b16 %v4651
    %v6160 = vunpack.c.l.b16 %v4652
    %v6161 = vunpack.c.h.b16 %v4652
    %v6162 = vunpack.c.l.b16 %v4653
    %v6163 = vunpack.c.h.b16 %v4653
    %v6164 = vunpack.c.l.b16 %v4654
    %v6165 = vunpack.c.h.b16 %v4654
    %v6166 = vunpack.c.l.b16 %v4655
    %v6167 = vunpack.c.h.b16 %v4655
    %v6168 = vunpack.c.l.b16 %v4656
    %v6169 = vunpack.c.h.b16 %v4656
    %v6170 = vunpack.c.l.b16 %v4657
    %v6171 = vunpack.c.h.b16 %v4657
    %v6172 = vunpack.c.l.b16 %v4658
    %v6173 = vunpack.c.h.b16 %v4658
    %v6174 = vunpack.c.l.b16 %v4659
    %v6175 = vunpack.c.h.b16 %v4659
    %v6176 = vunpack.c.l.b16 %v4660
    %v6177 = vunpack.c.h.b16 %v4660
    %v6178 = vunpack.c.l.b16 %v4661
    %v6179 = vunpack.c.h.b16 %v4661
    %v6180 = vunpack.c.l.b16 %v4662
    %v6181 = vunpack.c.h.b16 %v4662
    %v6182 = vunpack.c.l.b16 %v4663
    %v6183 = vunpack.c.h.b16 %v4663
    %v6184 = vunpack.c.l.b16 %v4664
    %v6185 = vunpack.c.h.b16 %v4664
    %v6186 = vunpack.c.l.b16 %v4665
    %v6187 = vunpack.c.h.b16 %v4665
    %v6188 = vunpack.c.l.b16 %v4666
    %v6189 = vunpack.c.h.b16 %v4666
    %v6190 = vunpack.c.l.b16 %v4667
    %v6191 = vunpack.c.h.b16 %v4667
    %v6192 = vunpack.c.l.b16 %v4668
    %v6193 = vunpack.c.h.b16 %v4668
    %v6194 = vunpack.c.l.b16 %v4669
    %v6195 = vunpack.c.h.b16 %v4669
    %v6196 = vunpack.c.l.b16 %v4670
    %v6197 = vunpack.c.h.b16 %v4670
    %v6198 = vunpack.c.l.b16 %v4671
    %v6199 = vunpack.c.h.b16 %v4671
    %v6200 = vunpack.c.l.b16 %v4672
    %v6201 = vunpack.c.h.b16 %v4672
    %v6202 = vunpack.c.l.b16 %v4673
    %v6203 = vunpack.c.h.b16 %v4673
    %v6204 = vunpack.c.l.b16 %v4674
    %v6205 = vunpack.c.h.b16 %v4674
    %v6206 = vunpack.c.l.b16 %v4675
    %v6207 = vunpack.c.h.b16 %v4675
    %v6208 = vunpack.c.l.b16 %v4676
    %v6209 = vunpack.c.h.b16 %v4676
    %v6210 = vunpack.c.l.b16 %v4677
    %v6211 = vunpack.c.h.b16 %v4677
    %v6212 = vunpack.c.l.b16 %v4678
    %v6213 = vunpack.c.h.b16 %v4678
    %v6214 = vunpack.c.l.b16 %v4679
    %v6215 = vunpack.c.h.b16 %v4679
    %v6216 = vunpack.c.l.b16 %v4680
    %v6217 = vunpack.c.h.b16 %v4680
    %v6218 = vunpack.c.l.b16 %v4681
    %v6219 = vunpack.c.h.b16 %v4681
    %v6220 = vunpack.c.l.b16 %v4682
    %v6221 = vunpack.c.h.b16 %v4682
    %v6222 = vunpack.c.l.b16 %v4683
    %v6223 = vunpack.c.h.b16 %v4683
    %v6224 = vunpack.c.l.b16 %v4684
    %v6225 = vunpack.c.h.b16 %v4684
    %v6226 = vunpack.c.l.b16 %v4685
    %v6227 = vunpack.c.h.b16 %v4685
    %v6228 = vunpack.c.l.b16 %v4686
    %v6229 = vunpack.c.h.b16 %v4686
    %v6230 = vunpack.c.l.b16 %v4687
    %v6231 = vunpack.c.h.b16 %v4687
    %v6232 = vunpack.c.l.b16 %v4688
    %v6233 = vunpack.c.h.b16 %v4688
    %v6234 = vunpack.c.l.b16 %v4689
    %v6235 = vunpack.c.h.b16 %v4689
    %v6236 = vunpack.c.l.b16 %v4690
    %v6237 = vunpack.c.h.b16 %v4690
    %v6238 = vunpack.c.l.b16 %v4691
    %v6239 = vunpack.c.h.b16 %v4691
    %v6240 = vunpack.c.l.b16 %v4692
    %v6241 = vunpack.c.h.b16 %v4692
    %v6242 = vunpack.c.l.b16 %v4693
    %v6243 = vunpack.c.h.b16 %v4693
    %v6244 = vunpack.c.l.b16 %v4694
    %v6245 = vunpack.c.h.b16 %v4694
    %v6246 = vunpack.c.l.b16 %v4695
    %v6247 = vunpack.c.h.b16 %v4695
    %v6248 = vunpack.c.l.b16 %v4696
    %v6249 = vunpack.c.h.b16 %v4696
    %v6250 = vunpack.c.l.b16 %v4697
    %v6251 = vunpack.c.h.b16 %v4697
    %v6252 = vunpack.c.l.b16 %v4698
    %v6253 = vunpack.c.h.b16 %v4698
    %v6254 = vunpack.c.l.b16 %v4699
    %v6255 = vunpack.c.h.b16 %v4699
    %v6256 = vunpack.c.l.b16 %v4700
    %v6257 = vunpack.c.h.b16 %v4700
    %v6258 = vunpack.c.l.b16 %v4701
    %v6259 = vunpack.c.h.b16 %v4701
    %v6260 = vunpack.c.l.b16 %v4702
    %v6261 = vunpack.c.h.b16 %v4702
    %v6262 = vunpack.c.l.b16 %v4703
    %v6263 = vunpack.c.h.b16 %v4703
    %v6264 = vunpack.c.l.b16 %v4704
    %v6265 = vunpack.c.h.b16 %v4704
    %v6266 = vunpack.c.l.b16 %v4705
    %v6267 = vunpack.c.h.b16 %v4705
    %v6268 = vunpack.c.l.b16 %v4706
    %v6269 = vunpack.c.h.b16 %v4706
    %v6270 = vunpack.c.l.b16 %v4707
    %v6271 = vunpack.c.h.b16 %v4707
    %v6272 = vunpack.c.l.b16 %v4708
    %v6273 = vunpack.c.h.b16 %v4708
    %v6274 = vunpack.c.l.b16 %v4709
    %v6275 = vunpack.c.h.b16 %v4709
    %v6276 = vunpack.c.l.b16 %v4710
    %v6277 = vunpack.c.h.b16 %v4710
    %v6278 = vunpack.c.l.b16 %v4711
    %v6279 = vunpack.c.h.b16 %v4711
    %v6280 = vunpack.c.l.b16 %v4712
    %v6281 = vunpack.c.h.b16 %v4712
    %v6282 = vunpack.c.l.b16 %v4713
    %v6283 = vunpack.c.h.b16 %v4713
    %v6284 = vunpack.c.l.b16 %v4714
    %v6285 = vunpack.c.h.b16 %v4714
    %v6286 = vunpack.c.l.b16 %v4715
    %v6287 = vunpack.c.h.b16 %v4715
    %v6288 = vunpack.c.l.b16 %v4716
    %v6289 = vunpack.c.h.b16 %v4716
    %v6290 = vunpack.c.l.b16 %v4717
    %v6291 = vunpack.c.h.b16 %v4717
    %v6292 = vunpack.c.l.b16 %v4718
    %v6293 = vunpack.c.h.b16 %v4718
    %v6294 = vunpack.c.l.b16 %v4719
    %v6295 = vunpack.c.h.b16 %v4719
    %v6296 = vunpack.c.l.b16 %v4720
    %v6297 = vunpack.c.h.b16 %v4720
    %v6298 = vunpack.c.l.b16 %v4721
    %v6299 = vunpack.c.h.b16 %v4721
    %v6300 = vpack.c.b16 %v5284, %v5276
    %v6301 = vpack.c.b16 %v5285, %v5277
    %v6302 = vpack.c.b16 %v5286, %v5278
    %v6303 = vpack.c.b16 %v5287, %v5279
    %v6304 = vpack.c.b16 %v5288, %v5280
    %v6305 = vpack.c.b16 %v5289, %v5281
    %v6306 = vpack.c.b16 %v5290, %v5282
    %v6307 = vpack.c.b16 %v5291, %v5283
    %v6308 = vpack.c.b16 %v5300, %v5292
    %v6309 = vpack.c.b16 %v5301, %v5293
    %v6310 = vpack.c.b16 %v5302, %v5294
    %v6311 = vpack.c.b16 %v5303, %v5295
    %v6312 = vpack.c.b16 %v5304, %v5296
    %v6313 = vpack.c.b16 %v5305, %v5297
    %v6314 = vpack.c.b16 %v5306, %v5298
    %v6315 = vpack.c.b16 %v5307, %v5299
    %v6316 = vpack.c.b16 %v5316, %v5308
    %v6317 = vpack.c.b16 %v5317, %v5309
    %v6318 = vpack.c.b16 %v5318, %v5310
    %v6319 = vpack.c.b16 %v5319, %v5311
    %v6320 = vpack.c.b16 %v5320, %v5312
    %v6321 = vpack.c.b16 %v5321, %v5313
    %v6322 = vpack.c.b16 %v5322, %v5314
    %v6323 = vpack.c.b16 %v5323, %v5315
    %v6324 = vpack.c.b16 %v5332, %v5324
    %v6325 = vpack.c.b16 %v5333, %v5325
    %v6326 = vpack.c.b16 %v5334, %v5326
    %v6327 = vpack.c.b16 %v5335, %v5327
    %v6328 = vpack.c.b16 %v5336, %v5328
    %v6329 = vpack.c.b16 %v5337, %v5329
    %v6330 = vpack.c.b16 %v5338, %v5330
    %v6331 = vpack.c.b16 %v5339, %v5331
    %v6332 = vpack.c.b16 %v5348, %v5340
    %v6333 = vpack.c.b16 %v5349, %v5341
    %v6334 = vpack.c.b16 %v5350, %v5342
    %v6335 = vpack.c.b16 %v5351, %v5343
    %v6336 = vpack.c.b16 %v5352, %v5344
    %v6337 = vpack.c.b16 %v5353, %v5345
    %v6338 = vpack.c.b16 %v5354, %v5346
    %v6339 = vpack.c.b16 %v5355, %v5347
    %v6340 = vpack.c.b16 %v5364, %v5356
    %v6341 = vpack.c.b16 %v5365, %v5357
    %v6342 = vpack.c.b16 %v5366, %v5358
    %v6343 = vpack.c.b16 %v5367, %v5359
    %v6344 = vpack.c.b16 %v5368, %v5360
    %v6345 = vpack.c.b16 %v5369, %v5361
    %v6346 = vpack.c.b16 %v5370, %v5362
    %v6347 = vpack.c.b16 %v5371, %v5363
    %v6348 = vpack.c.b16 %v5380, %v5372
    %v6349 = vpack.c.b16 %v5381, %v5373
    %v6350 = vpack.c.b16 %v5382, %v5374
    %v6351 = vpack.c.b16 %v5383, %v5375
    %v6352 = vpack.c.b16 %v5384, %v5376
    %v6353 = vpack.c.b16 %v5385, %v5377
    %v6354 = vpack.c.b16 %v5386, %v5378
    %v6355 = vpack.c.b16 %v5387, %v5379
    %v6356 = vpack.c.b16 %v5396, %v5388
    %v6357 = vpack.c.b16 %v5397, %v5389
    %v6358 = vpack.c.b16 %v5398, %v5390
    %v6359 = vpack.c.b16 %v5399, %v5391
    %v6360 = vpack.c.b16 %v5400, %v5392
    %v6361 = vpack.c.b16 %v5401, %v5393
    %v6362 = vpack.c.b16 %v5402, %v5394
    %v6363 = vpack.c.b16 %v5403, %v5395
    %v6364 = vpack.c.b16 %v5412, %v5404
    %v6365 = vpack.c.b16 %v5413, %v5405
    %v6366 = vpack.c.b16 %v5414, %v5406
    %v6367 = vpack.c.b16 %v5415, %v5407
    %v6368 = vpack.c.b16 %v5416, %v5408
    %v6369 = vpack.c.b16 %v5417, %v5409
    %v6370 = vpack.c.b16 %v5418, %v5410
    %v6371 = vpack.c.b16 %v5419, %v5411
    %v6372 = vpack.c.b16 %v5428, %v5420
    %v6373 = vpack.c.b16 %v5429, %v5421
    %v6374 = vpack.c.b16 %v5430, %v5422
    %v6375 = vpack.c.b16 %v5431, %v5423
    %v6376 = vpack.c.b16 %v5432, %v5424
    %v6377 = vpack.c.b16 %v5433, %v5425
    %v6378 = vpack.c.b16 %v5434, %v5426
    %v6379 = vpack.c.b16 %v5435, %v5427
    %v6380 = vpack.c.b16 %v5444, %v5436
    %v6381 = vpack.c.b16 %v5445, %v5437
    %v6382 = vpack.c.b16 %v5446, %v5438
    %v6383 = vpack.c.b16 %v5447, %v5439
    %v6384 = vpack.c.b16 %v5448, %v5440
    %v6385 = vpack.c.b16 %v5449, %v5441
    %v6386 = vpack.c.b16 %v5450, %v5442
    %v6387 = vpack.c.b16 %v5451, %v5443
    %v6388 = vpack.c.b16 %v5460, %v5452
    %v6389 = vpack.c.b16 %v5461, %v5453
    %v6390 = vpack.c.b16 %v5462, %v5454
    %v6391 = vpack.c.b16 %v5463, %v5455
    %v6392 = vpack.c.b16 %v5464, %v5456
    %v6393 = vpack.c.b16 %v5465, %v5457
    %v6394 = vpack.c.b16 %v5466, %v5458
    %v6395 = vpack.c.b16 %v5467, %v5459
    %v6396 = vpack.c.b16 %v5476, %v5468
    %v6397 = vpack.c.b16 %v5477, %v5469
    %v6398 = vpack.c.b16 %v5478, %v5470
    %v6399 = vpack.c.b16 %v5479, %v5471
    %v6400 = vpack.c.b16 %v5480, %v5472
    %v6401 = vpack.c.b16 %v5481, %v5473
    %v6402 = vpack.c.b16 %v5482, %v5474
    %v6403 = vpack.c.b16 %v5483, %v5475
    %v6404 = vpack.c.b16 %v5492, %v5484
    %v6405 = vpack.c.b16 %v5493, %v5485
    %v6406 = vpack.c.b16 %v5494, %v5486
    %v6407 = vpack.c.b16 %v5495, %v5487
    %v6408 = vpack.c.b16 %v5496, %v5488
    %v6409 = vpack.c.b16 %v5497, %v5489
    %v6410 = vpack.c.b16 %v5498, %v5490
    %v6411 = vpack.c.b16 %v5499, %v5491
    %v6412 = vpack.c.b16 %v5508, %v5500
    %v6413 = vpack.c.b16 %v5509, %v5501
    %v6414 = vpack.c.b16 %v5510, %v5502
    %v6415 = vpack.c.b16 %v5511, %v5503
    %v6416 = vpack.c.b16 %v5512, %v5504
    %v6417 = vpack.c.b16 %v5513, %v5505
    %v6418 = vpack.c.b16 %v5514, %v5506
    %v6419 = vpack.c.b16 %v5515, %v5507
    %v6420 = vpack.c.b16 %v5524, %v5516
    %v6421 = vpack.c.b16 %v5525, %v5517
    %v6422 = vpack.c.b16 %v5526, %v5518
    %v6423 = vpack.c.b16 %v5527, %v5519
    %v6424 = vpack.c.b16 %v5528, %v5520
    %v6425 = vpack.c.b16 %v5529, %v5521
    %v6426 = vpack.c.b16 %v5530, %v5522
    %v6427 = vpack.c.b16 %v5531, %v5523
    %v6428 = vpack.c.b16 %v5540, %v5532
    %v6429 = vpack.c.b16 %v5541, %v5533
    %v6430 = vpack.c.b16 %v5542, %v5534
    %v6431 = vpack.c.b16 %v5543, %v5535
    %v6432 = vpack.c.b16 %v5544, %v5536
    %v6433 = vpack.c.b16 %v5545, %v5537
    %v6434 = vpack.c.b16 %v5546, %v5538
    %v6435 = vpack.c.b16 %v5547, %v5539
    %v6436 = vpack.c.b16 %v5556, %v5548
    %v6437 = vpack.c.b16 %v5557, %v5549
    %v6438 = vpack.c.b16 %v5558, %v5550
    %v6439 = vpack.c.b16 %v5559, %v5551
    %v6440 = vpack.c.b16 %v5560, %v5552
    %v6441 = vpack.c.b16 %v5561, %v5553
    %v6442 = vpack.c.b16 %v5562, %v5554
    %v6443 = vpack.c.b16 %v5563, %v5555
    %v6444 = vpack.c.b16 %v5572, %v5564
    %v6445 = vpack.c.b16 %v5573, %v5565
    %v6446 = vpack.c.b16 %v5574, %v5566
    %v6447 = vpack.c.b16 %v5575, %v5567
    %v6448 = vpack.c.b16 %v5576, %v5568
    %v6449 = vpack.c.b16 %v5577, %v5569
    %v6450 = vpack.c.b16 %v5578, %v5570
    %v6451 = vpack.c.b16 %v5579, %v5571
    %v6452 = vpack.c.b16 %v5588, %v5580
    %v6453 = vpack.c.b16 %v5589, %v5581
    %v6454 = vpack.c.b16 %v5590, %v5582
    %v6455 = vpack.c.b16 %v5591, %v5583
    %v6456 = vpack.c.b16 %v5592, %v5584
    %v6457 = vpack.c.b16 %v5593, %v5585
    %v6458 = vpack.c.b16 %v5594, %v5586
    %v6459 = vpack.c.b16 %v5595, %v5587
    %v6460 = vpack.c.b16 %v5604, %v5596
    %v6461 = vpack.c.b16 %v5605, %v5597
    %v6462 = vpack.c.b16 %v5606, %v5598
    %v6463 = vpack.c.b16 %v5607, %v5599
    %v6464 = vpack.c.b16 %v5608, %v5600
    %v6465 = vpack.c.b16 %v5609, %v5601
    %v6466 = vpack.c.b16 %v5610, %v5602
    %v6467 = vpack.c.b16 %v5611, %v5603
    %v6468 = vpack.c.b16 %v5620, %v5612
    %v6469 = vpack.c.b16 %v5621, %v5613
    %v6470 = vpack.c.b16 %v5622, %v5614
    %v6471 = vpack.c.b16 %v5623, %v5615
    %v6472 = vpack.c.b16 %v5624, %v5616
    %v6473 = vpack.c.b16 %v5625, %v5617
    %v6474 = vpack.c.b16 %v5626, %v5618
    %v6475 = vpack.c.b16 %v5627, %v5619
    %v6476 = vpack.c.b16 %v5636, %v5628
    %v6477 = vpack.c.b16 %v5637, %v5629
    %v6478 = vpack.c.b16 %v5638, %v5630
    %v6479 = vpack.c.b16 %v5639, %v5631
    %v6480 = vpack.c.b16 %v5640, %v5632
    %v6481 = vpack.c.b16 %v5641, %v5633
    %v6482 = vpack.c.b16 %v5642, %v5634
    %v6483 = vpack.c.b16 %v5643, %v5635
    %v6484 = vpack.c.b16 %v5652, %v5644
    %v6485 = vpack.c.b16 %v5653, %v5645
    %v6486 = vpack.c.b16 %v5654, %v5646
    %v6487 = vpack.c.b16 %v5655, %v5647
    %v6488 = vpack.c.b16 %v5656, %v5648
    %v6489 = vpack.c.b16 %v5657, %v5649
    %v6490 = vpack.c.b16 %v5658, %v5650
    %v6491 = vpack.c.b16 %v5659, %v5651
    %v6492 = vpack.c.b16 %v5668, %v5660
    %v6493 = vpack.c.b16 %v5669, %v5661
    %v6494 = vpack.c.b16 %v5670, %v5662
    %v6495 = vpack.c.b16 %v5671, %v5663
    %v6496 = vpack.c.b16 %v5672, %v5664
    %v6497 = vpack.c.b16 %v5673, %v5665
    %v6498 = vpack.c.b16 %v5674, %v5666
    %v6499 = vpack.c.b16 %v5675, %v5667
    %v6500 = vpack.c.b16 %v5684, %v5676
    %v6501 = vpack.c.b16 %v5685, %v5677
    %v6502 = vpack.c.b16 %v5686, %v5678
    %v6503 = vpack.c.b16 %v5687, %v5679
    %v6504 = vpack.c.b16 %v5688, %v5680
    %v6505 = vpack.c.b16 %v5689, %v5681
    %v6506 = vpack.c.b16 %v5690, %v5682
    %v6507 = vpack.c.b16 %v5691, %v5683
    %v6508 = vpack.c.b16 %v5700, %v5692
    %v6509 = vpack.c.b16 %v5701, %v5693
    %v6510 = vpack.c.b16 %v5702, %v5694
    %v6511 = vpack.c.b16 %v5703, %v5695
    %v6512 = vpack.c.b16 %v5704, %v5696
    %v6513 = vpack.c.b16 %v5705, %v5697
    %v6514 = vpack.c.b16 %v5706, %v5698
    %v6515 = vpack.c.b16 %v5707, %v5699
    %v6516 = vpack.c.b16 %v5716, %v5708
    %v6517 = vpack.c.b16 %v5717, %v5709
    %v6518 = vpack.c.b16 %v5718, %v5710
    %v6519 = vpack.c.b16 %v5719, %v5711
    %v6520 = vpack.c.b16 %v5720, %v5712
    %v6521 = vpack.c.b16 %v5721, %v5713
    %v6522 = vpack.c.b16 %v5722, %v5714
    %v6523 = vpack.c.b16 %v5723, %v5715
    %v6524 = vpack.c.b16 %v5732, %v5724
    %v6525 = vpack.c.b16 %v5733, %v5725
    %v6526 = vpack.c.b16 %v5734, %v5726
    %v6527 = vpack.c.b16 %v5735, %v5727
    %v6528 = vpack.c.b16 %v5736, %v5728
    %v6529 = vpack.c.b16 %v5737, %v5729
    %v6530 = vpack.c.b16 %v5738, %v5730
    %v6531 = vpack.c.b16 %v5739, %v5731
    %v6532 = vpack.c.b16 %v5748, %v5740
    %v6533 = vpack.c.b16 %v5749, %v5741
    %v6534 = vpack.c.b16 %v5750, %v5742
    %v6535 = vpack.c.b16 %v5751, %v5743
    %v6536 = vpack.c.b16 %v5752, %v5744
    %v6537 = vpack.c.b16 %v5753, %v5745
    %v6538 = vpack.c.b16 %v5754, %v5746
    %v6539 = vpack.c.b16 %v5755, %v5747
    %v6540 = vpack.c.b16 %v5764, %v5756
    %v6541 = vpack.c.b16 %v5765, %v5757
    %v6542 = vpack.c.b16 %v5766, %v5758
    %v6543 = vpack.c.b16 %v5767, %v5759
    %v6544 = vpack.c.b16 %v5768, %v5760
    %v6545 = vpack.c.b16 %v5769, %v5761
    %v6546 = vpack.c.b16 %v5770, %v5762
    %v6547 = vpack.c.b16 %v5771, %v5763
    %v6548 = vpack.c.b16 %v5780, %v5772
    %v6549 = vpack.c.b16 %v5781, %v5773
    %v6550 = vpack.c.b16 %v5782, %v5774
    %v6551 = vpack.c.b16 %v5783, %v5775
    %v6552 = vpack.c.b16 %v5784, %v5776
    %v6553 = vpack.c.b16 %v5785, %v5777
    %v6554 = vpack.c.b16 %v5786, %v5778
    %v6555 = vpack.c.b16 %v5787, %v5779
    %v6556 = vpack.c.b16 %v5796, %v5788
    %v6557 = vpack.c.b16 %v5797, %v5789
    %v6558 = vpack.c.b16 %v5798, %v5790
    %v6559 = vpack.c.b16 %v5799, %v5791
    %v6560 = vpack.c.b16 %v5800, %v5792
    %v6561 = vpack.c.b16 %v5801, %v5793
    %v6562 = vpack.c.b16 %v5802, %v5794
    %v6563 = vpack.c.b16 %v5803, %v5795
    %v6564 = vpack.c.b16 %v5812, %v5804
    %v6565 = vpack.c.b16 %v5813, %v5805
    %v6566 = vpack.c.b16 %v5814, %v5806
    %v6567 = vpack.c.b16 %v5815, %v5807
    %v6568 = vpack.c.b16 %v5816, %v5808
    %v6569 = vpack.c.b16 %v5817, %v5809
    %v6570 = vpack.c.b16 %v5818, %v5810
    %v6571 = vpack.c.b16 %v5819, %v5811
    %v6572 = vpack.c.b16 %v5828, %v5820
    %v6573 = vpack.c.b16 %v5829, %v5821
    %v6574 = vpack.c.b16 %v5830, %v5822
    %v6575 = vpack.c.b16 %v5831, %v5823
    %v6576 = vpack.c.b16 %v5832, %v5824
    %v6577 = vpack.c.b16 %v5833, %v5825
    %v6578 = vpack.c.b16 %v5834, %v5826
    %v6579 = vpack.c.b16 %v5835, %v5827
    %v6580 = vpack.c.b16 %v5844, %v5836
    %v6581 = vpack.c.b16 %v5845, %v5837
    %v6582 = vpack.c.b16 %v5846, %v5838
    %v6583 = vpack.c.b16 %v5847, %v5839
    %v6584 = vpack.c.b16 %v5848, %v5840
    %v6585 = vpack.c.b16 %v5849, %v5841
    %v6586 = vpack.c.b16 %v5850, %v5842
    %v6587 = vpack.c.b16 %v5851, %v5843
    %v6588 = vpack.c.b16 %v5860, %v5852
    %v6589 = vpack.c.b16 %v5861, %v5853
    %v6590 = vpack.c.b16 %v5862, %v5854
    %v6591 = vpack.c.b16 %v5863, %v5855
    %v6592 = vpack.c.b16 %v5864, %v5856
    %v6593 = vpack.c.b16 %v5865, %v5857
    %v6594 = vpack.c.b16 %v5866, %v5858
    %v6595 = vpack.c.b16 %v5867, %v5859
    %v6596 = vpack.c.b16 %v5876, %v5868
    %v6597 = vpack.c.b16 %v5877, %v5869
    %v6598 = vpack.c.b16 %v5878, %v5870
    %v6599 = vpack.c.b16 %v5879, %v5871
    %v6600 = vpack.c.b16 %v5880, %v5872
    %v6601 = vpack.c.b16 %v5881, %v5873
    %v6602 = vpack.c.b16 %v5882, %v5874
    %v6603 = vpack.c.b16 %v5883, %v5875
    %v6604 = vpack.c.b16 %v5892, %v5884
    %v6605 = vpack.c.b16 %v5893, %v5885
    %v6606 = vpack.c.b16 %v5894, %v5886
    %v6607 = vpack.c.b16 %v5895, %v5887
    %v6608 = vpack.c.b16 %v5896, %v5888
    %v6609 = vpack.c.b16 %v5897, %v5889
    %v6610 = vpack.c.b16 %v5898, %v5890
    %v6611 = vpack.c.b16 %v5899, %v5891
    %v6612 = vpack.c.b16 %v5908, %v5900
    %v6613 = vpack.c.b16 %v5909, %v5901
    %v6614 = vpack.c.b16 %v5910, %v5902
    %v6615 = vpack.c.b16 %v5911, %v5903
    %v6616 = vpack.c.b16 %v5912, %v5904
    %v6617 = vpack.c.b16 %v5913, %v5905
    %v6618 = vpack.c.b16 %v5914, %v5906
    %v6619 = vpack.c.b16 %v5915, %v5907
    %v6620 = vpack.c.b16 %v5924, %v5916
    %v6621 = vpack.c.b16 %v5925, %v5917
    %v6622 = vpack.c.b16 %v5926, %v5918
    %v6623 = vpack.c.b16 %v5927, %v5919
    %v6624 = vpack.c.b16 %v5928, %v5920
    %v6625 = vpack.c.b16 %v5929, %v5921
    %v6626 = vpack.c.b16 %v5930, %v5922
    %v6627 = vpack.c.b16 %v5931, %v5923
    %v6628 = vpack.c.b16 %v5940, %v5932
    %v6629 = vpack.c.b16 %v5941, %v5933
    %v6630 = vpack.c.b16 %v5942, %v5934
    %v6631 = vpack.c.b16 %v5943, %v5935
    %v6632 = vpack.c.b16 %v5944, %v5936
    %v6633 = vpack.c.b16 %v5945, %v5937
    %v6634 = vpack.c.b16 %v5946, %v5938
    %v6635 = vpack.c.b16 %v5947, %v5939
    %v6636 = vpack.c.b16 %v5956, %v5948
    %v6637 = vpack.c.b16 %v5957, %v5949
    %v6638 = vpack.c.b16 %v5958, %v5950
    %v6639 = vpack.c.b16 %v5959, %v5951
    %v6640 = vpack.c.b16 %v5960, %v5952
    %v6641 = vpack.c.b16 %v5961, %v5953
    %v6642 = vpack.c.b16 %v5962, %v5954
    %v6643 = vpack.c.b16 %v5963, %v5955
    %v6644 = vpack.c.b16 %v5972, %v5964
    %v6645 = vpack.c.b16 %v5973, %v5965
    %v6646 = vpack.c.b16 %v5974, %v5966
    %v6647 = vpack.c.b16 %v5975, %v5967
    %v6648 = vpack.c.b16 %v5976, %v5968
    %v6649 = vpack.c.b16 %v5977, %v5969
    %v6650 = vpack.c.b16 %v5978, %v5970
    %v6651 = vpack.c.b16 %v5979, %v5971
    %v6652 = vpack.c.b16 %v5988, %v5980
    %v6653 = vpack.c.b16 %v5989, %v5981
    %v6654 = vpack.c.b16 %v5990, %v5982
    %v6655 = vpack.c.b16 %v5991, %v5983
    %v6656 = vpack.c.b16 %v5992, %v5984
    %v6657 = vpack.c.b16 %v5993, %v5985
    %v6658 = vpack.c.b16 %v5994, %v5986
    %v6659 = vpack.c.b16 %v5995, %v5987
    %v6660 = vpack.c.b16 %v6004, %v5996
    %v6661 = vpack.c.b16 %v6005, %v5997
    %v6662 = vpack.c.b16 %v6006, %v5998
    %v6663 = vpack.c.b16 %v6007, %v5999
    %v6664 = vpack.c.b16 %v6008, %v6000
    %v6665 = vpack.c.b16 %v6009, %v6001
    %v6666 = vpack.c.b16 %v6010, %v6002
    %v6667 = vpack.c.b16 %v6011, %v6003
    %v6668 = vpack.c.b16 %v6020, %v6012
    %v6669 = vpack.c.b16 %v6021, %v6013
    %v6670 = vpack.c.b16 %v6022, %v6014
    %v6671 = vpack.c.b16 %v6023, %v6015
    %v6672 = vpack.c.b16 %v6024, %v6016
    %v6673 = vpack.c.b16 %v6025, %v6017
    %v6674 = vpack.c.b16 %v6026, %v6018
    %v6675 = vpack.c.b16 %v6027, %v6019
    %v6676 = vpack.c.b16 %v6036, %v6028
    %v6677 = vpack.c.b16 %v6037, %v6029
    %v6678 = vpack.c.b16 %v6038, %v6030
    %v6679 = vpack.c.b16 %v6039, %v6031
    %v6680 = vpack.c.b16 %v6040, %v6032
    %v6681 = vpack.c.b16 %v6041, %v6033
    %v6682 = vpack.c.b16 %v6042, %v6034
    %v6683 = vpack.c.b16 %v6043, %v6035
    %v6684 = vpack.c.b16 %v6052, %v6044
    %v6685 = vpack.c.b16 %v6053, %v6045
    %v6686 = vpack.c.b16 %v6054, %v6046
    %v6687 = vpack.c.b16 %v6055, %v6047
    %v6688 = vpack.c.b16 %v6056, %v6048
    %v6689 = vpack.c.b16 %v6057, %v6049
    %v6690 = vpack.c.b16 %v6058, %v6050
    %v6691 = vpack.c.b16 %v6059, %v6051
    %v6692 = vpack.c.b16 %v6068, %v6060
    %v6693 = vpack.c.b16 %v6069, %v6061
    %v6694 = vpack.c.b16 %v6070, %v6062
    %v6695 = vpack.c.b16 %v6071, %v6063
    %v6696 = vpack.c.b16 %v6072, %v6064
    %v6697 = vpack.c.b16 %v6073, %v6065
    %v6698 = vpack.c.b16 %v6074, %v6066
    %v6699 = vpack.c.b16 %v6075, %v6067
    %v6700 = vpack.c.b16 %v6084, %v6076
    %v6701 = vpack.c.b16 %v6085, %v6077
    %v6702 = vpack.c.b16 %v6086, %v6078
    %v6703 = vpack.c.b16 %v6087, %v6079
    %v6704 = vpack.c.b16 %v6088, %v6080
    %v6705 = vpack.c.b16 %v6089, %v6081
    %v6706 = vpack.c.b16 %v6090, %v6082
    %v6707 = vpack.c.b16 %v6091, %v6083
    %v6708 = vpack.c.b16 %v6100, %v6092
    %v6709 = vpack.c.b16 %v6101, %v6093
    %v6710 = vpack.c.b16 %v6102, %v6094
    %v6711 = vpack.c.b16 %v6103, %v6095
    %v6712 = vpack.c.b16 %v6104, %v6096
    %v6713 = vpack.c.b16 %v6105, %v6097
    %v6714 = vpack.c.b16 %v6106, %v6098
    %v6715 = vpack.c.b16 %v6107, %v6099
    %v6716 = vpack.c.b16 %v6116, %v6108
    %v6717 = vpack.c.b16 %v6117, %v6109
    %v6718 = vpack.c.b16 %v6118, %v6110
    %v6719 = vpack.c.b16 %v6119, %v6111
    %v6720 = vpack.c.b16 %v6120, %v6112
    %v6721 = vpack.c.b16 %v6121, %v6113
    %v6722 = vpack.c.b16 %v6122, %v6114
    %v6723 = vpack.c.b16 %v6123, %v6115
    %v6724 = vpack.c.b16 %v6132, %v6124
    %v6725 = vpack.c.b16 %v6133, %v6125
    %v6726 = vpack.c.b16 %v6134, %v6126
    %v6727 = vpack.c.b16 %v6135, %v6127
    %v6728 = vpack.c.b16 %v6136, %v6128
    %v6729 = vpack.c.b16 %v6137, %v6129
    %v6730 = vpack.c.b16 %v6138, %v6130
    %v6731 = vpack.c.b16 %v6139, %v6131
    %v6732 = vpack.c.b16 %v6148, %v6140
    %v6733 = vpack.c.b16 %v6149, %v6141
    %v6734 = vpack.c.b16 %v6150, %v6142
    %v6735 = vpack.c.b16 %v6151, %v6143
    %v6736 = vpack.c.b16 %v6152, %v6144
    %v6737 = vpack.c.b16 %v6153, %v6145
    %v6738 = vpack.c.b16 %v6154, %v6146
    %v6739 = vpack.c.b16 %v6155, %v6147
    %v6740 = vpack.c.b16 %v6164, %v6156
    %v6741 = vpack.c.b16 %v6165, %v6157
    %v6742 = vpack.c.b16 %v6166, %v6158
    %v6743 = vpack.c.b16 %v6167, %v6159
    %v6744 = vpack.c.b16 %v6168, %v6160
    %v6745 = vpack.c.b16 %v6169, %v6161
    %v6746 = vpack.c.b16 %v6170, %v6162
    %v6747 = vpack.c.b16 %v6171, %v6163
    %v6748 = vpack.c.b16 %v6180, %v6172
    %v6749 = vpack.c.b16 %v6181, %v6173
    %v6750 = vpack.c.b16 %v6182, %v6174
    %v6751 = vpack.c.b16 %v6183, %v6175
    %v6752 = vpack.c.b16 %v6184, %v6176
    %v6753 = vpack.c.b16 %v6185, %v6177
    %v6754 = vpack.c.b16 %v6186, %v6178
    %v6755 = vpack.c.b16 %v6187, %v6179
    %v6756 = vpack.c.b16 %v6196, %v6188
    %v6757 = vpack.c.b16 %v6197, %v6189
    %v6758 = vpack.c.b16 %v6198, %v6190
    %v6759 = vpack.c.b16 %v6199, %v6191
    %v6760 = vpack.c.b16 %v6200, %v6192
    %v6761 = vpack.c.b16 %v6201, %v6193
    %v6762 = vpack.c.b16 %v6202, %v6194
    %v6763 = vpack.c.b16 %v6203, %v6195
    %v6764 = vpack.c.b16 %v6212, %v6204
    %v6765 = vpack.c.b16 %v6213, %v6205
    %v6766 = vpack.c.b16 %v6214, %v6206
    %v6767 = vpack.c.b16 %v6215, %v6207
    %v6768 = vpack.c.b16 %v6216, %v6208
    %v6769 = vpack.c.b16 %v6217, %v6209
    %v6770 = vpack.c.b16 %v6218, %v6210
    %v6771 = vpack.c.b16 %v6219, %v6211
    %v6772 = vpack.c.b16 %v6228, %v6220
    %v6773 = vpack.c.b16 %v6229, %v6221
    %v6774 = vpack.c.b16 %v6230, %v6222
    %v6775 = vpack.c.b16 %v6231, %v6223
    %v6776 = vpack.c.b16 %v6232, %v6224
    %v6777 = vpack.c.b16 %v6233, %v6225
    %v6778 = vpack.c.b16 %v6234, %v6226
    %v6779 = vpack.c.b16 %v6235, %v6227
    %v6780 = vpack.c.b16 %v6244, %v6236
    %v6781 = vpack.c.b16 %v6245, %v6237
    %v6782 = vpack.c.b16 %v6246, %v6238
    %v6783 = vpack.c.b16 %v6247, %v6239
    %v6784 = vpack.c.b16 %v6248, %v6240
    %v6785 = vpack.c.b16 %v6249, %v6241
    %v6786 = vpack.c.b16 %v6250, %v6242
    %v6787 = vpack.c.b16 %v6251, %v6243
    %v6788 = vpack.c.b16 %v6260, %v6252
    %v6789 = vpack.c.b16 %v6261, %v6253
    %v6790 = vpack.c.b16 %v6262, %v6254
    %v6791 = vpack.c.b16 %v6263, %v6255
    %v6792 = vpack.c.b16 %v6264, %v6256
    %v6793 = vpack.c.b16 %v6265, %v6257
    %v6794 = vpack.c.b16 %v6266, %v6258
    %v6795 = vpack.c.b16 %v6267, %v6259
    %v6796 = vpack.c.b16 %v6276, %v6268
    %v6797 = vpack.c.b16 %v6277, %v6269
    %v6798 = vpack.c.b16 %v6278, %v6270
    %v6799 = vpack.c.b16 %v6279, %v6271
    %v6800 = vpack.c.b16 %v6280, %v6272
    %v6801 = vpack.c.b16 %v6281, %v6273
    %v6802 = vpack.c.b16 %v6282, %v6274
    %v6803 = vpack.c.b16 %v6283, %v6275
    %v6804 = vpack.c.b16 %v6292, %v6284
    %v6805 = vpack.c.b16 %v6293, %v6285
    %v6806 = vpack.c.b16 %v6294, %v6286
    %v6807 = vpack.c.b16 %v6295, %v6287
    %v6808 = vpack.c.b16 %v6296, %v6288
    %v6809 = vpack.c.b16 %v6297, %v6289
    %v6810 = vpack.c.b16 %v6298, %v6290
    %v6811 = vpack.c.b16 %v6299, %v6291
    %7324 = vmatprep.subr.bf16.mxu0 %v6357
    %7325 = vmatpush1.bf16.msra.mxu0 %v6356
    %7326 = vmatprep.subr.bf16.mxu0 %v6349
    %7327 = vmatpush1.bf16.msra.mxu0 %v6348
    %7328 = vmatprep.subr.bf16.mxu0 %v6341
    %7329 = vmatpush1.bf16.msra.mxu0 %v6340
    %7330 = vmatprep.subr.bf16.mxu0 %v6333
    %7331 = vmatpush1.bf16.msra.mxu0 %v6332
    %7332 = vmatprep.subr.bf16.mxu0 %v6325
    %7333 = vmatpush1.bf16.msra.mxu0 %v6324
    %7334 = vmatprep.subr.bf16.mxu0 %v6317
    %7335 = vmatpush1.bf16.msra.mxu0 %v6316
    %7336 = vmatprep.subr.bf16.mxu0 %v6309
    %7337 = vmatpush1.bf16.msra.mxu0 %v6308
    %7338 = vmatprep.subr.bf16.mxu0 %v6301
    %7339 = vmatpush1.bf16.msra.mxu0 %v6300
    %7340 = vmatprep.subr.bf16.mxu0 %v6421
    %7341 = vmatpush2.bf16.msra.mxu0 %v6420
    %7342 = vmatprep.subr.bf16.mxu0 %v6413
    %7343 = vmatpush2.bf16.msra.mxu0 %v6412
    %7344 = vmatprep.subr.bf16.mxu0 %v6405
    %7345 = vmatpush2.bf16.msra.mxu0 %v6404
    %7346 = vmatprep.subr.bf16.mxu0 %v6397
    %7347 = vmatpush2.bf16.msra.mxu0 %v6396
    %7348 = vmatprep.subr.bf16.mxu0 %v6389
    %7349 = vmatpush2.bf16.msra.mxu0 %v6388
    %7350 = vmatprep.subr.bf16.mxu0 %v6381
    %7351 = vmatpush2.bf16.msra.mxu0 %v6380
    %7352 = vmatprep.subr.bf16.mxu0 %v6373
    %7353 = vmatpush2.bf16.msra.mxu0 %v6372
    %7354 = vmatprep.subr.bf16.mxu0 %v6365
    %7355 = vmatpush2.bf16.msra.mxu0 %v6364
    %7356 = vmatprep.mubr.bf16.mxu0 %v4203
    %7357 = vmatmul.mubr.bf16.gmra.mxu0 %v4202
    %v7358 = vpop.f32.mrf.mxu0
    %v7359 = vadd.f32 %v4727, %v7358
    %v7360 = vpop.f32.mrf.mxu0
    %v7361 = vadd.f32 %v4731, %v7360
    %v7362 = vpop.f32.mrf.mxu0
    %v7363 = vadd.f32 %v4727, %v7362
    %v7364 = vpop.f32.mrf.mxu0
    %v7365 = vadd.f32 %v4731, %v7364
    %7366 = vdwg.mxu0
    %7367 = vmatprep.subr.bf16.mxu0 %v6485
    %7368 = vmatpush1.bf16.msra.mxu0 %v6484
    %7369 = vmatprep.subr.bf16.mxu0 %v6477
    %7370 = vmatpush1.bf16.msra.mxu0 %v6476
    %7371 = vmatprep.subr.bf16.mxu0 %v6469
    %7372 = vmatpush1.bf16.msra.mxu0 %v6468
    %7373 = vmatprep.subr.bf16.mxu0 %v6461
    %7374 = vmatpush1.bf16.msra.mxu0 %v6460
    %7375 = vmatprep.subr.bf16.mxu0 %v6453
    %7376 = vmatpush1.bf16.msra.mxu0 %v6452
    %7377 = vmatprep.subr.bf16.mxu0 %v6445
    %7378 = vmatpush1.bf16.msra.mxu0 %v6444
    %7379 = vmatprep.subr.bf16.mxu0 %v6437
    %7380 = vmatpush1.bf16.msra.mxu0 %v6436
    %7381 = vmatprep.subr.bf16.mxu0 %v6429
    %7382 = vmatpush1.bf16.msra.mxu0 %v6428
    %7383 = vmatprep.subr.bf16.mxu0 %v6549
    %7384 = vmatpush2.bf16.msra.mxu0 %v6548
    %7385 = vmatprep.subr.bf16.mxu0 %v6541
    %7386 = vmatpush2.bf16.msra.mxu0 %v6540
    %7387 = vmatprep.subr.bf16.mxu0 %v6533
    %7388 = vmatpush2.bf16.msra.mxu0 %v6532
    %7389 = vmatprep.subr.bf16.mxu0 %v6525
    %7390 = vmatpush2.bf16.msra.mxu0 %v6524
    %7391 = vmatprep.subr.bf16.mxu0 %v6517
    %7392 = vmatpush2.bf16.msra.mxu0 %v6516
    %7393 = vmatprep.subr.bf16.mxu0 %v6509
    %7394 = vmatpush2.bf16.msra.mxu0 %v6508
    %7395 = vmatprep.subr.bf16.mxu0 %v6501
    %7396 = vmatpush2.bf16.msra.mxu0 %v6500
    %7397 = vmatprep.subr.bf16.mxu0 %v6493
    %7398 = vmatpush2.bf16.msra.mxu0 %v6492
    %7399 = vmatprep.mubr.bf16.mxu0 %v4205
    %7400 = vmatmul.mubr.bf16.gmra.mxu0 %v4204
    %v7401 = vpop.f32.mrf.mxu0
    %v7402 = vadd.f32 %v7359, %v7401
    %v7403 = vpop.f32.mrf.mxu0
    %v7404 = vadd.f32 %v7361, %v7403
    %v7405 = vpop.f32.mrf.mxu0
    %v7406 = vadd.f32 %v7363, %v7405
    %v7407 = vpop.f32.mrf.mxu0
    %v7408 = vadd.f32 %v7365, %v7407
    %7409 = vdwg.mxu0
    %7410 = vmatprep.subr.bf16.mxu0 %v6613
    %7411 = vmatpush1.bf16.msra.mxu0 %v6612
    %7412 = vmatprep.subr.bf16.mxu0 %v6605
    %7413 = vmatpush1.bf16.msra.mxu0 %v6604
    %7414 = vmatprep.subr.bf16.mxu0 %v6597
    %7415 = vmatpush1.bf16.msra.mxu0 %v6596
    %7416 = vmatprep.subr.bf16.mxu0 %v6589
    %7417 = vmatpush1.bf16.msra.mxu0 %v6588
    %7418 = vmatprep.subr.bf16.mxu0 %v6581
    %7419 = vmatpush1.bf16.msra.mxu0 %v6580
    %7420 = vmatprep.subr.bf16.mxu0 %v6573
    %7421 = vmatpush1.bf16.msra.mxu0 %v6572
    %7422 = vmatprep.subr.bf16.mxu0 %v6565
    %7423 = vmatpush1.bf16.msra.mxu0 %v6564
    %7424 = vmatprep.subr.bf16.mxu0 %v6557
    %7425 = vmatpush1.bf16.msra.mxu0 %v6556
    %7426 = vmatprep.subr.bf16.mxu0 %v6677
    %7427 = vmatpush2.bf16.msra.mxu0 %v6676
    %7428 = vmatprep.subr.bf16.mxu0 %v6669
    %7429 = vmatpush2.bf16.msra.mxu0 %v6668
    %7430 = vmatprep.subr.bf16.mxu0 %v6661
    %7431 = vmatpush2.bf16.msra.mxu0 %v6660
    %7432 = vmatprep.subr.bf16.mxu0 %v6653
    %7433 = vmatpush2.bf16.msra.mxu0 %v6652
    %7434 = vmatprep.subr.bf16.mxu0 %v6645
    %7435 = vmatpush2.bf16.msra.mxu0 %v6644
    %7436 = vmatprep.subr.bf16.mxu0 %v6637
    %7437 = vmatpush2.bf16.msra.mxu0 %v6636
    %7438 = vmatprep.subr.bf16.mxu0 %v6629
    %7439 = vmatpush2.bf16.msra.mxu0 %v6628
    %7440 = vmatprep.subr.bf16.mxu0 %v6621
    %7441 = vmatpush2.bf16.msra.mxu0 %v6620
    %7442 = vmatprep.mubr.bf16.mxu0 %v4207
    %7443 = vmatmul.mubr.bf16.gmra.mxu0 %v4206
    %v7444 = vpop.f32.mrf.mxu0
    %v7445 = vadd.f32 %v7402, %v7444
    %v7446 = vpop.f32.mrf.mxu0
    %v7447 = vadd.f32 %v7404, %v7446
    %v7448 = vpop.f32.mrf.mxu0
    %v7449 = vadd.f32 %v7406, %v7448
    %v7450 = vpop.f32.mrf.mxu0
    %v7451 = vadd.f32 %v7408, %v7450
    %7452 = vdwg.mxu0
    %7453 = vmatprep.subr.bf16.mxu0 %v6741
    %7454 = vmatpush1.bf16.msra.mxu0 %v6740
    %7455 = vmatprep.subr.bf16.mxu0 %v6733
    %7456 = vmatpush1.bf16.msra.mxu0 %v6732
    %7457 = vmatprep.subr.bf16.mxu0 %v6725
    %7458 = vmatpush1.bf16.msra.mxu0 %v6724
    %7459 = vmatprep.subr.bf16.mxu0 %v6717
    %7460 = vmatpush1.bf16.msra.mxu0 %v6716
    %7461 = vmatprep.subr.bf16.mxu0 %v6709
    %7462 = vmatpush1.bf16.msra.mxu0 %v6708
    %7463 = vmatprep.subr.bf16.mxu0 %v6701
    %7464 = vmatpush1.bf16.msra.mxu0 %v6700
    %7465 = vmatprep.subr.bf16.mxu0 %v6693
    %7466 = vmatpush1.bf16.msra.mxu0 %v6692
    %7467 = vmatprep.subr.bf16.mxu0 %v6685
    %7468 = vmatpush1.bf16.msra.mxu0 %v6684
    %7469 = vmatprep.subr.bf16.mxu0 %v6805
    %7470 = vmatpush2.bf16.msra.mxu0 %v6804
    %7471 = vmatprep.subr.bf16.mxu0 %v6797
    %7472 = vmatpush2.bf16.msra.mxu0 %v6796
    %7473 = vmatprep.subr.bf16.mxu0 %v6789
    %7474 = vmatpush2.bf16.msra.mxu0 %v6788
    %7475 = vmatprep.subr.bf16.mxu0 %v6781
    %7476 = vmatpush2.bf16.msra.mxu0 %v6780
    %7477 = vmatprep.subr.bf16.mxu0 %v6773
    %7478 = vmatpush2.bf16.msra.mxu0 %v6772
    %7479 = vmatprep.subr.bf16.mxu0 %v6765
    %7480 = vmatpush2.bf16.msra.mxu0 %v6764
    %7481 = vmatprep.subr.bf16.mxu0 %v6757
    %7482 = vmatpush2.bf16.msra.mxu0 %v6756
    %7483 = vmatprep.subr.bf16.mxu0 %v6749
    %7484 = vmatpush2.bf16.msra.mxu0 %v6748
    %7485 = vmatprep.mubr.bf16.mxu0 %v4209
    %7486 = vmatmul.mubr.bf16.gmra.mxu0 %v4208
    %v7487 = vpop.f32.mrf.mxu0
    %v7488 = vadd.f32 %v7445, %v7487
    %v7489 = vpop.f32.mrf.mxu0
    %v7490 = vadd.f32 %v7447, %v7489
    %v7491 = vpop.f32.mrf.mxu0
    %v7492 = vadd.f32 %v7449, %v7491
    %v7493 = vpop.f32.mrf.mxu0
    %v7494 = vadd.f32 %v7451, %v7493
    %7495 = vdwg.mxu0
    %7496 = vmatprep.subr.bf16.mxu0 %v6359
    %7497 = vmatpush1.bf16.msra.mxu0 %v6358
    %7498 = vmatprep.subr.bf16.mxu0 %v6351
    %7499 = vmatpush1.bf16.msra.mxu0 %v6350
    %7500 = vmatprep.subr.bf16.mxu0 %v6343
    %7501 = vmatpush1.bf16.msra.mxu0 %v6342
    %7502 = vmatprep.subr.bf16.mxu0 %v6335
    %7503 = vmatpush1.bf16.msra.mxu0 %v6334
    %7504 = vmatprep.subr.bf16.mxu0 %v6327
    %7505 = vmatpush1.bf16.msra.mxu0 %v6326
    %7506 = vmatprep.subr.bf16.mxu0 %v6319
    %7507 = vmatpush1.bf16.msra.mxu0 %v6318
    %7508 = vmatprep.subr.bf16.mxu0 %v6311
    %7509 = vmatpush1.bf16.msra.mxu0 %v6310
    %7510 = vmatprep.subr.bf16.mxu0 %v6303
    %7511 = vmatpush1.bf16.msra.mxu0 %v6302
    %7512 = vmatprep.subr.bf16.mxu0 %v6423
    %7513 = vmatpush2.bf16.msra.mxu0 %v6422
    %7514 = vmatprep.subr.bf16.mxu0 %v6415
    %7515 = vmatpush2.bf16.msra.mxu0 %v6414
    %7516 = vmatprep.subr.bf16.mxu0 %v6407
    %7517 = vmatpush2.bf16.msra.mxu0 %v6406
    %7518 = vmatprep.subr.bf16.mxu0 %v6399
    %7519 = vmatpush2.bf16.msra.mxu0 %v6398
    %7520 = vmatprep.subr.bf16.mxu0 %v6391
    %7521 = vmatpush2.bf16.msra.mxu0 %v6390
    %7522 = vmatprep.subr.bf16.mxu0 %v6383
    %7523 = vmatpush2.bf16.msra.mxu0 %v6382
    %7524 = vmatprep.subr.bf16.mxu0 %v6375
    %7525 = vmatpush2.bf16.msra.mxu0 %v6374
    %7526 = vmatprep.subr.bf16.mxu0 %v6367
    %7527 = vmatpush2.bf16.msra.mxu0 %v6366
    %7528 = vmatprep.mubr.bf16.mxu0 %v4203
    %7529 = vmatmul.mubr.bf16.gmra.mxu0 %v4202
    %v7530 = vpop.f32.mrf.mxu0
    %v7531 = vadd.f32 %v4735, %v7530
    %v7532 = vpop.f32.mrf.mxu0
    %v7533 = vadd.f32 %v4739, %v7532
    %v7534 = vpop.f32.mrf.mxu0
    %v7535 = vadd.f32 %v4735, %v7534
    %v7536 = vpop.f32.mrf.mxu0
    %v7537 = vadd.f32 %v4739, %v7536
    %7538 = vdwg.mxu0
    %7539 = vmatprep.subr.bf16.mxu0 %v6487
    %7540 = vmatpush1.bf16.msra.mxu0 %v6486
    %7541 = vmatprep.subr.bf16.mxu0 %v6479
    %7542 = vmatpush1.bf16.msra.mxu0 %v6478
    %7543 = vmatprep.subr.bf16.mxu0 %v6471
    %7544 = vmatpush1.bf16.msra.mxu0 %v6470
    %7545 = vmatprep.subr.bf16.mxu0 %v6463
    %7546 = vmatpush1.bf16.msra.mxu0 %v6462
    %7547 = vmatprep.subr.bf16.mxu0 %v6455
    %7548 = vmatpush1.bf16.msra.mxu0 %v6454
    %7549 = vmatprep.subr.bf16.mxu0 %v6447
    %7550 = vmatpush1.bf16.msra.mxu0 %v6446
    %7551 = vmatprep.subr.bf16.mxu0 %v6439
    %7552 = vmatpush1.bf16.msra.mxu0 %v6438
    %7553 = vmatprep.subr.bf16.mxu0 %v6431
    %7554 = vmatpush1.bf16.msra.mxu0 %v6430
    %7555 = vmatprep.subr.bf16.mxu0 %v6551
    %7556 = vmatpush2.bf16.msra.mxu0 %v6550
    %7557 = vmatprep.subr.bf16.mxu0 %v6543
    %7558 = vmatpush2.bf16.msra.mxu0 %v6542
    %7559 = vmatprep.subr.bf16.mxu0 %v6535
    %7560 = vmatpush2.bf16.msra.mxu0 %v6534
    %7561 = vmatprep.subr.bf16.mxu0 %v6527
    %7562 = vmatpush2.bf16.msra.mxu0 %v6526
    %7563 = vmatprep.subr.bf16.mxu0 %v6519
    %7564 = vmatpush2.bf16.msra.mxu0 %v6518
    %7565 = vmatprep.subr.bf16.mxu0 %v6511
    %7566 = vmatpush2.bf16.msra.mxu0 %v6510
    %7567 = vmatprep.subr.bf16.mxu0 %v6503
    %7568 = vmatpush2.bf16.msra.mxu0 %v6502
    %7569 = vmatprep.subr.bf16.mxu0 %v6495
    %7570 = vmatpush2.bf16.msra.mxu0 %v6494
    %7571 = vmatprep.mubr.bf16.mxu0 %v4205
    %7572 = vmatmul.mubr.bf16.gmra.mxu0 %v4204
    %v7573 = vpop.f32.mrf.mxu0
    %v7574 = vadd.f32 %v7531, %v7573
    %v7575 = vpop.f32.mrf.mxu0
    %v7576 = vadd.f32 %v7533, %v7575
    %v7577 = vpop.f32.mrf.mxu0
    %v7578 = vadd.f32 %v7535, %v7577
    %v7579 = vpop.f32.mrf.mxu0
    %v7580 = vadd.f32 %v7537, %v7579
    %7581 = vdwg.mxu0
    %7582 = vmatprep.subr.bf16.mxu0 %v6615
    %7583 = vmatpush1.bf16.msra.mxu0 %v6614
    %7584 = vmatprep.subr.bf16.mxu0 %v6607
    %7585 = vmatpush1.bf16.msra.mxu0 %v6606
    %7586 = vmatprep.subr.bf16.mxu0 %v6599
    %7587 = vmatpush1.bf16.msra.mxu0 %v6598
    %7588 = vmatprep.subr.bf16.mxu0 %v6591
    %7589 = vmatpush1.bf16.msra.mxu0 %v6590
    %7590 = vmatprep.subr.bf16.mxu0 %v6583
    %7591 = vmatpush1.bf16.msra.mxu0 %v6582
    %7592 = vmatprep.subr.bf16.mxu0 %v6575
    %7593 = vmatpush1.bf16.msra.mxu0 %v6574
    %7594 = vmatprep.subr.bf16.mxu0 %v6567
    %7595 = vmatpush1.bf16.msra.mxu0 %v6566
    %7596 = vmatprep.subr.bf16.mxu0 %v6559
    %7597 = vmatpush1.bf16.msra.mxu0 %v6558
    %7598 = vmatprep.subr.bf16.mxu0 %v6679
    %7599 = vmatpush2.bf16.msra.mxu0 %v6678
    %7600 = vmatprep.subr.bf16.mxu0 %v6671
    %7601 = vmatpush2.bf16.msra.mxu0 %v6670
    %7602 = vmatprep.subr.bf16.mxu0 %v6663
    %7603 = vmatpush2.bf16.msra.mxu0 %v6662
    %7604 = vmatprep.subr.bf16.mxu0 %v6655
    %7605 = vmatpush2.bf16.msra.mxu0 %v6654
    %7606 = vmatprep.subr.bf16.mxu0 %v6647
    %7607 = vmatpush2.bf16.msra.mxu0 %v6646
    %7608 = vmatprep.subr.bf16.mxu0 %v6639
    %7609 = vmatpush2.bf16.msra.mxu0 %v6638
    %7610 = vmatprep.subr.bf16.mxu0 %v6631
    %7611 = vmatpush2.bf16.msra.mxu0 %v6630
    %7612 = vmatprep.subr.bf16.mxu0 %v6623
    %7613 = vmatpush2.bf16.msra.mxu0 %v6622
    %7614 = vmatprep.mubr.bf16.mxu0 %v4207
    %7615 = vmatmul.mubr.bf16.gmra.mxu0 %v4206
    %v7616 = vpop.f32.mrf.mxu0
    %v7617 = vadd.f32 %v7574, %v7616
    %v7618 = vpop.f32.mrf.mxu0
    %v7619 = vadd.f32 %v7576, %v7618
    %v7620 = vpop.f32.mrf.mxu0
    %v7621 = vadd.f32 %v7578, %v7620
    %v7622 = vpop.f32.mrf.mxu0
    %v7623 = vadd.f32 %v7580, %v7622
    %7624 = vdwg.mxu0
    %7625 = vmatprep.subr.bf16.mxu0 %v6743
    %7626 = vmatpush1.bf16.msra.mxu0 %v6742
    %7627 = vmatprep.subr.bf16.mxu0 %v6735
    %7628 = vmatpush1.bf16.msra.mxu0 %v6734
    %7629 = vmatprep.subr.bf16.mxu0 %v6727
    %7630 = vmatpush1.bf16.msra.mxu0 %v6726
    %7631 = vmatprep.subr.bf16.mxu0 %v6719
    %7632 = vmatpush1.bf16.msra.mxu0 %v6718
    %7633 = vmatprep.subr.bf16.mxu0 %v6711
    %7634 = vmatpush1.bf16.msra.mxu0 %v6710
    %7635 = vmatprep.subr.bf16.mxu0 %v6703
    %7636 = vmatpush1.bf16.msra.mxu0 %v6702
    %7637 = vmatprep.subr.bf16.mxu0 %v6695
    %7638 = vmatpush1.bf16.msra.mxu0 %v6694
    %7639 = vmatprep.subr.bf16.mxu0 %v6687
    %7640 = vmatpush1.bf16.msra.mxu0 %v6686
    %7641 = vmatprep.subr.bf16.mxu0 %v6807
    %7642 = vmatpush2.bf16.msra.mxu0 %v6806
    %7643 = vmatprep.subr.bf16.mxu0 %v6799
    %7644 = vmatpush2.bf16.msra.mxu0 %v6798
    %7645 = vmatprep.subr.bf16.mxu0 %v6791
    %7646 = vmatpush2.bf16.msra.mxu0 %v6790
    %7647 = vmatprep.subr.bf16.mxu0 %v6783
    %7648 = vmatpush2.bf16.msra.mxu0 %v6782
    %7649 = vmatprep.subr.bf16.mxu0 %v6775
    %7650 = vmatpush2.bf16.msra.mxu0 %v6774
    %7651 = vmatprep.subr.bf16.mxu0 %v6767
    %7652 = vmatpush2.bf16.msra.mxu0 %v6766
    %7653 = vmatprep.subr.bf16.mxu0 %v6759
    %7654 = vmatpush2.bf16.msra.mxu0 %v6758
    %7655 = vmatprep.subr.bf16.mxu0 %v6751
    %7656 = vmatpush2.bf16.msra.mxu0 %v6750
    %7657 = vmatprep.mubr.bf16.mxu0 %v4209
    %7658 = vmatmul.mubr.bf16.gmra.mxu0 %v4208
    %v7659 = vpop.f32.mrf.mxu0
    %v7660 = vadd.f32 %v7617, %v7659
    %v7661 = vpop.f32.mrf.mxu0
    %v7662 = vadd.f32 %v7619, %v7661
    %v7663 = vpop.f32.mrf.mxu0
    %v7664 = vadd.f32 %v7621, %v7663
    %v7665 = vpop.f32.mrf.mxu0
    %v7666 = vadd.f32 %v7623, %v7665
    %7667 = vdwg.mxu0
    %7668 = vmatprep.subr.bf16.mxu0 %v6361
    %7669 = vmatpush1.bf16.msra.mxu0 %v6360
    %7670 = vmatprep.subr.bf16.mxu0 %v6353
    %7671 = vmatpush1.bf16.msra.mxu0 %v6352
    %7672 = vmatprep.subr.bf16.mxu0 %v6345
    %7673 = vmatpush1.bf16.msra.mxu0 %v6344
    %7674 = vmatprep.subr.bf16.mxu0 %v6337
    %7675 = vmatpush1.bf16.msra.mxu0 %v6336
    %7676 = vmatprep.subr.bf16.mxu0 %v6329
    %7677 = vmatpush1.bf16.msra.mxu0 %v6328
    %7678 = vmatprep.subr.bf16.mxu0 %v6321
    %7679 = vmatpush1.bf16.msra.mxu0 %v6320
    %7680 = vmatprep.subr.bf16.mxu0 %v6313
    %7681 = vmatpush1.bf16.msra.mxu0 %v6312
    %7682 = vmatprep.subr.bf16.mxu0 %v6305
    %7683 = vmatpush1.bf16.msra.mxu0 %v6304
    %7684 = vmatprep.subr.bf16.mxu0 %v6425
    %7685 = vmatpush2.bf16.msra.mxu0 %v6424
    %7686 = vmatprep.subr.bf16.mxu0 %v6417
    %7687 = vmatpush2.bf16.msra.mxu0 %v6416
    %7688 = vmatprep.subr.bf16.mxu0 %v6409
    %7689 = vmatpush2.bf16.msra.mxu0 %v6408
    %7690 = vmatprep.subr.bf16.mxu0 %v6401
    %7691 = vmatpush2.bf16.msra.mxu0 %v6400
    %7692 = vmatprep.subr.bf16.mxu0 %v6393
    %7693 = vmatpush2.bf16.msra.mxu0 %v6392
    %7694 = vmatprep.subr.bf16.mxu0 %v6385
    %7695 = vmatpush2.bf16.msra.mxu0 %v6384
    %7696 = vmatprep.subr.bf16.mxu0 %v6377
    %7697 = vmatpush2.bf16.msra.mxu0 %v6376
    %7698 = vmatprep.subr.bf16.mxu0 %v6369
    %7699 = vmatpush2.bf16.msra.mxu0 %v6368
    %7700 = vmatprep.mubr.bf16.mxu0 %v4203
    %7701 = vmatmul.mubr.bf16.gmra.mxu0 %v4202
    %v7702 = vpop.f32.mrf.mxu0
    %v7703 = vadd.f32 %v4743, %v7702
    %v7704 = vpop.f32.mrf.mxu0
    %v7705 = vadd.f32 %v4747, %v7704
    %v7706 = vpop.f32.mrf.mxu0
    %v7707 = vadd.f32 %v4743, %v7706
    %v7708 = vpop.f32.mrf.mxu0
    %v7709 = vadd.f32 %v4747, %v7708
    %7710 = vdwg.mxu0
    %7711 = vmatprep.subr.bf16.mxu0 %v6489
    %7712 = vmatpush1.bf16.msra.mxu0 %v6488
    %7713 = vmatprep.subr.bf16.mxu0 %v6481
    %7714 = vmatpush1.bf16.msra.mxu0 %v6480
    %7715 = vmatprep.subr.bf16.mxu0 %v6473
    %7716 = vmatpush1.bf16.msra.mxu0 %v6472
    %7717 = vmatprep.subr.bf16.mxu0 %v6465
    %7718 = vmatpush1.bf16.msra.mxu0 %v6464
    %7719 = vmatprep.subr.bf16.mxu0 %v6457
    %7720 = vmatpush1.bf16.msra.mxu0 %v6456
    %7721 = vmatprep.subr.bf16.mxu0 %v6449
    %7722 = vmatpush1.bf16.msra.mxu0 %v6448
    %7723 = vmatprep.subr.bf16.mxu0 %v6441
    %7724 = vmatpush1.bf16.msra.mxu0 %v6440
    %7725 = vmatprep.subr.bf16.mxu0 %v6433
    %7726 = vmatpush1.bf16.msra.mxu0 %v6432
    %7727 = vmatprep.subr.bf16.mxu0 %v6553
    %7728 = vmatpush2.bf16.msra.mxu0 %v6552
    %7729 = vmatprep.subr.bf16.mxu0 %v6545
    %7730 = vmatpush2.bf16.msra.mxu0 %v6544
    %7731 = vmatprep.subr.bf16.mxu0 %v6537
    %7732 = vmatpush2.bf16.msra.mxu0 %v6536
    %7733 = vmatprep.subr.bf16.mxu0 %v6529
    %7734 = vmatpush2.bf16.msra.mxu0 %v6528
    %7735 = vmatprep.subr.bf16.mxu0 %v6521
    %7736 = vmatpush2.bf16.msra.mxu0 %v6520
    %7737 = vmatprep.subr.bf16.mxu0 %v6513
    %7738 = vmatpush2.bf16.msra.mxu0 %v6512
    %7739 = vmatprep.subr.bf16.mxu0 %v6505
    %7740 = vmatpush2.bf16.msra.mxu0 %v6504
    %7741 = vmatprep.subr.bf16.mxu0 %v6497
    %7742 = vmatpush2.bf16.msra.mxu0 %v6496
    %7743 = vmatprep.mubr.bf16.mxu0 %v4205
    %7744 = vmatmul.mubr.bf16.gmra.mxu0 %v4204
    %v7745 = vpop.f32.mrf.mxu0
    %v7746 = vadd.f32 %v7703, %v7745
    %v7747 = vpop.f32.mrf.mxu0
    %v7748 = vadd.f32 %v7705, %v7747
    %v7749 = vpop.f32.mrf.mxu0
    %v7750 = vadd.f32 %v7707, %v7749
    %v7751 = vpop.f32.mrf.mxu0
    %v7752 = vadd.f32 %v7709, %v7751
    %7753 = vdwg.mxu0
    %7754 = vmatprep.subr.bf16.mxu0 %v6617
    %7755 = vmatpush1.bf16.msra.mxu0 %v6616
    %7756 = vmatprep.subr.bf16.mxu0 %v6609
    %7757 = vmatpush1.bf16.msra.mxu0 %v6608
    %7758 = vmatprep.subr.bf16.mxu0 %v6601
    %7759 = vmatpush1.bf16.msra.mxu0 %v6600
    %7760 = vmatprep.subr.bf16.mxu0 %v6593
    %7761 = vmatpush1.bf16.msra.mxu0 %v6592
    %7762 = vmatprep.subr.bf16.mxu0 %v6585
    %7763 = vmatpush1.bf16.msra.mxu0 %v6584
    %7764 = vmatprep.subr.bf16.mxu0 %v6577
    %7765 = vmatpush1.bf16.msra.mxu0 %v6576
    %7766 = vmatprep.subr.bf16.mxu0 %v6569
    %7767 = vmatpush1.bf16.msra.mxu0 %v6568
    %7768 = vmatprep.subr.bf16.mxu0 %v6561
    %7769 = vmatpush1.bf16.msra.mxu0 %v6560
    %7770 = vmatprep.subr.bf16.mxu0 %v6681
    %7771 = vmatpush2.bf16.msra.mxu0 %v6680
    %7772 = vmatprep.subr.bf16.mxu0 %v6673
    %7773 = vmatpush2.bf16.msra.mxu0 %v6672
    %7774 = vmatprep.subr.bf16.mxu0 %v6665
    %7775 = vmatpush2.bf16.msra.mxu0 %v6664
    %7776 = vmatprep.subr.bf16.mxu0 %v6657
    %7777 = vmatpush2.bf16.msra.mxu0 %v6656
    %7778 = vmatprep.subr.bf16.mxu0 %v6649
    %7779 = vmatpush2.bf16.msra.mxu0 %v6648
    %7780 = vmatprep.subr.bf16.mxu0 %v6641
    %7781 = vmatpush2.bf16.msra.mxu0 %v6640
    %7782 = vmatprep.subr.bf16.mxu0 %v6633
    %7783 = vmatpush2.bf16.msra.mxu0 %v6632
    %7784 = vmatprep.subr.bf16.mxu0 %v6625
    %7785 = vmatpush2.bf16.msra.mxu0 %v6624
    %7786 = vmatprep.mubr.bf16.mxu0 %v4207
    %7787 = vmatmul.mubr.bf16.gmra.mxu0 %v4206
    %v7788 = vpop.f32.mrf.mxu0
    %v7789 = vadd.f32 %v7746, %v7788
    %v7790 = vpop.f32.mrf.mxu0
    %v7791 = vadd.f32 %v7748, %v7790
    %v7792 = vpop.f32.mrf.mxu0
    %v7793 = vadd.f32 %v7750, %v7792
    %v7794 = vpop.f32.mrf.mxu0
    %v7795 = vadd.f32 %v7752, %v7794
    %7796 = vdwg.mxu0
    %7797 = vmatprep.subr.bf16.mxu0 %v6745
    %7798 = vmatpush1.bf16.msra.mxu0 %v6744
    %7799 = vmatprep.subr.bf16.mxu0 %v6737
    %7800 = vmatpush1.bf16.msra.mxu0 %v6736
    %7801 = vmatprep.subr.bf16.mxu0 %v6729
    %7802 = vmatpush1.bf16.msra.mxu0 %v6728
    %7803 = vmatprep.subr.bf16.mxu0 %v6721
    %7804 = vmatpush1.bf16.msra.mxu0 %v6720
    %7805 = vmatprep.subr.bf16.mxu0 %v6713
    %7806 = vmatpush1.bf16.msra.mxu0 %v6712
    %7807 = vmatprep.subr.bf16.mxu0 %v6705
    %7808 = vmatpush1.bf16.msra.mxu0 %v6704
    %7809 = vmatprep.subr.bf16.mxu0 %v6697
    %7810 = vmatpush1.bf16.msra.mxu0 %v6696
    %7811 = vmatprep.subr.bf16.mxu0 %v6689
    %7812 = vmatpush1.bf16.msra.mxu0 %v6688
    %7813 = vmatprep.subr.bf16.mxu0 %v6809
    %7814 = vmatpush2.bf16.msra.mxu0 %v6808
    %7815 = vmatprep.subr.bf16.mxu0 %v6801
    %7816 = vmatpush2.bf16.msra.mxu0 %v6800
    %7817 = vmatprep.subr.bf16.mxu0 %v6793
    %7818 = vmatpush2.bf16.msra.mxu0 %v6792
    %7819 = vmatprep.subr.bf16.mxu0 %v6785
    %7820 = vmatpush2.bf16.msra.mxu0 %v6784
    %7821 = vmatprep.subr.bf16.mxu0 %v6777
    %7822 = vmatpush2.bf16.msra.mxu0 %v6776
    %7823 = vmatprep.subr.bf16.mxu0 %v6769
    %7824 = vmatpush2.bf16.msra.mxu0 %v6768
    %7825 = vmatprep.subr.bf16.mxu0 %v6761
    %7826 = vmatpush2.bf16.msra.mxu0 %v6760
    %7827 = vmatprep.subr.bf16.mxu0 %v6753
    %7828 = vmatpush2.bf16.msra.mxu0 %v6752
    %7829 = vmatprep.mubr.bf16.mxu0 %v4209
    %7830 = vmatmul.mubr.bf16.gmra.mxu0 %v4208
    %v7831 = vpop.f32.mrf.mxu0
    %v7832 = vadd.f32 %v7789, %v7831
    %v7833 = vpop.f32.mrf.mxu0
    %v7834 = vadd.f32 %v7791, %v7833
    %v7835 = vpop.f32.mrf.mxu0
    %v7836 = vadd.f32 %v7793, %v7835
    %v7837 = vpop.f32.mrf.mxu0
    %v7838 = vadd.f32 %v7795, %v7837
    %7839 = vdwg.mxu0
    %7840 = vmatprep.subr.bf16.mxu0 %v6363
    %7841 = vmatpush1.bf16.msra.mxu0 %v6362
    %7842 = vmatprep.subr.bf16.mxu0 %v6355
    %7843 = vmatpush1.bf16.msra.mxu0 %v6354
    %7844 = vmatprep.subr.bf16.mxu0 %v6347
    %7845 = vmatpush1.bf16.msra.mxu0 %v6346
    %7846 = vmatprep.subr.bf16.mxu0 %v6339
    %7847 = vmatpush1.bf16.msra.mxu0 %v6338
    %7848 = vmatprep.subr.bf16.mxu0 %v6331
    %7849 = vmatpush1.bf16.msra.mxu0 %v6330
    %7850 = vmatprep.subr.bf16.mxu0 %v6323
    %7851 = vmatpush1.bf16.msra.mxu0 %v6322
    %7852 = vmatprep.subr.bf16.mxu0 %v6315
    %7853 = vmatpush1.bf16.msra.mxu0 %v6314
    %7854 = vmatprep.subr.bf16.mxu0 %v6307
    %7855 = vmatpush1.bf16.msra.mxu0 %v6306
    %7856 = vmatprep.subr.bf16.mxu0 %v6427
    %7857 = vmatpush2.bf16.msra.mxu0 %v6426
    %7858 = vmatprep.subr.bf16.mxu0 %v6419
    %7859 = vmatpush2.bf16.msra.mxu0 %v6418
    %7860 = vmatprep.subr.bf16.mxu0 %v6411
    %7861 = vmatpush2.bf16.msra.mxu0 %v6410
    %7862 = vmatprep.subr.bf16.mxu0 %v6403
    %7863 = vmatpush2.bf16.msra.mxu0 %v6402
    %7864 = vmatprep.subr.bf16.mxu0 %v6395
    %7865 = vmatpush2.bf16.msra.mxu0 %v6394
    %7866 = vmatprep.subr.bf16.mxu0 %v6387
    %7867 = vmatpush2.bf16.msra.mxu0 %v6386
    %7868 = vmatprep.subr.bf16.mxu0 %v6379
    %7869 = vmatpush2.bf16.msra.mxu0 %v6378
    %7870 = vmatprep.subr.bf16.mxu0 %v6371
    %7871 = vmatpush2.bf16.msra.mxu0 %v6370
    %7872 = vmatprep.mubr.bf16.mxu0 %v4203
    %7873 = vmatmul.mubr.bf16.gmra.mxu0 %v4202
    %v7874 = vpop.f32.mrf.mxu0
    %v7875 = vadd.f32 %v4751, %v7874
    %v7876 = vpop.f32.mrf.mxu0
    %v7877 = vadd.f32 %v4755, %v7876
    %v7878 = vpop.f32.mrf.mxu0
    %v7879 = vadd.f32 %v4751, %v7878
    %v7880 = vpop.f32.mrf.mxu0
    %v7881 = vadd.f32 %v4755, %v7880
    %7882 = vdwg.mxu0
    %7883 = vmatprep.subr.bf16.mxu0 %v6491
    %7884 = vmatpush1.bf16.msra.mxu0 %v6490
    %7885 = vmatprep.subr.bf16.mxu0 %v6483
    %7886 = vmatpush1.bf16.msra.mxu0 %v6482
    %7887 = vmatprep.subr.bf16.mxu0 %v6475
    %7888 = vmatpush1.bf16.msra.mxu0 %v6474
    %7889 = vmatprep.subr.bf16.mxu0 %v6467
    %7890 = vmatpush1.bf16.msra.mxu0 %v6466
    %7891 = vmatprep.subr.bf16.mxu0 %v6459
    %7892 = vmatpush1.bf16.msra.mxu0 %v6458
    %7893 = vmatprep.subr.bf16.mxu0 %v6451
    %7894 = vmatpush1.bf16.msra.mxu0 %v6450
    %7895 = vmatprep.subr.bf16.mxu0 %v6443
    %7896 = vmatpush1.bf16.msra.mxu0 %v6442
    %7897 = vmatprep.subr.bf16.mxu0 %v6435
    %7898 = vmatpush1.bf16.msra.mxu0 %v6434
    %7899 = vmatprep.subr.bf16.mxu0 %v6555
    %7900 = vmatpush2.bf16.msra.mxu0 %v6554
    %7901 = vmatprep.subr.bf16.mxu0 %v6547
    %7902 = vmatpush2.bf16.msra.mxu0 %v6546
    %7903 = vmatprep.subr.bf16.mxu0 %v6539
    %7904 = vmatpush2.bf16.msra.mxu0 %v6538
    %7905 = vmatprep.subr.bf16.mxu0 %v6531
    %7906 = vmatpush2.bf16.msra.mxu0 %v6530
    %7907 = vmatprep.subr.bf16.mxu0 %v6523
    %7908 = vmatpush2.bf16.msra.mxu0 %v6522
    %7909 = vmatprep.subr.bf16.mxu0 %v6515
    %7910 = vmatpush2.bf16.msra.mxu0 %v6514
    %7911 = vmatprep.subr.bf16.mxu0 %v6507
    %7912 = vmatpush2.bf16.msra.mxu0 %v6506
    %7913 = vmatprep.subr.bf16.mxu0 %v6499
    %7914 = vmatpush2.bf16.msra.mxu0 %v6498
    %7915 = vmatprep.mubr.bf16.mxu0 %v4205
    %7916 = vmatmul.mubr.bf16.gmra.mxu0 %v4204
    %v7917 = vpop.f32.mrf.mxu0
    %v7918 = vadd.f32 %v7875, %v7917
    %v7919 = vpop.f32.mrf.mxu0
    %v7920 = vadd.f32 %v7877, %v7919
    %v7921 = vpop.f32.mrf.mxu0
    %v7922 = vadd.f32 %v7879, %v7921
    %v7923 = vpop.f32.mrf.mxu0
    %v7924 = vadd.f32 %v7881, %v7923
    %7925 = vdwg.mxu0
    %7926 = vmatprep.subr.bf16.mxu0 %v6619
    %7927 = vmatpush1.bf16.msra.mxu0 %v6618
    %7928 = vmatprep.subr.bf16.mxu0 %v6611
    %7929 = vmatpush1.bf16.msra.mxu0 %v6610
    %7930 = vmatprep.subr.bf16.mxu0 %v6603
    %7931 = vmatpush1.bf16.msra.mxu0 %v6602
    %7932 = vmatprep.subr.bf16.mxu0 %v6595
    %7933 = vmatpush1.bf16.msra.mxu0 %v6594
    %7934 = vmatprep.subr.bf16.mxu0 %v6587
    %7935 = vmatpush1.bf16.msra.mxu0 %v6586
    %7936 = vmatprep.subr.bf16.mxu0 %v6579
    %7937 = vmatpush1.bf16.msra.mxu0 %v6578
    %7938 = vmatprep.subr.bf16.mxu0 %v6571
    %7939 = vmatpush1.bf16.msra.mxu0 %v6570
    %7940 = vmatprep.subr.bf16.mxu0 %v6563
    %7941 = vmatpush1.bf16.msra.mxu0 %v6562
    %7942 = vmatprep.subr.bf16.mxu0 %v6683
    %7943 = vmatpush2.bf16.msra.mxu0 %v6682
    %7944 = vmatprep.subr.bf16.mxu0 %v6675
    %7945 = vmatpush2.bf16.msra.mxu0 %v6674
    %7946 = vmatprep.subr.bf16.mxu0 %v6667
    %7947 = vmatpush2.bf16.msra.mxu0 %v6666
    %7948 = vmatprep.subr.bf16.mxu0 %v6659
    %7949 = vmatpush2.bf16.msra.mxu0 %v6658
    %7950 = vmatprep.subr.bf16.mxu0 %v6651
    %7951 = vmatpush2.bf16.msra.mxu0 %v6650
    %7952 = vmatprep.subr.bf16.mxu0 %v6643
    %7953 = vmatpush2.bf16.msra.mxu0 %v6642
    %7954 = vmatprep.subr.bf16.mxu0 %v6635
    %7955 = vmatpush2.bf16.msra.mxu0 %v6634
    %7956 = vmatprep.subr.bf16.mxu0 %v6627
    %7957 = vmatpush2.bf16.msra.mxu0 %v6626
    %7958 = vmatprep.mubr.bf16.mxu0 %v4207
    %7959 = vmatmul.mubr.bf16.gmra.mxu0 %v4206
    %v7960 = vpop.f32.mrf.mxu0
    %v7961 = vadd.f32 %v7918, %v7960
    %v7962 = vpop.f32.mrf.mxu0
    %v7963 = vadd.f32 %v7920, %v7962
    %v7964 = vpop.f32.mrf.mxu0
    %v7965 = vadd.f32 %v7922, %v7964
    %v7966 = vpop.f32.mrf.mxu0
    %v7967 = vadd.f32 %v7924, %v7966
    %7968 = vdwg.mxu0
    %7969 = vmatprep.subr.bf16.mxu0 %v6747
    %7970 = vmatpush1.bf16.msra.mxu0 %v6746
    %7971 = vmatprep.subr.bf16.mxu0 %v6739
    %7972 = vmatpush1.bf16.msra.mxu0 %v6738
    %7973 = vmatprep.subr.bf16.mxu0 %v6731
    %7974 = vmatpush1.bf16.msra.mxu0 %v6730
    %7975 = vmatprep.subr.bf16.mxu0 %v6723
    %7976 = vmatpush1.bf16.msra.mxu0 %v6722
    %7977 = vmatprep.subr.bf16.mxu0 %v6715
    %7978 = vmatpush1.bf16.msra.mxu0 %v6714
    %7979 = vmatprep.subr.bf16.mxu0 %v6707
    %7980 = vmatpush1.bf16.msra.mxu0 %v6706
    %7981 = vmatprep.subr.bf16.mxu0 %v6699
    %7982 = vmatpush1.bf16.msra.mxu0 %v6698
    %7983 = vmatprep.subr.bf16.mxu0 %v6691
    %7984 = vmatpush1.bf16.msra.mxu0 %v6690
    %7985 = vmatprep.subr.bf16.mxu0 %v6811
    %7986 = vmatpush2.bf16.msra.mxu0 %v6810
    %7987 = vmatprep.subr.bf16.mxu0 %v6803
    %7988 = vmatpush2.bf16.msra.mxu0 %v6802
    %7989 = vmatprep.subr.bf16.mxu0 %v6795
    %7990 = vmatpush2.bf16.msra.mxu0 %v6794
    %7991 = vmatprep.subr.bf16.mxu0 %v6787
    %7992 = vmatpush2.bf16.msra.mxu0 %v6786
    %7993 = vmatprep.subr.bf16.mxu0 %v6779
    %7994 = vmatpush2.bf16.msra.mxu0 %v6778
    %7995 = vmatprep.subr.bf16.mxu0 %v6771
    %7996 = vmatpush2.bf16.msra.mxu0 %v6770
    %7997 = vmatprep.subr.bf16.mxu0 %v6763
    %7998 = vmatpush2.bf16.msra.mxu0 %v6762
    %7999 = vmatprep.subr.bf16.mxu0 %v6755
    %8000 = vmatpush2.bf16.msra.mxu0 %v6754
    %8001 = vmatprep.mubr.bf16.mxu0 %v4209
    %8002 = vmatmul.mubr.bf16.gmra.mxu0 %v4208
    %v8003 = vpop.f32.mrf.mxu0
    %v8004 = vadd.f32 %v7961, %v8003
    %v8005 = vpop.f32.mrf.mxu0
    %v8006 = vadd.f32 %v7963, %v8005
    %v8007 = vpop.f32.mrf.mxu0
    %v8008 = vadd.f32 %v7965, %v8007
    %v8009 = vpop.f32.mrf.mxu0
    %v8010 = vadd.f32 %v7967, %v8009
    %8011 = vdwg.mxu0
    %vm8012 = vcmp.ge.f32.partialorder %v7488, 0.0
    %vm8013 = vcmp.ge.f32.partialorder %v7490, 0.0
    %vm8014 = vcmp.ge.f32.partialorder %v7660, 0.0
    %vm8015 = vcmp.ge.f32.partialorder %v7662, 0.0
    %vm8016 = vcmp.ge.f32.partialorder %v7832, 0.0
    %vm8017 = vcmp.ge.f32.partialorder %v7834, 0.0
    %vm8018 = vcmp.ge.f32.partialorder %v8004, 0.0
    %vm8019 = vcmp.ge.f32.partialorder %v8006, 0.0
    %vm8020 = vcmp.ge.f32.partialorder %v7492, 0.0
    %vm8021 = vcmp.ge.f32.partialorder %v7494, 0.0
    %vm8022 = vcmp.ge.f32.partialorder %v7664, 0.0
    %vm8023 = vcmp.ge.f32.partialorder %v7666, 0.0
    %vm8024 = vcmp.ge.f32.partialorder %v7836, 0.0
    %vm8025 = vcmp.ge.f32.partialorder %v7838, 0.0
    %vm8026 = vcmp.ge.f32.partialorder %v8008, 0.0
    %vm8027 = vcmp.ge.f32.partialorder %v8010, 0.0
    %v8028 = vmul.f32 %v7488, 0.2
    %v8029 = vmul.f32 %v7490, 0.2
    %v8030 = vmul.f32 %v7660, 0.2
    %v8031 = vmul.f32 %v7662, 0.2
    %v8032 = vmul.f32 %v7832, 0.2
    %v8033 = vmul.f32 %v7834, 0.2
    %v8034 = vmul.f32 %v8004, 0.2
    %v8035 = vmul.f32 %v8006, 0.2
    %v8036 = vmul.f32 %v7492, 0.2
    %v8037 = vmul.f32 %v7494, 0.2
    %v8038 = vmul.f32 %v7664, 0.2
    %v8039 = vmul.f32 %v7666, 0.2
    %v8040 = vmul.f32 %v7836, 0.2
    %v8041 = vmul.f32 %v7838, 0.2
    %v8042 = vmul.f32 %v8008, 0.2
    %v8043 = vmul.f32 %v8010, 0.2
    %v8044 = vsel %vm8012, %v7488, %v8028
    %v8045 = vsel %vm8013, %v7490, %v8029
    %v8046 = vsel %vm8014, %v7660, %v8030
    %v8047 = vsel %vm8015, %v7662, %v8031
    %v8048 = vsel %vm8016, %v7832, %v8032
    %v8049 = vsel %vm8017, %v7834, %v8033
    %v8050 = vsel %vm8018, %v8004, %v8034
    %v8051 = vsel %vm8019, %v8006, %v8035
    %v8052 = vsel %vm8020, %v7492, %v8036
    %v8053 = vsel %vm8021, %v7494, %v8037
    %v8054 = vsel %vm8022, %v7664, %v8038
    %v8055 = vsel %vm8023, %v7666, %v8039
    %v8056 = vsel %vm8024, %v7836, %v8040
    %v8057 = vsel %vm8025, %v7838, %v8041
    %v8058 = vsel %vm8026, %v8008, %v8042
    %v8059 = vsel %vm8027, %v8010, %v8043
    %v8060 = vlaneseq
    %v8061 = vshrl.u32 %v8060, 7
    %v8062 = vadd.s32 %v8061, 8
    %vm8063 = vcmp.lt.s32.totalorder %v8061, 12
    %vm8064 = vcmp.lt.s32.totalorder %v8062, 12
    %v8065 = vsel %vm8063, %v8044, 0.0
    %v8066 = vsel %vm8063, %v8045, 0.0
    %v8067 = vsel %vm8063, %v8046, 0.0
    %v8068 = vsel %vm8063, %v8047, 0.0
    %v8069 = vsel %vm8063, %v8048, 0.0
    %v8070 = vsel %vm8063, %v8049, 0.0
    %v8071 = vsel %vm8063, %v8050, 0.0
    %v8072 = vsel %vm8063, %v8051, 0.0
    %v8073 = vsel %vm8064, %v8052, 0.0
    %v8074 = vsel %vm8064, %v8053, 0.0
    %v8075 = vsel %vm8064, %v8054, 0.0
    %v8076 = vsel %vm8064, %v8055, 0.0
    %v8077 = vsel %vm8064, %v8056, 0.0
    %v8078 = vsel %vm8064, %v8057, 0.0
    %v8079 = vsel %vm8064, %v8058, 0.0
    %v8080 = vsel %vm8064, %v8059, 0.0
    %v8081 = vadd.f32 %v8065, %v8073
    %v8082 = vrot.slane %v8081, 4
    %v8083 = vadd.f32 %v8081, %v8082
    %v8084 = vrot.slane %v8083, 2
    %v8085 = vadd.f32 %v8083, %v8084
    %v8086 = vrot.slane %v8085, 1
    %v8087 = vadd.f32 %v8085, %v8086
    %v8088 = vadd.f32 %v8066, %v8074
    %v8089 = vrot.slane %v8088, 4
    %v8090 = vadd.f32 %v8088, %v8089
    %v8091 = vrot.slane %v8090, 2
    %v8092 = vadd.f32 %v8090, %v8091
    %v8093 = vrot.slane %v8092, 1
    %v8094 = vadd.f32 %v8092, %v8093
    %v8095 = vadd.f32 %v8067, %v8075
    %v8096 = vrot.slane %v8095, 4
    %v8097 = vadd.f32 %v8095, %v8096
    %v8098 = vrot.slane %v8097, 2
    %v8099 = vadd.f32 %v8097, %v8098
    %v8100 = vrot.slane %v8099, 1
    %v8101 = vadd.f32 %v8099, %v8100
    %v8102 = vadd.f32 %v8068, %v8076
    %v8103 = vrot.slane %v8102, 4
    %v8104 = vadd.f32 %v8102, %v8103
    %v8105 = vrot.slane %v8104, 2
    %v8106 = vadd.f32 %v8104, %v8105
    %v8107 = vrot.slane %v8106, 1
    %v8108 = vadd.f32 %v8106, %v8107
    %v8109 = vadd.f32 %v8069, %v8077
    %v8110 = vrot.slane %v8109, 4
    %v8111 = vadd.f32 %v8109, %v8110
    %v8112 = vrot.slane %v8111, 2
    %v8113 = vadd.f32 %v8111, %v8112
    %v8114 = vrot.slane %v8113, 1
    %v8115 = vadd.f32 %v8113, %v8114
    %v8116 = vadd.f32 %v8070, %v8078
    %v8117 = vrot.slane %v8116, 4
    %v8118 = vadd.f32 %v8116, %v8117
    %v8119 = vrot.slane %v8118, 2
    %v8120 = vadd.f32 %v8118, %v8119
    %v8121 = vrot.slane %v8120, 1
    %v8122 = vadd.f32 %v8120, %v8121
    %v8123 = vadd.f32 %v8071, %v8079
    %v8124 = vrot.slane %v8123, 4
    %v8125 = vadd.f32 %v8123, %v8124
    %v8126 = vrot.slane %v8125, 2
    %v8127 = vadd.f32 %v8125, %v8126
    %v8128 = vrot.slane %v8127, 1
    %v8129 = vadd.f32 %v8127, %v8128
    %v8130 = vadd.f32 %v8072, %v8080
    %v8131 = vrot.slane %v8130, 4
    %v8132 = vadd.f32 %v8130, %v8131
    %v8133 = vrot.slane %v8132, 2
    %v8134 = vadd.f32 %v8132, %v8133
    %v8135 = vrot.slane %v8134, 1
    %v8136 = vadd.f32 %v8134, %v8135
    %v8137 = vmul.f32 %v8087, 0.083333336
    %v8138 = vmul.f32 %v8094, 0.083333336
    %v8139 = vmul.f32 %v8101, 0.083333336
    %v8140 = vmul.f32 %v8108, 0.083333336
    %v8141 = vmul.f32 %v8115, 0.083333336
    %v8142 = vmul.f32 %v8122, 0.083333336
    %v8143 = vmul.f32 %v8129, 0.083333336
    %v8144 = vmul.f32 %v8136, 0.083333336
    %v8153 = vcombine.low %v8137, %v8138
    %v8154 = vcombine.low %v8139, %v8140
    %v8155 = vcombine.low %v8141, %v8142
    %v8156 = vcombine.low %v8143, %v8144
    %v8158 = vunpack.c.l.s4 1966171168
    %v8159 = vunpack.c.0.s8 %v8158
    %v8160 = vlaneseq
    %v8161 = vshrl.u32 %v8160, 7
    %v8162 = vsub.s32 %v8159, %v8161
    %v8163 = vrot.slane %v8153, %v8162
    %v8165 = vunpack.c.l.s4 1966171168
    %v8166 = vunpack.c.0.s8 %v8165
    %v8167 = vlaneseq
    %v8168 = vshrl.u32 %v8167, 7
    %v8169 = vsub.s32 %v8166, %v8168
    %v8170 = vrot.slane %v8154, %v8169
    %v8172 = vunpack.c.l.s4 1966171168
    %v8173 = vunpack.c.0.s8 %v8172
    %v8174 = vlaneseq
    %v8175 = vshrl.u32 %v8174, 7
    %v8176 = vsub.s32 %v8173, %v8175
    %v8177 = vrot.slane %v8155, %v8176
    %v8179 = vunpack.c.l.s4 1966171168
    %v8180 = vunpack.c.0.s8 %v8179
    %v8181 = vlaneseq
    %v8182 = vshrl.u32 %v8181, 7
    %v8183 = vsub.s32 %v8180, %v8182
    %v8184 = vrot.slane %v8156, %v8183
    %v8185 = vcombine.low %v8163, %v8170
    %v8186 = vcombine.low %v8177, %v8184
    %v8188 = vunpack.c.l.s4 1966171168
    %v8189 = vunpack.c.0.s8 %v8188
    %v8190 = vlaneseq
    %v8191 = vshrl.u32 %v8190, 7
    %v8192 = vsub.s32 %v8189, %v8191
    %v8193 = vrot.slane %v8185, %v8192
    %v8195 = vunpack.c.l.s4 1966171168
    %v8196 = vunpack.c.0.s8 %v8195
    %v8197 = vlaneseq
    %v8198 = vshrl.u32 %v8197, 7
    %v8199 = vsub.s32 %v8196, %v8198
    %v8200 = vrot.slane %v8186, %v8199
    %v8201 = vcombine.low %v8193, %v8200
    %8203 = vst [vmem:[#allocation11] sm:$0xff] %v8201
    // Predicated region
    $region42: #{encoder1_forward.1} parent=1 // pred_check
      _
    $region43: #{encoder1_forward.1} parent=1 // pred_check_branch
      %8205 = sbr.rel (0) target = $region45
    $region44: #{encoder1_forward.1} parent=1 // pred_region
      %s8207 = ssub.s32 128, 128
      %8208 = vsyncadd [#allocation4], %s8207
      %s8210 = sshll.u32 [#allocation11], 4
      %s8211 = int_to_ptr.vmem [resolvable:$true] %s8210
      %8213 = dma.vmem_to_hbm [thread:$0]  %s8211, 128, %s5, [#allocation4]
    $region45: #{encoder1_forward.1} parent=1 // pred_fallthru
      _
    // Predicated region
    $region46: #{encoder1_forward.1} parent=1 // pred_check
      _
    $region47: #{encoder1_forward.1} parent=1 // pred_check_branch
      %8215 = sbr.rel (0) target = $region49
    $region48: #{encoder1_forward.1} parent=1 // pred_region
      %8216 = dma.done [#allocation4], 128
    $region49: #{encoder1_forward.1} parent=1 // pred_fallthru
      _
    %8217 = vsyncpa [#allocation3], 1
    %8218 = vsyncpa [#allocation6], 1
    %8219 = vsyncpa [#allocation9], 1
    %8220 = vsyncpa [#allocation4], 1

</llo_original>
